<compile_context>
chip_gen: v6e
topology: v6e:2x2x1
jax: 0.10.0
libtpu: 0.0.40
codegen_flags: <defaults>
</compile_context>

<pallas_src>
import jax
import jax.numpy as jnp
from jax.experimental import pallas as pl
from jax.experimental.pallas import tpu as pltpu


# ----------------------------------------------------------------------------
# Kernel 1: fused (im2col-matmul) + folded-BN shift, then ReLU.
# A: (tm, K) row tile of im2col patches (f32, cast to bf16 in-kernel),
# B: (K, Cout) BN-scale-folded conv weight (bf16), shift: (1, Cout) f32.
# ----------------------------------------------------------------------------
def _matmul_shift_relu_kernel(a_ref, b_ref, t_ref, o_ref):
    acc = jnp.dot(a_ref[...].astype(jnp.bfloat16), b_ref[...],
                  preferred_element_type=jnp.float32)
    o_ref[...] = jnp.maximum(acc + t_ref[...], 0.0)


def _pick_tm(m, cap=512):
    """Largest tm <= cap that is a multiple of 8, divides M, and gives >= 2
    grid steps (so v7x's two TensorCores both get work)."""
    best = m
    for tm in range(8, min(m, cap) + 1, 8):
        if m % tm == 0 and m // tm >= 2:
            best = tm
    return best


def fused_matmul_shift_relu(a, b_bf16, shift):
    M, K = a.shape
    Kb, Nc = b_bf16.shape
    assert K == Kb
    assert M % 8 == 0, f"M={M} must be a multiple of 8"
    tm = _pick_tm(M)
    return pl.pallas_call(
        _matmul_shift_relu_kernel,
        out_shape=jax.ShapeDtypeStruct((M, Nc), jnp.float32),
        grid_spec=pltpu.PrefetchScalarGridSpec(
            num_scalar_prefetch=0,
            grid=(M // tm,),
            in_specs=[
                pl.BlockSpec((tm, K), lambda i: (i, 0)),
                pl.BlockSpec((K, Nc), lambda i: (0, 0)),
                pl.BlockSpec((1, Nc), lambda i: (0, 0)),
            ],
            out_specs=pl.BlockSpec((tm, Nc), lambda i: (i, 0)),
        ),
        compiler_params=pltpu.CompilerParams(
            dimension_semantics=("parallel",)),
    )(a, b_bf16, shift.reshape(1, Nc))


# ----------------------------------------------------------------------------
# Kernel 2: conv4+BN4+ReLU4 matmul fused with adaptive-avg-pool + fc1 + fc.
# Pooling is computed as pool_mat (N, M4) @ feat (M4, 512); the 1/S factor is
# pre-folded into fc1's weight on the host so pool_mat entries are exactly 1.
# ----------------------------------------------------------------------------
def _layer4_head_kernel(a_ref, w_ref, t_ref, pool_ref,
                        w1_ref, b1_ref, w2_ref, b2_ref, o_ref):
    feat = jnp.maximum(
        jnp.dot(a_ref[...].astype(jnp.bfloat16), w_ref[...],
                preferred_element_type=jnp.float32) + t_ref[...], 0.0)
    pooled = jnp.dot(pool_ref[...], feat.astype(jnp.bfloat16),
                     preferred_element_type=jnp.float32)        # per-sample sums
    h = jnp.dot(pooled.astype(jnp.bfloat16), w1_ref[...],
                preferred_element_type=jnp.float32) + b1_ref[...]
    o_ref[...] = jnp.dot(h.astype(jnp.bfloat16), w2_ref[...],
                         preferred_element_type=jnp.float32) + b2_ref[...]


def layer4_head(a4, w4_bf16, shift4, pool_bf16, w1_bf16, b1, w2_bf16, b2):
    M4, K4 = a4.shape
    _, C4 = w4_bf16.shape
    N = pool_bf16.shape[0]
    H1 = w1_bf16.shape[1]
    O = w2_bf16.shape[1]
    return pl.pallas_call(
        _layer4_head_kernel,
        out_shape=jax.ShapeDtypeStruct((N, O), jnp.float32),
        grid=(1,),
        in_specs=[
            pl.BlockSpec((M4, K4), lambda i: (0, 0)),
            pl.BlockSpec((K4, C4), lambda i: (0, 0)),
            pl.BlockSpec((1, C4), lambda i: (0, 0)),
            pl.BlockSpec((N, M4), lambda i: (0, 0)),
            pl.BlockSpec((C4, H1), lambda i: (0, 0)),
            pl.BlockSpec((1, H1), lambda i: (0, 0)),
            pl.BlockSpec((H1, O), lambda i: (0, 0)),
            pl.BlockSpec((1, O), lambda i: (0, 0)),
        ],
        out_specs=pl.BlockSpec((N, O), lambda i: (0, 0)),
        compiler_params=pltpu.CompilerParams(
            dimension_semantics=("arbitrary",)),
    )(a4, w4_bf16, shift4.reshape(1, C4), pool_bf16,
      w1_bf16, b1.reshape(1, H1), w2_bf16, b2.reshape(1, O))


# ----------------------------------------------------------------------------
# Plain-JAX glue: im2col patch extraction (NHWC) and BN-into-conv folding.
# ----------------------------------------------------------------------------
def im2col(x, kh, kw, stride):
    N, H, W, C = x.shape
    Ho = (H - kh) // stride + 1
    Wo = (W - kw) // stride + 1
    cols = []
    for i in range(kh):
        for j in range(kw):
            cols.append(x[:, i:i + stride * Ho:stride,
                          j:j + stride * Wo:stride, :])
    p = jnp.concatenate(cols, axis=-1)          # (N, Ho, Wo, kh*kw*C), tap-major
    return p.reshape(N * Ho * Wo, kh * kw * C), Ho, Wo


def fold_bn(w, b, gamma, beta, mean, var, eps=1e-5):
    """Fold inference-mode BN into the conv weight/bias; returns bf16 weight
    matrix (kh*kw*Cin, Cout) and f32 shift (Cout,)."""
    Cout, Cin, kh, kw = w.shape
    bmat = jnp.transpose(w, (2, 3, 1, 0)).reshape(kh * kw * Cin, Cout)
    scale = gamma / jnp.sqrt(var + eps)
    shift = (b - mean) * scale + beta
    bmat = (bmat * scale[None, :]).astype(jnp.bfloat16)
    return bmat, shift


def conv_bn_relu(x_nhwc, w, b, gamma, beta, mean, var, stride):
    Cout = w.shape[0]
    a, Ho, Wo = im2col(x_nhwc, w.shape[2], w.shape[3], stride)
    bmat, shift = fold_bn(w, b, gamma, beta, mean, var)
    out = fused_matmul_shift_relu(a, bmat, shift)
    N = x_nhwc.shape[0]
    return out.reshape(N, Ho, Wo, Cout)


# ----------------------------------------------------------------------------
# Deterministic parameter construction (shapes from MyNet.__init__).
# ----------------------------------------------------------------------------
def init_params(key):
    keys = iter(jax.random.split(key, 32))

    def conv_block(cout, cin, k):
        fan_in = cin * k * k
        w = jax.random.normal(next(keys), (cout, cin, k, k), jnp.float32) / jnp.sqrt(fan_in)
        b = 0.01 * jax.random.normal(next(keys), (cout,), jnp.float32)
        gamma = 1.0 + 0.1 * jax.random.normal(next(keys), (cout,), jnp.float32)
        beta = 0.05 * jax.random.normal(next(keys), (cout,), jnp.float32)
        mean = 0.1 * jax.random.normal(next(keys), (cout,), jnp.float32)
        var = 0.5 + jax.random.uniform(next(keys), (cout,), jnp.float32)
        return (w, b, gamma, beta, mean, var)

    params = {
        "layer1": conv_block(32, 3, 3),
        "layer2": conv_block(128, 32, 3),
        "layer3": conv_block(256, 128, 3),
        "layer4": conv_block(512, 256, 3),
        # fc1: Linear(512, 32); fc: Linear(32, 10)  (stored as (in, out))
        "fc1_w": jax.random.normal(next(keys), (512, 32), jnp.float32) / jnp.sqrt(512.0),
        "fc1_b": 0.01 * jax.random.normal(next(keys), (32,), jnp.float32),
        "fc_w": jax.random.normal(next(keys), (32, 10), jnp.float32) / jnp.sqrt(32.0),
        "fc_b": 0.01 * jax.random.normal(next(keys), (10,), jnp.float32),
    }
    return params


@jax.jit
def mynet_forward(x_nchw, params):
    x = jnp.transpose(x_nchw, (0, 2, 3, 1))                 # NCHW -> NHWC
    x = conv_bn_relu(x, *params["layer1"], stride=1)        # (N, 30, 30, 32)
    x = conv_bn_relu(x, *params["layer2"], stride=2)        # (N, 14, 14, 128)
    x = conv_bn_relu(x, *params["layer3"], stride=1)        # (N, 12, 12, 256)

    # Layer 4 + avgpool + fc1 + fc fused into a single pallas_call.
    w4, b4, g4, be4, m4, v4 = params["layer4"]
    a4, Ho, Wo = im2col(x, 3, 3, 1)                         # (N*10*10, 2304)
    bmat4, shift4 = fold_bn(w4, b4, g4, be4, m4, v4)
    N = x.shape[0]
    S = Ho * Wo
    # 0/1 block pooling matrix (exact in bf16); 1/S folded into fc1's weight.
    pool = jnp.repeat(jnp.eye(N, dtype=jnp.float32), S, axis=1).astype(jnp.bfloat16)
    w1 = (params["fc1_w"] / float(S)).astype(jnp.bfloat16)
    w2 = params["fc_w"].astype(jnp.bfloat16)
    return layer4_head(a4, bmat4, shift4, pool,
                       w1, params["fc1_b"], w2, params["fc_b"])  # (N, 10)


if __name__ == "__main__":
    key = jax.random.PRNGKey(0)
    k_x, k_p = jax.random.split(key)
    # CIFAR-10 sized input, small batch.
    x = jax.random.normal(k_x, (2, 3, 32, 32), jnp.float32)
    params = init_params(k_p)

    out = mynet_forward(x, params)
    out = jax.block_until_ready(out)

    assert out.shape == (2, 10), out.shape
    assert bool(jnp.all(jnp.isfinite(out)))
    print("KERNEL_OK")
</pallas_src>

<mosaic_0001>
module attributes {stable_mosaic.version = 11 : i64} {
  func.func @_matmul_shift_relu_kernel(%arg0: i32, %arg1: memref<360x27xf32, #tpu.memory_space<vmem>>, %arg2: memref<27x32xbf16, #tpu.memory_space<vmem>>, %arg3: memref<1x32xf32, #tpu.memory_space<vmem>>, %arg4: memref<360x32xf32, #tpu.memory_space<vmem>>) attributes {dimension_semantics = [#tpu.dimension_semantics<parallel>], iteration_bounds = array<i64: 5>, scalar_prefetch = 0 : i64, scratch_operands = 0 : i64, tpu.core_type = #tpu.core_type<tc>, window_params = [{transform_indices = @transform_0, window_bounds = array<i64: 360, 27>}, {pipeline_mode = #tpu.pipeline_mode<synchronous>, transform_indices = @transform_1, window_bounds = array<i64: 27, 32>}, {pipeline_mode = #tpu.pipeline_mode<synchronous>, transform_indices = @transform_2, window_bounds = array<i64: 1, 32>}, {transform_indices = @transform_3, window_bounds = array<i64: 360, 32>}]} {
    %c0 = arith.constant 0 : index
    %c0_0 = arith.constant 0 : index
    %0 = vector.load %arg1[%c0, %c0_0] : memref<360x27xf32, #tpu.memory_space<vmem>>, vector<360x27xf32>
    %1 = arith.truncf %0 : vector<360x27xf32> to vector<360x27xbf16>
    %c0_1 = arith.constant 0 : index
    %c0_2 = arith.constant 0 : index
    %2 = vector.load %arg2[%c0_1, %c0_2] : memref<27x32xbf16, #tpu.memory_space<vmem>>, vector<27x32xbf16>
    %cst = arith.constant dense<0.000000e+00> : vector<360x32xf32>
    %3 = tpu.matmul %1, %2, %cst {dimension_numbers = #tpu.dot_dimension_numbers<[1], [0], [0], [1], [0, 0, 1, 1], [], []>} : vector<360x27xbf16>, vector<27x32xbf16>, vector<360x32xf32> -> vector<360x32xf32>
    %c0_3 = arith.constant 0 : index
    %c0_4 = arith.constant 0 : index
    %4 = vector.load %arg3[%c0_3, %c0_4] : memref<1x32xf32, #tpu.memory_space<vmem>>, vector<1x32xf32>
    %5 = vector.broadcast %4 : vector<1x32xf32> to vector<360x32xf32>
    %6 = arith.addf %3, %5 : vector<360x32xf32>
    %cst_5 = arith.constant 0.000000e+00 : f32
    %7 = vector.broadcast %cst_5 : f32 to vector<360x32xf32>
    %8 = arith.maximumf %6, %7 : vector<360x32xf32>
    %c0_6 = arith.constant 0 : index
    %c0_7 = arith.constant 0 : index
    %9 = vector.load %arg4[%c0_6, %c0_7] : memref<360x32xf32, #tpu.memory_space<vmem>>, vector<360x32xf32>
    tpu.vector_store %arg4[%c0_6, %c0_7], %8 {strides = array<i32>} : memref<360x32xf32, #tpu.memory_space<vmem>>, vector<360x32xf32>,
    return
  }
  func.func @transform_0(%arg0: i32) -> (i32, i32) {
    %c0_i32 = arith.constant 0 : i32
    %c0_i32_0 = arith.constant 0 : i32
    return %arg0, %c0_i32 : i32, i32
  }
  func.func @transform_1(%arg0: i32) -> (i32, i32) {
    %c0_i32 = arith.constant 0 : i32
    %c0_i32_0 = arith.constant 0 : i32
    %c0_i32_1 = arith.constant 0 : i32
    return %c0_i32, %c0_i32_0 : i32, i32
  }
  func.func @transform_2(%arg0: i32) -> (i32, i32) {
    %c0_i32 = arith.constant 0 : i32
    %c0_i32_0 = arith.constant 0 : i32
    %c0_i32_1 = arith.constant 0 : i32
    return %c0_i32, %c0_i32_0 : i32, i32
  }
  func.func @transform_3(%arg0: i32) -> (i32, i32) {
    %c0_i32 = arith.constant 0 : i32
    %c0_i32_0 = arith.constant 0 : i32
    return %arg0, %c0_i32 : i32, i32
  }
}

module attributes {stable_mosaic.version = 11 : i64} {
  func.func @_matmul_shift_relu_kernel(%arg0: i32, %arg1: memref<56x288xf32, #tpu.memory_space<vmem>>, %arg2: memref<288x128xbf16, #tpu.memory_space<vmem>>, %arg3: memref<1x128xf32, #tpu.memory_space<vmem>>, %arg4: memref<56x128xf32, #tpu.memory_space<vmem>>) attributes {dimension_semantics = [#tpu.dimension_semantics<parallel>], iteration_bounds = array<i64: 7>, scalar_prefetch = 0 : i64, scratch_operands = 0 : i64, tpu.core_type = #tpu.core_type<tc>, window_params = [{transform_indices = @transform_0, window_bounds = array<i64: 56, 288>}, {pipeline_mode = #tpu.pipeline_mode<synchronous>, transform_indices = @transform_1, window_bounds = array<i64: 288, 128>}, {pipeline_mode = #tpu.pipeline_mode<synchronous>, transform_indices = @transform_2, window_bounds = array<i64: 1, 128>}, {transform_indices = @transform_3, window_bounds = array<i64: 56, 128>}]} {
    %c0 = arith.constant 0 : index
    %c0_0 = arith.constant 0 : index
    %0 = vector.load %arg1[%c0, %c0_0] : memref<56x288xf32, #tpu.memory_space<vmem>>, vector<56x288xf32>
    %1 = arith.truncf %0 : vector<56x288xf32> to vector<56x288xbf16>
    %c0_1 = arith.constant 0 : index
    %c0_2 = arith.constant 0 : index
    %2 = vector.load %arg2[%c0_1, %c0_2] : memref<288x128xbf16, #tpu.memory_space<vmem>>, vector<288x128xbf16>
    %cst = arith.constant dense<0.000000e+00> : vector<56x128xf32>
    %3 = tpu.matmul %1, %2, %cst {dimension_numbers = #tpu.dot_dimension_numbers<[1], [0], [0], [1], [0, 0, 1, 1], [], []>} : vector<56x288xbf16>, vector<288x128xbf16>, vector<56x128xf32> -> vector<56x128xf32>
    %c0_3 = arith.constant 0 : index
    %c0_4 = arith.constant 0 : index
    %4 = vector.load %arg3[%c0_3, %c0_4] : memref<1x128xf32, #tpu.memory_space<vmem>>, vector<1x128xf32>
    %5 = vector.broadcast %4 : vector<1x128xf32> to vector<56x128xf32>
    %6 = arith.addf %3, %5 : vector<56x128xf32>
    %cst_5 = arith.constant 0.000000e+00 : f32
    %7 = vector.broadcast %cst_5 : f32 to vector<56x128xf32>
    %8 = arith.maximumf %6, %7 : vector<56x128xf32>
    %c0_6 = arith.constant 0 : index
    %c0_7 = arith.constant 0 : index
    %9 = vector.load %arg4[%c0_6, %c0_7] : memref<56x128xf32, #tpu.memory_space<vmem>>, vector<56x128xf32>
    tpu.vector_store %arg4[%c0_6, %c0_7], %8 {strides = array<i32>} : memref<56x128xf32, #tpu.memory_space<vmem>>, vector<56x128xf32>,
    return
  }
  func.func @transform_0(%arg0: i32) -> (i32, i32) {
    %c0_i32 = arith.constant 0 : i32
    %c0_i32_0 = arith.constant 0 : i32
    return %arg0, %c0_i32 : i32, i32
  }
  func.func @transform_1(%arg0: i32) -> (i32, i32) {
    %c0_i32 = arith.constant 0 : i32
    %c0_i32_0 = arith.constant 0 : i32
    %c0_i32_1 = arith.constant 0 : i32
    return %c0_i32, %c0_i32_0 : i32, i32
  }
  func.func @transform_2(%arg0: i32) -> (i32, i32) {
    %c0_i32 = arith.constant 0 : i32
    %c0_i32_0 = arith.constant 0 : i32
    %c0_i32_1 = arith.constant 0 : i32
    return %c0_i32, %c0_i32_0 : i32, i32
  }
  func.func @transform_3(%arg0: i32) -> (i32, i32) {
    %c0_i32 = arith.constant 0 : i32
    %c0_i32_0 = arith.constant 0 : i32
    return %arg0, %c0_i32 : i32, i32
  }
}

module attributes {stable_mosaic.version = 11 : i64} {
  func.func @_matmul_shift_relu_kernel(%arg0: i32, %arg1: memref<144x1152xf32, #tpu.memory_space<vmem>>, %arg2: memref<1152x256xbf16, #tpu.memory_space<vmem>>, %arg3: memref<1x256xf32, #tpu.memory_space<vmem>>, %arg4: memref<144x256xf32, #tpu.memory_space<vmem>>) attributes {dimension_semantics = [#tpu.dimension_semantics<parallel>], iteration_bounds = array<i64: 2>, scalar_prefetch = 0 : i64, scratch_operands = 0 : i64, tpu.core_type = #tpu.core_type<tc>, window_params = [{transform_indices = @transform_0, window_bounds = array<i64: 144, 1152>}, {pipeline_mode = #tpu.pipeline_mode<synchronous>, transform_indices = @transform_1, window_bounds = array<i64: 1152, 256>}, {pipeline_mode = #tpu.pipeline_mode<synchronous>, transform_indices = @transform_2, window_bounds = array<i64: 1, 256>}, {transform_indices = @transform_3, window_bounds = array<i64: 144, 256>}]} {
    %c0 = arith.constant 0 : index
    %c0_0 = arith.constant 0 : index
    %0 = vector.load %arg1[%c0, %c0_0] : memref<144x1152xf32, #tpu.memory_space<vmem>>, vector<144x1152xf32>
    %1 = arith.truncf %0 : vector<144x1152xf32> to vector<144x1152xbf16>
    %c0_1 = arith.constant 0 : index
    %c0_2 = arith.constant 0 : index
    %2 = vector.load %arg2[%c0_1, %c0_2] : memref<1152x256xbf16, #tpu.memory_space<vmem>>, vector<1152x256xbf16>
    %cst = arith.constant dense<0.000000e+00> : vector<144x256xf32>
    %3 = tpu.matmul %1, %2, %cst {dimension_numbers = #tpu.dot_dimension_numbers<[1], [0], [0], [1], [0, 0, 1, 1], [], []>} : vector<144x1152xbf16>, vector<1152x256xbf16>, vector<144x256xf32> -> vector<144x256xf32>
    %c0_3 = arith.constant 0 : index
    %c0_4 = arith.constant 0 : index
    %4 = vector.load %arg3[%c0_3, %c0_4] : memref<1x256xf32, #tpu.memory_space<vmem>>, vector<1x256xf32>
    %5 = vector.broadcast %4 : vector<1x256xf32> to vector<144x256xf32>
    %6 = arith.addf %3, %5 : vector<144x256xf32>
    %cst_5 = arith.constant 0.000000e+00 : f32
    %7 = vector.broadcast %cst_5 : f32 to vector<144x256xf32>
    %8 = arith.maximumf %6, %7 : vector<144x256xf32>
    %c0_6 = arith.constant 0 : index
    %c0_7 = arith.constant 0 : index
    %9 = vector.load %arg4[%c0_6, %c0_7] : memref<144x256xf32, #tpu.memory_space<vmem>>, vector<144x256xf32>
    tpu.vector_store %arg4[%c0_6, %c0_7], %8 {strides = array<i32>} : memref<144x256xf32, #tpu.memory_space<vmem>>, vector<144x256xf32>,
    return
  }
  func.func @transform_0(%arg0: i32) -> (i32, i32) {
    %c0_i32 = arith.constant 0 : i32
    %c0_i32_0 = arith.constant 0 : i32
    return %arg0, %c0_i32 : i32, i32
  }
  func.func @transform_1(%arg0: i32) -> (i32, i32) {
    %c0_i32 = arith.constant 0 : i32
    %c0_i32_0 = arith.constant 0 : i32
    %c0_i32_1 = arith.constant 0 : i32
    return %c0_i32, %c0_i32_0 : i32, i32
  }
  func.func @transform_2(%arg0: i32) -> (i32, i32) {
    %c0_i32 = arith.constant 0 : i32
    %c0_i32_0 = arith.constant 0 : i32
    %c0_i32_1 = arith.constant 0 : i32
    return %c0_i32, %c0_i32_0 : i32, i32
  }
  func.func @transform_3(%arg0: i32) -> (i32, i32) {
    %c0_i32 = arith.constant 0 : i32
    %c0_i32_0 = arith.constant 0 : i32
    return %arg0, %c0_i32 : i32, i32
  }
}

module attributes {stable_mosaic.version = 11 : i64} {
  func.func @_layer4_head_kernel(%arg0: i32, %arg1: memref<200x2304xf32, #tpu.memory_space<vmem>>, %arg2: memref<2304x512xbf16, #tpu.memory_space<vmem>>, %arg3: memref<1x512xf32, #tpu.memory_space<vmem>>, %arg4: memref<2x200xbf16, #tpu.memory_space<vmem>>, %arg5: memref<512x32xbf16, #tpu.memory_space<vmem>>, %arg6: memref<1x32xf32, #tpu.memory_space<vmem>>, %arg7: memref<32x10xbf16, #tpu.memory_space<vmem>>, %arg8: memref<1x10xf32, #tpu.memory_space<vmem>>, %arg9: memref<2x10xf32, #tpu.memory_space<vmem>>) attributes {dimension_semantics = [#tpu.dimension_semantics<arbitrary>], iteration_bounds = array<i64: 1>, scalar_prefetch = 0 : i64, scratch_operands = 0 : i64, tpu.core_type = #tpu.core_type<tc>, window_params = [{pipeline_mode = #tpu.pipeline_mode<synchronous>, transform_indices = @transform_0, window_bounds = array<i64: 200, 2304>}, {pipeline_mode = #tpu.pipeline_mode<synchronous>, transform_indices = @transform_1, window_bounds = array<i64: 2304, 512>}, {pipeline_mode = #tpu.pipeline_mode<synchronous>, transform_indices = @transform_2, window_bounds = array<i64: 1, 512>}, {pipeline_mode = #tpu.pipeline_mode<synchronous>, transform_indices = @transform_3, window_bounds = array<i64: 2, 200>}, {pipeline_mode = #tpu.pipeline_mode<synchronous>, transform_indices = @transform_4, window_bounds = array<i64: 512, 32>}, {pipeline_mode = #tpu.pipeline_mode<synchronous>, transform_indices = @transform_5, window_bounds = array<i64: 1, 32>}, {pipeline_mode = #tpu.pipeline_mode<synchronous>, transform_indices = @transform_6, window_bounds = array<i64: 32, 10>}, {pipeline_mode = #tpu.pipeline_mode<synchronous>, transform_indices = @transform_7, window_bounds = array<i64: 1, 10>}, {pipeline_mode = #tpu.pipeline_mode<synchronous>, transform_indices = @transform_8, window_bounds = array<i64: 2, 10>}]} {
    %c0 = arith.constant 0 : index
    %c0_0 = arith.constant 0 : index
    %0 = vector.load %arg1[%c0, %c0_0] : memref<200x2304xf32, #tpu.memory_space<vmem>>, vector<200x2304xf32>
    %1 = arith.truncf %0 : vector<200x2304xf32> to vector<200x2304xbf16>
    %c0_1 = arith.constant 0 : index
    %c0_2 = arith.constant 0 : index
    %2 = vector.load %arg2[%c0_1, %c0_2] : memref<2304x512xbf16, #tpu.memory_space<vmem>>, vector<2304x512xbf16>
    %cst = arith.constant dense<0.000000e+00> : vector<200x512xf32>
    %3 = tpu.matmul %1, %2, %cst {dimension_numbers = #tpu.dot_dimension_numbers<[1], [0], [0], [1], [0, 0, 1, 1], [], []>} : vector<200x2304xbf16>, vector<2304x512xbf16>, vector<200x512xf32> -> vector<200x512xf32>
    %c0_3 = arith.constant 0 : index
    %c0_4 = arith.constant 0 : index
    %4 = vector.load %arg3[%c0_3, %c0_4] : memref<1x512xf32, #tpu.memory_space<vmem>>, vector<1x512xf32>
    %5 = vector.broadcast %4 : vector<1x512xf32> to vector<200x512xf32>
    %6 = arith.addf %3, %5 : vector<200x512xf32>
    %cst_5 = arith.constant 0.000000e+00 : f32
    %7 = vector.broadcast %cst_5 : f32 to vector<200x512xf32>
    %8 = arith.maximumf %6, %7 : vector<200x512xf32>
    %c0_6 = arith.constant 0 : index
    %c0_7 = arith.constant 0 : index
    %9 = vector.load %arg4[%c0_6, %c0_7] : memref<2x200xbf16, #tpu.memory_space<vmem>>, vector<2x200xbf16>
    %10 = arith.truncf %8 : vector<200x512xf32> to vector<200x512xbf16>
    %cst_8 = arith.constant dense<0.000000e+00> : vector<2x512xf32>
    %11 = tpu.matmul %9, %10, %cst_8 {dimension_numbers = #tpu.dot_dimension_numbers<[1], [0], [0], [1], [0, 0, 1, 1], [], []>} : vector<2x200xbf16>, vector<200x512xbf16>, vector<2x512xf32> -> vector<2x512xf32>
    %12 = arith.truncf %11 : vector<2x512xf32> to vector<2x512xbf16>
    %c0_9 = arith.constant 0 : index
    %c0_10 = arith.constant 0 : index
    %13 = vector.load %arg5[%c0_9, %c0_10] : memref<512x32xbf16, #tpu.memory_space<vmem>>, vector<512x32xbf16>
    %cst_11 = arith.constant dense<0.000000e+00> : vector<2x32xf32>
    %14 = tpu.matmul %12, %13, %cst_11 {dimension_numbers = #tpu.dot_dimension_numbers<[1], [0], [0], [1], [0, 0, 1, 1], [], []>} : vector<2x512xbf16>, vector<512x32xbf16>, vector<2x32xf32> -> vector<2x32xf32>
    %c0_12 = arith.constant 0 : index
    %c0_13 = arith.constant 0 : index
    %15 = vector.load %arg6[%c0_12, %c0_13] : memref<1x32xf32, #tpu.memory_space<vmem>>, vector<1x32xf32>
    %16 = vector.broadcast %15 : vector<1x32xf32> to vector<2x32xf32>
    %17 = arith.addf %14, %16 : vector<2x32xf32>
    %18 = arith.truncf %17 : vector<2x32xf32> to vector<2x32xbf16>
    %c0_14 = arith.constant 0 : index
    %c0_15 = arith.constant 0 : index
    %19 = vector.load %arg7[%c0_14, %c0_15] : memref<32x10xbf16, #tpu.memory_space<vmem>>, vector<32x10xbf16>
    %cst_16 = arith.constant dense<0.000000e+00> : vector<2x10xf32>
    %20 = tpu.matmul %18, %19, %cst_16 {dimension_numbers = #tpu.dot_dimension_numbers<[1], [0], [0], [1], [0, 0, 1, 1], [], []>} : vector<2x32xbf16>, vector<32x10xbf16>, vector<2x10xf32> -> vector<2x10xf32>
    %c0_17 = arith.constant 0 : index
    %c0_18 = arith.constant 0 : index
    %21 = vector.load %arg8[%c0_17, %c0_18] : memref<1x10xf32, #tpu.memory_space<vmem>>, vector<1x10xf32>
    %22 = vector.broadcast %21 : vector<1x10xf32> to vector<2x10xf32>
    %23 = arith.addf %20, %22 : vector<2x10xf32>
    %c0_19 = arith.constant 0 : index
    %c0_20 = arith.constant 0 : index
    %24 = vector.load %arg9[%c0_19, %c0_20] : memref<2x10xf32, #tpu.memory_space<vmem>>, vector<2x10xf32>
    tpu.vector_store %arg9[%c0_19, %c0_20], %23 {strides = array<i32>} : memref<2x10xf32, #tpu.memory_space<vmem>>, vector<2x10xf32>,
    return
  }
  func.func @transform_0(%arg0: i32) -> (i32, i32) {
    %c0_i32 = arith.constant 0 : i32
    %c0_i32_0 = arith.constant 0 : i32
    %c0_i32_1 = arith.constant 0 : i32
    return %c0_i32, %c0_i32_0 : i32, i32
  }
  func.func @transform_1(%arg0: i32) -> (i32, i32) {
    %c0_i32 = arith.constant 0 : i32
    %c0_i32_0 = arith.constant 0 : i32
    %c0_i32_1 = arith.constant 0 : i32
    return %c0_i32, %c0_i32_0 : i32, i32
  }
  func.func @transform_2(%arg0: i32) -> (i32, i32) {
    %c0_i32 = arith.constant 0 : i32
    %c0_i32_0 = arith.constant 0 : i32
    %c0_i32_1 = arith.constant 0 : i32
    return %c0_i32, %c0_i32_0 : i32, i32
  }
  func.func @transform_3(%arg0: i32) -> (i32, i32) {
    %c0_i32 = arith.constant 0 : i32
    %c0_i32_0 = arith.constant 0 : i32
    %c0_i32_1 = arith.constant 0 : i32
    return %c0_i32, %c0_i32_0 : i32, i32
  }
  func.func @transform_4(%arg0: i32) -> (i32, i32) {
    %c0_i32 = arith.constant 0 : i32
    %c0_i32_0 = arith.constant 0 : i32
    %c0_i32_1 = arith.constant 0 : i32
    return %c0_i32, %c0_i32_0 : i32, i32
  }
  func.func @transform_5(%arg0: i32) -> (i32, i32) {
    %c0_i32 = arith.constant 0 : i32
    %c0_i32_0 = arith.constant 0 : i32
    %c0_i32_1 = arith.constant 0 : i32
    return %c0_i32, %c0_i32_0 : i32, i32
  }
  func.func @transform_6(%arg0: i32) -> (i32, i32) {
    %c0_i32 = arith.constant 0 : i32
    %c0_i32_0 = arith.constant 0 : i32
    %c0_i32_1 = arith.constant 0 : i32
    return %c0_i32, %c0_i32_0 : i32, i32
  }
  func.func @transform_7(%arg0: i32) -> (i32, i32) {
    %c0_i32 = arith.constant 0 : i32
    %c0_i32_0 = arith.constant 0 : i32
    %c0_i32_1 = arith.constant 0 : i32
    return %c0_i32, %c0_i32_0 : i32, i32
  }
  func.func @transform_8(%arg0: i32) -> (i32, i32) {
    %c0_i32 = arith.constant 0 : i32
    %c0_i32_0 = arith.constant 0 : i32
    %c0_i32_1 = arith.constant 0 : i32
    return %c0_i32, %c0_i32_0 : i32, i32
  }
}

</mosaic_0001>

<llo_original>
// kernel: mynet_forward.4
$region0: #{mynet_forward.4}
  #allocation0 [shape = 'u32[]', space=smem, size = 0x4, offset = 0x4, fixed_abs, tag = 'smem constant byte address 0x4 - core index']
  #allocation1 [shape = 'u32[144,128]{1,0:T(1,128)}', space=vmem, size = 0x12000, scoped, tag = 'internal scratch']
  %s0 = inlined_call_operand.vmem [shape: f32[1800,27], index: 0, kind: input, shape index: {}]
  %s1 = inlined_call_operand.vmem [shape: bf16[27,32], index: 1, kind: input, shape index: {}]
  %s2 = inlined_call_operand.vmem [shape: f32[1,32], index: 2, kind: input, shape index: {}]
  %s3 = inlined_call_operand.vmem [shape: f32[1800,32], index: 3, kind: output, shape index: {}]
  %s4 = sld [smem:[#allocation0]]
  $region45: #{mynet_forward.4} parent=0
    _
  %s6 = ssub.s32 1, %s4
  %s7 = scalar_select 0, %s6, %s4
  loop: start=0, step=1, limit=7
  $region2: #{mynet_forward.4} parent=0 // loop_pre_header
    _
  $region3: #{mynet_forward.4} parent=0 // loop_header
    %s9 = sphi 0, %s13
    %p10 = scmp.ge.s32.totalorder %s9, 7
    %s19 = sphi 0, %s21
    %s22 = sphi 0, %s19
    %s23 = sphi 0, %s22
    %s39 = sphi 0, %s23
    %s43 = sphi 0, %s43
    %s45 = sphi 0, %s43
    %s46 = sphi 0, %s45
    %s60 = sphi 0, %s46
    %s64 = sphi 0, %s64
    %s66 = sphi 0, %s64
    %s67 = sphi 0, %s66
    %s81 = sphi 0, %s67
    %s87 = sphi 0, %s89
    %s90 = sphi 0, %s87
    %s91 = sphi 0, %s90
    %s107 = sphi 0, %s91
  $region4: #{mynet_forward.4} parent=0 // loop_header_branch
    %12 = sbr.rel (%p10) target = $region8
  $region5: #{mynet_forward.4} parent=0 // loop_body
    %s14 = ssub.s32 %s9, 1
    %s15 = ssub.s32 %s9, 2
    %s16 = sadd.s32 %s9, 1
    %s17 = ssub.s32 %s9, %s16
    %p18 = scmp.eq.s32.totalorder %s17, 0
    %s20 = sadd.s32 %s19, 1
    %s21 = scalar_select %p18, %s19, %s20
    %p24 = pneg %p18
    %p25 = scmp.eq.s32.totalorder %s9, 4
    %p26 = por %p24, %p25
    %p27 = scmp.ne.s32.totalorder %s19, %s22
    %p28 = scmp.eq.s32.totalorder %s9, 0
    %p29 = por %p27, %p28
    %p30 = scmp.ne.s32.totalorder %s19, %s22
    %p31 = scmp.eq.s32.totalorder %s14, 4
    %p32 = por %p30, %p31
    %p33 = scmp.ne.s32.totalorder %s22, %s23
    %p34 = scmp.eq.s32.totalorder %s14, 0
    %p35 = por %p33, %p34
    %p36 = scmp.ne.s32.totalorder %s22, %s23
    %p37 = scmp.eq.s32.totalorder %s15, 4
    %p38 = por %p36, %p37
    %p40 = scmp.ne.s32.totalorder %s23, %s39
    %p41 = scmp.eq.s32.totalorder %s15, 0
    %p42 = por %p40, %p41
    %s44 = sadd.s32 %s43, 1
    %p47 = scmp.eq.s32.totalorder %s9, 4
    %p48 = scmp.ne.s32.totalorder %s43, %s45
    %p49 = scmp.eq.s32.totalorder %s9, 0
    %p50 = por %p48, %p49
    %p51 = scmp.ne.s32.totalorder %s43, %s45
    %p52 = scmp.eq.s32.totalorder %s14, 4
    %p53 = por %p51, %p52
    %p54 = scmp.ne.s32.totalorder %s45, %s46
    %p55 = scmp.eq.s32.totalorder %s14, 0
    %p56 = por %p54, %p55
    %p57 = scmp.ne.s32.totalorder %s45, %s46
    %p58 = scmp.eq.s32.totalorder %s15, 4
    %p59 = por %p57, %p58
    %p61 = scmp.ne.s32.totalorder %s46, %s60
    %p62 = scmp.eq.s32.totalorder %s15, 0
    %p63 = por %p61, %p62
    %s65 = sadd.s32 %s64, 1
    %p68 = scmp.eq.s32.totalorder %s9, 4
    %p69 = scmp.ne.s32.totalorder %s64, %s66
    %p70 = scmp.eq.s32.totalorder %s9, 0
    %p71 = por %p69, %p70
    %p72 = scmp.ne.s32.totalorder %s64, %s66
    %p73 = scmp.eq.s32.totalorder %s14, 4
    %p74 = por %p72, %p73
    %p75 = scmp.ne.s32.totalorder %s66, %s67
    %p76 = scmp.eq.s32.totalorder %s14, 0
    %p77 = por %p75, %p76
    %p78 = scmp.ne.s32.totalorder %s66, %s67
    %p79 = scmp.eq.s32.totalorder %s15, 4
    %p80 = por %p78, %p79
    %p82 = scmp.ne.s32.totalorder %s67, %s81
    %p83 = scmp.eq.s32.totalorder %s15, 0
    %p84 = por %p82, %p83
    %s85 = ssub.s32 %s9, %s16
    %p86 = scmp.eq.s32.totalorder %s85, 0
    %s88 = sadd.s32 %s87, 1
    %s89 = scalar_select %p86, %s87, %s88
    %p92 = pneg %p86
    %p93 = scmp.eq.s32.totalorder %s9, 4
    %p94 = por %p92, %p93
    %p95 = scmp.ne.s32.totalorder %s87, %s90
    %p96 = scmp.eq.s32.totalorder %s9, 0
    %p97 = por %p95, %p96
    %p98 = scmp.ne.s32.totalorder %s87, %s90
    %p99 = scmp.eq.s32.totalorder %s14, 4
    %p100 = por %p98, %p99
    %p101 = scmp.ne.s32.totalorder %s90, %s91
    %p102 = scmp.eq.s32.totalorder %s14, 0
    %p103 = por %p101, %p102
    %p104 = scmp.ne.s32.totalorder %s90, %s91
    %p105 = scmp.eq.s32.totalorder %s15, 4
    %p106 = por %p104, %p105
    %p108 = scmp.ne.s32.totalorder %s91, %s107
    %p109 = scmp.eq.s32.totalorder %s15, 0
    %p110 = por %p108, %p109
    %p111 = scmp.le.s32.totalorder 1, %s9
    %p112 = scmp.lt.s32.totalorder %s9, 6
    %p113 = pnand %p111, %p112
    %p114 = pneg %p113
    // Predicated region
    $region9: #{mynet_forward.4} parent=5 // pred_check
      _
    $region10: #{mynet_forward.4} parent=5 // pred_check_branch
      %116 = sbr.rel (%p113) target = $region12
    $region11: #{mynet_forward.4} parent=5 // pred_region
      %s117 = ssub.s32 %s9, 1
      // Predicated region
      $region13: #{mynet_forward.4} parent=11 // pred_check
        %p118 = pneg %p56
      $region14: #{mynet_forward.4} parent=11 // pred_check_branch
        %120 = sbr.rel (%p118) target = $region16
      $region15: #{mynet_forward.4} parent=11 // pred_region
        _
      $region16: #{mynet_forward.4} parent=11 // pred_fallthru
        _
      // Predicated region
      $region17: #{mynet_forward.4} parent=11 // pred_check
        %p121 = pneg %p77
      $region18: #{mynet_forward.4} parent=11 // pred_check_branch
        %123 = sbr.rel (%p121) target = $region20
      $region19: #{mynet_forward.4} parent=11 // pred_region
        _
      $region20: #{mynet_forward.4} parent=11 // pred_fallthru
        _
    $region12: #{mynet_forward.4} parent=5 // pred_fallthru
      _
    %p124 = scmp.lt.s32.totalorder %s9, 5
    // Predicated region
    $region21: #{mynet_forward.4} parent=5 // pred_check
      %p125 = pneg %p124
    $region22: #{mynet_forward.4} parent=5 // pred_check_branch
      %127 = sbr.rel (%p125) target = $region24
    $region23: #{mynet_forward.4} parent=5 // pred_region
      // Predicated region
      $region25: #{mynet_forward.4} parent=23 // pred_check
        %p128 = pneg %p29
      $region26: #{mynet_forward.4} parent=23 // pred_check_branch
        %130 = sbr.rel (%p128) target = $region28
      $region27: #{mynet_forward.4} parent=23 // pred_region
        %s131 = smul.u32 45, %s9
        %p132 = scmp.lt.s32.totalorder %s131, 224
        %s133 = scalar_select %p132, %s131, 224
        %s134 = smul.addr %s133, 8
        %s135 = scalar_lea.vmem %s0, %s134
        %s136 = smul.u32 45, %s9
      $region28: #{mynet_forward.4} parent=23 // pred_fallthru
        _
    $region24: #{mynet_forward.4} parent=5 // pred_fallthru
      _
    %p137 = scmp.le.s32.totalorder 1, %s9
    %p138 = scmp.lt.s32.totalorder %s9, 6
    %p139 = pnand %p137, %p138
    %p140 = pneg %p139
    // Predicated region
    $region29: #{mynet_forward.4} parent=5 // pred_check
      _
    $region30: #{mynet_forward.4} parent=5 // pred_check_branch
      %142 = sbr.rel (%p139) target = $region32
    $region31: #{mynet_forward.4} parent=5 // pred_region
      %s143 = ssub.s32 %s9, 1
      %s144 = smul.u32 45, %s14
      %p145 = scmp.lt.s32.totalorder %s144, 224
      %s146 = scalar_select %p145, %s144, 224
      %s147 = smul.addr %s146, 8
      %s148 = scalar_lea.vmem %s0, %s147
      %p149 = pneg %p35
      %p150 = pneg %p32
      %p151 = pneg %p56
      %p152 = pneg %p53
      %p153 = pneg %p77
      %p154 = pneg %p74
      %p155 = pneg %p103
      %p156 = pneg %p100
      %s157 = smul.u32 45, %s14
      %p158 = scmp.lt.s32.totalorder %s157, 224
      %s159 = scalar_select %p158, %s157, 224
      %s160 = smul.addr %s159, 8
      %s161 = scalar_lea.vmem %s3, %s160
      %s162 = smul.u32 45, %s14
      %p163 = scmp.lt.s32.totalorder %s162, 224
      %s164 = scalar_select %p163, %s162, 224
      %s165 = smul.addr %s164, 8
      %s166 = scalar_lea.vmem %s0, %s165
      %s167 = smul.u32 45, %s14
      %s168 = smul.u32 45, %s14
      %p169 = scmp.lt.s32.totalorder %s168, 224
      %s170 = scalar_select %p169, %s168, 224
      %s171 = smul.addr %s170, 8
      %s172 = scalar_lea.vmem %s3, %s171
      %s173 = smul.u32 45, %s14
      %v175 = vld [vmem:[%s166] sm:$0xff]
      %v176 = vld [vmem:[%s166 + $0x8] sm:$0xff]
      %v177 = vld [vmem:[%s166 + $0x10] sm:$0xff]
      %v178 = vld [vmem:[%s166 + $0x18] sm:$0xff]
      %v179 = vld [vmem:[%s166 + $0x20] sm:$0xff]
      %v180 = vld [vmem:[%s166 + $0x28] sm:$0xff]
      %v181 = vld [vmem:[%s166 + $0x30] sm:$0xff]
      %v182 = vld [vmem:[%s166 + $0x38] sm:$0xff]
      %v183 = vld [vmem:[%s166 + $0x40] sm:$0xff]
      %v184 = vld [vmem:[%s166 + $0x48] sm:$0xff]
      %v185 = vld [vmem:[%s166 + $0x50] sm:$0xff]
      %v186 = vld [vmem:[%s166 + $0x58] sm:$0xff]
      %v187 = vld [vmem:[%s166 + $0x60] sm:$0xff]
      %v188 = vld [vmem:[%s166 + $0x68] sm:$0xff]
      %v189 = vld [vmem:[%s166 + $0x70] sm:$0xff]
      %v190 = vld [vmem:[%s166 + $0x78] sm:$0xff]
      %v191 = vld [vmem:[%s166 + $0x80] sm:$0xff]
      %v192 = vld [vmem:[%s166 + $0x88] sm:$0xff]
      %v193 = vld [vmem:[%s166 + $0x90] sm:$0xff]
      %v194 = vld [vmem:[%s166 + $0x98] sm:$0xff]
      %v195 = vld [vmem:[%s166 + $0xa0] sm:$0xff]
      %v196 = vld [vmem:[%s166 + $0xa8] sm:$0xff]
      %v197 = vld [vmem:[%s166 + $0xb0] sm:$0xff]
      %v198 = vld [vmem:[%s166 + $0xb8] sm:$0xff]
      %v199 = vld [vmem:[%s166 + $0xc0] sm:$0xff]
      %v200 = vld [vmem:[%s166 + $0xc8] sm:$0xff]
      %v201 = vld [vmem:[%s166 + $0xd0] sm:$0xff]
      %v202 = vld [vmem:[%s166 + $0xd8] sm:$0xff]
      %v203 = vld [vmem:[%s166 + $0xe0] sm:$0xff]
      %v204 = vld [vmem:[%s166 + $0xe8] sm:$0xff]
      %v205 = vld [vmem:[%s166 + $0xf0] sm:$0xff]
      %v206 = vld [vmem:[%s166 + $0xf8] sm:$0xff]
      %v207 = vld [vmem:[%s166 + $0x100] sm:$0xff]
      %v208 = vld [vmem:[%s166 + $0x108] sm:$0xff]
      %v209 = vld [vmem:[%s166 + $0x110] sm:$0xff]
      %v210 = vld [vmem:[%s166 + $0x118] sm:$0xff]
      %v211 = vld [vmem:[%s166 + $0x120] sm:$0xff]
      %v212 = vld [vmem:[%s166 + $0x128] sm:$0xff]
      %v213 = vld [vmem:[%s166 + $0x130] sm:$0xff]
      %v214 = vld [vmem:[%s166 + $0x138] sm:$0xff]
      %v215 = vld [vmem:[%s166 + $0x140] sm:$0xff]
      %v216 = vld [vmem:[%s166 + $0x148] sm:$0xff]
      %v217 = vld [vmem:[%s166 + $0x150] sm:$0xff]
      %v218 = vld [vmem:[%s166 + $0x158] sm:$0xff]
      %v219 = vld [vmem:[%s166 + $0x160] sm:$0xff]
      %v220 = vpack.c.bf16 %v176, %v175
      %v221 = vpack.c.bf16 %v178, %v177
      %v222 = vpack.c.bf16 %v180, %v179
      %v223 = vpack.c.bf16 %v182, %v181
      %v224 = vpack.c.bf16 %v184, %v183
      %v225 = vpack.c.bf16 %v186, %v185
      %v226 = vpack.c.bf16 %v188, %v187
      %v227 = vpack.c.bf16 %v190, %v189
      %v228 = vpack.c.bf16 %v192, %v191
      %v229 = vpack.c.bf16 %v194, %v193
      %v230 = vpack.c.bf16 %v196, %v195
      %v231 = vpack.c.bf16 %v198, %v197
      %v232 = vpack.c.bf16 %v200, %v199
      %v233 = vpack.c.bf16 %v202, %v201
      %v234 = vpack.c.bf16 %v204, %v203
      %v235 = vpack.c.bf16 %v206, %v205
      %v236 = vpack.c.bf16 %v208, %v207
      %v237 = vpack.c.bf16 %v210, %v209
      %v238 = vpack.c.bf16 %v212, %v211
      %v239 = vpack.c.bf16 %v214, %v213
      %v240 = vpack.c.bf16 %v216, %v215
      %v241 = vpack.c.bf16 %v218, %v217
      %v242 = vpack.c.bf16 %v219, %v219
      %v243 = vld [vmem:[%s1] sm:$0xf]
      %v244 = vld [vmem:[%s1 + $0x4] sm:$0xf]
      %v245 = vld [vmem:[%s1 + $0x8] sm:$0xf]
      %v246 = vld [vmem:[%s1 + $0xc] sm:$0x3]
      %v247 = vld [vmem:[%s2] sm:$0x1]
      %v249 = vlaneseq
      %v250 = vshrl.u32 %v249, 7
      %v251 = vsub.s32 0, %v250
      %v252 = vrot.slane %v247, %v251
      %v258 = vunpack.c.l.b16 %v243
      %v259 = vunpack.c.l.b16 %v244
      %v260 = vunpack.c.l.b16 %v245
      %v261 = vunpack.c.l.b16 %v246
      %v262 = vpack.c.b16 %v259, %v258
      %v263 = vpack.c.b16 %v261, %v260
      %vm265 = vcmask 220160
      %v267 = vsel %vm265, %v220, 0
      %v270 = vsel %vm265, %v221, 0
      %v273 = vsel %vm265, %v222, 0
      %v276 = vsel %vm265, %v223, 0
      %v279 = vsel %vm265, %v224, 0
      %v282 = vsel %vm265, %v225, 0
      %v285 = vsel %vm265, %v226, 0
      %v288 = vsel %vm265, %v227, 0
      %v291 = vsel %vm265, %v228, 0
      %v294 = vsel %vm265, %v229, 0
      %v297 = vsel %vm265, %v230, 0
      %v300 = vsel %vm265, %v231, 0
      %v303 = vsel %vm265, %v232, 0
      %v306 = vsel %vm265, %v233, 0
      %v309 = vsel %vm265, %v234, 0
      %v312 = vsel %vm265, %v235, 0
      %v315 = vsel %vm265, %v236, 0
      %v318 = vsel %vm265, %v237, 0
      %v321 = vsel %vm265, %v238, 0
      %v324 = vsel %vm265, %v239, 0
      %v327 = vsel %vm265, %v240, 0
      %v330 = vsel %vm265, %v241, 0
      %v333 = vsel %vm265, %v242, 0
      %vm335 = vcmask 1044480
      %vm336 = vcmask 1045504
      %v337 = vsel %vm335, 4294967295, 65535
      %v338 = vsel %vm336, %v337, 0
      %v340 = vand.u32 %v263, %v338
      %342 = vmatprep.subr.bf16.mxu0 0
      %343 = vmatpush1.bf16.msra.mxu0 0
      %344 = vmatprep.subr.bf16.mxu0 0
      %345 = vmatpush1.bf16.msra.mxu0 0
      %346 = vmatprep.subr.bf16.mxu0 0
      %347 = vmatpush1.bf16.msra.mxu0 0
      %348 = vmatprep.subr.bf16.mxu0 0
      %349 = vmatpush1.bf16.msra.mxu0 0
      %350 = vmatprep.subr.bf16.mxu0 0
      %351 = vmatpush1.bf16.msra.mxu0 0
      %352 = vmatprep.subr.bf16.mxu0 0
      %353 = vmatpush1.bf16.msra.mxu0 0
      %354 = vmatprep.subr.bf16.mxu0 0
      %355 = vmatpush1.bf16.msra.mxu0 %v340
      %356 = vmatprep.subr.bf16.mxu0 0
      %357 = vmatpush1.bf16.msra.mxu0 %v262
      %358 = vmatprep.subr.bf16.mxu0 0
      %359 = vmatpush2.bf16.msra.mxu0 0
      %360 = vmatprep.subr.bf16.mxu0 0
      %361 = vmatpush2.bf16.msra.mxu0 0
      %362 = vmatprep.subr.bf16.mxu0 0
      %363 = vmatpush2.bf16.msra.mxu0 0
      %364 = vmatprep.subr.bf16.mxu0 0
      %365 = vmatpush2.bf16.msra.mxu0 0
      %366 = vmatprep.subr.bf16.mxu0 0
      %367 = vmatpush2.bf16.msra.mxu0 0
      %368 = vmatprep.subr.bf16.mxu0 0
      %369 = vmatpush2.bf16.msra.mxu0 0
      %370 = vmatprep.subr.bf16.mxu0 0
      %371 = vmatpush2.bf16.msra.mxu0 0
      %372 = vmatprep.subr.bf16.mxu0 0
      %373 = vmatpush2.bf16.msra.mxu0 0
      %374 = vmatprep.mubr.bf16.mxu0 0
      %375 = vmatmul.mubr.bf16.gmra.mxu0 %v267
      %v376 = vpop.f32.mrf.mxu0
      %v377 = vadd.f32 %v252, %v376
      %v378 = vpop.f32.mrf.mxu0
      %v379 = vpop.f32.mrf.mxu0
      %v380 = vadd.f32 %v252, %v379
      %v381 = vpop.f32.mrf.mxu0
      %382 = vmatprep.mubr.bf16.mxu0 0
      %383 = vmatmul.mubr.bf16.gmra.mxu0 %v270
      %v384 = vpop.f32.mrf.mxu0
      %v385 = vadd.f32 %v252, %v384
      %v386 = vpop.f32.mrf.mxu0
      %v387 = vpop.f32.mrf.mxu0
      %v388 = vadd.f32 %v252, %v387
      %v389 = vpop.f32.mrf.mxu0
      %390 = vmatprep.mubr.bf16.mxu0 0
      %391 = vmatmul.mubr.bf16.gmra.mxu0 %v273
      %v392 = vpop.f32.mrf.mxu0
      %v393 = vadd.f32 %v252, %v392
      %v394 = vpop.f32.mrf.mxu0
      %v395 = vpop.f32.mrf.mxu0
      %v396 = vadd.f32 %v252, %v395
      %v397 = vpop.f32.mrf.mxu0
      %398 = vmatprep.mubr.bf16.mxu0 0
      %399 = vmatmul.mubr.bf16.gmra.mxu0 %v276
      %v400 = vpop.f32.mrf.mxu0
      %v401 = vadd.f32 %v252, %v400
      %v402 = vpop.f32.mrf.mxu0
      %v403 = vpop.f32.mrf.mxu0
      %v404 = vadd.f32 %v252, %v403
      %v405 = vpop.f32.mrf.mxu0
      %406 = vmatprep.mubr.bf16.mxu0 0
      %407 = vmatmul.mubr.bf16.gmra.mxu0 %v279
      %v408 = vpop.f32.mrf.mxu0
      %v409 = vadd.f32 %v252, %v408
      %v410 = vpop.f32.mrf.mxu0
      %v411 = vpop.f32.mrf.mxu0
      %v412 = vadd.f32 %v252, %v411
      %v413 = vpop.f32.mrf.mxu0
      %414 = vmatprep.mubr.bf16.mxu0 0
      %415 = vmatmul.mubr.bf16.gmra.mxu0 %v282
      %v416 = vpop.f32.mrf.mxu0
      %v417 = vadd.f32 %v252, %v416
      %v418 = vpop.f32.mrf.mxu0
      %v419 = vpop.f32.mrf.mxu0
      %v420 = vadd.f32 %v252, %v419
      %v421 = vpop.f32.mrf.mxu0
      %422 = vmatprep.mubr.bf16.mxu0 0
      %423 = vmatmul.mubr.bf16.gmra.mxu0 %v285
      %v424 = vpop.f32.mrf.mxu0
      %v425 = vadd.f32 %v252, %v424
      %v426 = vpop.f32.mrf.mxu0
      %v427 = vpop.f32.mrf.mxu0
      %v428 = vadd.f32 %v252, %v427
      %v429 = vpop.f32.mrf.mxu0
      %430 = vmatprep.mubr.bf16.mxu0 0
      %431 = vmatmul.mubr.bf16.gmra.mxu0 %v288
      %v432 = vpop.f32.mrf.mxu0
      %v433 = vadd.f32 %v252, %v432
      %v434 = vpop.f32.mrf.mxu0
      %v435 = vpop.f32.mrf.mxu0
      %v436 = vadd.f32 %v252, %v435
      %v437 = vpop.f32.mrf.mxu0
      %438 = vmatprep.mubr.bf16.mxu0 0
      %439 = vmatmul.mubr.bf16.gmra.mxu0 %v291
      %v440 = vpop.f32.mrf.mxu0
      %v441 = vadd.f32 %v252, %v440
      %v442 = vpop.f32.mrf.mxu0
      %v443 = vpop.f32.mrf.mxu0
      %v444 = vadd.f32 %v252, %v443
      %v445 = vpop.f32.mrf.mxu0
      %446 = vmatprep.mubr.bf16.mxu0 0
      %447 = vmatmul.mubr.bf16.gmra.mxu0 %v294
      %v448 = vpop.f32.mrf.mxu0
      %v449 = vadd.f32 %v252, %v448
      %v450 = vpop.f32.mrf.mxu0
      %v451 = vpop.f32.mrf.mxu0
      %v452 = vadd.f32 %v252, %v451
      %v453 = vpop.f32.mrf.mxu0
      %454 = vmatprep.mubr.bf16.mxu0 0
      %455 = vmatmul.mubr.bf16.gmra.mxu0 %v297
      %v456 = vpop.f32.mrf.mxu0
      %v457 = vadd.f32 %v252, %v456
      %v458 = vpop.f32.mrf.mxu0
      %v459 = vpop.f32.mrf.mxu0
      %v460 = vadd.f32 %v252, %v459
      %v461 = vpop.f32.mrf.mxu0
      %462 = vmatprep.mubr.bf16.mxu0 0
      %463 = vmatmul.mubr.bf16.gmra.mxu0 %v300
      %v464 = vpop.f32.mrf.mxu0
      %v465 = vadd.f32 %v252, %v464
      %v466 = vpop.f32.mrf.mxu0
      %v467 = vpop.f32.mrf.mxu0
      %v468 = vadd.f32 %v252, %v467
      %v469 = vpop.f32.mrf.mxu0
      %470 = vmatprep.mubr.bf16.mxu0 0
      %471 = vmatmul.mubr.bf16.gmra.mxu0 %v303
      %v472 = vpop.f32.mrf.mxu0
      %v473 = vadd.f32 %v252, %v472
      %v474 = vpop.f32.mrf.mxu0
      %v475 = vpop.f32.mrf.mxu0
      %v476 = vadd.f32 %v252, %v475
      %v477 = vpop.f32.mrf.mxu0
      %478 = vmatprep.mubr.bf16.mxu0 0
      %479 = vmatmul.mubr.bf16.gmra.mxu0 %v306
      %v480 = vpop.f32.mrf.mxu0
      %v481 = vadd.f32 %v252, %v480
      %v482 = vpop.f32.mrf.mxu0
      %v483 = vpop.f32.mrf.mxu0
      %v484 = vadd.f32 %v252, %v483
      %v485 = vpop.f32.mrf.mxu0
      %486 = vmatprep.mubr.bf16.mxu0 0
      %487 = vmatmul.mubr.bf16.gmra.mxu0 %v309
      %v488 = vpop.f32.mrf.mxu0
      %v489 = vadd.f32 %v252, %v488
      %v490 = vpop.f32.mrf.mxu0
      %v491 = vpop.f32.mrf.mxu0
      %v492 = vadd.f32 %v252, %v491
      %v493 = vpop.f32.mrf.mxu0
      %494 = vmatprep.mubr.bf16.mxu0 0
      %495 = vmatmul.mubr.bf16.gmra.mxu0 %v312
      %v496 = vpop.f32.mrf.mxu0
      %v497 = vadd.f32 %v252, %v496
      %v498 = vpop.f32.mrf.mxu0
      %v499 = vpop.f32.mrf.mxu0
      %v500 = vadd.f32 %v252, %v499
      %v501 = vpop.f32.mrf.mxu0
      %502 = vmatprep.mubr.bf16.mxu0 0
      %503 = vmatmul.mubr.bf16.gmra.mxu0 %v315
      %v504 = vpop.f32.mrf.mxu0
      %v505 = vadd.f32 %v252, %v504
      %v506 = vpop.f32.mrf.mxu0
      %v507 = vpop.f32.mrf.mxu0
      %v508 = vadd.f32 %v252, %v507
      %v509 = vpop.f32.mrf.mxu0
      %510 = vmatprep.mubr.bf16.mxu0 0
      %511 = vmatmul.mubr.bf16.gmra.mxu0 %v318
      %v512 = vpop.f32.mrf.mxu0
      %v513 = vadd.f32 %v252, %v512
      %v514 = vpop.f32.mrf.mxu0
      %v515 = vpop.f32.mrf.mxu0
      %v516 = vadd.f32 %v252, %v515
      %v517 = vpop.f32.mrf.mxu0
      %518 = vmatprep.mubr.bf16.mxu0 0
      %519 = vmatmul.mubr.bf16.gmra.mxu0 %v321
      %v520 = vpop.f32.mrf.mxu0
      %v521 = vadd.f32 %v252, %v520
      %v522 = vpop.f32.mrf.mxu0
      %v523 = vpop.f32.mrf.mxu0
      %v524 = vadd.f32 %v252, %v523
      %v525 = vpop.f32.mrf.mxu0
      %526 = vmatprep.mubr.bf16.mxu0 0
      %527 = vmatmul.mubr.bf16.gmra.mxu0 %v324
      %v528 = vpop.f32.mrf.mxu0
      %v529 = vadd.f32 %v252, %v528
      %v530 = vpop.f32.mrf.mxu0
      %v531 = vpop.f32.mrf.mxu0
      %v532 = vadd.f32 %v252, %v531
      %v533 = vpop.f32.mrf.mxu0
      %534 = vmatprep.mubr.bf16.mxu0 0
      %535 = vmatmul.mubr.bf16.gmra.mxu0 %v327
      %v536 = vpop.f32.mrf.mxu0
      %v537 = vadd.f32 %v252, %v536
      %v538 = vpop.f32.mrf.mxu0
      %v539 = vpop.f32.mrf.mxu0
      %v540 = vadd.f32 %v252, %v539
      %v541 = vpop.f32.mrf.mxu0
      %542 = vmatprep.mubr.bf16.mxu0 0
      %543 = vmatmul.mubr.bf16.gmra.mxu0 %v330
      %v544 = vpop.f32.mrf.mxu0
      %v545 = vadd.f32 %v252, %v544
      %v546 = vpop.f32.mrf.mxu0
      %v547 = vpop.f32.mrf.mxu0
      %v548 = vadd.f32 %v252, %v547
      %v549 = vpop.f32.mrf.mxu0
      %550 = vmatprep.mubr.bf16.mxu0 0
      %551 = vmatmul.mubr.bf16.gmra.mxu0 %v333
      %v552 = vpop.f32.mrf.mxu0
      %v553 = vadd.f32 %v252, %v552
      %v554 = vpop.f32.mrf.mxu0
      %v555 = vpop.f32.mrf.mxu0
      %v556 = vpop.f32.mrf.mxu0
      %557 = vdwg.mxu0
      %v558 = vmax.f32 %v377, 0.0
      %v559 = vmax.f32 %v380, 0.0
      %v560 = vmax.f32 %v385, 0.0
      %v561 = vmax.f32 %v388, 0.0
      %v562 = vmax.f32 %v393, 0.0
      %v563 = vmax.f32 %v396, 0.0
      %v564 = vmax.f32 %v401, 0.0
      %v565 = vmax.f32 %v404, 0.0
      %v566 = vmax.f32 %v409, 0.0
      %v567 = vmax.f32 %v412, 0.0
      %v568 = vmax.f32 %v417, 0.0
      %v569 = vmax.f32 %v420, 0.0
      %v570 = vmax.f32 %v425, 0.0
      %v571 = vmax.f32 %v428, 0.0
      %v572 = vmax.f32 %v433, 0.0
      %v573 = vmax.f32 %v436, 0.0
      %v574 = vmax.f32 %v441, 0.0
      %v575 = vmax.f32 %v444, 0.0
      %v576 = vmax.f32 %v449, 0.0
      %v577 = vmax.f32 %v452, 0.0
      %v578 = vmax.f32 %v457, 0.0
      %v579 = vmax.f32 %v460, 0.0
      %v580 = vmax.f32 %v465, 0.0
      %v581 = vmax.f32 %v468, 0.0
      %v582 = vmax.f32 %v473, 0.0
      %v583 = vmax.f32 %v476, 0.0
      %v584 = vmax.f32 %v481, 0.0
      %v585 = vmax.f32 %v484, 0.0
      %v586 = vmax.f32 %v489, 0.0
      %v587 = vmax.f32 %v492, 0.0
      %v588 = vmax.f32 %v497, 0.0
      %v589 = vmax.f32 %v500, 0.0
      %v590 = vmax.f32 %v505, 0.0
      %v591 = vmax.f32 %v508, 0.0
      %v592 = vmax.f32 %v513, 0.0
      %v593 = vmax.f32 %v516, 0.0
      %v594 = vmax.f32 %v521, 0.0
      %v595 = vmax.f32 %v524, 0.0
      %v596 = vmax.f32 %v529, 0.0
      %v597 = vmax.f32 %v532, 0.0
      %v598 = vmax.f32 %v537, 0.0
      %v599 = vmax.f32 %v540, 0.0
      %v600 = vmax.f32 %v545, 0.0
      %v601 = vmax.f32 %v548, 0.0
      %v602 = vmax.f32 %v553, 0.0
      %vm603 = vcmask 261120
      %604 = vst.msk [vmem:[%s172] sm:$0xff] %vm603, %v558
      %605 = vst.msk [vmem:[%s172 + $0x8] sm:$0xff] %vm603, %v559
      %606 = vst.msk [vmem:[%s172 + $0x10] sm:$0xff] %vm603, %v560
      %607 = vst.msk [vmem:[%s172 + $0x18] sm:$0xff] %vm603, %v561
      %608 = vst.msk [vmem:[%s172 + $0x20] sm:$0xff] %vm603, %v562
      %609 = vst.msk [vmem:[%s172 + $0x28] sm:$0xff] %vm603, %v563
      %610 = vst.msk [vmem:[%s172 + $0x30] sm:$0xff] %vm603, %v564
      %611 = vst.msk [vmem:[%s172 + $0x38] sm:$0xff] %vm603, %v565
      %612 = vst.msk [vmem:[%s172 + $0x40] sm:$0xff] %vm603, %v566
      %613 = vst.msk [vmem:[%s172 + $0x48] sm:$0xff] %vm603, %v567
      %614 = vst.msk [vmem:[%s172 + $0x50] sm:$0xff] %vm603, %v568
      %615 = vst.msk [vmem:[%s172 + $0x58] sm:$0xff] %vm603, %v569
      %616 = vst.msk [vmem:[%s172 + $0x60] sm:$0xff] %vm603, %v570
      %617 = vst.msk [vmem:[%s172 + $0x68] sm:$0xff] %vm603, %v571
      %618 = vst.msk [vmem:[%s172 + $0x70] sm:$0xff] %vm603, %v572
      %619 = vst.msk [vmem:[%s172 + $0x78] sm:$0xff] %vm603, %v573
      %620 = vst.msk [vmem:[%s172 + $0x80] sm:$0xff] %vm603, %v574
      %621 = vst.msk [vmem:[%s172 + $0x88] sm:$0xff] %vm603, %v575
      %622 = vst.msk [vmem:[%s172 + $0x90] sm:$0xff] %vm603, %v576
      %623 = vst.msk [vmem:[%s172 + $0x98] sm:$0xff] %vm603, %v577
      %624 = vst.msk [vmem:[%s172 + $0xa0] sm:$0xff] %vm603, %v578
      %625 = vst.msk [vmem:[%s172 + $0xa8] sm:$0xff] %vm603, %v579
      %626 = vst.msk [vmem:[%s172 + $0xb0] sm:$0xff] %vm603, %v580
      %627 = vst.msk [vmem:[%s172 + $0xb8] sm:$0xff] %vm603, %v581
      %628 = vst.msk [vmem:[%s172 + $0xc0] sm:$0xff] %vm603, %v582
      %629 = vst.msk [vmem:[%s172 + $0xc8] sm:$0xff] %vm603, %v583
      %630 = vst.msk [vmem:[%s172 + $0xd0] sm:$0xff] %vm603, %v584
      %631 = vst.msk [vmem:[%s172 + $0xd8] sm:$0xff] %vm603, %v585
      %632 = vst.msk [vmem:[%s172 + $0xe0] sm:$0xff] %vm603, %v586
      %633 = vst.msk [vmem:[%s172 + $0xe8] sm:$0xff] %vm603, %v587
      %634 = vst.msk [vmem:[%s172 + $0xf0] sm:$0xff] %vm603, %v588
      %635 = vst.msk [vmem:[%s172 + $0xf8] sm:$0xff] %vm603, %v589
      %636 = vst.msk [vmem:[%s172 + $0x100] sm:$0xff] %vm603, %v590
      %637 = vst.msk [vmem:[%s172 + $0x108] sm:$0xff] %vm603, %v591
      %638 = vst.msk [vmem:[%s172 + $0x110] sm:$0xff] %vm603, %v592
      %639 = vst.msk [vmem:[%s172 + $0x118] sm:$0xff] %vm603, %v593
      %640 = vst.msk [vmem:[%s172 + $0x120] sm:$0xff] %vm603, %v594
      %641 = vst.msk [vmem:[%s172 + $0x128] sm:$0xff] %vm603, %v595
      %642 = vst.msk [vmem:[%s172 + $0x130] sm:$0xff] %vm603, %v596
      %643 = vst.msk [vmem:[%s172 + $0x138] sm:$0xff] %vm603, %v597
      %644 = vst.msk [vmem:[%s172 + $0x140] sm:$0xff] %vm603, %v598
      %645 = vst.msk [vmem:[%s172 + $0x148] sm:$0xff] %vm603, %v599
      %646 = vst.msk [vmem:[%s172 + $0x150] sm:$0xff] %vm603, %v600
      %647 = vst.msk [vmem:[%s172 + $0x158] sm:$0xff] %vm603, %v601
      %648 = vst.msk [vmem:[%s172 + $0x160] sm:$0xff] %vm603, %v602
      %s649 = smul.u32 45, %s14
      %p650 = scmp.lt.s32.totalorder %s649, 224
      %s651 = scalar_select %p650, %s649, 224
      %s652 = smul.addr %s651, 8
      %s653 = scalar_lea.vmem %s3, %s652
      // Predicated region
      $region33: #{mynet_forward.4} parent=31 // pred_check
        %p654 = pneg %p100
      $region34: #{mynet_forward.4} parent=31 // pred_check_branch
        %656 = sbr.rel (%p654) target = $region36
      $region35: #{mynet_forward.4} parent=31 // pred_region
        %s657 = smul.u32 45, %s14
      $region36: #{mynet_forward.4} parent=31 // pred_fallthru
        _
    $region32: #{mynet_forward.4} parent=5 // pred_fallthru
      _
    %p658 = scmp.le.s32.totalorder 2, %s9
    // Predicated region
    $region37: #{mynet_forward.4} parent=5 // pred_check
      %p659 = pneg %p658
    $region38: #{mynet_forward.4} parent=5 // pred_check_branch
      %661 = sbr.rel (%p659) target = $region40
    $region39: #{mynet_forward.4} parent=5 // pred_region
      %s662 = ssub.s32 %s9, 2
      // Predicated region
      $region41: #{mynet_forward.4} parent=39 // pred_check
        %p663 = pneg %p106
      $region42: #{mynet_forward.4} parent=39 // pred_check_branch
        %665 = sbr.rel (%p663) target = $region44
      $region43: #{mynet_forward.4} parent=39 // pred_region
        %s666 = smul.u32 45, %s15
        %p667 = scmp.lt.s32.totalorder %s666, 224
        %s668 = scalar_select %p667, %s666, 224
        %s669 = smul.addr %s668, 8
        %s670 = scalar_lea.vmem %s3, %s669
      $region44: #{mynet_forward.4} parent=39 // pred_fallthru
        _
    $region40: #{mynet_forward.4} parent=5 // pred_fallthru
      _
  $region6: #{mynet_forward.4} parent=0 // loop_footer
    %s13 = sadd.s32 1, %s9
  $region7: #{mynet_forward.4} parent=0 // loop_footer_branch
    %8 = sbr.rel target = $region3
  $region8: #{mynet_forward.4} parent=0 // loop_exit
    _

// kernel: mynet_forward.5
$region0: #{mynet_forward.5}
  #allocation0 [shape = 'u32[]', space=smem, size = 0x4, offset = 0x4, fixed_abs, tag = 'smem constant byte address 0x4 - core index']
  #allocation1 [shape = 'u32[144,128]{1,0:T(1,128)}', space=vmem, size = 0x12000, scoped, tag = 'internal scratch']
  %s0 = inlined_call_operand.vmem [shape: f32[392,288], index: 0, kind: input, shape index: {}]
  %s1 = inlined_call_operand.vmem [shape: bf16[288,128], index: 1, kind: input, shape index: {}]
  %s2 = inlined_call_operand.vmem [shape: f32[1,128], index: 2, kind: input, shape index: {}]
  %s3 = inlined_call_operand.vmem [shape: f32[392,128], index: 3, kind: output, shape index: {}]
  %s4 = sld [smem:[#allocation0]]
  $region45: #{mynet_forward.5} parent=0
    _
  %s6 = ssub.s32 1, %s4
  %s7 = scalar_select 0, %s6, %s4
  loop: start=0, step=1, limit=9
  $region2: #{mynet_forward.5} parent=0 // loop_pre_header
    _
  $region3: #{mynet_forward.5} parent=0 // loop_header
    %s9 = sphi 0, %s13
    %p10 = scmp.ge.s32.totalorder %s9, 9
    %s19 = sphi 0, %s21
    %s22 = sphi 0, %s19
    %s23 = sphi 0, %s22
    %s39 = sphi 0, %s23
    %s43 = sphi 0, %s43
    %s45 = sphi 0, %s43
    %s46 = sphi 0, %s45
    %s60 = sphi 0, %s46
    %s64 = sphi 0, %s64
    %s66 = sphi 0, %s64
    %s67 = sphi 0, %s66
    %s81 = sphi 0, %s67
    %s87 = sphi 0, %s89
    %s90 = sphi 0, %s87
    %s91 = sphi 0, %s90
    %s107 = sphi 0, %s91
  $region4: #{mynet_forward.5} parent=0 // loop_header_branch
    %12 = sbr.rel (%p10) target = $region8
  $region5: #{mynet_forward.5} parent=0 // loop_body
    %s14 = ssub.s32 %s9, 1
    %s15 = ssub.s32 %s9, 2
    %s16 = sadd.s32 %s9, 1
    %s17 = ssub.s32 %s9, %s16
    %p18 = scmp.eq.s32.totalorder %s17, 0
    %s20 = sadd.s32 %s19, 1
    %s21 = scalar_select %p18, %s19, %s20
    %p24 = pneg %p18
    %p25 = scmp.eq.s32.totalorder %s9, 6
    %p26 = por %p24, %p25
    %p27 = scmp.ne.s32.totalorder %s19, %s22
    %p28 = scmp.eq.s32.totalorder %s9, 0
    %p29 = por %p27, %p28
    %p30 = scmp.ne.s32.totalorder %s19, %s22
    %p31 = scmp.eq.s32.totalorder %s14, 6
    %p32 = por %p30, %p31
    %p33 = scmp.ne.s32.totalorder %s22, %s23
    %p34 = scmp.eq.s32.totalorder %s14, 0
    %p35 = por %p33, %p34
    %p36 = scmp.ne.s32.totalorder %s22, %s23
    %p37 = scmp.eq.s32.totalorder %s15, 6
    %p38 = por %p36, %p37
    %p40 = scmp.ne.s32.totalorder %s23, %s39
    %p41 = scmp.eq.s32.totalorder %s15, 0
    %p42 = por %p40, %p41
    %s44 = sadd.s32 %s43, 1
    %p47 = scmp.eq.s32.totalorder %s9, 6
    %p48 = scmp.ne.s32.totalorder %s43, %s45
    %p49 = scmp.eq.s32.totalorder %s9, 0
    %p50 = por %p48, %p49
    %p51 = scmp.ne.s32.totalorder %s43, %s45
    %p52 = scmp.eq.s32.totalorder %s14, 6
    %p53 = por %p51, %p52
    %p54 = scmp.ne.s32.totalorder %s45, %s46
    %p55 = scmp.eq.s32.totalorder %s14, 0
    %p56 = por %p54, %p55
    %p57 = scmp.ne.s32.totalorder %s45, %s46
    %p58 = scmp.eq.s32.totalorder %s15, 6
    %p59 = por %p57, %p58
    %p61 = scmp.ne.s32.totalorder %s46, %s60
    %p62 = scmp.eq.s32.totalorder %s15, 0
    %p63 = por %p61, %p62
    %s65 = sadd.s32 %s64, 1
    %p68 = scmp.eq.s32.totalorder %s9, 6
    %p69 = scmp.ne.s32.totalorder %s64, %s66
    %p70 = scmp.eq.s32.totalorder %s9, 0
    %p71 = por %p69, %p70
    %p72 = scmp.ne.s32.totalorder %s64, %s66
    %p73 = scmp.eq.s32.totalorder %s14, 6
    %p74 = por %p72, %p73
    %p75 = scmp.ne.s32.totalorder %s66, %s67
    %p76 = scmp.eq.s32.totalorder %s14, 0
    %p77 = por %p75, %p76
    %p78 = scmp.ne.s32.totalorder %s66, %s67
    %p79 = scmp.eq.s32.totalorder %s15, 6
    %p80 = por %p78, %p79
    %p82 = scmp.ne.s32.totalorder %s67, %s81
    %p83 = scmp.eq.s32.totalorder %s15, 0
    %p84 = por %p82, %p83
    %s85 = ssub.s32 %s9, %s16
    %p86 = scmp.eq.s32.totalorder %s85, 0
    %s88 = sadd.s32 %s87, 1
    %s89 = scalar_select %p86, %s87, %s88
    %p92 = pneg %p86
    %p93 = scmp.eq.s32.totalorder %s9, 6
    %p94 = por %p92, %p93
    %p95 = scmp.ne.s32.totalorder %s87, %s90
    %p96 = scmp.eq.s32.totalorder %s9, 0
    %p97 = por %p95, %p96
    %p98 = scmp.ne.s32.totalorder %s87, %s90
    %p99 = scmp.eq.s32.totalorder %s14, 6
    %p100 = por %p98, %p99
    %p101 = scmp.ne.s32.totalorder %s90, %s91
    %p102 = scmp.eq.s32.totalorder %s14, 0
    %p103 = por %p101, %p102
    %p104 = scmp.ne.s32.totalorder %s90, %s91
    %p105 = scmp.eq.s32.totalorder %s15, 6
    %p106 = por %p104, %p105
    %p108 = scmp.ne.s32.totalorder %s91, %s107
    %p109 = scmp.eq.s32.totalorder %s15, 0
    %p110 = por %p108, %p109
    %p111 = scmp.le.s32.totalorder 1, %s9
    %p112 = scmp.lt.s32.totalorder %s9, 8
    %p113 = pnand %p111, %p112
    %p114 = pneg %p113
    // Predicated region
    $region9: #{mynet_forward.5} parent=5 // pred_check
      _
    $region10: #{mynet_forward.5} parent=5 // pred_check_branch
      %116 = sbr.rel (%p113) target = $region12
    $region11: #{mynet_forward.5} parent=5 // pred_region
      %s117 = ssub.s32 %s9, 1
      // Predicated region
      $region13: #{mynet_forward.5} parent=11 // pred_check
        %p118 = pneg %p56
      $region14: #{mynet_forward.5} parent=11 // pred_check_branch
        %120 = sbr.rel (%p118) target = $region16
      $region15: #{mynet_forward.5} parent=11 // pred_region
        _
      $region16: #{mynet_forward.5} parent=11 // pred_fallthru
        _
      // Predicated region
      $region17: #{mynet_forward.5} parent=11 // pred_check
        %p121 = pneg %p77
      $region18: #{mynet_forward.5} parent=11 // pred_check_branch
        %123 = sbr.rel (%p121) target = $region20
      $region19: #{mynet_forward.5} parent=11 // pred_region
        _
      $region20: #{mynet_forward.5} parent=11 // pred_fallthru
        _
    $region12: #{mynet_forward.5} parent=5 // pred_fallthru
      _
    %p124 = scmp.lt.s32.totalorder %s9, 7
    // Predicated region
    $region21: #{mynet_forward.5} parent=5 // pred_check
      %p125 = pneg %p124
    $region22: #{mynet_forward.5} parent=5 // pred_check_branch
      %127 = sbr.rel (%p125) target = $region24
    $region23: #{mynet_forward.5} parent=5 // pred_region
      // Predicated region
      $region25: #{mynet_forward.5} parent=23 // pred_check
        %p128 = pneg %p29
      $region26: #{mynet_forward.5} parent=23 // pred_check_branch
        %130 = sbr.rel (%p128) target = $region28
      $region27: #{mynet_forward.5} parent=23 // pred_region
        %s131 = smul.u32 7, %s9
        %p132 = scmp.lt.s32.totalorder %s131, 48
        %s133 = scalar_select %p132, %s131, 48
        %s134 = smul.addr %s133, 3
        %s135 = smul.addr %s134, 8
        %s136 = scalar_lea.vmem %s0, %s135
        %s137 = smul.u32 7, %s9
      $region28: #{mynet_forward.5} parent=23 // pred_fallthru
        _
    $region24: #{mynet_forward.5} parent=5 // pred_fallthru
      _
    %p138 = scmp.le.s32.totalorder 1, %s9
    %p139 = scmp.lt.s32.totalorder %s9, 8
    %p140 = pnand %p138, %p139
    %p141 = pneg %p140
    // Predicated region
    $region29: #{mynet_forward.5} parent=5 // pred_check
      _
    $region30: #{mynet_forward.5} parent=5 // pred_check_branch
      %143 = sbr.rel (%p140) target = $region32
    $region31: #{mynet_forward.5} parent=5 // pred_region
      %s144 = ssub.s32 %s9, 1
      %s145 = smul.u32 7, %s14
      %p146 = scmp.lt.s32.totalorder %s145, 48
      %s147 = scalar_select %p146, %s145, 48
      %s148 = smul.addr %s147, 3
      %s149 = smul.addr %s148, 8
      %s150 = scalar_lea.vmem %s0, %s149
      %p151 = pneg %p35
      %p152 = pneg %p32
      %p153 = pneg %p56
      %p154 = pneg %p53
      %p155 = pneg %p77
      %p156 = pneg %p74
      %p157 = pneg %p103
      %p158 = pneg %p100
      %s159 = smul.u32 7, %s14
      %p160 = scmp.lt.s32.totalorder %s159, 48
      %s161 = scalar_select %p160, %s159, 48
      %s162 = smul.addr %s161, 8
      %s163 = scalar_lea.vmem %s3, %s162
      %s164 = smul.u32 7, %s14
      %p165 = scmp.lt.s32.totalorder %s164, 48
      %s166 = scalar_select %p165, %s164, 48
      %s167 = smul.addr %s166, 3
      %s168 = smul.addr %s167, 8
      %s169 = scalar_lea.vmem %s0, %s168
      %s170 = smul.u32 7, %s14
      %s171 = smul.u32 7, %s14
      %p172 = scmp.lt.s32.totalorder %s171, 48
      %s173 = scalar_select %p172, %s171, 48
      %s174 = smul.addr %s173, 8
      %s175 = scalar_lea.vmem %s3, %s174
      %s176 = smul.u32 7, %s14
      %v178 = vld [vmem:[%s169] sm:$0xff]
      %v179 = vld [vmem:[%s169 + $0x8] sm:$0xff]
      %v180 = vld [vmem:[%s169 + $0x10] sm:$0xff]
      %v181 = vld [vmem:[%s169 + $0x18] sm:$0xff]
      %v182 = vld [vmem:[%s169 + $0x20] sm:$0xff]
      %v183 = vld [vmem:[%s169 + $0x28] sm:$0xff]
      %v184 = vld [vmem:[%s169 + $0x30] sm:$0xff]
      %v185 = vld [vmem:[%s169 + $0x38] sm:$0xff]
      %v186 = vld [vmem:[%s169 + $0x40] sm:$0xff]
      %v187 = vld [vmem:[%s169 + $0x48] sm:$0xff]
      %v188 = vld [vmem:[%s169 + $0x50] sm:$0xff]
      %v189 = vld [vmem:[%s169 + $0x58] sm:$0xff]
      %v190 = vld [vmem:[%s169 + $0x60] sm:$0xff]
      %v191 = vld [vmem:[%s169 + $0x68] sm:$0xff]
      %v192 = vld [vmem:[%s169 + $0x70] sm:$0xff]
      %v193 = vld [vmem:[%s169 + $0x78] sm:$0xff]
      %v194 = vld [vmem:[%s169 + $0x80] sm:$0xff]
      %v195 = vld [vmem:[%s169 + $0x88] sm:$0xff]
      %v196 = vld [vmem:[%s169 + $0x90] sm:$0xff]
      %v197 = vld [vmem:[%s169 + $0x98] sm:$0xff]
      %v198 = vld [vmem:[%s169 + $0xa0] sm:$0xff]
      %v199 = vpack.c.bf16 %v181, %v178
      %v200 = vpack.c.bf16 %v182, %v179
      %v201 = vpack.c.bf16 %v183, %v180
      %v202 = vpack.c.bf16 %v187, %v184
      %v203 = vpack.c.bf16 %v188, %v185
      %v204 = vpack.c.bf16 %v189, %v186
      %v205 = vpack.c.bf16 %v193, %v190
      %v206 = vpack.c.bf16 %v194, %v191
      %v207 = vpack.c.bf16 %v195, %v192
      %v208 = vpack.c.bf16 %v196, %v196
      %v209 = vpack.c.bf16 %v197, %v197
      %v210 = vpack.c.bf16 %v198, %v198
      %v211 = vld [vmem:[%s1] sm:$0xf]
      %v212 = vld [vmem:[%s1 + $0x4] sm:$0xf]
      %v213 = vld [vmem:[%s1 + $0x8] sm:$0xf]
      %v214 = vld [vmem:[%s1 + $0xc] sm:$0xf]
      %v215 = vld [vmem:[%s1 + $0x10] sm:$0xf]
      %v216 = vld [vmem:[%s1 + $0x14] sm:$0xf]
      %v217 = vld [vmem:[%s1 + $0x18] sm:$0xf]
      %v218 = vld [vmem:[%s1 + $0x1c] sm:$0xf]
      %v219 = vld [vmem:[%s1 + $0x20] sm:$0xf]
      %v220 = vld [vmem:[%s1 + $0x24] sm:$0xf]
      %v221 = vld [vmem:[%s1 + $0x28] sm:$0xf]
      %v222 = vld [vmem:[%s1 + $0x2c] sm:$0xf]
      %v223 = vld [vmem:[%s1 + $0x30] sm:$0xf]
      %v224 = vld [vmem:[%s1 + $0x34] sm:$0xf]
      %v225 = vld [vmem:[%s1 + $0x38] sm:$0xf]
      %v226 = vld [vmem:[%s1 + $0x3c] sm:$0xf]
      %v227 = vld [vmem:[%s1 + $0x40] sm:$0xf]
      %v228 = vld [vmem:[%s1 + $0x44] sm:$0xf]
      %v229 = vld [vmem:[%s1 + $0x48] sm:$0xf]
      %v230 = vld [vmem:[%s1 + $0x4c] sm:$0xf]
      %v231 = vld [vmem:[%s1 + $0x50] sm:$0xf]
      %v232 = vld [vmem:[%s1 + $0x54] sm:$0xf]
      %v233 = vld [vmem:[%s1 + $0x58] sm:$0xf]
      %v234 = vld [vmem:[%s1 + $0x5c] sm:$0xf]
      %v235 = vld [vmem:[%s1 + $0x60] sm:$0xf]
      %v236 = vld [vmem:[%s1 + $0x64] sm:$0xf]
      %v237 = vld [vmem:[%s1 + $0x68] sm:$0xf]
      %v238 = vld [vmem:[%s1 + $0x6c] sm:$0xf]
      %v239 = vld [vmem:[%s1 + $0x70] sm:$0xf]
      %v240 = vld [vmem:[%s1 + $0x74] sm:$0xf]
      %v241 = vld [vmem:[%s1 + $0x78] sm:$0xf]
      %v242 = vld [vmem:[%s1 + $0x7c] sm:$0xf]
      %v243 = vld [vmem:[%s1 + $0x80] sm:$0xf]
      %v244 = vld [vmem:[%s1 + $0x84] sm:$0xf]
      %v245 = vld [vmem:[%s1 + $0x88] sm:$0xf]
      %v246 = vld [vmem:[%s1 + $0x8c] sm:$0xf]
      %v247 = vld [vmem:[%s2] sm:$0x1]
      %v249 = vlaneseq
      %v250 = vshrl.u32 %v249, 7
      %v251 = vsub.s32 0, %v250
      %v252 = vrot.slane %v247, %v251
      %v290 = vunpack.c.l.b16 %v211
      %v291 = vunpack.c.l.b16 %v212
      %v292 = vunpack.c.l.b16 %v213
      %v293 = vunpack.c.l.b16 %v214
      %v294 = vunpack.c.l.b16 %v215
      %v295 = vunpack.c.l.b16 %v216
      %v296 = vunpack.c.l.b16 %v217
      %v297 = vunpack.c.l.b16 %v218
      %v298 = vunpack.c.l.b16 %v219
      %v299 = vunpack.c.l.b16 %v220
      %v300 = vunpack.c.l.b16 %v221
      %v301 = vunpack.c.l.b16 %v222
      %v302 = vunpack.c.l.b16 %v223
      %v303 = vunpack.c.l.b16 %v224
      %v304 = vunpack.c.l.b16 %v225
      %v305 = vunpack.c.l.b16 %v226
      %v306 = vunpack.c.l.b16 %v227
      %v307 = vunpack.c.l.b16 %v228
      %v308 = vunpack.c.l.b16 %v229
      %v309 = vunpack.c.l.b16 %v230
      %v310 = vunpack.c.l.b16 %v231
      %v311 = vunpack.c.l.b16 %v232
      %v312 = vunpack.c.l.b16 %v233
      %v313 = vunpack.c.l.b16 %v234
      %v314 = vunpack.c.l.b16 %v235
      %v315 = vunpack.c.l.b16 %v236
      %v316 = vunpack.c.l.b16 %v237
      %v317 = vunpack.c.l.b16 %v238
      %v318 = vunpack.c.l.b16 %v239
      %v319 = vunpack.c.l.b16 %v240
      %v320 = vunpack.c.l.b16 %v241
      %v321 = vunpack.c.l.b16 %v242
      %v322 = vunpack.c.l.b16 %v243
      %v323 = vunpack.c.l.b16 %v244
      %v324 = vunpack.c.l.b16 %v245
      %v325 = vunpack.c.l.b16 %v246
      %v326 = vpack.c.b16 %v291, %v290
      %v327 = vpack.c.b16 %v293, %v292
      %v328 = vpack.c.b16 %v295, %v294
      %v329 = vpack.c.b16 %v297, %v296
      %v330 = vpack.c.b16 %v299, %v298
      %v331 = vpack.c.b16 %v301, %v300
      %v332 = vpack.c.b16 %v303, %v302
      %v333 = vpack.c.b16 %v305, %v304
      %v334 = vpack.c.b16 %v307, %v306
      %v335 = vpack.c.b16 %v309, %v308
      %v336 = vpack.c.b16 %v311, %v310
      %v337 = vpack.c.b16 %v313, %v312
      %v338 = vpack.c.b16 %v315, %v314
      %v339 = vpack.c.b16 %v317, %v316
      %v340 = vpack.c.b16 %v319, %v318
      %v341 = vpack.c.b16 %v321, %v320
      %v342 = vpack.c.b16 %v323, %v322
      %v343 = vpack.c.b16 %v325, %v324
      %vm362 = vcmask 261120
      %v364 = vsel %vm362, %v201, 0
      %v367 = vsel %vm362, %v204, 0
      %v370 = vsel %vm362, %v207, 0
      %v373 = vsel %vm362, %v210, 0
      %375 = vmatprep.subr.bf16.mxu0 0
      %376 = vmatpush1.bf16.msra.mxu0 %v333
      %377 = vmatprep.subr.bf16.mxu0 0
      %378 = vmatpush1.bf16.msra.mxu0 %v332
      %379 = vmatprep.subr.bf16.mxu0 0
      %380 = vmatpush1.bf16.msra.mxu0 %v331
      %381 = vmatprep.subr.bf16.mxu0 0
      %382 = vmatpush1.bf16.msra.mxu0 %v330
      %383 = vmatprep.subr.bf16.mxu0 0
      %384 = vmatpush1.bf16.msra.mxu0 %v329
      %385 = vmatprep.subr.bf16.mxu0 0
      %386 = vmatpush1.bf16.msra.mxu0 %v328
      %387 = vmatprep.subr.bf16.mxu0 0
      %388 = vmatpush1.bf16.msra.mxu0 %v327
      %389 = vmatprep.subr.bf16.mxu0 0
      %390 = vmatpush1.bf16.msra.mxu0 %v326
      %391 = vmatprep.subr.bf16.mxu0 0
      %392 = vmatpush2.bf16.msra.mxu0 %v341
      %393 = vmatprep.subr.bf16.mxu0 0
      %394 = vmatpush2.bf16.msra.mxu0 %v340
      %395 = vmatprep.subr.bf16.mxu0 0
      %396 = vmatpush2.bf16.msra.mxu0 %v339
      %397 = vmatprep.subr.bf16.mxu0 0
      %398 = vmatpush2.bf16.msra.mxu0 %v338
      %399 = vmatprep.subr.bf16.mxu0 0
      %400 = vmatpush2.bf16.msra.mxu0 %v337
      %401 = vmatprep.subr.bf16.mxu0 0
      %402 = vmatpush2.bf16.msra.mxu0 %v336
      %403 = vmatprep.subr.bf16.mxu0 0
      %404 = vmatpush2.bf16.msra.mxu0 %v335
      %405 = vmatprep.subr.bf16.mxu0 0
      %406 = vmatpush2.bf16.msra.mxu0 %v334
      %407 = vmatprep.mubr.bf16.mxu0 %v200
      %408 = vmatmul.mubr.bf16.gmra.mxu0 %v199
      %v409 = vpop.f32.mrf.mxu0
      %v410 = vadd.f32 %v252, %v409
      %v411 = vpop.f32.mrf.mxu0
      %v412 = vpop.f32.mrf.mxu0
      %v413 = vadd.f32 %v252, %v412
      %v414 = vpop.f32.mrf.mxu0
      %415 = vmatprep.mubr.bf16.mxu0 %v203
      %416 = vmatmul.mubr.bf16.gmra.mxu0 %v202
      %v417 = vpop.f32.mrf.mxu0
      %v418 = vadd.f32 %v252, %v417
      %v419 = vpop.f32.mrf.mxu0
      %v420 = vpop.f32.mrf.mxu0
      %v421 = vadd.f32 %v252, %v420
      %v422 = vpop.f32.mrf.mxu0
      %423 = vmatprep.mubr.bf16.mxu0 %v206
      %424 = vmatmul.mubr.bf16.gmra.mxu0 %v205
      %v425 = vpop.f32.mrf.mxu0
      %v426 = vadd.f32 %v252, %v425
      %v427 = vpop.f32.mrf.mxu0
      %v428 = vpop.f32.mrf.mxu0
      %v429 = vadd.f32 %v252, %v428
      %v430 = vpop.f32.mrf.mxu0
      %431 = vmatprep.mubr.bf16.mxu0 %v209
      %432 = vmatmul.mubr.bf16.gmra.mxu0 %v208
      %v433 = vpop.f32.mrf.mxu0
      %v434 = vadd.f32 %v252, %v433
      %v435 = vpop.f32.mrf.mxu0
      %v436 = vpop.f32.mrf.mxu0
      %v437 = vpop.f32.mrf.mxu0
      %438 = vdwg.mxu0
      %439 = vmatprep.subr.bf16.mxu0 0
      %440 = vmatpush1.bf16.msra.mxu0 0
      %441 = vmatprep.subr.bf16.mxu0 0
      %442 = vmatpush1.bf16.msra.mxu0 0
      %443 = vmatprep.subr.bf16.mxu0 0
      %444 = vmatpush1.bf16.msra.mxu0 0
      %445 = vmatprep.subr.bf16.mxu0 0
      %446 = vmatpush1.bf16.msra.mxu0 0
      %447 = vmatprep.subr.bf16.mxu0 0
      %448 = vmatpush1.bf16.msra.mxu0 0
      %449 = vmatprep.subr.bf16.mxu0 0
      %450 = vmatpush1.bf16.msra.mxu0 0
      %451 = vmatprep.subr.bf16.mxu0 0
      %452 = vmatpush1.bf16.msra.mxu0 %v343
      %453 = vmatprep.subr.bf16.mxu0 0
      %454 = vmatpush1.bf16.msra.mxu0 %v342
      %455 = vmatprep.subr.bf16.mxu0 0
      %456 = vmatpush2.bf16.msra.mxu0 0
      %457 = vmatprep.subr.bf16.mxu0 0
      %458 = vmatpush2.bf16.msra.mxu0 0
      %459 = vmatprep.subr.bf16.mxu0 0
      %460 = vmatpush2.bf16.msra.mxu0 0
      %461 = vmatprep.subr.bf16.mxu0 0
      %462 = vmatpush2.bf16.msra.mxu0 0
      %463 = vmatprep.subr.bf16.mxu0 0
      %464 = vmatpush2.bf16.msra.mxu0 0
      %465 = vmatprep.subr.bf16.mxu0 0
      %466 = vmatpush2.bf16.msra.mxu0 0
      %467 = vmatprep.subr.bf16.mxu0 0
      %468 = vmatpush2.bf16.msra.mxu0 0
      %469 = vmatprep.subr.bf16.mxu0 0
      %470 = vmatpush2.bf16.msra.mxu0 0
      %471 = vmatprep.mubr.bf16.mxu0 0
      %472 = vmatmul.mubr.bf16.gmra.mxu0 %v364
      %v473 = vpop.f32.mrf.mxu0
      %v474 = vadd.f32 %v410, %v473
      %v475 = vpop.f32.mrf.mxu0
      %v476 = vpop.f32.mrf.mxu0
      %v477 = vadd.f32 %v413, %v476
      %v478 = vpop.f32.mrf.mxu0
      %479 = vmatprep.mubr.bf16.mxu0 0
      %480 = vmatmul.mubr.bf16.gmra.mxu0 %v367
      %v481 = vpop.f32.mrf.mxu0
      %v482 = vadd.f32 %v418, %v481
      %v483 = vpop.f32.mrf.mxu0
      %v484 = vpop.f32.mrf.mxu0
      %v485 = vadd.f32 %v421, %v484
      %v486 = vpop.f32.mrf.mxu0
      %487 = vmatprep.mubr.bf16.mxu0 0
      %488 = vmatmul.mubr.bf16.gmra.mxu0 %v370
      %v489 = vpop.f32.mrf.mxu0
      %v490 = vadd.f32 %v426, %v489
      %v491 = vpop.f32.mrf.mxu0
      %v492 = vpop.f32.mrf.mxu0
      %v493 = vadd.f32 %v429, %v492
      %v494 = vpop.f32.mrf.mxu0
      %495 = vmatprep.mubr.bf16.mxu0 0
      %496 = vmatmul.mubr.bf16.gmra.mxu0 %v373
      %v497 = vpop.f32.mrf.mxu0
      %v498 = vadd.f32 %v434, %v497
      %v499 = vpop.f32.mrf.mxu0
      %v500 = vpop.f32.mrf.mxu0
      %v501 = vpop.f32.mrf.mxu0
      %502 = vdwg.mxu0
      %v503 = vmax.f32 %v474, 0.0
      %v504 = vmax.f32 %v477, 0.0
      %v505 = vmax.f32 %v482, 0.0
      %v506 = vmax.f32 %v485, 0.0
      %v507 = vmax.f32 %v490, 0.0
      %v508 = vmax.f32 %v493, 0.0
      %v509 = vmax.f32 %v498, 0.0
      %510 = vst [vmem:[%s175] sm:$0xff] %v503
      %511 = vst [vmem:[%s175 + $0x8] sm:$0xff] %v504
      %512 = vst [vmem:[%s175 + $0x10] sm:$0xff] %v505
      %513 = vst [vmem:[%s175 + $0x18] sm:$0xff] %v506
      %514 = vst [vmem:[%s175 + $0x20] sm:$0xff] %v507
      %515 = vst [vmem:[%s175 + $0x28] sm:$0xff] %v508
      %516 = vst [vmem:[%s175 + $0x30] sm:$0xff] %v509
      %s517 = smul.u32 7, %s14
      %p518 = scmp.lt.s32.totalorder %s517, 48
      %s519 = scalar_select %p518, %s517, 48
      %s520 = smul.addr %s519, 8
      %s521 = scalar_lea.vmem %s3, %s520
      // Predicated region
      $region33: #{mynet_forward.5} parent=31 // pred_check
        %p522 = pneg %p100
      $region34: #{mynet_forward.5} parent=31 // pred_check_branch
        %524 = sbr.rel (%p522) target = $region36
      $region35: #{mynet_forward.5} parent=31 // pred_region
        %s525 = smul.u32 7, %s14
      $region36: #{mynet_forward.5} parent=31 // pred_fallthru
        _
    $region32: #{mynet_forward.5} parent=5 // pred_fallthru
      _
    %p526 = scmp.le.s32.totalorder 2, %s9
    // Predicated region
    $region37: #{mynet_forward.5} parent=5 // pred_check
      %p527 = pneg %p526
    $region38: #{mynet_forward.5} parent=5 // pred_check_branch
      %529 = sbr.rel (%p527) target = $region40
    $region39: #{mynet_forward.5} parent=5 // pred_region
      %s530 = ssub.s32 %s9, 2
      // Predicated region
      $region41: #{mynet_forward.5} parent=39 // pred_check
        %p531 = pneg %p106
      $region42: #{mynet_forward.5} parent=39 // pred_check_branch
        %533 = sbr.rel (%p531) target = $region44
      $region43: #{mynet_forward.5} parent=39 // pred_region
        %s534 = smul.u32 7, %s15
        %p535 = scmp.lt.s32.totalorder %s534, 48
        %s536 = scalar_select %p535, %s534, 48
        %s537 = smul.addr %s536, 8
        %s538 = scalar_lea.vmem %s3, %s537
      $region44: #{mynet_forward.5} parent=39 // pred_fallthru
        _
    $region40: #{mynet_forward.5} parent=5 // pred_fallthru
      _
  $region6: #{mynet_forward.5} parent=0 // loop_footer
    %s13 = sadd.s32 1, %s9
  $region7: #{mynet_forward.5} parent=0 // loop_footer_branch
    %8 = sbr.rel target = $region3
  $region8: #{mynet_forward.5} parent=0 // loop_exit
    _

// kernel: mynet_forward.6
$region0: #{mynet_forward.6}
  #allocation0 [shape = 'u32[]', space=smem, size = 0x4, offset = 0x4, fixed_abs, tag = 'smem constant byte address 0x4 - core index']
  #allocation1 [shape = 'u32[144,128]{1,0:T(1,128)}', space=vmem, size = 0x12000, scoped, tag = 'internal scratch']
  %s0 = inlined_call_operand.vmem [shape: f32[288,1152], index: 0, kind: input, shape index: {}]
  %s1 = inlined_call_operand.vmem [shape: bf16[1152,256], index: 1, kind: input, shape index: {}]
  %s2 = inlined_call_operand.vmem [shape: f32[1,256], index: 2, kind: input, shape index: {}]
  %s3 = inlined_call_operand.vmem [shape: f32[288,256], index: 3, kind: output, shape index: {}]
  %s4 = sld [smem:[#allocation0]]
  $region45: #{mynet_forward.6} parent=0
    _
  %s6 = ssub.s32 1, %s4
  %s7 = scalar_select 0, %s6, %s4
  loop: start=0, step=1, limit=4
  $region2: #{mynet_forward.6} parent=0 // loop_pre_header
    _
  $region3: #{mynet_forward.6} parent=0 // loop_header
    %s9 = sphi 0, %s13
    %p10 = scmp.ge.s32.totalorder %s9, 4
    %s19 = sphi 0, %s21
    %s22 = sphi 0, %s19
    %s23 = sphi 0, %s22
    %s39 = sphi 0, %s23
    %s43 = sphi 0, %s43
    %s45 = sphi 0, %s43
    %s46 = sphi 0, %s45
    %s60 = sphi 0, %s46
    %s64 = sphi 0, %s64
    %s66 = sphi 0, %s64
    %s67 = sphi 0, %s66
    %s81 = sphi 0, %s67
    %s87 = sphi 0, %s89
    %s90 = sphi 0, %s87
    %s91 = sphi 0, %s90
    %s107 = sphi 0, %s91
  $region4: #{mynet_forward.6} parent=0 // loop_header_branch
    %12 = sbr.rel (%p10) target = $region8
  $region5: #{mynet_forward.6} parent=0 // loop_body
    %s14 = ssub.s32 %s9, 1
    %s15 = ssub.s32 %s9, 2
    %s16 = sadd.s32 %s9, 1
    %s17 = ssub.s32 %s9, %s16
    %p18 = scmp.eq.s32.totalorder %s17, 0
    %s20 = sadd.s32 %s19, 1
    %s21 = scalar_select %p18, %s19, %s20
    %p24 = pneg %p18
    %p25 = scmp.eq.s32.totalorder %s9, 1
    %p26 = por %p24, %p25
    %p27 = scmp.ne.s32.totalorder %s19, %s22
    %p28 = scmp.eq.s32.totalorder %s9, 0
    %p29 = por %p27, %p28
    %p30 = scmp.ne.s32.totalorder %s19, %s22
    %p31 = scmp.eq.s32.totalorder %s14, 1
    %p32 = por %p30, %p31
    %p33 = scmp.ne.s32.totalorder %s22, %s23
    %p34 = scmp.eq.s32.totalorder %s14, 0
    %p35 = por %p33, %p34
    %p36 = scmp.ne.s32.totalorder %s22, %s23
    %p37 = scmp.eq.s32.totalorder %s15, 1
    %p38 = por %p36, %p37
    %p40 = scmp.ne.s32.totalorder %s23, %s39
    %p41 = scmp.eq.s32.totalorder %s15, 0
    %p42 = por %p40, %p41
    %s44 = sadd.s32 %s43, 1
    %p47 = scmp.eq.s32.totalorder %s9, 1
    %p48 = scmp.ne.s32.totalorder %s43, %s45
    %p49 = scmp.eq.s32.totalorder %s9, 0
    %p50 = por %p48, %p49
    %p51 = scmp.ne.s32.totalorder %s43, %s45
    %p52 = scmp.eq.s32.totalorder %s14, 1
    %p53 = por %p51, %p52
    %p54 = scmp.ne.s32.totalorder %s45, %s46
    %p55 = scmp.eq.s32.totalorder %s14, 0
    %p56 = por %p54, %p55
    %p57 = scmp.ne.s32.totalorder %s45, %s46
    %p58 = scmp.eq.s32.totalorder %s15, 1
    %p59 = por %p57, %p58
    %p61 = scmp.ne.s32.totalorder %s46, %s60
    %p62 = scmp.eq.s32.totalorder %s15, 0
    %p63 = por %p61, %p62
    %s65 = sadd.s32 %s64, 1
    %p68 = scmp.eq.s32.totalorder %s9, 1
    %p69 = scmp.ne.s32.totalorder %s64, %s66
    %p70 = scmp.eq.s32.totalorder %s9, 0
    %p71 = por %p69, %p70
    %p72 = scmp.ne.s32.totalorder %s64, %s66
    %p73 = scmp.eq.s32.totalorder %s14, 1
    %p74 = por %p72, %p73
    %p75 = scmp.ne.s32.totalorder %s66, %s67
    %p76 = scmp.eq.s32.totalorder %s14, 0
    %p77 = por %p75, %p76
    %p78 = scmp.ne.s32.totalorder %s66, %s67
    %p79 = scmp.eq.s32.totalorder %s15, 1
    %p80 = por %p78, %p79
    %p82 = scmp.ne.s32.totalorder %s67, %s81
    %p83 = scmp.eq.s32.totalorder %s15, 0
    %p84 = por %p82, %p83
    %s85 = ssub.s32 %s9, %s16
    %p86 = scmp.eq.s32.totalorder %s85, 0
    %s88 = sadd.s32 %s87, 1
    %s89 = scalar_select %p86, %s87, %s88
    %p92 = pneg %p86
    %p93 = scmp.eq.s32.totalorder %s9, 1
    %p94 = por %p92, %p93
    %p95 = scmp.ne.s32.totalorder %s87, %s90
    %p96 = scmp.eq.s32.totalorder %s9, 0
    %p97 = por %p95, %p96
    %p98 = scmp.ne.s32.totalorder %s87, %s90
    %p99 = scmp.eq.s32.totalorder %s14, 1
    %p100 = por %p98, %p99
    %p101 = scmp.ne.s32.totalorder %s90, %s91
    %p102 = scmp.eq.s32.totalorder %s14, 0
    %p103 = por %p101, %p102
    %p104 = scmp.ne.s32.totalorder %s90, %s91
    %p105 = scmp.eq.s32.totalorder %s15, 1
    %p106 = por %p104, %p105
    %p108 = scmp.ne.s32.totalorder %s91, %s107
    %p109 = scmp.eq.s32.totalorder %s15, 0
    %p110 = por %p108, %p109
    %p111 = scmp.le.s32.totalorder 1, %s9
    %p112 = scmp.lt.s32.totalorder %s9, 3
    %p113 = pnand %p111, %p112
    %p114 = pneg %p113
    // Predicated region
    $region9: #{mynet_forward.6} parent=5 // pred_check
      _
    $region10: #{mynet_forward.6} parent=5 // pred_check_branch
      %116 = sbr.rel (%p113) target = $region12
    $region11: #{mynet_forward.6} parent=5 // pred_region
      %s117 = ssub.s32 %s9, 1
      // Predicated region
      $region13: #{mynet_forward.6} parent=11 // pred_check
        %p118 = pneg %p56
      $region14: #{mynet_forward.6} parent=11 // pred_check_branch
        %120 = sbr.rel (%p118) target = $region16
      $region15: #{mynet_forward.6} parent=11 // pred_region
        _
      $region16: #{mynet_forward.6} parent=11 // pred_fallthru
        _
      // Predicated region
      $region17: #{mynet_forward.6} parent=11 // pred_check
        %p121 = pneg %p77
      $region18: #{mynet_forward.6} parent=11 // pred_check_branch
        %123 = sbr.rel (%p121) target = $region20
      $region19: #{mynet_forward.6} parent=11 // pred_region
        _
      $region20: #{mynet_forward.6} parent=11 // pred_fallthru
        _
    $region12: #{mynet_forward.6} parent=5 // pred_fallthru
      _
    %p124 = scmp.lt.s32.totalorder %s9, 2
    // Predicated region
    $region21: #{mynet_forward.6} parent=5 // pred_check
      %p125 = pneg %p124
    $region22: #{mynet_forward.6} parent=5 // pred_check_branch
      %127 = sbr.rel (%p125) target = $region24
    $region23: #{mynet_forward.6} parent=5 // pred_region
      // Predicated region
      $region25: #{mynet_forward.6} parent=23 // pred_check
        %p128 = pneg %p29
      $region26: #{mynet_forward.6} parent=23 // pred_check_branch
        %130 = sbr.rel (%p128) target = $region28
      $region27: #{mynet_forward.6} parent=23 // pred_region
        %s131 = smul.u32 18, %s9
        %p132 = scmp.lt.s32.totalorder %s131, 35
        %s133 = scalar_select %p132, %s131, 35
        %s134 = smul.addr %s133, 9
        %s135 = smul.addr %s134, 8
        %s136 = scalar_lea.vmem %s0, %s135
        %s137 = smul.u32 18, %s9
      $region28: #{mynet_forward.6} parent=23 // pred_fallthru
        _
    $region24: #{mynet_forward.6} parent=5 // pred_fallthru
      _
    %p138 = scmp.le.s32.totalorder 1, %s9
    %p139 = scmp.lt.s32.totalorder %s9, 3
    %p140 = pnand %p138, %p139
    %p141 = pneg %p140
    // Predicated region
    $region29: #{mynet_forward.6} parent=5 // pred_check
      _
    $region30: #{mynet_forward.6} parent=5 // pred_check_branch
      %143 = sbr.rel (%p140) target = $region32
    $region31: #{mynet_forward.6} parent=5 // pred_region
      %s144 = ssub.s32 %s9, 1
      %s145 = smul.u32 18, %s14
      %p146 = scmp.lt.s32.totalorder %s145, 35
      %s147 = scalar_select %p146, %s145, 35
      %s148 = smul.addr %s147, 9
      %s149 = smul.addr %s148, 8
      %s150 = scalar_lea.vmem %s0, %s149
      %p151 = pneg %p35
      %p152 = pneg %p32
      %p153 = pneg %p56
      %p154 = pneg %p53
      %p155 = pneg %p77
      %p156 = pneg %p74
      %p157 = pneg %p103
      %p158 = pneg %p100
      %s159 = smul.u32 18, %s14
      %p160 = scmp.lt.s32.totalorder %s159, 35
      %s161 = scalar_select %p160, %s159, 35
      %s162 = smul.addr %s161, 2
      %s163 = smul.addr %s162, 8
      %s164 = scalar_lea.vmem %s3, %s163
      %s165 = smul.u32 18, %s14
      %p166 = scmp.lt.s32.totalorder %s165, 35
      %s167 = scalar_select %p166, %s165, 35
      %s168 = smul.addr %s167, 9
      %s169 = smul.addr %s168, 8
      %s170 = scalar_lea.vmem %s0, %s169
      %s171 = smul.u32 18, %s14
      %s172 = smul.u32 18, %s14
      %p173 = scmp.lt.s32.totalorder %s172, 35
      %s174 = scalar_select %p173, %s172, 35
      %s175 = smul.addr %s174, 2
      %s176 = smul.addr %s175, 8
      %s177 = scalar_lea.vmem %s3, %s176
      %s178 = smul.u32 18, %s14
      %v180 = vld [vmem:[%s170] sm:$0xff]
      %v181 = vld [vmem:[%s170 + $0x8] sm:$0xff]
      %v182 = vld [vmem:[%s170 + $0x10] sm:$0xff]
      %v183 = vld [vmem:[%s170 + $0x18] sm:$0xff]
      %v184 = vld [vmem:[%s170 + $0x20] sm:$0xff]
      %v185 = vld [vmem:[%s170 + $0x28] sm:$0xff]
      %v186 = vld [vmem:[%s170 + $0x30] sm:$0xff]
      %v187 = vld [vmem:[%s170 + $0x38] sm:$0xff]
      %v188 = vld [vmem:[%s170 + $0x40] sm:$0xff]
      %v189 = vld [vmem:[%s170 + $0x48] sm:$0xff]
      %v190 = vld [vmem:[%s170 + $0x50] sm:$0xff]
      %v191 = vld [vmem:[%s170 + $0x58] sm:$0xff]
      %v192 = vld [vmem:[%s170 + $0x60] sm:$0xff]
      %v193 = vld [vmem:[%s170 + $0x68] sm:$0xff]
      %v194 = vld [vmem:[%s170 + $0x70] sm:$0xff]
      %v195 = vld [vmem:[%s170 + $0x78] sm:$0xff]
      %v196 = vld [vmem:[%s170 + $0x80] sm:$0xff]
      %v197 = vld [vmem:[%s170 + $0x88] sm:$0xff]
      %v198 = vld [vmem:[%s170 + $0x90] sm:$0xff]
      %v199 = vld [vmem:[%s170 + $0x98] sm:$0xff]
      %v200 = vld [vmem:[%s170 + $0xa0] sm:$0xff]
      %v201 = vld [vmem:[%s170 + $0xa8] sm:$0xff]
      %v202 = vld [vmem:[%s170 + $0xb0] sm:$0xff]
      %v203 = vld [vmem:[%s170 + $0xb8] sm:$0xff]
      %v204 = vld [vmem:[%s170 + $0xc0] sm:$0xff]
      %v205 = vld [vmem:[%s170 + $0xc8] sm:$0xff]
      %v206 = vld [vmem:[%s170 + $0xd0] sm:$0xff]
      %v207 = vld [vmem:[%s170 + $0xd8] sm:$0xff]
      %v208 = vld [vmem:[%s170 + $0xe0] sm:$0xff]
      %v209 = vld [vmem:[%s170 + $0xe8] sm:$0xff]
      %v210 = vld [vmem:[%s170 + $0xf0] sm:$0xff]
      %v211 = vld [vmem:[%s170 + $0xf8] sm:$0xff]
      %v212 = vld [vmem:[%s170 + $0x100] sm:$0xff]
      %v213 = vld [vmem:[%s170 + $0x108] sm:$0xff]
      %v214 = vld [vmem:[%s170 + $0x110] sm:$0xff]
      %v215 = vld [vmem:[%s170 + $0x118] sm:$0xff]
      %v216 = vld [vmem:[%s170 + $0x120] sm:$0xff]
      %v217 = vld [vmem:[%s170 + $0x128] sm:$0xff]
      %v218 = vld [vmem:[%s170 + $0x130] sm:$0xff]
      %v219 = vld [vmem:[%s170 + $0x138] sm:$0xff]
      %v220 = vld [vmem:[%s170 + $0x140] sm:$0xff]
      %v221 = vld [vmem:[%s170 + $0x148] sm:$0xff]
      %v222 = vld [vmem:[%s170 + $0x150] sm:$0xff]
      %v223 = vld [vmem:[%s170 + $0x158] sm:$0xff]
      %v224 = vld [vmem:[%s170 + $0x160] sm:$0xff]
      %v225 = vld [vmem:[%s170 + $0x168] sm:$0xff]
      %v226 = vld [vmem:[%s170 + $0x170] sm:$0xff]
      %v227 = vld [vmem:[%s170 + $0x178] sm:$0xff]
      %v228 = vld [vmem:[%s170 + $0x180] sm:$0xff]
      %v229 = vld [vmem:[%s170 + $0x188] sm:$0xff]
      %v230 = vld [vmem:[%s170 + $0x190] sm:$0xff]
      %v231 = vld [vmem:[%s170 + $0x198] sm:$0xff]
      %v232 = vld [vmem:[%s170 + $0x1a0] sm:$0xff]
      %v233 = vld [vmem:[%s170 + $0x1a8] sm:$0xff]
      %v234 = vld [vmem:[%s170 + $0x1b0] sm:$0xff]
      %v235 = vld [vmem:[%s170 + $0x1b8] sm:$0xff]
      %v236 = vld [vmem:[%s170 + $0x1c0] sm:$0xff]
      %v237 = vld [vmem:[%s170 + $0x1c8] sm:$0xff]
      %v238 = vld [vmem:[%s170 + $0x1d0] sm:$0xff]
      %v239 = vld [vmem:[%s170 + $0x1d8] sm:$0xff]
      %v240 = vld [vmem:[%s170 + $0x1e0] sm:$0xff]
      %v241 = vld [vmem:[%s170 + $0x1e8] sm:$0xff]
      %v242 = vld [vmem:[%s170 + $0x1f0] sm:$0xff]
      %v243 = vld [vmem:[%s170 + $0x1f8] sm:$0xff]
      %v244 = vld [vmem:[%s170 + $0x200] sm:$0xff]
      %v245 = vld [vmem:[%s170 + $0x208] sm:$0xff]
      %v246 = vld [vmem:[%s170 + $0x210] sm:$0xff]
      %v247 = vld [vmem:[%s170 + $0x218] sm:$0xff]
      %v248 = vld [vmem:[%s170 + $0x220] sm:$0xff]
      %v249 = vld [vmem:[%s170 + $0x228] sm:$0xff]
      %v250 = vld [vmem:[%s170 + $0x230] sm:$0xff]
      %v251 = vld [vmem:[%s170 + $0x238] sm:$0xff]
      %v252 = vld [vmem:[%s170 + $0x240] sm:$0xff]
      %v253 = vld [vmem:[%s170 + $0x248] sm:$0xff]
      %v254 = vld [vmem:[%s170 + $0x250] sm:$0xff]
      %v255 = vld [vmem:[%s170 + $0x258] sm:$0xff]
      %v256 = vld [vmem:[%s170 + $0x260] sm:$0xff]
      %v257 = vld [vmem:[%s170 + $0x268] sm:$0xff]
      %v258 = vld [vmem:[%s170 + $0x270] sm:$0xff]
      %v259 = vld [vmem:[%s170 + $0x278] sm:$0xff]
      %v260 = vld [vmem:[%s170 + $0x280] sm:$0xff]
      %v261 = vld [vmem:[%s170 + $0x288] sm:$0xff]
      %v262 = vld [vmem:[%s170 + $0x290] sm:$0xff]
      %v263 = vld [vmem:[%s170 + $0x298] sm:$0xff]
      %v264 = vld [vmem:[%s170 + $0x2a0] sm:$0xff]
      %v265 = vld [vmem:[%s170 + $0x2a8] sm:$0xff]
      %v266 = vld [vmem:[%s170 + $0x2b0] sm:$0xff]
      %v267 = vld [vmem:[%s170 + $0x2b8] sm:$0xff]
      %v268 = vld [vmem:[%s170 + $0x2c0] sm:$0xff]
      %v269 = vld [vmem:[%s170 + $0x2c8] sm:$0xff]
      %v270 = vld [vmem:[%s170 + $0x2d0] sm:$0xff]
      %v271 = vld [vmem:[%s170 + $0x2d8] sm:$0xff]
      %v272 = vld [vmem:[%s170 + $0x2e0] sm:$0xff]
      %v273 = vld [vmem:[%s170 + $0x2e8] sm:$0xff]
      %v274 = vld [vmem:[%s170 + $0x2f0] sm:$0xff]
      %v275 = vld [vmem:[%s170 + $0x2f8] sm:$0xff]
      %v276 = vld [vmem:[%s170 + $0x300] sm:$0xff]
      %v277 = vld [vmem:[%s170 + $0x308] sm:$0xff]
      %v278 = vld [vmem:[%s170 + $0x310] sm:$0xff]
      %v279 = vld [vmem:[%s170 + $0x318] sm:$0xff]
      %v280 = vld [vmem:[%s170 + $0x320] sm:$0xff]
      %v281 = vld [vmem:[%s170 + $0x328] sm:$0xff]
      %v282 = vld [vmem:[%s170 + $0x330] sm:$0xff]
      %v283 = vld [vmem:[%s170 + $0x338] sm:$0xff]
      %v284 = vld [vmem:[%s170 + $0x340] sm:$0xff]
      %v285 = vld [vmem:[%s170 + $0x348] sm:$0xff]
      %v286 = vld [vmem:[%s170 + $0x350] sm:$0xff]
      %v287 = vld [vmem:[%s170 + $0x358] sm:$0xff]
      %v288 = vld [vmem:[%s170 + $0x360] sm:$0xff]
      %v289 = vld [vmem:[%s170 + $0x368] sm:$0xff]
      %v290 = vld [vmem:[%s170 + $0x370] sm:$0xff]
      %v291 = vld [vmem:[%s170 + $0x378] sm:$0xff]
      %v292 = vld [vmem:[%s170 + $0x380] sm:$0xff]
      %v293 = vld [vmem:[%s170 + $0x388] sm:$0xff]
      %v294 = vld [vmem:[%s170 + $0x390] sm:$0xff]
      %v295 = vld [vmem:[%s170 + $0x398] sm:$0xff]
      %v296 = vld [vmem:[%s170 + $0x3a0] sm:$0xff]
      %v297 = vld [vmem:[%s170 + $0x3a8] sm:$0xff]
      %v298 = vld [vmem:[%s170 + $0x3b0] sm:$0xff]
      %v299 = vld [vmem:[%s170 + $0x3b8] sm:$0xff]
      %v300 = vld [vmem:[%s170 + $0x3c0] sm:$0xff]
      %v301 = vld [vmem:[%s170 + $0x3c8] sm:$0xff]
      %v302 = vld [vmem:[%s170 + $0x3d0] sm:$0xff]
      %v303 = vld [vmem:[%s170 + $0x3d8] sm:$0xff]
      %v304 = vld [vmem:[%s170 + $0x3e0] sm:$0xff]
      %v305 = vld [vmem:[%s170 + $0x3e8] sm:$0xff]
      %v306 = vld [vmem:[%s170 + $0x3f0] sm:$0xff]
      %v307 = vld [vmem:[%s170 + $0x3f8] sm:$0xff]
      %v308 = vld [vmem:[%s170 + $0x400] sm:$0xff]
      %v309 = vld [vmem:[%s170 + $0x408] sm:$0xff]
      %v310 = vld [vmem:[%s170 + $0x410] sm:$0xff]
      %v311 = vld [vmem:[%s170 + $0x418] sm:$0xff]
      %v312 = vld [vmem:[%s170 + $0x420] sm:$0xff]
      %v313 = vld [vmem:[%s170 + $0x428] sm:$0xff]
      %v314 = vld [vmem:[%s170 + $0x430] sm:$0xff]
      %v315 = vld [vmem:[%s170 + $0x438] sm:$0xff]
      %v316 = vld [vmem:[%s170 + $0x440] sm:$0xff]
      %v317 = vld [vmem:[%s170 + $0x448] sm:$0xff]
      %v318 = vld [vmem:[%s170 + $0x450] sm:$0xff]
      %v319 = vld [vmem:[%s170 + $0x458] sm:$0xff]
      %v320 = vld [vmem:[%s170 + $0x460] sm:$0xff]
      %v321 = vld [vmem:[%s170 + $0x468] sm:$0xff]
      %v322 = vld [vmem:[%s170 + $0x470] sm:$0xff]
      %v323 = vld [vmem:[%s170 + $0x478] sm:$0xff]
      %v324 = vld [vmem:[%s170 + $0x480] sm:$0xff]
      %v325 = vld [vmem:[%s170 + $0x488] sm:$0xff]
      %v326 = vld [vmem:[%s170 + $0x490] sm:$0xff]
      %v327 = vld [vmem:[%s170 + $0x498] sm:$0xff]
      %v328 = vld [vmem:[%s170 + $0x4a0] sm:$0xff]
      %v329 = vld [vmem:[%s170 + $0x4a8] sm:$0xff]
      %v330 = vld [vmem:[%s170 + $0x4b0] sm:$0xff]
      %v331 = vld [vmem:[%s170 + $0x4b8] sm:$0xff]
      %v332 = vld [vmem:[%s170 + $0x4c0] sm:$0xff]
      %v333 = vld [vmem:[%s170 + $0x4c8] sm:$0xff]
      %v334 = vld [vmem:[%s170 + $0x4d0] sm:$0xff]
      %v335 = vld [vmem:[%s170 + $0x4d8] sm:$0xff]
      %v336 = vld [vmem:[%s170 + $0x4e0] sm:$0xff]
      %v337 = vld [vmem:[%s170 + $0x4e8] sm:$0xff]
      %v338 = vld [vmem:[%s170 + $0x4f0] sm:$0xff]
      %v339 = vld [vmem:[%s170 + $0x4f8] sm:$0xff]
      %v340 = vld [vmem:[%s170 + $0x500] sm:$0xff]
      %v341 = vld [vmem:[%s170 + $0x508] sm:$0xff]
      %v342 = vpack.c.bf16 %v189, %v180
      %v343 = vpack.c.bf16 %v190, %v181
      %v344 = vpack.c.bf16 %v191, %v182
      %v345 = vpack.c.bf16 %v192, %v183
      %v346 = vpack.c.bf16 %v193, %v184
      %v347 = vpack.c.bf16 %v194, %v185
      %v348 = vpack.c.bf16 %v195, %v186
      %v349 = vpack.c.bf16 %v196, %v187
      %v350 = vpack.c.bf16 %v197, %v188
      %v351 = vpack.c.bf16 %v207, %v198
      %v352 = vpack.c.bf16 %v208, %v199
      %v353 = vpack.c.bf16 %v209, %v200
      %v354 = vpack.c.bf16 %v210, %v201
      %v355 = vpack.c.bf16 %v211, %v202
      %v356 = vpack.c.bf16 %v212, %v203
      %v357 = vpack.c.bf16 %v213, %v204
      %v358 = vpack.c.bf16 %v214, %v205
      %v359 = vpack.c.bf16 %v215, %v206
      %v360 = vpack.c.bf16 %v225, %v216
      %v361 = vpack.c.bf16 %v226, %v217
      %v362 = vpack.c.bf16 %v227, %v218
      %v363 = vpack.c.bf16 %v228, %v219
      %v364 = vpack.c.bf16 %v229, %v220
      %v365 = vpack.c.bf16 %v230, %v221
      %v366 = vpack.c.bf16 %v231, %v222
      %v367 = vpack.c.bf16 %v232, %v223
      %v368 = vpack.c.bf16 %v233, %v224
      %v369 = vpack.c.bf16 %v243, %v234
      %v370 = vpack.c.bf16 %v244, %v235
      %v371 = vpack.c.bf16 %v245, %v236
      %v372 = vpack.c.bf16 %v246, %v237
      %v373 = vpack.c.bf16 %v247, %v238
      %v374 = vpack.c.bf16 %v248, %v239
      %v375 = vpack.c.bf16 %v249, %v240
      %v376 = vpack.c.bf16 %v250, %v241
      %v377 = vpack.c.bf16 %v251, %v242
      %v378 = vpack.c.bf16 %v261, %v252
      %v379 = vpack.c.bf16 %v262, %v253
      %v380 = vpack.c.bf16 %v263, %v254
      %v381 = vpack.c.bf16 %v264, %v255
      %v382 = vpack.c.bf16 %v265, %v256
      %v383 = vpack.c.bf16 %v266, %v257
      %v384 = vpack.c.bf16 %v267, %v258
      %v385 = vpack.c.bf16 %v268, %v259
      %v386 = vpack.c.bf16 %v269, %v260
      %v387 = vpack.c.bf16 %v279, %v270
      %v388 = vpack.c.bf16 %v280, %v271
      %v389 = vpack.c.bf16 %v281, %v272
      %v390 = vpack.c.bf16 %v282, %v273
      %v391 = vpack.c.bf16 %v283, %v274
      %v392 = vpack.c.bf16 %v284, %v275
      %v393 = vpack.c.bf16 %v285, %v276
      %v394 = vpack.c.bf16 %v286, %v277
      %v395 = vpack.c.bf16 %v287, %v278
      %v396 = vpack.c.bf16 %v297, %v288
      %v397 = vpack.c.bf16 %v298, %v289
      %v398 = vpack.c.bf16 %v299, %v290
      %v399 = vpack.c.bf16 %v300, %v291
      %v400 = vpack.c.bf16 %v301, %v292
      %v401 = vpack.c.bf16 %v302, %v293
      %v402 = vpack.c.bf16 %v303, %v294
      %v403 = vpack.c.bf16 %v304, %v295
      %v404 = vpack.c.bf16 %v305, %v296
      %v405 = vpack.c.bf16 %v315, %v306
      %v406 = vpack.c.bf16 %v316, %v307
      %v407 = vpack.c.bf16 %v317, %v308
      %v408 = vpack.c.bf16 %v318, %v309
      %v409 = vpack.c.bf16 %v319, %v310
      %v410 = vpack.c.bf16 %v320, %v311
      %v411 = vpack.c.bf16 %v321, %v312
      %v412 = vpack.c.bf16 %v322, %v313
      %v413 = vpack.c.bf16 %v323, %v314
      %v414 = vpack.c.bf16 %v333, %v324
      %v415 = vpack.c.bf16 %v334, %v325
      %v416 = vpack.c.bf16 %v335, %v326
      %v417 = vpack.c.bf16 %v336, %v327
      %v418 = vpack.c.bf16 %v337, %v328
      %v419 = vpack.c.bf16 %v338, %v329
      %v420 = vpack.c.bf16 %v339, %v330
      %v421 = vpack.c.bf16 %v340, %v331
      %v422 = vpack.c.bf16 %v341, %v332
      %v423 = vld [vmem:[%s1] sm:$0xff]
      %v424 = vld [vmem:[%s1 + $0x8] sm:$0xff]
      %v425 = vld [vmem:[%s1 + $0x10] sm:$0xff]
      %v426 = vld [vmem:[%s1 + $0x18] sm:$0xff]
      %v427 = vld [vmem:[%s1 + $0x20] sm:$0xff]
      %v428 = vld [vmem:[%s1 + $0x28] sm:$0xff]
      %v429 = vld [vmem:[%s1 + $0x30] sm:$0xff]
      %v430 = vld [vmem:[%s1 + $0x38] sm:$0xff]
      %v431 = vld [vmem:[%s1 + $0x40] sm:$0xff]
      %v432 = vld [vmem:[%s1 + $0x48] sm:$0xff]
      %v433 = vld [vmem:[%s1 + $0x50] sm:$0xff]
      %v434 = vld [vmem:[%s1 + $0x58] sm:$0xff]
      %v435 = vld [vmem:[%s1 + $0x60] sm:$0xff]
      %v436 = vld [vmem:[%s1 + $0x68] sm:$0xff]
      %v437 = vld [vmem:[%s1 + $0x70] sm:$0xff]
      %v438 = vld [vmem:[%s1 + $0x78] sm:$0xff]
      %v439 = vld [vmem:[%s1 + $0x80] sm:$0xff]
      %v440 = vld [vmem:[%s1 + $0x88] sm:$0xff]
      %v441 = vld [vmem:[%s1 + $0x90] sm:$0xff]
      %v442 = vld [vmem:[%s1 + $0x98] sm:$0xff]
      %v443 = vld [vmem:[%s1 + $0xa0] sm:$0xff]
      %v444 = vld [vmem:[%s1 + $0xa8] sm:$0xff]
      %v445 = vld [vmem:[%s1 + $0xb0] sm:$0xff]
      %v446 = vld [vmem:[%s1 + $0xb8] sm:$0xff]
      %v447 = vld [vmem:[%s1 + $0xc0] sm:$0xff]
      %v448 = vld [vmem:[%s1 + $0xc8] sm:$0xff]
      %v449 = vld [vmem:[%s1 + $0xd0] sm:$0xff]
      %v450 = vld [vmem:[%s1 + $0xd8] sm:$0xff]
      %v451 = vld [vmem:[%s1 + $0xe0] sm:$0xff]
      %v452 = vld [vmem:[%s1 + $0xe8] sm:$0xff]
      %v453 = vld [vmem:[%s1 + $0xf0] sm:$0xff]
      %v454 = vld [vmem:[%s1 + $0xf8] sm:$0xff]
      %v455 = vld [vmem:[%s1 + $0x100] sm:$0xff]
      %v456 = vld [vmem:[%s1 + $0x108] sm:$0xff]
      %v457 = vld [vmem:[%s1 + $0x110] sm:$0xff]
      %v458 = vld [vmem:[%s1 + $0x118] sm:$0xff]
      %v459 = vld [vmem:[%s1 + $0x120] sm:$0xff]
      %v460 = vld [vmem:[%s1 + $0x128] sm:$0xff]
      %v461 = vld [vmem:[%s1 + $0x130] sm:$0xff]
      %v462 = vld [vmem:[%s1 + $0x138] sm:$0xff]
      %v463 = vld [vmem:[%s1 + $0x140] sm:$0xff]
      %v464 = vld [vmem:[%s1 + $0x148] sm:$0xff]
      %v465 = vld [vmem:[%s1 + $0x150] sm:$0xff]
      %v466 = vld [vmem:[%s1 + $0x158] sm:$0xff]
      %v467 = vld [vmem:[%s1 + $0x160] sm:$0xff]
      %v468 = vld [vmem:[%s1 + $0x168] sm:$0xff]
      %v469 = vld [vmem:[%s1 + $0x170] sm:$0xff]
      %v470 = vld [vmem:[%s1 + $0x178] sm:$0xff]
      %v471 = vld [vmem:[%s1 + $0x180] sm:$0xff]
      %v472 = vld [vmem:[%s1 + $0x188] sm:$0xff]
      %v473 = vld [vmem:[%s1 + $0x190] sm:$0xff]
      %v474 = vld [vmem:[%s1 + $0x198] sm:$0xff]
      %v475 = vld [vmem:[%s1 + $0x1a0] sm:$0xff]
      %v476 = vld [vmem:[%s1 + $0x1a8] sm:$0xff]
      %v477 = vld [vmem:[%s1 + $0x1b0] sm:$0xff]
      %v478 = vld [vmem:[%s1 + $0x1b8] sm:$0xff]
      %v479 = vld [vmem:[%s1 + $0x1c0] sm:$0xff]
      %v480 = vld [vmem:[%s1 + $0x1c8] sm:$0xff]
      %v481 = vld [vmem:[%s1 + $0x1d0] sm:$0xff]
      %v482 = vld [vmem:[%s1 + $0x1d8] sm:$0xff]
      %v483 = vld [vmem:[%s1 + $0x1e0] sm:$0xff]
      %v484 = vld [vmem:[%s1 + $0x1e8] sm:$0xff]
      %v485 = vld [vmem:[%s1 + $0x1f0] sm:$0xff]
      %v486 = vld [vmem:[%s1 + $0x1f8] sm:$0xff]
      %v487 = vld [vmem:[%s1 + $0x200] sm:$0xff]
      %v488 = vld [vmem:[%s1 + $0x208] sm:$0xff]
      %v489 = vld [vmem:[%s1 + $0x210] sm:$0xff]
      %v490 = vld [vmem:[%s1 + $0x218] sm:$0xff]
      %v491 = vld [vmem:[%s1 + $0x220] sm:$0xff]
      %v492 = vld [vmem:[%s1 + $0x228] sm:$0xff]
      %v493 = vld [vmem:[%s1 + $0x230] sm:$0xff]
      %v494 = vld [vmem:[%s1 + $0x238] sm:$0xff]
      %v495 = vld [vmem:[%s1 + $0x240] sm:$0xff]
      %v496 = vld [vmem:[%s1 + $0x248] sm:$0xff]
      %v497 = vld [vmem:[%s1 + $0x250] sm:$0xff]
      %v498 = vld [vmem:[%s1 + $0x258] sm:$0xff]
      %v499 = vld [vmem:[%s1 + $0x260] sm:$0xff]
      %v500 = vld [vmem:[%s1 + $0x268] sm:$0xff]
      %v501 = vld [vmem:[%s1 + $0x270] sm:$0xff]
      %v502 = vld [vmem:[%s1 + $0x278] sm:$0xff]
      %v503 = vld [vmem:[%s1 + $0x280] sm:$0xff]
      %v504 = vld [vmem:[%s1 + $0x288] sm:$0xff]
      %v505 = vld [vmem:[%s1 + $0x290] sm:$0xff]
      %v506 = vld [vmem:[%s1 + $0x298] sm:$0xff]
      %v507 = vld [vmem:[%s1 + $0x2a0] sm:$0xff]
      %v508 = vld [vmem:[%s1 + $0x2a8] sm:$0xff]
      %v509 = vld [vmem:[%s1 + $0x2b0] sm:$0xff]
      %v510 = vld [vmem:[%s1 + $0x2b8] sm:$0xff]
      %v511 = vld [vmem:[%s1 + $0x2c0] sm:$0xff]
      %v512 = vld [vmem:[%s1 + $0x2c8] sm:$0xff]
      %v513 = vld [vmem:[%s1 + $0x2d0] sm:$0xff]
      %v514 = vld [vmem:[%s1 + $0x2d8] sm:$0xff]
      %v515 = vld [vmem:[%s1 + $0x2e0] sm:$0xff]
      %v516 = vld [vmem:[%s1 + $0x2e8] sm:$0xff]
      %v517 = vld [vmem:[%s1 + $0x2f0] sm:$0xff]
      %v518 = vld [vmem:[%s1 + $0x2f8] sm:$0xff]
      %v519 = vld [vmem:[%s1 + $0x300] sm:$0xff]
      %v520 = vld [vmem:[%s1 + $0x308] sm:$0xff]
      %v521 = vld [vmem:[%s1 + $0x310] sm:$0xff]
      %v522 = vld [vmem:[%s1 + $0x318] sm:$0xff]
      %v523 = vld [vmem:[%s1 + $0x320] sm:$0xff]
      %v524 = vld [vmem:[%s1 + $0x328] sm:$0xff]
      %v525 = vld [vmem:[%s1 + $0x330] sm:$0xff]
      %v526 = vld [vmem:[%s1 + $0x338] sm:$0xff]
      %v527 = vld [vmem:[%s1 + $0x340] sm:$0xff]
      %v528 = vld [vmem:[%s1 + $0x348] sm:$0xff]
      %v529 = vld [vmem:[%s1 + $0x350] sm:$0xff]
      %v530 = vld [vmem:[%s1 + $0x358] sm:$0xff]
      %v531 = vld [vmem:[%s1 + $0x360] sm:$0xff]
      %v532 = vld [vmem:[%s1 + $0x368] sm:$0xff]
      %v533 = vld [vmem:[%s1 + $0x370] sm:$0xff]
      %v534 = vld [vmem:[%s1 + $0x378] sm:$0xff]
      %v535 = vld [vmem:[%s1 + $0x380] sm:$0xff]
      %v536 = vld [vmem:[%s1 + $0x388] sm:$0xff]
      %v537 = vld [vmem:[%s1 + $0x390] sm:$0xff]
      %v538 = vld [vmem:[%s1 + $0x398] sm:$0xff]
      %v539 = vld [vmem:[%s1 + $0x3a0] sm:$0xff]
      %v540 = vld [vmem:[%s1 + $0x3a8] sm:$0xff]
      %v541 = vld [vmem:[%s1 + $0x3b0] sm:$0xff]
      %v542 = vld [vmem:[%s1 + $0x3b8] sm:$0xff]
      %v543 = vld [vmem:[%s1 + $0x3c0] sm:$0xff]
      %v544 = vld [vmem:[%s1 + $0x3c8] sm:$0xff]
      %v545 = vld [vmem:[%s1 + $0x3d0] sm:$0xff]
      %v546 = vld [vmem:[%s1 + $0x3d8] sm:$0xff]
      %v547 = vld [vmem:[%s1 + $0x3e0] sm:$0xff]
      %v548 = vld [vmem:[%s1 + $0x3e8] sm:$0xff]
      %v549 = vld [vmem:[%s1 + $0x3f0] sm:$0xff]
      %v550 = vld [vmem:[%s1 + $0x3f8] sm:$0xff]
      %v551 = vld [vmem:[%s1 + $0x400] sm:$0xff]
      %v552 = vld [vmem:[%s1 + $0x408] sm:$0xff]
      %v553 = vld [vmem:[%s1 + $0x410] sm:$0xff]
      %v554 = vld [vmem:[%s1 + $0x418] sm:$0xff]
      %v555 = vld [vmem:[%s1 + $0x420] sm:$0xff]
      %v556 = vld [vmem:[%s1 + $0x428] sm:$0xff]
      %v557 = vld [vmem:[%s1 + $0x430] sm:$0xff]
      %v558 = vld [vmem:[%s1 + $0x438] sm:$0xff]
      %v559 = vld [vmem:[%s1 + $0x440] sm:$0xff]
      %v560 = vld [vmem:[%s1 + $0x448] sm:$0xff]
      %v561 = vld [vmem:[%s1 + $0x450] sm:$0xff]
      %v562 = vld [vmem:[%s1 + $0x458] sm:$0xff]
      %v563 = vld [vmem:[%s1 + $0x460] sm:$0xff]
      %v564 = vld [vmem:[%s1 + $0x468] sm:$0xff]
      %v565 = vld [vmem:[%s1 + $0x470] sm:$0xff]
      %v566 = vld [vmem:[%s1 + $0x478] sm:$0xff]
      %v567 = vld [vmem:[%s2] sm:$0x3]
      %v569 = vlaneseq
      %v570 = vshrl.u32 %v569, 7
      %v571 = vsub.s32 0, %v570
      %v572 = vrot.slane %v567, %v571
      %v573 = vlaneseq
      %v574 = vshrl.u32 %v573, 7
      %v575 = vsub.s32 1, %v574
      %v576 = vrot.slane %v567, %v575
      %v723 = vunpack.c.l.b16 %v423
      %v724 = vunpack.c.h.b16 %v423
      %v725 = vunpack.c.l.b16 %v424
      %v726 = vunpack.c.h.b16 %v424
      %v727 = vunpack.c.l.b16 %v425
      %v728 = vunpack.c.h.b16 %v425
      %v729 = vunpack.c.l.b16 %v426
      %v730 = vunpack.c.h.b16 %v426
      %v731 = vunpack.c.l.b16 %v427
      %v732 = vunpack.c.h.b16 %v427
      %v733 = vunpack.c.l.b16 %v428
      %v734 = vunpack.c.h.b16 %v428
      %v735 = vunpack.c.l.b16 %v429
      %v736 = vunpack.c.h.b16 %v429
      %v737 = vunpack.c.l.b16 %v430
      %v738 = vunpack.c.h.b16 %v430
      %v739 = vunpack.c.l.b16 %v431
      %v740 = vunpack.c.h.b16 %v431
      %v741 = vunpack.c.l.b16 %v432
      %v742 = vunpack.c.h.b16 %v432
      %v743 = vunpack.c.l.b16 %v433
      %v744 = vunpack.c.h.b16 %v433
      %v745 = vunpack.c.l.b16 %v434
      %v746 = vunpack.c.h.b16 %v434
      %v747 = vunpack.c.l.b16 %v435
      %v748 = vunpack.c.h.b16 %v435
      %v749 = vunpack.c.l.b16 %v436
      %v750 = vunpack.c.h.b16 %v436
      %v751 = vunpack.c.l.b16 %v437
      %v752 = vunpack.c.h.b16 %v437
      %v753 = vunpack.c.l.b16 %v438
      %v754 = vunpack.c.h.b16 %v438
      %v755 = vunpack.c.l.b16 %v439
      %v756 = vunpack.c.h.b16 %v439
      %v757 = vunpack.c.l.b16 %v440
      %v758 = vunpack.c.h.b16 %v440
      %v759 = vunpack.c.l.b16 %v441
      %v760 = vunpack.c.h.b16 %v441
      %v761 = vunpack.c.l.b16 %v442
      %v762 = vunpack.c.h.b16 %v442
      %v763 = vunpack.c.l.b16 %v443
      %v764 = vunpack.c.h.b16 %v443
      %v765 = vunpack.c.l.b16 %v444
      %v766 = vunpack.c.h.b16 %v444
      %v767 = vunpack.c.l.b16 %v445
      %v768 = vunpack.c.h.b16 %v445
      %v769 = vunpack.c.l.b16 %v446
      %v770 = vunpack.c.h.b16 %v446
      %v771 = vunpack.c.l.b16 %v447
      %v772 = vunpack.c.h.b16 %v447
      %v773 = vunpack.c.l.b16 %v448
      %v774 = vunpack.c.h.b16 %v448
      %v775 = vunpack.c.l.b16 %v449
      %v776 = vunpack.c.h.b16 %v449
      %v777 = vunpack.c.l.b16 %v450
      %v778 = vunpack.c.h.b16 %v450
      %v779 = vunpack.c.l.b16 %v451
      %v780 = vunpack.c.h.b16 %v451
      %v781 = vunpack.c.l.b16 %v452
      %v782 = vunpack.c.h.b16 %v452
      %v783 = vunpack.c.l.b16 %v453
      %v784 = vunpack.c.h.b16 %v453
      %v785 = vunpack.c.l.b16 %v454
      %v786 = vunpack.c.h.b16 %v454
      %v787 = vunpack.c.l.b16 %v455
      %v788 = vunpack.c.h.b16 %v455
      %v789 = vunpack.c.l.b16 %v456
      %v790 = vunpack.c.h.b16 %v456
      %v791 = vunpack.c.l.b16 %v457
      %v792 = vunpack.c.h.b16 %v457
      %v793 = vunpack.c.l.b16 %v458
      %v794 = vunpack.c.h.b16 %v458
      %v795 = vunpack.c.l.b16 %v459
      %v796 = vunpack.c.h.b16 %v459
      %v797 = vunpack.c.l.b16 %v460
      %v798 = vunpack.c.h.b16 %v460
      %v799 = vunpack.c.l.b16 %v461
      %v800 = vunpack.c.h.b16 %v461
      %v801 = vunpack.c.l.b16 %v462
      %v802 = vunpack.c.h.b16 %v462
      %v803 = vunpack.c.l.b16 %v463
      %v804 = vunpack.c.h.b16 %v463
      %v805 = vunpack.c.l.b16 %v464
      %v806 = vunpack.c.h.b16 %v464
      %v807 = vunpack.c.l.b16 %v465
      %v808 = vunpack.c.h.b16 %v465
      %v809 = vunpack.c.l.b16 %v466
      %v810 = vunpack.c.h.b16 %v466
      %v811 = vunpack.c.l.b16 %v467
      %v812 = vunpack.c.h.b16 %v467
      %v813 = vunpack.c.l.b16 %v468
      %v814 = vunpack.c.h.b16 %v468
      %v815 = vunpack.c.l.b16 %v469
      %v816 = vunpack.c.h.b16 %v469
      %v817 = vunpack.c.l.b16 %v470
      %v818 = vunpack.c.h.b16 %v470
      %v819 = vunpack.c.l.b16 %v471
      %v820 = vunpack.c.h.b16 %v471
      %v821 = vunpack.c.l.b16 %v472
      %v822 = vunpack.c.h.b16 %v472
      %v823 = vunpack.c.l.b16 %v473
      %v824 = vunpack.c.h.b16 %v473
      %v825 = vunpack.c.l.b16 %v474
      %v826 = vunpack.c.h.b16 %v474
      %v827 = vunpack.c.l.b16 %v475
      %v828 = vunpack.c.h.b16 %v475
      %v829 = vunpack.c.l.b16 %v476
      %v830 = vunpack.c.h.b16 %v476
      %v831 = vunpack.c.l.b16 %v477
      %v832 = vunpack.c.h.b16 %v477
      %v833 = vunpack.c.l.b16 %v478
      %v834 = vunpack.c.h.b16 %v478
      %v835 = vunpack.c.l.b16 %v479
      %v836 = vunpack.c.h.b16 %v479
      %v837 = vunpack.c.l.b16 %v480
      %v838 = vunpack.c.h.b16 %v480
      %v839 = vunpack.c.l.b16 %v481
      %v840 = vunpack.c.h.b16 %v481
      %v841 = vunpack.c.l.b16 %v482
      %v842 = vunpack.c.h.b16 %v482
      %v843 = vunpack.c.l.b16 %v483
      %v844 = vunpack.c.h.b16 %v483
      %v845 = vunpack.c.l.b16 %v484
      %v846 = vunpack.c.h.b16 %v484
      %v847 = vunpack.c.l.b16 %v485
      %v848 = vunpack.c.h.b16 %v485
      %v849 = vunpack.c.l.b16 %v486
      %v850 = vunpack.c.h.b16 %v486
      %v851 = vunpack.c.l.b16 %v487
      %v852 = vunpack.c.h.b16 %v487
      %v853 = vunpack.c.l.b16 %v488
      %v854 = vunpack.c.h.b16 %v488
      %v855 = vunpack.c.l.b16 %v489
      %v856 = vunpack.c.h.b16 %v489
      %v857 = vunpack.c.l.b16 %v490
      %v858 = vunpack.c.h.b16 %v490
      %v859 = vunpack.c.l.b16 %v491
      %v860 = vunpack.c.h.b16 %v491
      %v861 = vunpack.c.l.b16 %v492
      %v862 = vunpack.c.h.b16 %v492
      %v863 = vunpack.c.l.b16 %v493
      %v864 = vunpack.c.h.b16 %v493
      %v865 = vunpack.c.l.b16 %v494
      %v866 = vunpack.c.h.b16 %v494
      %v867 = vunpack.c.l.b16 %v495
      %v868 = vunpack.c.h.b16 %v495
      %v869 = vunpack.c.l.b16 %v496
      %v870 = vunpack.c.h.b16 %v496
      %v871 = vunpack.c.l.b16 %v497
      %v872 = vunpack.c.h.b16 %v497
      %v873 = vunpack.c.l.b16 %v498
      %v874 = vunpack.c.h.b16 %v498
      %v875 = vunpack.c.l.b16 %v499
      %v876 = vunpack.c.h.b16 %v499
      %v877 = vunpack.c.l.b16 %v500
      %v878 = vunpack.c.h.b16 %v500
      %v879 = vunpack.c.l.b16 %v501
      %v880 = vunpack.c.h.b16 %v501
      %v881 = vunpack.c.l.b16 %v502
      %v882 = vunpack.c.h.b16 %v502
      %v883 = vunpack.c.l.b16 %v503
      %v884 = vunpack.c.h.b16 %v503
      %v885 = vunpack.c.l.b16 %v504
      %v886 = vunpack.c.h.b16 %v504
      %v887 = vunpack.c.l.b16 %v505
      %v888 = vunpack.c.h.b16 %v505
      %v889 = vunpack.c.l.b16 %v506
      %v890 = vunpack.c.h.b16 %v506
      %v891 = vunpack.c.l.b16 %v507
      %v892 = vunpack.c.h.b16 %v507
      %v893 = vunpack.c.l.b16 %v508
      %v894 = vunpack.c.h.b16 %v508
      %v895 = vunpack.c.l.b16 %v509
      %v896 = vunpack.c.h.b16 %v509
      %v897 = vunpack.c.l.b16 %v510
      %v898 = vunpack.c.h.b16 %v510
      %v899 = vunpack.c.l.b16 %v511
      %v900 = vunpack.c.h.b16 %v511
      %v901 = vunpack.c.l.b16 %v512
      %v902 = vunpack.c.h.b16 %v512
      %v903 = vunpack.c.l.b16 %v513
      %v904 = vunpack.c.h.b16 %v513
      %v905 = vunpack.c.l.b16 %v514
      %v906 = vunpack.c.h.b16 %v514
      %v907 = vunpack.c.l.b16 %v515
      %v908 = vunpack.c.h.b16 %v515
      %v909 = vunpack.c.l.b16 %v516
      %v910 = vunpack.c.h.b16 %v516
      %v911 = vunpack.c.l.b16 %v517
      %v912 = vunpack.c.h.b16 %v517
      %v913 = vunpack.c.l.b16 %v518
      %v914 = vunpack.c.h.b16 %v518
      %v915 = vunpack.c.l.b16 %v519
      %v916 = vunpack.c.h.b16 %v519
      %v917 = vunpack.c.l.b16 %v520
      %v918 = vunpack.c.h.b16 %v520
      %v919 = vunpack.c.l.b16 %v521
      %v920 = vunpack.c.h.b16 %v521
      %v921 = vunpack.c.l.b16 %v522
      %v922 = vunpack.c.h.b16 %v522
      %v923 = vunpack.c.l.b16 %v523
      %v924 = vunpack.c.h.b16 %v523
      %v925 = vunpack.c.l.b16 %v524
      %v926 = vunpack.c.h.b16 %v524
      %v927 = vunpack.c.l.b16 %v525
      %v928 = vunpack.c.h.b16 %v525
      %v929 = vunpack.c.l.b16 %v526
      %v930 = vunpack.c.h.b16 %v526
      %v931 = vunpack.c.l.b16 %v527
      %v932 = vunpack.c.h.b16 %v527
      %v933 = vunpack.c.l.b16 %v528
      %v934 = vunpack.c.h.b16 %v528
      %v935 = vunpack.c.l.b16 %v529
      %v936 = vunpack.c.h.b16 %v529
      %v937 = vunpack.c.l.b16 %v530
      %v938 = vunpack.c.h.b16 %v530
      %v939 = vunpack.c.l.b16 %v531
      %v940 = vunpack.c.h.b16 %v531
      %v941 = vunpack.c.l.b16 %v532
      %v942 = vunpack.c.h.b16 %v532
      %v943 = vunpack.c.l.b16 %v533
      %v944 = vunpack.c.h.b16 %v533
      %v945 = vunpack.c.l.b16 %v534
      %v946 = vunpack.c.h.b16 %v534
      %v947 = vunpack.c.l.b16 %v535
      %v948 = vunpack.c.h.b16 %v535
      %v949 = vunpack.c.l.b16 %v536
      %v950 = vunpack.c.h.b16 %v536
      %v951 = vunpack.c.l.b16 %v537
      %v952 = vunpack.c.h.b16 %v537
      %v953 = vunpack.c.l.b16 %v538
      %v954 = vunpack.c.h.b16 %v538
      %v955 = vunpack.c.l.b16 %v539
      %v956 = vunpack.c.h.b16 %v539
      %v957 = vunpack.c.l.b16 %v540
      %v958 = vunpack.c.h.b16 %v540
      %v959 = vunpack.c.l.b16 %v541
      %v960 = vunpack.c.h.b16 %v541
      %v961 = vunpack.c.l.b16 %v542
      %v962 = vunpack.c.h.b16 %v542
      %v963 = vunpack.c.l.b16 %v543
      %v964 = vunpack.c.h.b16 %v543
      %v965 = vunpack.c.l.b16 %v544
      %v966 = vunpack.c.h.b16 %v544
      %v967 = vunpack.c.l.b16 %v545
      %v968 = vunpack.c.h.b16 %v545
      %v969 = vunpack.c.l.b16 %v546
      %v970 = vunpack.c.h.b16 %v546
      %v971 = vunpack.c.l.b16 %v547
      %v972 = vunpack.c.h.b16 %v547
      %v973 = vunpack.c.l.b16 %v548
      %v974 = vunpack.c.h.b16 %v548
      %v975 = vunpack.c.l.b16 %v549
      %v976 = vunpack.c.h.b16 %v549
      %v977 = vunpack.c.l.b16 %v550
      %v978 = vunpack.c.h.b16 %v550
      %v979 = vunpack.c.l.b16 %v551
      %v980 = vunpack.c.h.b16 %v551
      %v981 = vunpack.c.l.b16 %v552
      %v982 = vunpack.c.h.b16 %v552
      %v983 = vunpack.c.l.b16 %v553
      %v984 = vunpack.c.h.b16 %v553
      %v985 = vunpack.c.l.b16 %v554
      %v986 = vunpack.c.h.b16 %v554
      %v987 = vunpack.c.l.b16 %v555
      %v988 = vunpack.c.h.b16 %v555
      %v989 = vunpack.c.l.b16 %v556
      %v990 = vunpack.c.h.b16 %v556
      %v991 = vunpack.c.l.b16 %v557
      %v992 = vunpack.c.h.b16 %v557
      %v993 = vunpack.c.l.b16 %v558
      %v994 = vunpack.c.h.b16 %v558
      %v995 = vunpack.c.l.b16 %v559
      %v996 = vunpack.c.h.b16 %v559
      %v997 = vunpack.c.l.b16 %v560
      %v998 = vunpack.c.h.b16 %v560
      %v999 = vunpack.c.l.b16 %v561
      %v1000 = vunpack.c.h.b16 %v561
      %v1001 = vunpack.c.l.b16 %v562
      %v1002 = vunpack.c.h.b16 %v562
      %v1003 = vunpack.c.l.b16 %v563
      %v1004 = vunpack.c.h.b16 %v563
      %v1005 = vunpack.c.l.b16 %v564
      %v1006 = vunpack.c.h.b16 %v564
      %v1007 = vunpack.c.l.b16 %v565
      %v1008 = vunpack.c.h.b16 %v565
      %v1009 = vunpack.c.l.b16 %v566
      %v1010 = vunpack.c.h.b16 %v566
      %v1011 = vpack.c.b16 %v725, %v723
      %v1012 = vpack.c.b16 %v726, %v724
      %v1013 = vpack.c.b16 %v729, %v727
      %v1014 = vpack.c.b16 %v730, %v728
      %v1015 = vpack.c.b16 %v733, %v731
      %v1016 = vpack.c.b16 %v734, %v732
      %v1017 = vpack.c.b16 %v737, %v735
      %v1018 = vpack.c.b16 %v738, %v736
      %v1019 = vpack.c.b16 %v741, %v739
      %v1020 = vpack.c.b16 %v742, %v740
      %v1021 = vpack.c.b16 %v745, %v743
      %v1022 = vpack.c.b16 %v746, %v744
      %v1023 = vpack.c.b16 %v749, %v747
      %v1024 = vpack.c.b16 %v750, %v748
      %v1025 = vpack.c.b16 %v753, %v751
      %v1026 = vpack.c.b16 %v754, %v752
      %v1027 = vpack.c.b16 %v757, %v755
      %v1028 = vpack.c.b16 %v758, %v756
      %v1029 = vpack.c.b16 %v761, %v759
      %v1030 = vpack.c.b16 %v762, %v760
      %v1031 = vpack.c.b16 %v765, %v763
      %v1032 = vpack.c.b16 %v766, %v764
      %v1033 = vpack.c.b16 %v769, %v767
      %v1034 = vpack.c.b16 %v770, %v768
      %v1035 = vpack.c.b16 %v773, %v771
      %v1036 = vpack.c.b16 %v774, %v772
      %v1037 = vpack.c.b16 %v777, %v775
      %v1038 = vpack.c.b16 %v778, %v776
      %v1039 = vpack.c.b16 %v781, %v779
      %v1040 = vpack.c.b16 %v782, %v780
      %v1041 = vpack.c.b16 %v785, %v783
      %v1042 = vpack.c.b16 %v786, %v784
      %v1043 = vpack.c.b16 %v789, %v787
      %v1044 = vpack.c.b16 %v790, %v788
      %v1045 = vpack.c.b16 %v793, %v791
      %v1046 = vpack.c.b16 %v794, %v792
      %v1047 = vpack.c.b16 %v797, %v795
      %v1048 = vpack.c.b16 %v798, %v796
      %v1049 = vpack.c.b16 %v801, %v799
      %v1050 = vpack.c.b16 %v802, %v800
      %v1051 = vpack.c.b16 %v805, %v803
      %v1052 = vpack.c.b16 %v806, %v804
      %v1053 = vpack.c.b16 %v809, %v807
      %v1054 = vpack.c.b16 %v810, %v808
      %v1055 = vpack.c.b16 %v813, %v811
      %v1056 = vpack.c.b16 %v814, %v812
      %v1057 = vpack.c.b16 %v817, %v815
      %v1058 = vpack.c.b16 %v818, %v816
      %v1059 = vpack.c.b16 %v821, %v819
      %v1060 = vpack.c.b16 %v822, %v820
      %v1061 = vpack.c.b16 %v825, %v823
      %v1062 = vpack.c.b16 %v826, %v824
      %v1063 = vpack.c.b16 %v829, %v827
      %v1064 = vpack.c.b16 %v830, %v828
      %v1065 = vpack.c.b16 %v833, %v831
      %v1066 = vpack.c.b16 %v834, %v832
      %v1067 = vpack.c.b16 %v837, %v835
      %v1068 = vpack.c.b16 %v838, %v836
      %v1069 = vpack.c.b16 %v841, %v839
      %v1070 = vpack.c.b16 %v842, %v840
      %v1071 = vpack.c.b16 %v845, %v843
      %v1072 = vpack.c.b16 %v846, %v844
      %v1073 = vpack.c.b16 %v849, %v847
      %v1074 = vpack.c.b16 %v850, %v848
      %v1075 = vpack.c.b16 %v853, %v851
      %v1076 = vpack.c.b16 %v854, %v852
      %v1077 = vpack.c.b16 %v857, %v855
      %v1078 = vpack.c.b16 %v858, %v856
      %v1079 = vpack.c.b16 %v861, %v859
      %v1080 = vpack.c.b16 %v862, %v860
      %v1081 = vpack.c.b16 %v865, %v863
      %v1082 = vpack.c.b16 %v866, %v864
      %v1083 = vpack.c.b16 %v869, %v867
      %v1084 = vpack.c.b16 %v870, %v868
      %v1085 = vpack.c.b16 %v873, %v871
      %v1086 = vpack.c.b16 %v874, %v872
      %v1087 = vpack.c.b16 %v877, %v875
      %v1088 = vpack.c.b16 %v878, %v876
      %v1089 = vpack.c.b16 %v881, %v879
      %v1090 = vpack.c.b16 %v882, %v880
      %v1091 = vpack.c.b16 %v885, %v883
      %v1092 = vpack.c.b16 %v886, %v884
      %v1093 = vpack.c.b16 %v889, %v887
      %v1094 = vpack.c.b16 %v890, %v888
      %v1095 = vpack.c.b16 %v893, %v891
      %v1096 = vpack.c.b16 %v894, %v892
      %v1097 = vpack.c.b16 %v897, %v895
      %v1098 = vpack.c.b16 %v898, %v896
      %v1099 = vpack.c.b16 %v901, %v899
      %v1100 = vpack.c.b16 %v902, %v900
      %v1101 = vpack.c.b16 %v905, %v903
      %v1102 = vpack.c.b16 %v906, %v904
      %v1103 = vpack.c.b16 %v909, %v907
      %v1104 = vpack.c.b16 %v910, %v908
      %v1105 = vpack.c.b16 %v913, %v911
      %v1106 = vpack.c.b16 %v914, %v912
      %v1107 = vpack.c.b16 %v917, %v915
      %v1108 = vpack.c.b16 %v918, %v916
      %v1109 = vpack.c.b16 %v921, %v919
      %v1110 = vpack.c.b16 %v922, %v920
      %v1111 = vpack.c.b16 %v925, %v923
      %v1112 = vpack.c.b16 %v926, %v924
      %v1113 = vpack.c.b16 %v929, %v927
      %v1114 = vpack.c.b16 %v930, %v928
      %v1115 = vpack.c.b16 %v933, %v931
      %v1116 = vpack.c.b16 %v934, %v932
      %v1117 = vpack.c.b16 %v937, %v935
      %v1118 = vpack.c.b16 %v938, %v936
      %v1119 = vpack.c.b16 %v941, %v939
      %v1120 = vpack.c.b16 %v942, %v940
      %v1121 = vpack.c.b16 %v945, %v943
      %v1122 = vpack.c.b16 %v946, %v944
      %v1123 = vpack.c.b16 %v949, %v947
      %v1124 = vpack.c.b16 %v950, %v948
      %v1125 = vpack.c.b16 %v953, %v951
      %v1126 = vpack.c.b16 %v954, %v952
      %v1127 = vpack.c.b16 %v957, %v955
      %v1128 = vpack.c.b16 %v958, %v956
      %v1129 = vpack.c.b16 %v961, %v959
      %v1130 = vpack.c.b16 %v962, %v960
      %v1131 = vpack.c.b16 %v965, %v963
      %v1132 = vpack.c.b16 %v966, %v964
      %v1133 = vpack.c.b16 %v969, %v967
      %v1134 = vpack.c.b16 %v970, %v968
      %v1135 = vpack.c.b16 %v973, %v971
      %v1136 = vpack.c.b16 %v974, %v972
      %v1137 = vpack.c.b16 %v977, %v975
      %v1138 = vpack.c.b16 %v978, %v976
      %v1139 = vpack.c.b16 %v981, %v979
      %v1140 = vpack.c.b16 %v982, %v980
      %v1141 = vpack.c.b16 %v985, %v983
      %v1142 = vpack.c.b16 %v986, %v984
      %v1143 = vpack.c.b16 %v989, %v987
      %v1144 = vpack.c.b16 %v990, %v988
      %v1145 = vpack.c.b16 %v993, %v991
      %v1146 = vpack.c.b16 %v994, %v992
      %v1147 = vpack.c.b16 %v997, %v995
      %v1148 = vpack.c.b16 %v998, %v996
      %v1149 = vpack.c.b16 %v1001, %v999
      %v1150 = vpack.c.b16 %v1002, %v1000
      %v1151 = vpack.c.b16 %v1005, %v1003
      %v1152 = vpack.c.b16 %v1006, %v1004
      %v1153 = vpack.c.b16 %v1009, %v1007
      %v1154 = vpack.c.b16 %v1010, %v1008
      %1299 = vmatprep.subr.bf16.mxu0 %v1026
      %1300 = vmatpush1.bf16.msra.mxu0 %v1025
      %1301 = vmatprep.subr.bf16.mxu0 %v1024
      %1302 = vmatpush1.bf16.msra.mxu0 %v1023
      %1303 = vmatprep.subr.bf16.mxu0 %v1022
      %1304 = vmatpush1.bf16.msra.mxu0 %v1021
      %1305 = vmatprep.subr.bf16.mxu0 %v1020
      %1306 = vmatpush1.bf16.msra.mxu0 %v1019
      %1307 = vmatprep.subr.bf16.mxu0 %v1018
      %1308 = vmatpush1.bf16.msra.mxu0 %v1017
      %1309 = vmatprep.subr.bf16.mxu0 %v1016
      %1310 = vmatpush1.bf16.msra.mxu0 %v1015
      %1311 = vmatprep.subr.bf16.mxu0 %v1014
      %1312 = vmatpush1.bf16.msra.mxu0 %v1013
      %1313 = vmatprep.subr.bf16.mxu0 %v1012
      %1314 = vmatpush1.bf16.msra.mxu0 %v1011
      %1315 = vmatprep.subr.bf16.mxu0 %v1042
      %1316 = vmatpush2.bf16.msra.mxu0 %v1041
      %1317 = vmatprep.subr.bf16.mxu0 %v1040
      %1318 = vmatpush2.bf16.msra.mxu0 %v1039
      %1319 = vmatprep.subr.bf16.mxu0 %v1038
      %1320 = vmatpush2.bf16.msra.mxu0 %v1037
      %1321 = vmatprep.subr.bf16.mxu0 %v1036
      %1322 = vmatpush2.bf16.msra.mxu0 %v1035
      %1323 = vmatprep.subr.bf16.mxu0 %v1034
      %1324 = vmatpush2.bf16.msra.mxu0 %v1033
      %1325 = vmatprep.subr.bf16.mxu0 %v1032
      %1326 = vmatpush2.bf16.msra.mxu0 %v1031
      %1327 = vmatprep.subr.bf16.mxu0 %v1030
      %1328 = vmatpush2.bf16.msra.mxu0 %v1029
      %1329 = vmatprep.subr.bf16.mxu0 %v1028
      %1330 = vmatpush2.bf16.msra.mxu0 %v1027
      %1331 = vmatprep.mubr.bf16.mxu0 %v343
      %1332 = vmatmul.mubr.bf16.gmra.mxu0 %v342
      %v1333 = vpop.f32.mrf.mxu0
      %v1334 = vadd.f32 %v572, %v1333
      %v1335 = vpop.f32.mrf.mxu0
      %v1336 = vadd.f32 %v576, %v1335
      %v1337 = vpop.f32.mrf.mxu0
      %v1338 = vadd.f32 %v572, %v1337
      %v1339 = vpop.f32.mrf.mxu0
      %v1340 = vadd.f32 %v576, %v1339
      %1341 = vmatprep.mubr.bf16.mxu0 %v352
      %1342 = vmatmul.mubr.bf16.gmra.mxu0 %v351
      %v1343 = vpop.f32.mrf.mxu0
      %v1344 = vadd.f32 %v572, %v1343
      %v1345 = vpop.f32.mrf.mxu0
      %v1346 = vadd.f32 %v576, %v1345
      %v1347 = vpop.f32.mrf.mxu0
      %v1348 = vadd.f32 %v572, %v1347
      %v1349 = vpop.f32.mrf.mxu0
      %v1350 = vadd.f32 %v576, %v1349
      %1351 = vmatprep.mubr.bf16.mxu0 %v361
      %1352 = vmatmul.mubr.bf16.gmra.mxu0 %v360
      %v1353 = vpop.f32.mrf.mxu0
      %v1354 = vadd.f32 %v572, %v1353
      %v1355 = vpop.f32.mrf.mxu0
      %v1356 = vadd.f32 %v576, %v1355
      %v1357 = vpop.f32.mrf.mxu0
      %v1358 = vadd.f32 %v572, %v1357
      %v1359 = vpop.f32.mrf.mxu0
      %v1360 = vadd.f32 %v576, %v1359
      %1361 = vmatprep.mubr.bf16.mxu0 %v370
      %1362 = vmatmul.mubr.bf16.gmra.mxu0 %v369
      %v1363 = vpop.f32.mrf.mxu0
      %v1364 = vadd.f32 %v572, %v1363
      %v1365 = vpop.f32.mrf.mxu0
      %v1366 = vadd.f32 %v576, %v1365
      %v1367 = vpop.f32.mrf.mxu0
      %v1368 = vadd.f32 %v572, %v1367
      %v1369 = vpop.f32.mrf.mxu0
      %v1370 = vadd.f32 %v576, %v1369
      %1371 = vmatprep.mubr.bf16.mxu0 %v379
      %1372 = vmatmul.mubr.bf16.gmra.mxu0 %v378
      %v1373 = vpop.f32.mrf.mxu0
      %v1374 = vadd.f32 %v572, %v1373
      %v1375 = vpop.f32.mrf.mxu0
      %v1376 = vadd.f32 %v576, %v1375
      %v1377 = vpop.f32.mrf.mxu0
      %v1378 = vadd.f32 %v572, %v1377
      %v1379 = vpop.f32.mrf.mxu0
      %v1380 = vadd.f32 %v576, %v1379
      %1381 = vmatprep.mubr.bf16.mxu0 %v388
      %1382 = vmatmul.mubr.bf16.gmra.mxu0 %v387
      %v1383 = vpop.f32.mrf.mxu0
      %v1384 = vadd.f32 %v572, %v1383
      %v1385 = vpop.f32.mrf.mxu0
      %v1386 = vadd.f32 %v576, %v1385
      %v1387 = vpop.f32.mrf.mxu0
      %v1388 = vadd.f32 %v572, %v1387
      %v1389 = vpop.f32.mrf.mxu0
      %v1390 = vadd.f32 %v576, %v1389
      %1391 = vmatprep.mubr.bf16.mxu0 %v397
      %1392 = vmatmul.mubr.bf16.gmra.mxu0 %v396
      %v1393 = vpop.f32.mrf.mxu0
      %v1394 = vadd.f32 %v572, %v1393
      %v1395 = vpop.f32.mrf.mxu0
      %v1396 = vadd.f32 %v576, %v1395
      %v1397 = vpop.f32.mrf.mxu0
      %v1398 = vadd.f32 %v572, %v1397
      %v1399 = vpop.f32.mrf.mxu0
      %v1400 = vadd.f32 %v576, %v1399
      %1401 = vmatprep.mubr.bf16.mxu0 %v406
      %1402 = vmatmul.mubr.bf16.gmra.mxu0 %v405
      %v1403 = vpop.f32.mrf.mxu0
      %v1404 = vadd.f32 %v572, %v1403
      %v1405 = vpop.f32.mrf.mxu0
      %v1406 = vadd.f32 %v576, %v1405
      %v1407 = vpop.f32.mrf.mxu0
      %v1408 = vadd.f32 %v572, %v1407
      %v1409 = vpop.f32.mrf.mxu0
      %v1410 = vadd.f32 %v576, %v1409
      %1411 = vmatprep.mubr.bf16.mxu0 %v415
      %1412 = vmatmul.mubr.bf16.gmra.mxu0 %v414
      %v1413 = vpop.f32.mrf.mxu0
      %v1414 = vadd.f32 %v572, %v1413
      %v1415 = vpop.f32.mrf.mxu0
      %v1416 = vadd.f32 %v576, %v1415
      %v1417 = vpop.f32.mrf.mxu0
      %v1418 = vadd.f32 %v572, %v1417
      %v1419 = vpop.f32.mrf.mxu0
      %v1420 = vadd.f32 %v576, %v1419
      %1421 = vdwg.mxu0
      %1422 = vmatprep.subr.bf16.mxu0 %v1058
      %1423 = vmatpush1.bf16.msra.mxu0 %v1057
      %1424 = vmatprep.subr.bf16.mxu0 %v1056
      %1425 = vmatpush1.bf16.msra.mxu0 %v1055
      %1426 = vmatprep.subr.bf16.mxu0 %v1054
      %1427 = vmatpush1.bf16.msra.mxu0 %v1053
      %1428 = vmatprep.subr.bf16.mxu0 %v1052
      %1429 = vmatpush1.bf16.msra.mxu0 %v1051
      %1430 = vmatprep.subr.bf16.mxu0 %v1050
      %1431 = vmatpush1.bf16.msra.mxu0 %v1049
      %1432 = vmatprep.subr.bf16.mxu0 %v1048
      %1433 = vmatpush1.bf16.msra.mxu0 %v1047
      %1434 = vmatprep.subr.bf16.mxu0 %v1046
      %1435 = vmatpush1.bf16.msra.mxu0 %v1045
      %1436 = vmatprep.subr.bf16.mxu0 %v1044
      %1437 = vmatpush1.bf16.msra.mxu0 %v1043
      %1438 = vmatprep.subr.bf16.mxu0 %v1074
      %1439 = vmatpush2.bf16.msra.mxu0 %v1073
      %1440 = vmatprep.subr.bf16.mxu0 %v1072
      %1441 = vmatpush2.bf16.msra.mxu0 %v1071
      %1442 = vmatprep.subr.bf16.mxu0 %v1070
      %1443 = vmatpush2.bf16.msra.mxu0 %v1069
      %1444 = vmatprep.subr.bf16.mxu0 %v1068
      %1445 = vmatpush2.bf16.msra.mxu0 %v1067
      %1446 = vmatprep.subr.bf16.mxu0 %v1066
      %1447 = vmatpush2.bf16.msra.mxu0 %v1065
      %1448 = vmatprep.subr.bf16.mxu0 %v1064
      %1449 = vmatpush2.bf16.msra.mxu0 %v1063
      %1450 = vmatprep.subr.bf16.mxu0 %v1062
      %1451 = vmatpush2.bf16.msra.mxu0 %v1061
      %1452 = vmatprep.subr.bf16.mxu0 %v1060
      %1453 = vmatpush2.bf16.msra.mxu0 %v1059
      %1454 = vmatprep.mubr.bf16.mxu0 %v345
      %1455 = vmatmul.mubr.bf16.gmra.mxu0 %v344
      %v1456 = vpop.f32.mrf.mxu0
      %v1457 = vadd.f32 %v1334, %v1456
      %v1458 = vpop.f32.mrf.mxu0
      %v1459 = vadd.f32 %v1336, %v1458
      %v1460 = vpop.f32.mrf.mxu0
      %v1461 = vadd.f32 %v1338, %v1460
      %v1462 = vpop.f32.mrf.mxu0
      %v1463 = vadd.f32 %v1340, %v1462
      %1464 = vmatprep.mubr.bf16.mxu0 %v354
      %1465 = vmatmul.mubr.bf16.gmra.mxu0 %v353
      %v1466 = vpop.f32.mrf.mxu0
      %v1467 = vadd.f32 %v1344, %v1466
      %v1468 = vpop.f32.mrf.mxu0
      %v1469 = vadd.f32 %v1346, %v1468
      %v1470 = vpop.f32.mrf.mxu0
      %v1471 = vadd.f32 %v1348, %v1470
      %v1472 = vpop.f32.mrf.mxu0
      %v1473 = vadd.f32 %v1350, %v1472
      %1474 = vmatprep.mubr.bf16.mxu0 %v363
      %1475 = vmatmul.mubr.bf16.gmra.mxu0 %v362
      %v1476 = vpop.f32.mrf.mxu0
      %v1477 = vadd.f32 %v1354, %v1476
      %v1478 = vpop.f32.mrf.mxu0
      %v1479 = vadd.f32 %v1356, %v1478
      %v1480 = vpop.f32.mrf.mxu0
      %v1481 = vadd.f32 %v1358, %v1480
      %v1482 = vpop.f32.mrf.mxu0
      %v1483 = vadd.f32 %v1360, %v1482
      %1484 = vmatprep.mubr.bf16.mxu0 %v372
      %1485 = vmatmul.mubr.bf16.gmra.mxu0 %v371
      %v1486 = vpop.f32.mrf.mxu0
      %v1487 = vadd.f32 %v1364, %v1486
      %v1488 = vpop.f32.mrf.mxu0
      %v1489 = vadd.f32 %v1366, %v1488
      %v1490 = vpop.f32.mrf.mxu0
      %v1491 = vadd.f32 %v1368, %v1490
      %v1492 = vpop.f32.mrf.mxu0
      %v1493 = vadd.f32 %v1370, %v1492
      %1494 = vmatprep.mubr.bf16.mxu0 %v381
      %1495 = vmatmul.mubr.bf16.gmra.mxu0 %v380
      %v1496 = vpop.f32.mrf.mxu0
      %v1497 = vadd.f32 %v1374, %v1496
      %v1498 = vpop.f32.mrf.mxu0
      %v1499 = vadd.f32 %v1376, %v1498
      %v1500 = vpop.f32.mrf.mxu0
      %v1501 = vadd.f32 %v1378, %v1500
      %v1502 = vpop.f32.mrf.mxu0
      %v1503 = vadd.f32 %v1380, %v1502
      %1504 = vmatprep.mubr.bf16.mxu0 %v390
      %1505 = vmatmul.mubr.bf16.gmra.mxu0 %v389
      %v1506 = vpop.f32.mrf.mxu0
      %v1507 = vadd.f32 %v1384, %v1506
      %v1508 = vpop.f32.mrf.mxu0
      %v1509 = vadd.f32 %v1386, %v1508
      %v1510 = vpop.f32.mrf.mxu0
      %v1511 = vadd.f32 %v1388, %v1510
      %v1512 = vpop.f32.mrf.mxu0
      %v1513 = vadd.f32 %v1390, %v1512
      %1514 = vmatprep.mubr.bf16.mxu0 %v399
      %1515 = vmatmul.mubr.bf16.gmra.mxu0 %v398
      %v1516 = vpop.f32.mrf.mxu0
      %v1517 = vadd.f32 %v1394, %v1516
      %v1518 = vpop.f32.mrf.mxu0
      %v1519 = vadd.f32 %v1396, %v1518
      %v1520 = vpop.f32.mrf.mxu0
      %v1521 = vadd.f32 %v1398, %v1520
      %v1522 = vpop.f32.mrf.mxu0
      %v1523 = vadd.f32 %v1400, %v1522
      %1524 = vmatprep.mubr.bf16.mxu0 %v408
      %1525 = vmatmul.mubr.bf16.gmra.mxu0 %v407
      %v1526 = vpop.f32.mrf.mxu0
      %v1527 = vadd.f32 %v1404, %v1526
      %v1528 = vpop.f32.mrf.mxu0
      %v1529 = vadd.f32 %v1406, %v1528
      %v1530 = vpop.f32.mrf.mxu0
      %v1531 = vadd.f32 %v1408, %v1530
      %v1532 = vpop.f32.mrf.mxu0
      %v1533 = vadd.f32 %v1410, %v1532
      %1534 = vmatprep.mubr.bf16.mxu0 %v417
      %1535 = vmatmul.mubr.bf16.gmra.mxu0 %v416
      %v1536 = vpop.f32.mrf.mxu0
      %v1537 = vadd.f32 %v1414, %v1536
      %v1538 = vpop.f32.mrf.mxu0
      %v1539 = vadd.f32 %v1416, %v1538
      %v1540 = vpop.f32.mrf.mxu0
      %v1541 = vadd.f32 %v1418, %v1540
      %v1542 = vpop.f32.mrf.mxu0
      %v1543 = vadd.f32 %v1420, %v1542
      %1544 = vdwg.mxu0
      %1545 = vmatprep.subr.bf16.mxu0 %v1090
      %1546 = vmatpush1.bf16.msra.mxu0 %v1089
      %1547 = vmatprep.subr.bf16.mxu0 %v1088
      %1548 = vmatpush1.bf16.msra.mxu0 %v1087
      %1549 = vmatprep.subr.bf16.mxu0 %v1086
      %1550 = vmatpush1.bf16.msra.mxu0 %v1085
      %1551 = vmatprep.subr.bf16.mxu0 %v1084
      %1552 = vmatpush1.bf16.msra.mxu0 %v1083
      %1553 = vmatprep.subr.bf16.mxu0 %v1082
      %1554 = vmatpush1.bf16.msra.mxu0 %v1081
      %1555 = vmatprep.subr.bf16.mxu0 %v1080
      %1556 = vmatpush1.bf16.msra.mxu0 %v1079
      %1557 = vmatprep.subr.bf16.mxu0 %v1078
      %1558 = vmatpush1.bf16.msra.mxu0 %v1077
      %1559 = vmatprep.subr.bf16.mxu0 %v1076
      %1560 = vmatpush1.bf16.msra.mxu0 %v1075
      %1561 = vmatprep.subr.bf16.mxu0 %v1106
      %1562 = vmatpush2.bf16.msra.mxu0 %v1105
      %1563 = vmatprep.subr.bf16.mxu0 %v1104
      %1564 = vmatpush2.bf16.msra.mxu0 %v1103
      %1565 = vmatprep.subr.bf16.mxu0 %v1102
      %1566 = vmatpush2.bf16.msra.mxu0 %v1101
      %1567 = vmatprep.subr.bf16.mxu0 %v1100
      %1568 = vmatpush2.bf16.msra.mxu0 %v1099
      %1569 = vmatprep.subr.bf16.mxu0 %v1098
      %1570 = vmatpush2.bf16.msra.mxu0 %v1097
      %1571 = vmatprep.subr.bf16.mxu0 %v1096
      %1572 = vmatpush2.bf16.msra.mxu0 %v1095
      %1573 = vmatprep.subr.bf16.mxu0 %v1094
      %1574 = vmatpush2.bf16.msra.mxu0 %v1093
      %1575 = vmatprep.subr.bf16.mxu0 %v1092
      %1576 = vmatpush2.bf16.msra.mxu0 %v1091
      %1577 = vmatprep.mubr.bf16.mxu0 %v347
      %1578 = vmatmul.mubr.bf16.gmra.mxu0 %v346
      %v1579 = vpop.f32.mrf.mxu0
      %v1580 = vadd.f32 %v1457, %v1579
      %v1581 = vpop.f32.mrf.mxu0
      %v1582 = vadd.f32 %v1459, %v1581
      %v1583 = vpop.f32.mrf.mxu0
      %v1584 = vadd.f32 %v1461, %v1583
      %v1585 = vpop.f32.mrf.mxu0
      %v1586 = vadd.f32 %v1463, %v1585
      %1587 = vmatprep.mubr.bf16.mxu0 %v356
      %1588 = vmatmul.mubr.bf16.gmra.mxu0 %v355
      %v1589 = vpop.f32.mrf.mxu0
      %v1590 = vadd.f32 %v1467, %v1589
      %v1591 = vpop.f32.mrf.mxu0
      %v1592 = vadd.f32 %v1469, %v1591
      %v1593 = vpop.f32.mrf.mxu0
      %v1594 = vadd.f32 %v1471, %v1593
      %v1595 = vpop.f32.mrf.mxu0
      %v1596 = vadd.f32 %v1473, %v1595
      %1597 = vmatprep.mubr.bf16.mxu0 %v365
      %1598 = vmatmul.mubr.bf16.gmra.mxu0 %v364
      %v1599 = vpop.f32.mrf.mxu0
      %v1600 = vadd.f32 %v1477, %v1599
      %v1601 = vpop.f32.mrf.mxu0
      %v1602 = vadd.f32 %v1479, %v1601
      %v1603 = vpop.f32.mrf.mxu0
      %v1604 = vadd.f32 %v1481, %v1603
      %v1605 = vpop.f32.mrf.mxu0
      %v1606 = vadd.f32 %v1483, %v1605
      %1607 = vmatprep.mubr.bf16.mxu0 %v374
      %1608 = vmatmul.mubr.bf16.gmra.mxu0 %v373
      %v1609 = vpop.f32.mrf.mxu0
      %v1610 = vadd.f32 %v1487, %v1609
      %v1611 = vpop.f32.mrf.mxu0
      %v1612 = vadd.f32 %v1489, %v1611
      %v1613 = vpop.f32.mrf.mxu0
      %v1614 = vadd.f32 %v1491, %v1613
      %v1615 = vpop.f32.mrf.mxu0
      %v1616 = vadd.f32 %v1493, %v1615
      %1617 = vmatprep.mubr.bf16.mxu0 %v383
      %1618 = vmatmul.mubr.bf16.gmra.mxu0 %v382
      %v1619 = vpop.f32.mrf.mxu0
      %v1620 = vadd.f32 %v1497, %v1619
      %v1621 = vpop.f32.mrf.mxu0
      %v1622 = vadd.f32 %v1499, %v1621
      %v1623 = vpop.f32.mrf.mxu0
      %v1624 = vadd.f32 %v1501, %v1623
      %v1625 = vpop.f32.mrf.mxu0
      %v1626 = vadd.f32 %v1503, %v1625
      %1627 = vmatprep.mubr.bf16.mxu0 %v392
      %1628 = vmatmul.mubr.bf16.gmra.mxu0 %v391
      %v1629 = vpop.f32.mrf.mxu0
      %v1630 = vadd.f32 %v1507, %v1629
      %v1631 = vpop.f32.mrf.mxu0
      %v1632 = vadd.f32 %v1509, %v1631
      %v1633 = vpop.f32.mrf.mxu0
      %v1634 = vadd.f32 %v1511, %v1633
      %v1635 = vpop.f32.mrf.mxu0
      %v1636 = vadd.f32 %v1513, %v1635
      %1637 = vmatprep.mubr.bf16.mxu0 %v401
      %1638 = vmatmul.mubr.bf16.gmra.mxu0 %v400
      %v1639 = vpop.f32.mrf.mxu0
      %v1640 = vadd.f32 %v1517, %v1639
      %v1641 = vpop.f32.mrf.mxu0
      %v1642 = vadd.f32 %v1519, %v1641
      %v1643 = vpop.f32.mrf.mxu0
      %v1644 = vadd.f32 %v1521, %v1643
      %v1645 = vpop.f32.mrf.mxu0
      %v1646 = vadd.f32 %v1523, %v1645
      %1647 = vmatprep.mubr.bf16.mxu0 %v410
      %1648 = vmatmul.mubr.bf16.gmra.mxu0 %v409
      %v1649 = vpop.f32.mrf.mxu0
      %v1650 = vadd.f32 %v1527, %v1649
      %v1651 = vpop.f32.mrf.mxu0
      %v1652 = vadd.f32 %v1529, %v1651
      %v1653 = vpop.f32.mrf.mxu0
      %v1654 = vadd.f32 %v1531, %v1653
      %v1655 = vpop.f32.mrf.mxu0
      %v1656 = vadd.f32 %v1533, %v1655
      %1657 = vmatprep.mubr.bf16.mxu0 %v419
      %1658 = vmatmul.mubr.bf16.gmra.mxu0 %v418
      %v1659 = vpop.f32.mrf.mxu0
      %v1660 = vadd.f32 %v1537, %v1659
      %v1661 = vpop.f32.mrf.mxu0
      %v1662 = vadd.f32 %v1539, %v1661
      %v1663 = vpop.f32.mrf.mxu0
      %v1664 = vadd.f32 %v1541, %v1663
      %v1665 = vpop.f32.mrf.mxu0
      %v1666 = vadd.f32 %v1543, %v1665
      %1667 = vdwg.mxu0
      %1668 = vmatprep.subr.bf16.mxu0 %v1122
      %1669 = vmatpush1.bf16.msra.mxu0 %v1121
      %1670 = vmatprep.subr.bf16.mxu0 %v1120
      %1671 = vmatpush1.bf16.msra.mxu0 %v1119
      %1672 = vmatprep.subr.bf16.mxu0 %v1118
      %1673 = vmatpush1.bf16.msra.mxu0 %v1117
      %1674 = vmatprep.subr.bf16.mxu0 %v1116
      %1675 = vmatpush1.bf16.msra.mxu0 %v1115
      %1676 = vmatprep.subr.bf16.mxu0 %v1114
      %1677 = vmatpush1.bf16.msra.mxu0 %v1113
      %1678 = vmatprep.subr.bf16.mxu0 %v1112
      %1679 = vmatpush1.bf16.msra.mxu0 %v1111
      %1680 = vmatprep.subr.bf16.mxu0 %v1110
      %1681 = vmatpush1.bf16.msra.mxu0 %v1109
      %1682 = vmatprep.subr.bf16.mxu0 %v1108
      %1683 = vmatpush1.bf16.msra.mxu0 %v1107
      %1684 = vmatprep.subr.bf16.mxu0 %v1138
      %1685 = vmatpush2.bf16.msra.mxu0 %v1137
      %1686 = vmatprep.subr.bf16.mxu0 %v1136
      %1687 = vmatpush2.bf16.msra.mxu0 %v1135
      %1688 = vmatprep.subr.bf16.mxu0 %v1134
      %1689 = vmatpush2.bf16.msra.mxu0 %v1133
      %1690 = vmatprep.subr.bf16.mxu0 %v1132
      %1691 = vmatpush2.bf16.msra.mxu0 %v1131
      %1692 = vmatprep.subr.bf16.mxu0 %v1130
      %1693 = vmatpush2.bf16.msra.mxu0 %v1129
      %1694 = vmatprep.subr.bf16.mxu0 %v1128
      %1695 = vmatpush2.bf16.msra.mxu0 %v1127
      %1696 = vmatprep.subr.bf16.mxu0 %v1126
      %1697 = vmatpush2.bf16.msra.mxu0 %v1125
      %1698 = vmatprep.subr.bf16.mxu0 %v1124
      %1699 = vmatpush2.bf16.msra.mxu0 %v1123
      %1700 = vmatprep.mubr.bf16.mxu0 %v349
      %1701 = vmatmul.mubr.bf16.gmra.mxu0 %v348
      %v1702 = vpop.f32.mrf.mxu0
      %v1703 = vadd.f32 %v1580, %v1702
      %v1704 = vpop.f32.mrf.mxu0
      %v1705 = vadd.f32 %v1582, %v1704
      %v1706 = vpop.f32.mrf.mxu0
      %v1707 = vadd.f32 %v1584, %v1706
      %v1708 = vpop.f32.mrf.mxu0
      %v1709 = vadd.f32 %v1586, %v1708
      %1710 = vmatprep.mubr.bf16.mxu0 %v358
      %1711 = vmatmul.mubr.bf16.gmra.mxu0 %v357
      %v1712 = vpop.f32.mrf.mxu0
      %v1713 = vadd.f32 %v1590, %v1712
      %v1714 = vpop.f32.mrf.mxu0
      %v1715 = vadd.f32 %v1592, %v1714
      %v1716 = vpop.f32.mrf.mxu0
      %v1717 = vadd.f32 %v1594, %v1716
      %v1718 = vpop.f32.mrf.mxu0
      %v1719 = vadd.f32 %v1596, %v1718
      %1720 = vmatprep.mubr.bf16.mxu0 %v367
      %1721 = vmatmul.mubr.bf16.gmra.mxu0 %v366
      %v1722 = vpop.f32.mrf.mxu0
      %v1723 = vadd.f32 %v1600, %v1722
      %v1724 = vpop.f32.mrf.mxu0
      %v1725 = vadd.f32 %v1602, %v1724
      %v1726 = vpop.f32.mrf.mxu0
      %v1727 = vadd.f32 %v1604, %v1726
      %v1728 = vpop.f32.mrf.mxu0
      %v1729 = vadd.f32 %v1606, %v1728
      %1730 = vmatprep.mubr.bf16.mxu0 %v376
      %1731 = vmatmul.mubr.bf16.gmra.mxu0 %v375
      %v1732 = vpop.f32.mrf.mxu0
      %v1733 = vadd.f32 %v1610, %v1732
      %v1734 = vpop.f32.mrf.mxu0
      %v1735 = vadd.f32 %v1612, %v1734
      %v1736 = vpop.f32.mrf.mxu0
      %v1737 = vadd.f32 %v1614, %v1736
      %v1738 = vpop.f32.mrf.mxu0
      %v1739 = vadd.f32 %v1616, %v1738
      %1740 = vmatprep.mubr.bf16.mxu0 %v385
      %1741 = vmatmul.mubr.bf16.gmra.mxu0 %v384
      %v1742 = vpop.f32.mrf.mxu0
      %v1743 = vadd.f32 %v1620, %v1742
      %v1744 = vpop.f32.mrf.mxu0
      %v1745 = vadd.f32 %v1622, %v1744
      %v1746 = vpop.f32.mrf.mxu0
      %v1747 = vadd.f32 %v1624, %v1746
      %v1748 = vpop.f32.mrf.mxu0
      %v1749 = vadd.f32 %v1626, %v1748
      %1750 = vmatprep.mubr.bf16.mxu0 %v394
      %1751 = vmatmul.mubr.bf16.gmra.mxu0 %v393
      %v1752 = vpop.f32.mrf.mxu0
      %v1753 = vadd.f32 %v1630, %v1752
      %v1754 = vpop.f32.mrf.mxu0
      %v1755 = vadd.f32 %v1632, %v1754
      %v1756 = vpop.f32.mrf.mxu0
      %v1757 = vadd.f32 %v1634, %v1756
      %v1758 = vpop.f32.mrf.mxu0
      %v1759 = vadd.f32 %v1636, %v1758
      %1760 = vmatprep.mubr.bf16.mxu0 %v403
      %1761 = vmatmul.mubr.bf16.gmra.mxu0 %v402
      %v1762 = vpop.f32.mrf.mxu0
      %v1763 = vadd.f32 %v1640, %v1762
      %v1764 = vpop.f32.mrf.mxu0
      %v1765 = vadd.f32 %v1642, %v1764
      %v1766 = vpop.f32.mrf.mxu0
      %v1767 = vadd.f32 %v1644, %v1766
      %v1768 = vpop.f32.mrf.mxu0
      %v1769 = vadd.f32 %v1646, %v1768
      %1770 = vmatprep.mubr.bf16.mxu0 %v412
      %1771 = vmatmul.mubr.bf16.gmra.mxu0 %v411
      %v1772 = vpop.f32.mrf.mxu0
      %v1773 = vadd.f32 %v1650, %v1772
      %v1774 = vpop.f32.mrf.mxu0
      %v1775 = vadd.f32 %v1652, %v1774
      %v1776 = vpop.f32.mrf.mxu0
      %v1777 = vadd.f32 %v1654, %v1776
      %v1778 = vpop.f32.mrf.mxu0
      %v1779 = vadd.f32 %v1656, %v1778
      %1780 = vmatprep.mubr.bf16.mxu0 %v421
      %1781 = vmatmul.mubr.bf16.gmra.mxu0 %v420
      %v1782 = vpop.f32.mrf.mxu0
      %v1783 = vadd.f32 %v1660, %v1782
      %v1784 = vpop.f32.mrf.mxu0
      %v1785 = vadd.f32 %v1662, %v1784
      %v1786 = vpop.f32.mrf.mxu0
      %v1787 = vadd.f32 %v1664, %v1786
      %v1788 = vpop.f32.mrf.mxu0
      %v1789 = vadd.f32 %v1666, %v1788
      %1790 = vdwg.mxu0
      %1791 = vmatprep.subr.bf16.mxu0 %v1154
      %1792 = vmatpush1.bf16.msra.mxu0 %v1153
      %1793 = vmatprep.subr.bf16.mxu0 %v1152
      %1794 = vmatpush1.bf16.msra.mxu0 %v1151
      %1795 = vmatprep.subr.bf16.mxu0 %v1150
      %1796 = vmatpush1.bf16.msra.mxu0 %v1149
      %1797 = vmatprep.subr.bf16.mxu0 %v1148
      %1798 = vmatpush1.bf16.msra.mxu0 %v1147
      %1799 = vmatprep.subr.bf16.mxu0 %v1146
      %1800 = vmatpush1.bf16.msra.mxu0 %v1145
      %1801 = vmatprep.subr.bf16.mxu0 %v1144
      %1802 = vmatpush1.bf16.msra.mxu0 %v1143
      %1803 = vmatprep.subr.bf16.mxu0 %v1142
      %1804 = vmatpush1.bf16.msra.mxu0 %v1141
      %1805 = vmatprep.subr.bf16.mxu0 %v1140
      %1806 = vmatpush1.bf16.msra.mxu0 %v1139
      %1807 = vmatprep.subr.bf16.mxu0 0
      %1808 = vmatpush2.bf16.msra.mxu0 0
      %1809 = vmatprep.subr.bf16.mxu0 0
      %1810 = vmatpush2.bf16.msra.mxu0 0
      %1811 = vmatprep.subr.bf16.mxu0 0
      %1812 = vmatpush2.bf16.msra.mxu0 0
      %1813 = vmatprep.subr.bf16.mxu0 0
      %1814 = vmatpush2.bf16.msra.mxu0 0
      %1815 = vmatprep.subr.bf16.mxu0 0
      %1816 = vmatpush2.bf16.msra.mxu0 0
      %1817 = vmatprep.subr.bf16.mxu0 0
      %1818 = vmatpush2.bf16.msra.mxu0 0
      %1819 = vmatprep.subr.bf16.mxu0 0
      %1820 = vmatpush2.bf16.msra.mxu0 0
      %1821 = vmatprep.subr.bf16.mxu0 0
      %1822 = vmatpush2.bf16.msra.mxu0 0
      %1823 = vmatprep.mubr.bf16.mxu0 0
      %1824 = vmatmul.mubr.bf16.gmra.mxu0 %v350
      %v1825 = vpop.f32.mrf.mxu0
      %v1826 = vadd.f32 %v1703, %v1825
      %v1827 = vpop.f32.mrf.mxu0
      %v1828 = vadd.f32 %v1705, %v1827
      %v1829 = vpop.f32.mrf.mxu0
      %v1830 = vadd.f32 %v1707, %v1829
      %v1831 = vpop.f32.mrf.mxu0
      %v1832 = vadd.f32 %v1709, %v1831
      %1833 = vmatprep.mubr.bf16.mxu0 0
      %1834 = vmatmul.mubr.bf16.gmra.mxu0 %v359
      %v1835 = vpop.f32.mrf.mxu0
      %v1836 = vadd.f32 %v1713, %v1835
      %v1837 = vpop.f32.mrf.mxu0
      %v1838 = vadd.f32 %v1715, %v1837
      %v1839 = vpop.f32.mrf.mxu0
      %v1840 = vadd.f32 %v1717, %v1839
      %v1841 = vpop.f32.mrf.mxu0
      %v1842 = vadd.f32 %v1719, %v1841
      %1843 = vmatprep.mubr.bf16.mxu0 0
      %1844 = vmatmul.mubr.bf16.gmra.mxu0 %v368
      %v1845 = vpop.f32.mrf.mxu0
      %v1846 = vadd.f32 %v1723, %v1845
      %v1847 = vpop.f32.mrf.mxu0
      %v1848 = vadd.f32 %v1725, %v1847
      %v1849 = vpop.f32.mrf.mxu0
      %v1850 = vadd.f32 %v1727, %v1849
      %v1851 = vpop.f32.mrf.mxu0
      %v1852 = vadd.f32 %v1729, %v1851
      %1853 = vmatprep.mubr.bf16.mxu0 0
      %1854 = vmatmul.mubr.bf16.gmra.mxu0 %v377
      %v1855 = vpop.f32.mrf.mxu0
      %v1856 = vadd.f32 %v1733, %v1855
      %v1857 = vpop.f32.mrf.mxu0
      %v1858 = vadd.f32 %v1735, %v1857
      %v1859 = vpop.f32.mrf.mxu0
      %v1860 = vadd.f32 %v1737, %v1859
      %v1861 = vpop.f32.mrf.mxu0
      %v1862 = vadd.f32 %v1739, %v1861
      %1863 = vmatprep.mubr.bf16.mxu0 0
      %1864 = vmatmul.mubr.bf16.gmra.mxu0 %v386
      %v1865 = vpop.f32.mrf.mxu0
      %v1866 = vadd.f32 %v1743, %v1865
      %v1867 = vpop.f32.mrf.mxu0
      %v1868 = vadd.f32 %v1745, %v1867
      %v1869 = vpop.f32.mrf.mxu0
      %v1870 = vadd.f32 %v1747, %v1869
      %v1871 = vpop.f32.mrf.mxu0
      %v1872 = vadd.f32 %v1749, %v1871
      %1873 = vmatprep.mubr.bf16.mxu0 0
      %1874 = vmatmul.mubr.bf16.gmra.mxu0 %v395
      %v1875 = vpop.f32.mrf.mxu0
      %v1876 = vadd.f32 %v1753, %v1875
      %v1877 = vpop.f32.mrf.mxu0
      %v1878 = vadd.f32 %v1755, %v1877
      %v1879 = vpop.f32.mrf.mxu0
      %v1880 = vadd.f32 %v1757, %v1879
      %v1881 = vpop.f32.mrf.mxu0
      %v1882 = vadd.f32 %v1759, %v1881
      %1883 = vmatprep.mubr.bf16.mxu0 0
      %1884 = vmatmul.mubr.bf16.gmra.mxu0 %v404
      %v1885 = vpop.f32.mrf.mxu0
      %v1886 = vadd.f32 %v1763, %v1885
      %v1887 = vpop.f32.mrf.mxu0
      %v1888 = vadd.f32 %v1765, %v1887
      %v1889 = vpop.f32.mrf.mxu0
      %v1890 = vadd.f32 %v1767, %v1889
      %v1891 = vpop.f32.mrf.mxu0
      %v1892 = vadd.f32 %v1769, %v1891
      %1893 = vmatprep.mubr.bf16.mxu0 0
      %1894 = vmatmul.mubr.bf16.gmra.mxu0 %v413
      %v1895 = vpop.f32.mrf.mxu0
      %v1896 = vadd.f32 %v1773, %v1895
      %v1897 = vpop.f32.mrf.mxu0
      %v1898 = vadd.f32 %v1775, %v1897
      %v1899 = vpop.f32.mrf.mxu0
      %v1900 = vadd.f32 %v1777, %v1899
      %v1901 = vpop.f32.mrf.mxu0
      %v1902 = vadd.f32 %v1779, %v1901
      %1903 = vmatprep.mubr.bf16.mxu0 0
      %1904 = vmatmul.mubr.bf16.gmra.mxu0 %v422
      %v1905 = vpop.f32.mrf.mxu0
      %v1906 = vadd.f32 %v1783, %v1905
      %v1907 = vpop.f32.mrf.mxu0
      %v1908 = vadd.f32 %v1785, %v1907
      %v1909 = vpop.f32.mrf.mxu0
      %v1910 = vadd.f32 %v1787, %v1909
      %v1911 = vpop.f32.mrf.mxu0
      %v1912 = vadd.f32 %v1789, %v1911
      %1913 = vdwg.mxu0
      %v1914 = vmax.f32 %v1826, 0.0
      %v1915 = vmax.f32 %v1828, 0.0
      %v1916 = vmax.f32 %v1830, 0.0
      %v1917 = vmax.f32 %v1832, 0.0
      %v1918 = vmax.f32 %v1836, 0.0
      %v1919 = vmax.f32 %v1838, 0.0
      %v1920 = vmax.f32 %v1840, 0.0
      %v1921 = vmax.f32 %v1842, 0.0
      %v1922 = vmax.f32 %v1846, 0.0
      %v1923 = vmax.f32 %v1848, 0.0
      %v1924 = vmax.f32 %v1850, 0.0
      %v1925 = vmax.f32 %v1852, 0.0
      %v1926 = vmax.f32 %v1856, 0.0
      %v1927 = vmax.f32 %v1858, 0.0
      %v1928 = vmax.f32 %v1860, 0.0
      %v1929 = vmax.f32 %v1862, 0.0
      %v1930 = vmax.f32 %v1866, 0.0
      %v1931 = vmax.f32 %v1868, 0.0
      %v1932 = vmax.f32 %v1870, 0.0
      %v1933 = vmax.f32 %v1872, 0.0
      %v1934 = vmax.f32 %v1876, 0.0
      %v1935 = vmax.f32 %v1878, 0.0
      %v1936 = vmax.f32 %v1880, 0.0
      %v1937 = vmax.f32 %v1882, 0.0
      %v1938 = vmax.f32 %v1886, 0.0
      %v1939 = vmax.f32 %v1888, 0.0
      %v1940 = vmax.f32 %v1890, 0.0
      %v1941 = vmax.f32 %v1892, 0.0
      %v1942 = vmax.f32 %v1896, 0.0
      %v1943 = vmax.f32 %v1898, 0.0
      %v1944 = vmax.f32 %v1900, 0.0
      %v1945 = vmax.f32 %v1902, 0.0
      %v1946 = vmax.f32 %v1906, 0.0
      %v1947 = vmax.f32 %v1908, 0.0
      %v1948 = vmax.f32 %v1910, 0.0
      %v1949 = vmax.f32 %v1912, 0.0
      %1950 = vst [vmem:[%s177] sm:$0xff] %v1914
      %1951 = vst [vmem:[%s177 + $0x8] sm:$0xff] %v1915
      %1952 = vst [vmem:[%s177 + $0x10] sm:$0xff] %v1916
      %1953 = vst [vmem:[%s177 + $0x18] sm:$0xff] %v1917
      %1954 = vst [vmem:[%s177 + $0x20] sm:$0xff] %v1918
      %1955 = vst [vmem:[%s177 + $0x28] sm:$0xff] %v1919
      %1956 = vst [vmem:[%s177 + $0x30] sm:$0xff] %v1920
      %1957 = vst [vmem:[%s177 + $0x38] sm:$0xff] %v1921
      %1958 = vst [vmem:[%s177 + $0x40] sm:$0xff] %v1922
      %1959 = vst [vmem:[%s177 + $0x48] sm:$0xff] %v1923
      %1960 = vst [vmem:[%s177 + $0x50] sm:$0xff] %v1924
      %1961 = vst [vmem:[%s177 + $0x58] sm:$0xff] %v1925
      %1962 = vst [vmem:[%s177 + $0x60] sm:$0xff] %v1926
      %1963 = vst [vmem:[%s177 + $0x68] sm:$0xff] %v1927
      %1964 = vst [vmem:[%s177 + $0x70] sm:$0xff] %v1928
      %1965 = vst [vmem:[%s177 + $0x78] sm:$0xff] %v1929
      %1966 = vst [vmem:[%s177 + $0x80] sm:$0xff] %v1930
      %1967 = vst [vmem:[%s177 + $0x88] sm:$0xff] %v1931
      %1968 = vst [vmem:[%s177 + $0x90] sm:$0xff] %v1932
      %1969 = vst [vmem:[%s177 + $0x98] sm:$0xff] %v1933
      %1970 = vst [vmem:[%s177 + $0xa0] sm:$0xff] %v1934
      %1971 = vst [vmem:[%s177 + $0xa8] sm:$0xff] %v1935
      %1972 = vst [vmem:[%s177 + $0xb0] sm:$0xff] %v1936
      %1973 = vst [vmem:[%s177 + $0xb8] sm:$0xff] %v1937
      %1974 = vst [vmem:[%s177 + $0xc0] sm:$0xff] %v1938
      %1975 = vst [vmem:[%s177 + $0xc8] sm:$0xff] %v1939
      %1976 = vst [vmem:[%s177 + $0xd0] sm:$0xff] %v1940
      %1977 = vst [vmem:[%s177 + $0xd8] sm:$0xff] %v1941
      %1978 = vst [vmem:[%s177 + $0xe0] sm:$0xff] %v1942
      %1979 = vst [vmem:[%s177 + $0xe8] sm:$0xff] %v1943
      %1980 = vst [vmem:[%s177 + $0xf0] sm:$0xff] %v1944
      %1981 = vst [vmem:[%s177 + $0xf8] sm:$0xff] %v1945
      %1982 = vst [vmem:[%s177 + $0x100] sm:$0xff] %v1946
      %1983 = vst [vmem:[%s177 + $0x108] sm:$0xff] %v1947
      %1984 = vst [vmem:[%s177 + $0x110] sm:$0xff] %v1948
      %1985 = vst [vmem:[%s177 + $0x118] sm:$0xff] %v1949
      %s1986 = smul.u32 18, %s14
      %p1987 = scmp.lt.s32.totalorder %s1986, 35
      %s1988 = scalar_select %p1987, %s1986, 35
      %s1989 = smul.addr %s1988, 2
      %s1990 = smul.addr %s1989, 8
      %s1991 = scalar_lea.vmem %s3, %s1990
      // Predicated region
      $region33: #{mynet_forward.6} parent=31 // pred_check
        %p1992 = pneg %p100
      $region34: #{mynet_forward.6} parent=31 // pred_check_branch
        %1994 = sbr.rel (%p1992) target = $region36
      $region35: #{mynet_forward.6} parent=31 // pred_region
        %s1995 = smul.u32 18, %s14
      $region36: #{mynet_forward.6} parent=31 // pred_fallthru
        _
    $region32: #{mynet_forward.6} parent=5 // pred_fallthru
      _
    %p1996 = scmp.le.s32.totalorder 2, %s9
    // Predicated region
    $region37: #{mynet_forward.6} parent=5 // pred_check
      %p1997 = pneg %p1996
    $region38: #{mynet_forward.6} parent=5 // pred_check_branch
      %1999 = sbr.rel (%p1997) target = $region40
    $region39: #{mynet_forward.6} parent=5 // pred_region
      %s2000 = ssub.s32 %s9, 2
      // Predicated region
      $region41: #{mynet_forward.6} parent=39 // pred_check
        %p2001 = pneg %p106
      $region42: #{mynet_forward.6} parent=39 // pred_check_branch
        %2003 = sbr.rel (%p2001) target = $region44
      $region43: #{mynet_forward.6} parent=39 // pred_region
        %s2004 = smul.u32 18, %s15
        %p2005 = scmp.lt.s32.totalorder %s2004, 35
        %s2006 = scalar_select %p2005, %s2004, 35
        %s2007 = smul.addr %s2006, 2
        %s2008 = smul.addr %s2007, 8
        %s2009 = scalar_lea.vmem %s3, %s2008
      $region44: #{mynet_forward.6} parent=39 // pred_fallthru
        _
    $region40: #{mynet_forward.6} parent=5 // pred_fallthru
      _
  $region6: #{mynet_forward.6} parent=0 // loop_footer
    %s13 = sadd.s32 1, %s9
  $region7: #{mynet_forward.6} parent=0 // loop_footer_branch
    %8 = sbr.rel target = $region3
  $region8: #{mynet_forward.6} parent=0 // loop_exit
    _

// kernel: mynet_forward.7
$region0: #{mynet_forward.7}
  #allocation0 [shape = 'u32[]', space=smem, size = 0x4, offset = 0x4, fixed_abs, tag = 'smem constant byte address 0x4 - core index']
  #allocation1 [shape = 'u32[144,128]{1,0:T(1,128)}', space=vmem, size = 0x12000, scoped, tag = 'internal scratch']
  %s0 = inlined_call_operand.vmem [shape: f32[200,2304], index: 0, kind: input, shape index: {}]
  %s1 = inlined_call_operand.vmem [shape: bf16[2304,512], index: 1, kind: input, shape index: {}]
  %s2 = inlined_call_operand.vmem [shape: f32[1,512], index: 2, kind: input, shape index: {}]
  %s3 = inlined_call_operand.vmem [shape: bf16[2,200], index: 3, kind: input, shape index: {}]
  %s4 = inlined_call_operand.vmem [shape: bf16[512,32], index: 4, kind: input, shape index: {}]
  %s5 = inlined_call_operand.vmem [shape: f32[1,32], index: 5, kind: input, shape index: {}]
  %s6 = inlined_call_operand.vmem [shape: bf16[32,10], index: 6, kind: input, shape index: {}]
  %s7 = inlined_call_operand.vmem [shape: f32[1,10], index: 7, kind: input, shape index: {}]
  %s8 = inlined_call_operand.hbm [shape: f32[2,10], index: 8, kind: output, shape index: {}]
  %s9 = sld [smem:[#allocation0]]
  $region42: #{mynet_forward.7} parent=0
    _
  %s11 = ssub.s32 1, %s9
  %s12 = scalar_select 0, %s11, %s9
  $region1: #{mynet_forward.7} parent=0
    #allocation2 [shape = 'u8[1024]{0}', space=vmem, size = 0x400, scoped, tag = 'output window, operand 0, single buffered']
    #allocation3 [shape = 's32[1]{0}', space=sflag, size = 0x4, scoped, tag = 'scoped memory for mynet_forward.7']
    %13 = vsyncpa [#allocation3], 0
    // Predicated region
    $region2: #{mynet_forward.7} parent=1 // pred_check
      _
    $region3: #{mynet_forward.7} parent=1 // pred_check_branch
      %15 = sbr.rel (0) target = $region5
    $region4: #{mynet_forward.7} parent=1 // pred_region
      _
    $region5: #{mynet_forward.7} parent=1 // pred_fallthru
      _
    // Predicated region
    $region6: #{mynet_forward.7} parent=1 // pred_check
      _
    $region7: #{mynet_forward.7} parent=1 // pred_check_branch
      %17 = sbr.rel (0) target = $region9
    $region8: #{mynet_forward.7} parent=1 // pred_region
      _
    $region9: #{mynet_forward.7} parent=1 // pred_fallthru
      _
    // Predicated region
    $region10: #{mynet_forward.7} parent=1 // pred_check
      _
    $region11: #{mynet_forward.7} parent=1 // pred_check_branch
      %19 = sbr.rel (0) target = $region13
    $region12: #{mynet_forward.7} parent=1 // pred_region
      _
    $region13: #{mynet_forward.7} parent=1 // pred_fallthru
      _
    // Predicated region
    $region14: #{mynet_forward.7} parent=1 // pred_check
      _
    $region15: #{mynet_forward.7} parent=1 // pred_check_branch
      %21 = sbr.rel (0) target = $region17
    $region16: #{mynet_forward.7} parent=1 // pred_region
      _
    $region17: #{mynet_forward.7} parent=1 // pred_fallthru
      _
    // Predicated region
    $region18: #{mynet_forward.7} parent=1 // pred_check
      _
    $region19: #{mynet_forward.7} parent=1 // pred_check_branch
      %23 = sbr.rel (0) target = $region21
    $region20: #{mynet_forward.7} parent=1 // pred_region
      _
    $region21: #{mynet_forward.7} parent=1 // pred_fallthru
      _
    // Predicated region
    $region22: #{mynet_forward.7} parent=1 // pred_check
      _
    $region23: #{mynet_forward.7} parent=1 // pred_check_branch
      %25 = sbr.rel (0) target = $region25
    $region24: #{mynet_forward.7} parent=1 // pred_region
      _
    $region25: #{mynet_forward.7} parent=1 // pred_fallthru
      _
    // Predicated region
    $region26: #{mynet_forward.7} parent=1 // pred_check
      _
    $region27: #{mynet_forward.7} parent=1 // pred_check_branch
      %27 = sbr.rel (0) target = $region29
    $region28: #{mynet_forward.7} parent=1 // pred_region
      _
    $region29: #{mynet_forward.7} parent=1 // pred_fallthru
      _
    // Predicated region
    $region30: #{mynet_forward.7} parent=1 // pred_check
      _
    $region31: #{mynet_forward.7} parent=1 // pred_check_branch
      %29 = sbr.rel (0) target = $region33
    $region32: #{mynet_forward.7} parent=1 // pred_region
      _
    $region33: #{mynet_forward.7} parent=1 // pred_fallthru
      _
    %v31 = vld [vmem:[%s0] sm:$0xff]
    %v32 = vld [vmem:[%s0 + $0x8] sm:$0xff]
    %v33 = vld [vmem:[%s0 + $0x10] sm:$0xff]
    %v34 = vld [vmem:[%s0 + $0x18] sm:$0xff]
    %v35 = vld [vmem:[%s0 + $0x20] sm:$0xff]
    %v36 = vld [vmem:[%s0 + $0x28] sm:$0xff]
    %v37 = vld [vmem:[%s0 + $0x30] sm:$0xff]
    %v38 = vld [vmem:[%s0 + $0x38] sm:$0xff]
    %v39 = vld [vmem:[%s0 + $0x40] sm:$0xff]
    %v40 = vld [vmem:[%s0 + $0x48] sm:$0xff]
    %v41 = vld [vmem:[%s0 + $0x50] sm:$0xff]
    %v42 = vld [vmem:[%s0 + $0x58] sm:$0xff]
    %v43 = vld [vmem:[%s0 + $0x60] sm:$0xff]
    %v44 = vld [vmem:[%s0 + $0x68] sm:$0xff]
    %v45 = vld [vmem:[%s0 + $0x70] sm:$0xff]
    %v46 = vld [vmem:[%s0 + $0x78] sm:$0xff]
    %v47 = vld [vmem:[%s0 + $0x80] sm:$0xff]
    %v48 = vld [vmem:[%s0 + $0x88] sm:$0xff]
    %v49 = vld [vmem:[%s0 + $0x90] sm:$0xff]
    %v50 = vld [vmem:[%s0 + $0x98] sm:$0xff]
    %v51 = vld [vmem:[%s0 + $0xa0] sm:$0xff]
    %v52 = vld [vmem:[%s0 + $0xa8] sm:$0xff]
    %v53 = vld [vmem:[%s0 + $0xb0] sm:$0xff]
    %v54 = vld [vmem:[%s0 + $0xb8] sm:$0xff]
    %v55 = vld [vmem:[%s0 + $0xc0] sm:$0xff]
    %v56 = vld [vmem:[%s0 + $0xc8] sm:$0xff]
    %v57 = vld [vmem:[%s0 + $0xd0] sm:$0xff]
    %v58 = vld [vmem:[%s0 + $0xd8] sm:$0xff]
    %v59 = vld [vmem:[%s0 + $0xe0] sm:$0xff]
    %v60 = vld [vmem:[%s0 + $0xe8] sm:$0xff]
    %v61 = vld [vmem:[%s0 + $0xf0] sm:$0xff]
    %v62 = vld [vmem:[%s0 + $0xf8] sm:$0xff]
    %v63 = vld [vmem:[%s0 + $0x100] sm:$0xff]
    %v64 = vld [vmem:[%s0 + $0x108] sm:$0xff]
    %v65 = vld [vmem:[%s0 + $0x110] sm:$0xff]
    %v66 = vld [vmem:[%s0 + $0x118] sm:$0xff]
    %v67 = vld [vmem:[%s0 + $0x120] sm:$0xff]
    %v68 = vld [vmem:[%s0 + $0x128] sm:$0xff]
    %v69 = vld [vmem:[%s0 + $0x130] sm:$0xff]
    %v70 = vld [vmem:[%s0 + $0x138] sm:$0xff]
    %v71 = vld [vmem:[%s0 + $0x140] sm:$0xff]
    %v72 = vld [vmem:[%s0 + $0x148] sm:$0xff]
    %v73 = vld [vmem:[%s0 + $0x150] sm:$0xff]
    %v74 = vld [vmem:[%s0 + $0x158] sm:$0xff]
    %v75 = vld [vmem:[%s0 + $0x160] sm:$0xff]
    %v76 = vld [vmem:[%s0 + $0x168] sm:$0xff]
    %v77 = vld [vmem:[%s0 + $0x170] sm:$0xff]
    %v78 = vld [vmem:[%s0 + $0x178] sm:$0xff]
    %v79 = vld [vmem:[%s0 + $0x180] sm:$0xff]
    %v80 = vld [vmem:[%s0 + $0x188] sm:$0xff]
    %v81 = vld [vmem:[%s0 + $0x190] sm:$0xff]
    %v82 = vld [vmem:[%s0 + $0x198] sm:$0xff]
    %v83 = vld [vmem:[%s0 + $0x1a0] sm:$0xff]
    %v84 = vld [vmem:[%s0 + $0x1a8] sm:$0xff]
    %v85 = vld [vmem:[%s0 + $0x1b0] sm:$0xff]
    %v86 = vld [vmem:[%s0 + $0x1b8] sm:$0xff]
    %v87 = vld [vmem:[%s0 + $0x1c0] sm:$0xff]
    %v88 = vld [vmem:[%s0 + $0x1c8] sm:$0xff]
    %v89 = vld [vmem:[%s0 + $0x1d0] sm:$0xff]
    %v90 = vld [vmem:[%s0 + $0x1d8] sm:$0xff]
    %v91 = vld [vmem:[%s0 + $0x1e0] sm:$0xff]
    %v92 = vld [vmem:[%s0 + $0x1e8] sm:$0xff]
    %v93 = vld [vmem:[%s0 + $0x1f0] sm:$0xff]
    %v94 = vld [vmem:[%s0 + $0x1f8] sm:$0xff]
    %v95 = vld [vmem:[%s0 + $0x200] sm:$0xff]
    %v96 = vld [vmem:[%s0 + $0x208] sm:$0xff]
    %v97 = vld [vmem:[%s0 + $0x210] sm:$0xff]
    %v98 = vld [vmem:[%s0 + $0x218] sm:$0xff]
    %v99 = vld [vmem:[%s0 + $0x220] sm:$0xff]
    %v100 = vld [vmem:[%s0 + $0x228] sm:$0xff]
    %v101 = vld [vmem:[%s0 + $0x230] sm:$0xff]
    %v102 = vld [vmem:[%s0 + $0x238] sm:$0xff]
    %v103 = vld [vmem:[%s0 + $0x240] sm:$0xff]
    %v104 = vld [vmem:[%s0 + $0x248] sm:$0xff]
    %v105 = vld [vmem:[%s0 + $0x250] sm:$0xff]
    %v106 = vld [vmem:[%s0 + $0x258] sm:$0xff]
    %v107 = vld [vmem:[%s0 + $0x260] sm:$0xff]
    %v108 = vld [vmem:[%s0 + $0x268] sm:$0xff]
    %v109 = vld [vmem:[%s0 + $0x270] sm:$0xff]
    %v110 = vld [vmem:[%s0 + $0x278] sm:$0xff]
    %v111 = vld [vmem:[%s0 + $0x280] sm:$0xff]
    %v112 = vld [vmem:[%s0 + $0x288] sm:$0xff]
    %v113 = vld [vmem:[%s0 + $0x290] sm:$0xff]
    %v114 = vld [vmem:[%s0 + $0x298] sm:$0xff]
    %v115 = vld [vmem:[%s0 + $0x2a0] sm:$0xff]
    %v116 = vld [vmem:[%s0 + $0x2a8] sm:$0xff]
    %v117 = vld [vmem:[%s0 + $0x2b0] sm:$0xff]
    %v118 = vld [vmem:[%s0 + $0x2b8] sm:$0xff]
    %v119 = vld [vmem:[%s0 + $0x2c0] sm:$0xff]
    %v120 = vld [vmem:[%s0 + $0x2c8] sm:$0xff]
    %v121 = vld [vmem:[%s0 + $0x2d0] sm:$0xff]
    %v122 = vld [vmem:[%s0 + $0x2d8] sm:$0xff]
    %v123 = vld [vmem:[%s0 + $0x2e0] sm:$0xff]
    %v124 = vld [vmem:[%s0 + $0x2e8] sm:$0xff]
    %v125 = vld [vmem:[%s0 + $0x2f0] sm:$0xff]
    %v126 = vld [vmem:[%s0 + $0x2f8] sm:$0xff]
    %v127 = vld [vmem:[%s0 + $0x300] sm:$0xff]
    %v128 = vld [vmem:[%s0 + $0x308] sm:$0xff]
    %v129 = vld [vmem:[%s0 + $0x310] sm:$0xff]
    %v130 = vld [vmem:[%s0 + $0x318] sm:$0xff]
    %v131 = vld [vmem:[%s0 + $0x320] sm:$0xff]
    %v132 = vld [vmem:[%s0 + $0x328] sm:$0xff]
    %v133 = vld [vmem:[%s0 + $0x330] sm:$0xff]
    %v134 = vld [vmem:[%s0 + $0x338] sm:$0xff]
    %v135 = vld [vmem:[%s0 + $0x340] sm:$0xff]
    %v136 = vld [vmem:[%s0 + $0x348] sm:$0xff]
    %v137 = vld [vmem:[%s0 + $0x350] sm:$0xff]
    %v138 = vld [vmem:[%s0 + $0x358] sm:$0xff]
    %v139 = vld [vmem:[%s0 + $0x360] sm:$0xff]
    %v140 = vld [vmem:[%s0 + $0x368] sm:$0xff]
    %v141 = vld [vmem:[%s0 + $0x370] sm:$0xff]
    %v142 = vld [vmem:[%s0 + $0x378] sm:$0xff]
    %v143 = vld [vmem:[%s0 + $0x380] sm:$0xff]
    %v144 = vld [vmem:[%s0 + $0x388] sm:$0xff]
    %v145 = vld [vmem:[%s0 + $0x390] sm:$0xff]
    %v146 = vld [vmem:[%s0 + $0x398] sm:$0xff]
    %v147 = vld [vmem:[%s0 + $0x3a0] sm:$0xff]
    %v148 = vld [vmem:[%s0 + $0x3a8] sm:$0xff]
    %v149 = vld [vmem:[%s0 + $0x3b0] sm:$0xff]
    %v150 = vld [vmem:[%s0 + $0x3b8] sm:$0xff]
    %v151 = vld [vmem:[%s0 + $0x3c0] sm:$0xff]
    %v152 = vld [vmem:[%s0 + $0x3c8] sm:$0xff]
    %v153 = vld [vmem:[%s0 + $0x3d0] sm:$0xff]
    %v154 = vld [vmem:[%s0 + $0x3d8] sm:$0xff]
    %v155 = vld [vmem:[%s0 + $0x3e0] sm:$0xff]
    %v156 = vld [vmem:[%s0 + $0x3e8] sm:$0xff]
    %v157 = vld [vmem:[%s0 + $0x3f0] sm:$0xff]
    %v158 = vld [vmem:[%s0 + $0x3f8] sm:$0xff]
    %v159 = vld [vmem:[%s0 + $0x400] sm:$0xff]
    %v160 = vld [vmem:[%s0 + $0x408] sm:$0xff]
    %v161 = vld [vmem:[%s0 + $0x410] sm:$0xff]
    %v162 = vld [vmem:[%s0 + $0x418] sm:$0xff]
    %v163 = vld [vmem:[%s0 + $0x420] sm:$0xff]
    %v164 = vld [vmem:[%s0 + $0x428] sm:$0xff]
    %v165 = vld [vmem:[%s0 + $0x430] sm:$0xff]
    %v166 = vld [vmem:[%s0 + $0x438] sm:$0xff]
    %v167 = vld [vmem:[%s0 + $0x440] sm:$0xff]
    %v168 = vld [vmem:[%s0 + $0x448] sm:$0xff]
    %v169 = vld [vmem:[%s0 + $0x450] sm:$0xff]
    %v170 = vld [vmem:[%s0 + $0x458] sm:$0xff]
    %v171 = vld [vmem:[%s0 + $0x460] sm:$0xff]
    %v172 = vld [vmem:[%s0 + $0x468] sm:$0xff]
    %v173 = vld [vmem:[%s0 + $0x470] sm:$0xff]
    %v174 = vld [vmem:[%s0 + $0x478] sm:$0xff]
    %v175 = vld [vmem:[%s0 + $0x480] sm:$0xff]
    %v176 = vld [vmem:[%s0 + $0x488] sm:$0xff]
    %v177 = vld [vmem:[%s0 + $0x490] sm:$0xff]
    %v178 = vld [vmem:[%s0 + $0x498] sm:$0xff]
    %v179 = vld [vmem:[%s0 + $0x4a0] sm:$0xff]
    %v180 = vld [vmem:[%s0 + $0x4a8] sm:$0xff]
    %v181 = vld [vmem:[%s0 + $0x4b0] sm:$0xff]
    %v182 = vld [vmem:[%s0 + $0x4b8] sm:$0xff]
    %v183 = vld [vmem:[%s0 + $0x4c0] sm:$0xff]
    %v184 = vld [vmem:[%s0 + $0x4c8] sm:$0xff]
    %v185 = vld [vmem:[%s0 + $0x4d0] sm:$0xff]
    %v186 = vld [vmem:[%s0 + $0x4d8] sm:$0xff]
    %v187 = vld [vmem:[%s0 + $0x4e0] sm:$0xff]
    %v188 = vld [vmem:[%s0 + $0x4e8] sm:$0xff]
    %v189 = vld [vmem:[%s0 + $0x4f0] sm:$0xff]
    %v190 = vld [vmem:[%s0 + $0x4f8] sm:$0xff]
    %v191 = vld [vmem:[%s0 + $0x500] sm:$0xff]
    %v192 = vld [vmem:[%s0 + $0x508] sm:$0xff]
    %v193 = vld [vmem:[%s0 + $0x510] sm:$0xff]
    %v194 = vld [vmem:[%s0 + $0x518] sm:$0xff]
    %v195 = vld [vmem:[%s0 + $0x520] sm:$0xff]
    %v196 = vld [vmem:[%s0 + $0x528] sm:$0xff]
    %v197 = vld [vmem:[%s0 + $0x530] sm:$0xff]
    %v198 = vld [vmem:[%s0 + $0x538] sm:$0xff]
    %v199 = vld [vmem:[%s0 + $0x540] sm:$0xff]
    %v200 = vld [vmem:[%s0 + $0x548] sm:$0xff]
    %v201 = vld [vmem:[%s0 + $0x550] sm:$0xff]
    %v202 = vld [vmem:[%s0 + $0x558] sm:$0xff]
    %v203 = vld [vmem:[%s0 + $0x560] sm:$0xff]
    %v204 = vld [vmem:[%s0 + $0x568] sm:$0xff]
    %v205 = vld [vmem:[%s0 + $0x570] sm:$0xff]
    %v206 = vld [vmem:[%s0 + $0x578] sm:$0xff]
    %v207 = vld [vmem:[%s0 + $0x580] sm:$0xff]
    %v208 = vld [vmem:[%s0 + $0x588] sm:$0xff]
    %v209 = vld [vmem:[%s0 + $0x590] sm:$0xff]
    %v210 = vld [vmem:[%s0 + $0x598] sm:$0xff]
    %v211 = vld [vmem:[%s0 + $0x5a0] sm:$0xff]
    %v212 = vld [vmem:[%s0 + $0x5a8] sm:$0xff]
    %v213 = vld [vmem:[%s0 + $0x5b0] sm:$0xff]
    %v214 = vld [vmem:[%s0 + $0x5b8] sm:$0xff]
    %v215 = vld [vmem:[%s0 + $0x5c0] sm:$0xff]
    %v216 = vld [vmem:[%s0 + $0x5c8] sm:$0xff]
    %v217 = vld [vmem:[%s0 + $0x5d0] sm:$0xff]
    %v218 = vld [vmem:[%s0 + $0x5d8] sm:$0xff]
    %v219 = vld [vmem:[%s0 + $0x5e0] sm:$0xff]
    %v220 = vld [vmem:[%s0 + $0x5e8] sm:$0xff]
    %v221 = vld [vmem:[%s0 + $0x5f0] sm:$0xff]
    %v222 = vld [vmem:[%s0 + $0x5f8] sm:$0xff]
    %v223 = vld [vmem:[%s0 + $0x600] sm:$0xff]
    %v224 = vld [vmem:[%s0 + $0x608] sm:$0xff]
    %v225 = vld [vmem:[%s0 + $0x610] sm:$0xff]
    %v226 = vld [vmem:[%s0 + $0x618] sm:$0xff]
    %v227 = vld [vmem:[%s0 + $0x620] sm:$0xff]
    %v228 = vld [vmem:[%s0 + $0x628] sm:$0xff]
    %v229 = vld [vmem:[%s0 + $0x630] sm:$0xff]
    %v230 = vld [vmem:[%s0 + $0x638] sm:$0xff]
    %v231 = vld [vmem:[%s0 + $0x640] sm:$0xff]
    %v232 = vld [vmem:[%s0 + $0x648] sm:$0xff]
    %v233 = vld [vmem:[%s0 + $0x650] sm:$0xff]
    %v234 = vld [vmem:[%s0 + $0x658] sm:$0xff]
    %v235 = vld [vmem:[%s0 + $0x660] sm:$0xff]
    %v236 = vld [vmem:[%s0 + $0x668] sm:$0xff]
    %v237 = vld [vmem:[%s0 + $0x670] sm:$0xff]
    %v238 = vld [vmem:[%s0 + $0x678] sm:$0xff]
    %v239 = vld [vmem:[%s0 + $0x680] sm:$0xff]
    %v240 = vld [vmem:[%s0 + $0x688] sm:$0xff]
    %v241 = vld [vmem:[%s0 + $0x690] sm:$0xff]
    %v242 = vld [vmem:[%s0 + $0x698] sm:$0xff]
    %v243 = vld [vmem:[%s0 + $0x6a0] sm:$0xff]
    %v244 = vld [vmem:[%s0 + $0x6a8] sm:$0xff]
    %v245 = vld [vmem:[%s0 + $0x6b0] sm:$0xff]
    %v246 = vld [vmem:[%s0 + $0x6b8] sm:$0xff]
    %v247 = vld [vmem:[%s0 + $0x6c0] sm:$0xff]
    %v248 = vld [vmem:[%s0 + $0x6c8] sm:$0xff]
    %v249 = vld [vmem:[%s0 + $0x6d0] sm:$0xff]
    %v250 = vld [vmem:[%s0 + $0x6d8] sm:$0xff]
    %v251 = vld [vmem:[%s0 + $0x6e0] sm:$0xff]
    %v252 = vld [vmem:[%s0 + $0x6e8] sm:$0xff]
    %v253 = vld [vmem:[%s0 + $0x6f0] sm:$0xff]
    %v254 = vld [vmem:[%s0 + $0x6f8] sm:$0xff]
    %v255 = vld [vmem:[%s0 + $0x700] sm:$0xff]
    %v256 = vld [vmem:[%s0 + $0x708] sm:$0xff]
    %v257 = vld [vmem:[%s0 + $0x710] sm:$0xff]
    %v258 = vld [vmem:[%s0 + $0x718] sm:$0xff]
    %v259 = vld [vmem:[%s0 + $0x720] sm:$0xff]
    %v260 = vld [vmem:[%s0 + $0x728] sm:$0xff]
    %v261 = vld [vmem:[%s0 + $0x730] sm:$0xff]
    %v262 = vld [vmem:[%s0 + $0x738] sm:$0xff]
    %v263 = vld [vmem:[%s0 + $0x740] sm:$0xff]
    %v264 = vld [vmem:[%s0 + $0x748] sm:$0xff]
    %v265 = vld [vmem:[%s0 + $0x750] sm:$0xff]
    %v266 = vld [vmem:[%s0 + $0x758] sm:$0xff]
    %v267 = vld [vmem:[%s0 + $0x760] sm:$0xff]
    %v268 = vld [vmem:[%s0 + $0x768] sm:$0xff]
    %v269 = vld [vmem:[%s0 + $0x770] sm:$0xff]
    %v270 = vld [vmem:[%s0 + $0x778] sm:$0xff]
    %v271 = vld [vmem:[%s0 + $0x780] sm:$0xff]
    %v272 = vld [vmem:[%s0 + $0x788] sm:$0xff]
    %v273 = vld [vmem:[%s0 + $0x790] sm:$0xff]
    %v274 = vld [vmem:[%s0 + $0x798] sm:$0xff]
    %v275 = vld [vmem:[%s0 + $0x7a0] sm:$0xff]
    %v276 = vld [vmem:[%s0 + $0x7a8] sm:$0xff]
    %v277 = vld [vmem:[%s0 + $0x7b0] sm:$0xff]
    %v278 = vld [vmem:[%s0 + $0x7b8] sm:$0xff]
    %v279 = vld [vmem:[%s0 + $0x7c0] sm:$0xff]
    %v280 = vld [vmem:[%s0 + $0x7c8] sm:$0xff]
    %v281 = vld [vmem:[%s0 + $0x7d0] sm:$0xff]
    %v282 = vld [vmem:[%s0 + $0x7d8] sm:$0xff]
    %v283 = vld [vmem:[%s0 + $0x7e0] sm:$0xff]
    %v284 = vld [vmem:[%s0 + $0x7e8] sm:$0xff]
    %v285 = vld [vmem:[%s0 + $0x7f0] sm:$0xff]
    %v286 = vld [vmem:[%s0 + $0x7f8] sm:$0xff]
    %v287 = vld [vmem:[%s0 + $0x800] sm:$0xff]
    %v288 = vld [vmem:[%s0 + $0x808] sm:$0xff]
    %v289 = vld [vmem:[%s0 + $0x810] sm:$0xff]
    %v290 = vld [vmem:[%s0 + $0x818] sm:$0xff]
    %v291 = vld [vmem:[%s0 + $0x820] sm:$0xff]
    %v292 = vld [vmem:[%s0 + $0x828] sm:$0xff]
    %v293 = vld [vmem:[%s0 + $0x830] sm:$0xff]
    %v294 = vld [vmem:[%s0 + $0x838] sm:$0xff]
    %v295 = vld [vmem:[%s0 + $0x840] sm:$0xff]
    %v296 = vld [vmem:[%s0 + $0x848] sm:$0xff]
    %v297 = vld [vmem:[%s0 + $0x850] sm:$0xff]
    %v298 = vld [vmem:[%s0 + $0x858] sm:$0xff]
    %v299 = vld [vmem:[%s0 + $0x860] sm:$0xff]
    %v300 = vld [vmem:[%s0 + $0x868] sm:$0xff]
    %v301 = vld [vmem:[%s0 + $0x870] sm:$0xff]
    %v302 = vld [vmem:[%s0 + $0x878] sm:$0xff]
    %v303 = vld [vmem:[%s0 + $0x880] sm:$0xff]
    %v304 = vld [vmem:[%s0 + $0x888] sm:$0xff]
    %v305 = vld [vmem:[%s0 + $0x890] sm:$0xff]
    %v306 = vld [vmem:[%s0 + $0x898] sm:$0xff]
    %v307 = vld [vmem:[%s0 + $0x8a0] sm:$0xff]
    %v308 = vld [vmem:[%s0 + $0x8a8] sm:$0xff]
    %v309 = vld [vmem:[%s0 + $0x8b0] sm:$0xff]
    %v310 = vld [vmem:[%s0 + $0x8b8] sm:$0xff]
    %v311 = vld [vmem:[%s0 + $0x8c0] sm:$0xff]
    %v312 = vld [vmem:[%s0 + $0x8c8] sm:$0xff]
    %v313 = vld [vmem:[%s0 + $0x8d0] sm:$0xff]
    %v314 = vld [vmem:[%s0 + $0x8d8] sm:$0xff]
    %v315 = vld [vmem:[%s0 + $0x8e0] sm:$0xff]
    %v316 = vld [vmem:[%s0 + $0x8e8] sm:$0xff]
    %v317 = vld [vmem:[%s0 + $0x8f0] sm:$0xff]
    %v318 = vld [vmem:[%s0 + $0x8f8] sm:$0xff]
    %v319 = vld [vmem:[%s0 + $0x900] sm:$0xff]
    %v320 = vld [vmem:[%s0 + $0x908] sm:$0xff]
    %v321 = vld [vmem:[%s0 + $0x910] sm:$0xff]
    %v322 = vld [vmem:[%s0 + $0x918] sm:$0xff]
    %v323 = vld [vmem:[%s0 + $0x920] sm:$0xff]
    %v324 = vld [vmem:[%s0 + $0x928] sm:$0xff]
    %v325 = vld [vmem:[%s0 + $0x930] sm:$0xff]
    %v326 = vld [vmem:[%s0 + $0x938] sm:$0xff]
    %v327 = vld [vmem:[%s0 + $0x940] sm:$0xff]
    %v328 = vld [vmem:[%s0 + $0x948] sm:$0xff]
    %v329 = vld [vmem:[%s0 + $0x950] sm:$0xff]
    %v330 = vld [vmem:[%s0 + $0x958] sm:$0xff]
    %v331 = vld [vmem:[%s0 + $0x960] sm:$0xff]
    %v332 = vld [vmem:[%s0 + $0x968] sm:$0xff]
    %v333 = vld [vmem:[%s0 + $0x970] sm:$0xff]
    %v334 = vld [vmem:[%s0 + $0x978] sm:$0xff]
    %v335 = vld [vmem:[%s0 + $0x980] sm:$0xff]
    %v336 = vld [vmem:[%s0 + $0x988] sm:$0xff]
    %v337 = vld [vmem:[%s0 + $0x990] sm:$0xff]
    %v338 = vld [vmem:[%s0 + $0x998] sm:$0xff]
    %v339 = vld [vmem:[%s0 + $0x9a0] sm:$0xff]
    %v340 = vld [vmem:[%s0 + $0x9a8] sm:$0xff]
    %v341 = vld [vmem:[%s0 + $0x9b0] sm:$0xff]
    %v342 = vld [vmem:[%s0 + $0x9b8] sm:$0xff]
    %v343 = vld [vmem:[%s0 + $0x9c0] sm:$0xff]
    %v344 = vld [vmem:[%s0 + $0x9c8] sm:$0xff]
    %v345 = vld [vmem:[%s0 + $0x9d0] sm:$0xff]
    %v346 = vld [vmem:[%s0 + $0x9d8] sm:$0xff]
    %v347 = vld [vmem:[%s0 + $0x9e0] sm:$0xff]
    %v348 = vld [vmem:[%s0 + $0x9e8] sm:$0xff]
    %v349 = vld [vmem:[%s0 + $0x9f0] sm:$0xff]
    %v350 = vld [vmem:[%s0 + $0x9f8] sm:$0xff]
    %v351 = vld [vmem:[%s0 + $0xa00] sm:$0xff]
    %v352 = vld [vmem:[%s0 + $0xa08] sm:$0xff]
    %v353 = vld [vmem:[%s0 + $0xa10] sm:$0xff]
    %v354 = vld [vmem:[%s0 + $0xa18] sm:$0xff]
    %v355 = vld [vmem:[%s0 + $0xa20] sm:$0xff]
    %v356 = vld [vmem:[%s0 + $0xa28] sm:$0xff]
    %v357 = vld [vmem:[%s0 + $0xa30] sm:$0xff]
    %v358 = vld [vmem:[%s0 + $0xa38] sm:$0xff]
    %v359 = vld [vmem:[%s0 + $0xa40] sm:$0xff]
    %v360 = vld [vmem:[%s0 + $0xa48] sm:$0xff]
    %v361 = vld [vmem:[%s0 + $0xa50] sm:$0xff]
    %v362 = vld [vmem:[%s0 + $0xa58] sm:$0xff]
    %v363 = vld [vmem:[%s0 + $0xa60] sm:$0xff]
    %v364 = vld [vmem:[%s0 + $0xa68] sm:$0xff]
    %v365 = vld [vmem:[%s0 + $0xa70] sm:$0xff]
    %v366 = vld [vmem:[%s0 + $0xa78] sm:$0xff]
    %v367 = vld [vmem:[%s0 + $0xa80] sm:$0xff]
    %v368 = vld [vmem:[%s0 + $0xa88] sm:$0xff]
    %v369 = vld [vmem:[%s0 + $0xa90] sm:$0xff]
    %v370 = vld [vmem:[%s0 + $0xa98] sm:$0xff]
    %v371 = vld [vmem:[%s0 + $0xaa0] sm:$0xff]
    %v372 = vld [vmem:[%s0 + $0xaa8] sm:$0xff]
    %v373 = vld [vmem:[%s0 + $0xab0] sm:$0xff]
    %v374 = vld [vmem:[%s0 + $0xab8] sm:$0xff]
    %v375 = vld [vmem:[%s0 + $0xac0] sm:$0xff]
    %v376 = vld [vmem:[%s0 + $0xac8] sm:$0xff]
    %v377 = vld [vmem:[%s0 + $0xad0] sm:$0xff]
    %v378 = vld [vmem:[%s0 + $0xad8] sm:$0xff]
    %v379 = vld [vmem:[%s0 + $0xae0] sm:$0xff]
    %v380 = vld [vmem:[%s0 + $0xae8] sm:$0xff]
    %v381 = vld [vmem:[%s0 + $0xaf0] sm:$0xff]
    %v382 = vld [vmem:[%s0 + $0xaf8] sm:$0xff]
    %v383 = vld [vmem:[%s0 + $0xb00] sm:$0xff]
    %v384 = vld [vmem:[%s0 + $0xb08] sm:$0xff]
    %v385 = vld [vmem:[%s0 + $0xb10] sm:$0xff]
    %v386 = vld [vmem:[%s0 + $0xb18] sm:$0xff]
    %v387 = vld [vmem:[%s0 + $0xb20] sm:$0xff]
    %v388 = vld [vmem:[%s0 + $0xb28] sm:$0xff]
    %v389 = vld [vmem:[%s0 + $0xb30] sm:$0xff]
    %v390 = vld [vmem:[%s0 + $0xb38] sm:$0xff]
    %v391 = vld [vmem:[%s0 + $0xb40] sm:$0xff]
    %v392 = vld [vmem:[%s0 + $0xb48] sm:$0xff]
    %v393 = vld [vmem:[%s0 + $0xb50] sm:$0xff]
    %v394 = vld [vmem:[%s0 + $0xb58] sm:$0xff]
    %v395 = vld [vmem:[%s0 + $0xb60] sm:$0xff]
    %v396 = vld [vmem:[%s0 + $0xb68] sm:$0xff]
    %v397 = vld [vmem:[%s0 + $0xb70] sm:$0xff]
    %v398 = vld [vmem:[%s0 + $0xb78] sm:$0xff]
    %v399 = vld [vmem:[%s0 + $0xb80] sm:$0xff]
    %v400 = vld [vmem:[%s0 + $0xb88] sm:$0xff]
    %v401 = vld [vmem:[%s0 + $0xb90] sm:$0xff]
    %v402 = vld [vmem:[%s0 + $0xb98] sm:$0xff]
    %v403 = vld [vmem:[%s0 + $0xba0] sm:$0xff]
    %v404 = vld [vmem:[%s0 + $0xba8] sm:$0xff]
    %v405 = vld [vmem:[%s0 + $0xbb0] sm:$0xff]
    %v406 = vld [vmem:[%s0 + $0xbb8] sm:$0xff]
    %v407 = vld [vmem:[%s0 + $0xbc0] sm:$0xff]
    %v408 = vld [vmem:[%s0 + $0xbc8] sm:$0xff]
    %v409 = vld [vmem:[%s0 + $0xbd0] sm:$0xff]
    %v410 = vld [vmem:[%s0 + $0xbd8] sm:$0xff]
    %v411 = vld [vmem:[%s0 + $0xbe0] sm:$0xff]
    %v412 = vld [vmem:[%s0 + $0xbe8] sm:$0xff]
    %v413 = vld [vmem:[%s0 + $0xbf0] sm:$0xff]
    %v414 = vld [vmem:[%s0 + $0xbf8] sm:$0xff]
    %v415 = vld [vmem:[%s0 + $0xc00] sm:$0xff]
    %v416 = vld [vmem:[%s0 + $0xc08] sm:$0xff]
    %v417 = vld [vmem:[%s0 + $0xc10] sm:$0xff]
    %v418 = vld [vmem:[%s0 + $0xc18] sm:$0xff]
    %v419 = vld [vmem:[%s0 + $0xc20] sm:$0xff]
    %v420 = vld [vmem:[%s0 + $0xc28] sm:$0xff]
    %v421 = vld [vmem:[%s0 + $0xc30] sm:$0xff]
    %v422 = vld [vmem:[%s0 + $0xc38] sm:$0xff]
    %v423 = vld [vmem:[%s0 + $0xc40] sm:$0xff]
    %v424 = vld [vmem:[%s0 + $0xc48] sm:$0xff]
    %v425 = vld [vmem:[%s0 + $0xc50] sm:$0xff]
    %v426 = vld [vmem:[%s0 + $0xc58] sm:$0xff]
    %v427 = vld [vmem:[%s0 + $0xc60] sm:$0xff]
    %v428 = vld [vmem:[%s0 + $0xc68] sm:$0xff]
    %v429 = vld [vmem:[%s0 + $0xc70] sm:$0xff]
    %v430 = vld [vmem:[%s0 + $0xc78] sm:$0xff]
    %v431 = vld [vmem:[%s0 + $0xc80] sm:$0xff]
    %v432 = vld [vmem:[%s0 + $0xc88] sm:$0xff]
    %v433 = vld [vmem:[%s0 + $0xc90] sm:$0xff]
    %v434 = vld [vmem:[%s0 + $0xc98] sm:$0xff]
    %v435 = vld [vmem:[%s0 + $0xca0] sm:$0xff]
    %v436 = vld [vmem:[%s0 + $0xca8] sm:$0xff]
    %v437 = vld [vmem:[%s0 + $0xcb0] sm:$0xff]
    %v438 = vld [vmem:[%s0 + $0xcb8] sm:$0xff]
    %v439 = vld [vmem:[%s0 + $0xcc0] sm:$0xff]
    %v440 = vld [vmem:[%s0 + $0xcc8] sm:$0xff]
    %v441 = vld [vmem:[%s0 + $0xcd0] sm:$0xff]
    %v442 = vld [vmem:[%s0 + $0xcd8] sm:$0xff]
    %v443 = vld [vmem:[%s0 + $0xce0] sm:$0xff]
    %v444 = vld [vmem:[%s0 + $0xce8] sm:$0xff]
    %v445 = vld [vmem:[%s0 + $0xcf0] sm:$0xff]
    %v446 = vld [vmem:[%s0 + $0xcf8] sm:$0xff]
    %v447 = vld [vmem:[%s0 + $0xd00] sm:$0xff]
    %v448 = vld [vmem:[%s0 + $0xd08] sm:$0xff]
    %v449 = vld [vmem:[%s0 + $0xd10] sm:$0xff]
    %v450 = vld [vmem:[%s0 + $0xd18] sm:$0xff]
    %v451 = vld [vmem:[%s0 + $0xd20] sm:$0xff]
    %v452 = vld [vmem:[%s0 + $0xd28] sm:$0xff]
    %v453 = vld [vmem:[%s0 + $0xd30] sm:$0xff]
    %v454 = vld [vmem:[%s0 + $0xd38] sm:$0xff]
    %v455 = vld [vmem:[%s0 + $0xd40] sm:$0xff]
    %v456 = vld [vmem:[%s0 + $0xd48] sm:$0xff]
    %v457 = vld [vmem:[%s0 + $0xd50] sm:$0xff]
    %v458 = vld [vmem:[%s0 + $0xd58] sm:$0xff]
    %v459 = vld [vmem:[%s0 + $0xd60] sm:$0xff]
    %v460 = vld [vmem:[%s0 + $0xd68] sm:$0xff]
    %v461 = vld [vmem:[%s0 + $0xd70] sm:$0xff]
    %v462 = vld [vmem:[%s0 + $0xd78] sm:$0xff]
    %v463 = vld [vmem:[%s0 + $0xd80] sm:$0xff]
    %v464 = vld [vmem:[%s0 + $0xd88] sm:$0xff]
    %v465 = vld [vmem:[%s0 + $0xd90] sm:$0xff]
    %v466 = vld [vmem:[%s0 + $0xd98] sm:$0xff]
    %v467 = vld [vmem:[%s0 + $0xda0] sm:$0xff]
    %v468 = vld [vmem:[%s0 + $0xda8] sm:$0xff]
    %v469 = vld [vmem:[%s0 + $0xdb0] sm:$0xff]
    %v470 = vld [vmem:[%s0 + $0xdb8] sm:$0xff]
    %v471 = vld [vmem:[%s0 + $0xdc0] sm:$0xff]
    %v472 = vld [vmem:[%s0 + $0xdc8] sm:$0xff]
    %v473 = vld [vmem:[%s0 + $0xdd0] sm:$0xff]
    %v474 = vld [vmem:[%s0 + $0xdd8] sm:$0xff]
    %v475 = vld [vmem:[%s0 + $0xde0] sm:$0xff]
    %v476 = vld [vmem:[%s0 + $0xde8] sm:$0xff]
    %v477 = vld [vmem:[%s0 + $0xdf0] sm:$0xff]
    %v478 = vld [vmem:[%s0 + $0xdf8] sm:$0xff]
    %v479 = vld [vmem:[%s0 + $0xe00] sm:$0xff]
    %v480 = vld [vmem:[%s0 + $0xe08] sm:$0xff]
    %v481 = vpack.c.bf16 %v49, %v31
    %v482 = vpack.c.bf16 %v50, %v32
    %v483 = vpack.c.bf16 %v51, %v33
    %v484 = vpack.c.bf16 %v52, %v34
    %v485 = vpack.c.bf16 %v53, %v35
    %v486 = vpack.c.bf16 %v54, %v36
    %v487 = vpack.c.bf16 %v55, %v37
    %v488 = vpack.c.bf16 %v56, %v38
    %v489 = vpack.c.bf16 %v57, %v39
    %v490 = vpack.c.bf16 %v58, %v40
    %v491 = vpack.c.bf16 %v59, %v41
    %v492 = vpack.c.bf16 %v60, %v42
    %v493 = vpack.c.bf16 %v61, %v43
    %v494 = vpack.c.bf16 %v62, %v44
    %v495 = vpack.c.bf16 %v63, %v45
    %v496 = vpack.c.bf16 %v64, %v46
    %v497 = vpack.c.bf16 %v65, %v47
    %v498 = vpack.c.bf16 %v66, %v48
    %v499 = vpack.c.bf16 %v85, %v67
    %v500 = vpack.c.bf16 %v86, %v68
    %v501 = vpack.c.bf16 %v87, %v69
    %v502 = vpack.c.bf16 %v88, %v70
    %v503 = vpack.c.bf16 %v89, %v71
    %v504 = vpack.c.bf16 %v90, %v72
    %v505 = vpack.c.bf16 %v91, %v73
    %v506 = vpack.c.bf16 %v92, %v74
    %v507 = vpack.c.bf16 %v93, %v75
    %v508 = vpack.c.bf16 %v94, %v76
    %v509 = vpack.c.bf16 %v95, %v77
    %v510 = vpack.c.bf16 %v96, %v78
    %v511 = vpack.c.bf16 %v97, %v79
    %v512 = vpack.c.bf16 %v98, %v80
    %v513 = vpack.c.bf16 %v99, %v81
    %v514 = vpack.c.bf16 %v100, %v82
    %v515 = vpack.c.bf16 %v101, %v83
    %v516 = vpack.c.bf16 %v102, %v84
    %v517 = vpack.c.bf16 %v121, %v103
    %v518 = vpack.c.bf16 %v122, %v104
    %v519 = vpack.c.bf16 %v123, %v105
    %v520 = vpack.c.bf16 %v124, %v106
    %v521 = vpack.c.bf16 %v125, %v107
    %v522 = vpack.c.bf16 %v126, %v108
    %v523 = vpack.c.bf16 %v127, %v109
    %v524 = vpack.c.bf16 %v128, %v110
    %v525 = vpack.c.bf16 %v129, %v111
    %v526 = vpack.c.bf16 %v130, %v112
    %v527 = vpack.c.bf16 %v131, %v113
    %v528 = vpack.c.bf16 %v132, %v114
    %v529 = vpack.c.bf16 %v133, %v115
    %v530 = vpack.c.bf16 %v134, %v116
    %v531 = vpack.c.bf16 %v135, %v117
    %v532 = vpack.c.bf16 %v136, %v118
    %v533 = vpack.c.bf16 %v137, %v119
    %v534 = vpack.c.bf16 %v138, %v120
    %v535 = vpack.c.bf16 %v157, %v139
    %v536 = vpack.c.bf16 %v158, %v140
    %v537 = vpack.c.bf16 %v159, %v141
    %v538 = vpack.c.bf16 %v160, %v142
    %v539 = vpack.c.bf16 %v161, %v143
    %v540 = vpack.c.bf16 %v162, %v144
    %v541 = vpack.c.bf16 %v163, %v145
    %v542 = vpack.c.bf16 %v164, %v146
    %v543 = vpack.c.bf16 %v165, %v147
    %v544 = vpack.c.bf16 %v166, %v148
    %v545 = vpack.c.bf16 %v167, %v149
    %v546 = vpack.c.bf16 %v168, %v150
    %v547 = vpack.c.bf16 %v169, %v151
    %v548 = vpack.c.bf16 %v170, %v152
    %v549 = vpack.c.bf16 %v171, %v153
    %v550 = vpack.c.bf16 %v172, %v154
    %v551 = vpack.c.bf16 %v173, %v155
    %v552 = vpack.c.bf16 %v174, %v156
    %v553 = vpack.c.bf16 %v193, %v175
    %v554 = vpack.c.bf16 %v194, %v176
    %v555 = vpack.c.bf16 %v195, %v177
    %v556 = vpack.c.bf16 %v196, %v178
    %v557 = vpack.c.bf16 %v197, %v179
    %v558 = vpack.c.bf16 %v198, %v180
    %v559 = vpack.c.bf16 %v199, %v181
    %v560 = vpack.c.bf16 %v200, %v182
    %v561 = vpack.c.bf16 %v201, %v183
    %v562 = vpack.c.bf16 %v202, %v184
    %v563 = vpack.c.bf16 %v203, %v185
    %v564 = vpack.c.bf16 %v204, %v186
    %v565 = vpack.c.bf16 %v205, %v187
    %v566 = vpack.c.bf16 %v206, %v188
    %v567 = vpack.c.bf16 %v207, %v189
    %v568 = vpack.c.bf16 %v208, %v190
    %v569 = vpack.c.bf16 %v209, %v191
    %v570 = vpack.c.bf16 %v210, %v192
    %v571 = vpack.c.bf16 %v229, %v211
    %v572 = vpack.c.bf16 %v230, %v212
    %v573 = vpack.c.bf16 %v231, %v213
    %v574 = vpack.c.bf16 %v232, %v214
    %v575 = vpack.c.bf16 %v233, %v215
    %v576 = vpack.c.bf16 %v234, %v216
    %v577 = vpack.c.bf16 %v235, %v217
    %v578 = vpack.c.bf16 %v236, %v218
    %v579 = vpack.c.bf16 %v237, %v219
    %v580 = vpack.c.bf16 %v238, %v220
    %v581 = vpack.c.bf16 %v239, %v221
    %v582 = vpack.c.bf16 %v240, %v222
    %v583 = vpack.c.bf16 %v241, %v223
    %v584 = vpack.c.bf16 %v242, %v224
    %v585 = vpack.c.bf16 %v243, %v225
    %v586 = vpack.c.bf16 %v244, %v226
    %v587 = vpack.c.bf16 %v245, %v227
    %v588 = vpack.c.bf16 %v246, %v228
    %v589 = vpack.c.bf16 %v265, %v247
    %v590 = vpack.c.bf16 %v266, %v248
    %v591 = vpack.c.bf16 %v267, %v249
    %v592 = vpack.c.bf16 %v268, %v250
    %v593 = vpack.c.bf16 %v269, %v251
    %v594 = vpack.c.bf16 %v270, %v252
    %v595 = vpack.c.bf16 %v271, %v253
    %v596 = vpack.c.bf16 %v272, %v254
    %v597 = vpack.c.bf16 %v273, %v255
    %v598 = vpack.c.bf16 %v274, %v256
    %v599 = vpack.c.bf16 %v275, %v257
    %v600 = vpack.c.bf16 %v276, %v258
    %v601 = vpack.c.bf16 %v277, %v259
    %v602 = vpack.c.bf16 %v278, %v260
    %v603 = vpack.c.bf16 %v279, %v261
    %v604 = vpack.c.bf16 %v280, %v262
    %v605 = vpack.c.bf16 %v281, %v263
    %v606 = vpack.c.bf16 %v282, %v264
    %v607 = vpack.c.bf16 %v301, %v283
    %v608 = vpack.c.bf16 %v302, %v284
    %v609 = vpack.c.bf16 %v303, %v285
    %v610 = vpack.c.bf16 %v304, %v286
    %v611 = vpack.c.bf16 %v305, %v287
    %v612 = vpack.c.bf16 %v306, %v288
    %v613 = vpack.c.bf16 %v307, %v289
    %v614 = vpack.c.bf16 %v308, %v290
    %v615 = vpack.c.bf16 %v309, %v291
    %v616 = vpack.c.bf16 %v310, %v292
    %v617 = vpack.c.bf16 %v311, %v293
    %v618 = vpack.c.bf16 %v312, %v294
    %v619 = vpack.c.bf16 %v313, %v295
    %v620 = vpack.c.bf16 %v314, %v296
    %v621 = vpack.c.bf16 %v315, %v297
    %v622 = vpack.c.bf16 %v316, %v298
    %v623 = vpack.c.bf16 %v317, %v299
    %v624 = vpack.c.bf16 %v318, %v300
    %v625 = vpack.c.bf16 %v337, %v319
    %v626 = vpack.c.bf16 %v338, %v320
    %v627 = vpack.c.bf16 %v339, %v321
    %v628 = vpack.c.bf16 %v340, %v322
    %v629 = vpack.c.bf16 %v341, %v323
    %v630 = vpack.c.bf16 %v342, %v324
    %v631 = vpack.c.bf16 %v343, %v325
    %v632 = vpack.c.bf16 %v344, %v326
    %v633 = vpack.c.bf16 %v345, %v327
    %v634 = vpack.c.bf16 %v346, %v328
    %v635 = vpack.c.bf16 %v347, %v329
    %v636 = vpack.c.bf16 %v348, %v330
    %v637 = vpack.c.bf16 %v349, %v331
    %v638 = vpack.c.bf16 %v350, %v332
    %v639 = vpack.c.bf16 %v351, %v333
    %v640 = vpack.c.bf16 %v352, %v334
    %v641 = vpack.c.bf16 %v353, %v335
    %v642 = vpack.c.bf16 %v354, %v336
    %v643 = vpack.c.bf16 %v373, %v355
    %v644 = vpack.c.bf16 %v374, %v356
    %v645 = vpack.c.bf16 %v375, %v357
    %v646 = vpack.c.bf16 %v376, %v358
    %v647 = vpack.c.bf16 %v377, %v359
    %v648 = vpack.c.bf16 %v378, %v360
    %v649 = vpack.c.bf16 %v379, %v361
    %v650 = vpack.c.bf16 %v380, %v362
    %v651 = vpack.c.bf16 %v381, %v363
    %v652 = vpack.c.bf16 %v382, %v364
    %v653 = vpack.c.bf16 %v383, %v365
    %v654 = vpack.c.bf16 %v384, %v366
    %v655 = vpack.c.bf16 %v385, %v367
    %v656 = vpack.c.bf16 %v386, %v368
    %v657 = vpack.c.bf16 %v387, %v369
    %v658 = vpack.c.bf16 %v388, %v370
    %v659 = vpack.c.bf16 %v389, %v371
    %v660 = vpack.c.bf16 %v390, %v372
    %v661 = vpack.c.bf16 %v409, %v391
    %v662 = vpack.c.bf16 %v410, %v392
    %v663 = vpack.c.bf16 %v411, %v393
    %v664 = vpack.c.bf16 %v412, %v394
    %v665 = vpack.c.bf16 %v413, %v395
    %v666 = vpack.c.bf16 %v414, %v396
    %v667 = vpack.c.bf16 %v415, %v397
    %v668 = vpack.c.bf16 %v416, %v398
    %v669 = vpack.c.bf16 %v417, %v399
    %v670 = vpack.c.bf16 %v418, %v400
    %v671 = vpack.c.bf16 %v419, %v401
    %v672 = vpack.c.bf16 %v420, %v402
    %v673 = vpack.c.bf16 %v421, %v403
    %v674 = vpack.c.bf16 %v422, %v404
    %v675 = vpack.c.bf16 %v423, %v405
    %v676 = vpack.c.bf16 %v424, %v406
    %v677 = vpack.c.bf16 %v425, %v407
    %v678 = vpack.c.bf16 %v426, %v408
    %v679 = vpack.c.bf16 %v445, %v427
    %v680 = vpack.c.bf16 %v446, %v428
    %v681 = vpack.c.bf16 %v447, %v429
    %v682 = vpack.c.bf16 %v448, %v430
    %v683 = vpack.c.bf16 %v449, %v431
    %v684 = vpack.c.bf16 %v450, %v432
    %v685 = vpack.c.bf16 %v451, %v433
    %v686 = vpack.c.bf16 %v452, %v434
    %v687 = vpack.c.bf16 %v453, %v435
    %v688 = vpack.c.bf16 %v454, %v436
    %v689 = vpack.c.bf16 %v455, %v437
    %v690 = vpack.c.bf16 %v456, %v438
    %v691 = vpack.c.bf16 %v457, %v439
    %v692 = vpack.c.bf16 %v458, %v440
    %v693 = vpack.c.bf16 %v459, %v441
    %v694 = vpack.c.bf16 %v460, %v442
    %v695 = vpack.c.bf16 %v461, %v443
    %v696 = vpack.c.bf16 %v462, %v444
    %v697 = vpack.c.bf16 %v463, %v463
    %v698 = vpack.c.bf16 %v464, %v464
    %v699 = vpack.c.bf16 %v465, %v465
    %v700 = vpack.c.bf16 %v466, %v466
    %v701 = vpack.c.bf16 %v467, %v467
    %v702 = vpack.c.bf16 %v468, %v468
    %v703 = vpack.c.bf16 %v469, %v469
    %v704 = vpack.c.bf16 %v470, %v470
    %v705 = vpack.c.bf16 %v471, %v471
    %v706 = vpack.c.bf16 %v472, %v472
    %v707 = vpack.c.bf16 %v473, %v473
    %v708 = vpack.c.bf16 %v474, %v474
    %v709 = vpack.c.bf16 %v475, %v475
    %v710 = vpack.c.bf16 %v476, %v476
    %v711 = vpack.c.bf16 %v477, %v477
    %v712 = vpack.c.bf16 %v478, %v478
    %v713 = vpack.c.bf16 %v479, %v479
    %v714 = vpack.c.bf16 %v480, %v480
    %v715 = vld [vmem:[%s1] sm:$0xff]
    %v716 = vld [vmem:[%s1 + $0x8] sm:$0xff]
    %v717 = vld [vmem:[%s1 + $0x10] sm:$0xff]
    %v718 = vld [vmem:[%s1 + $0x18] sm:$0xff]
    %v719 = vld [vmem:[%s1 + $0x20] sm:$0xff]
    %v720 = vld [vmem:[%s1 + $0x28] sm:$0xff]
    %v721 = vld [vmem:[%s1 + $0x30] sm:$0xff]
    %v722 = vld [vmem:[%s1 + $0x38] sm:$0xff]
    %v723 = vld [vmem:[%s1 + $0x40] sm:$0xff]
    %v724 = vld [vmem:[%s1 + $0x48] sm:$0xff]
    %v725 = vld [vmem:[%s1 + $0x50] sm:$0xff]
    %v726 = vld [vmem:[%s1 + $0x58] sm:$0xff]
    %v727 = vld [vmem:[%s1 + $0x60] sm:$0xff]
    %v728 = vld [vmem:[%s1 + $0x68] sm:$0xff]
    %v729 = vld [vmem:[%s1 + $0x70] sm:$0xff]
    %v730 = vld [vmem:[%s1 + $0x78] sm:$0xff]
    %v731 = vld [vmem:[%s1 + $0x80] sm:$0xff]
    %v732 = vld [vmem:[%s1 + $0x88] sm:$0xff]
    %v733 = vld [vmem:[%s1 + $0x90] sm:$0xff]
    %v734 = vld [vmem:[%s1 + $0x98] sm:$0xff]
    %v735 = vld [vmem:[%s1 + $0xa0] sm:$0xff]
    %v736 = vld [vmem:[%s1 + $0xa8] sm:$0xff]
    %v737 = vld [vmem:[%s1 + $0xb0] sm:$0xff]
    %v738 = vld [vmem:[%s1 + $0xb8] sm:$0xff]
    %v739 = vld [vmem:[%s1 + $0xc0] sm:$0xff]
    %v740 = vld [vmem:[%s1 + $0xc8] sm:$0xff]
    %v741 = vld [vmem:[%s1 + $0xd0] sm:$0xff]
    %v742 = vld [vmem:[%s1 + $0xd8] sm:$0xff]
    %v743 = vld [vmem:[%s1 + $0xe0] sm:$0xff]
    %v744 = vld [vmem:[%s1 + $0xe8] sm:$0xff]
    %v745 = vld [vmem:[%s1 + $0xf0] sm:$0xff]
    %v746 = vld [vmem:[%s1 + $0xf8] sm:$0xff]
    %v747 = vld [vmem:[%s1 + $0x100] sm:$0xff]
    %v748 = vld [vmem:[%s1 + $0x108] sm:$0xff]
    %v749 = vld [vmem:[%s1 + $0x110] sm:$0xff]
    %v750 = vld [vmem:[%s1 + $0x118] sm:$0xff]
    %v751 = vld [vmem:[%s1 + $0x120] sm:$0xff]
    %v752 = vld [vmem:[%s1 + $0x128] sm:$0xff]
    %v753 = vld [vmem:[%s1 + $0x130] sm:$0xff]
    %v754 = vld [vmem:[%s1 + $0x138] sm:$0xff]
    %v755 = vld [vmem:[%s1 + $0x140] sm:$0xff]
    %v756 = vld [vmem:[%s1 + $0x148] sm:$0xff]
    %v757 = vld [vmem:[%s1 + $0x150] sm:$0xff]
    %v758 = vld [vmem:[%s1 + $0x158] sm:$0xff]
    %v759 = vld [vmem:[%s1 + $0x160] sm:$0xff]
    %v760 = vld [vmem:[%s1 + $0x168] sm:$0xff]
    %v761 = vld [vmem:[%s1 + $0x170] sm:$0xff]
    %v762 = vld [vmem:[%s1 + $0x178] sm:$0xff]
    %v763 = vld [vmem:[%s1 + $0x180] sm:$0xff]
    %v764 = vld [vmem:[%s1 + $0x188] sm:$0xff]
    %v765 = vld [vmem:[%s1 + $0x190] sm:$0xff]
    %v766 = vld [vmem:[%s1 + $0x198] sm:$0xff]
    %v767 = vld [vmem:[%s1 + $0x1a0] sm:$0xff]
    %v768 = vld [vmem:[%s1 + $0x1a8] sm:$0xff]
    %v769 = vld [vmem:[%s1 + $0x1b0] sm:$0xff]
    %v770 = vld [vmem:[%s1 + $0x1b8] sm:$0xff]
    %v771 = vld [vmem:[%s1 + $0x1c0] sm:$0xff]
    %v772 = vld [vmem:[%s1 + $0x1c8] sm:$0xff]
    %v773 = vld [vmem:[%s1 + $0x1d0] sm:$0xff]
    %v774 = vld [vmem:[%s1 + $0x1d8] sm:$0xff]
    %v775 = vld [vmem:[%s1 + $0x1e0] sm:$0xff]
    %v776 = vld [vmem:[%s1 + $0x1e8] sm:$0xff]
    %v777 = vld [vmem:[%s1 + $0x1f0] sm:$0xff]
    %v778 = vld [vmem:[%s1 + $0x1f8] sm:$0xff]
    %v779 = vld [vmem:[%s1 + $0x200] sm:$0xff]
    %v780 = vld [vmem:[%s1 + $0x208] sm:$0xff]
    %v781 = vld [vmem:[%s1 + $0x210] sm:$0xff]
    %v782 = vld [vmem:[%s1 + $0x218] sm:$0xff]
    %v783 = vld [vmem:[%s1 + $0x220] sm:$0xff]
    %v784 = vld [vmem:[%s1 + $0x228] sm:$0xff]
    %v785 = vld [vmem:[%s1 + $0x230] sm:$0xff]
    %v786 = vld [vmem:[%s1 + $0x238] sm:$0xff]
    %v787 = vld [vmem:[%s1 + $0x240] sm:$0xff]
    %v788 = vld [vmem:[%s1 + $0x248] sm:$0xff]
    %v789 = vld [vmem:[%s1 + $0x250] sm:$0xff]
    %v790 = vld [vmem:[%s1 + $0x258] sm:$0xff]
    %v791 = vld [vmem:[%s1 + $0x260] sm:$0xff]
    %v792 = vld [vmem:[%s1 + $0x268] sm:$0xff]
    %v793 = vld [vmem:[%s1 + $0x270] sm:$0xff]
    %v794 = vld [vmem:[%s1 + $0x278] sm:$0xff]
    %v795 = vld [vmem:[%s1 + $0x280] sm:$0xff]
    %v796 = vld [vmem:[%s1 + $0x288] sm:$0xff]
    %v797 = vld [vmem:[%s1 + $0x290] sm:$0xff]
    %v798 = vld [vmem:[%s1 + $0x298] sm:$0xff]
    %v799 = vld [vmem:[%s1 + $0x2a0] sm:$0xff]
    %v800 = vld [vmem:[%s1 + $0x2a8] sm:$0xff]
    %v801 = vld [vmem:[%s1 + $0x2b0] sm:$0xff]
    %v802 = vld [vmem:[%s1 + $0x2b8] sm:$0xff]
    %v803 = vld [vmem:[%s1 + $0x2c0] sm:$0xff]
    %v804 = vld [vmem:[%s1 + $0x2c8] sm:$0xff]
    %v805 = vld [vmem:[%s1 + $0x2d0] sm:$0xff]
    %v806 = vld [vmem:[%s1 + $0x2d8] sm:$0xff]
    %v807 = vld [vmem:[%s1 + $0x2e0] sm:$0xff]
    %v808 = vld [vmem:[%s1 + $0x2e8] sm:$0xff]
    %v809 = vld [vmem:[%s1 + $0x2f0] sm:$0xff]
    %v810 = vld [vmem:[%s1 + $0x2f8] sm:$0xff]
    %v811 = vld [vmem:[%s1 + $0x300] sm:$0xff]
    %v812 = vld [vmem:[%s1 + $0x308] sm:$0xff]
    %v813 = vld [vmem:[%s1 + $0x310] sm:$0xff]
    %v814 = vld [vmem:[%s1 + $0x318] sm:$0xff]
    %v815 = vld [vmem:[%s1 + $0x320] sm:$0xff]
    %v816 = vld [vmem:[%s1 + $0x328] sm:$0xff]
    %v817 = vld [vmem:[%s1 + $0x330] sm:$0xff]
    %v818 = vld [vmem:[%s1 + $0x338] sm:$0xff]
    %v819 = vld [vmem:[%s1 + $0x340] sm:$0xff]
    %v820 = vld [vmem:[%s1 + $0x348] sm:$0xff]
    %v821 = vld [vmem:[%s1 + $0x350] sm:$0xff]
    %v822 = vld [vmem:[%s1 + $0x358] sm:$0xff]
    %v823 = vld [vmem:[%s1 + $0x360] sm:$0xff]
    %v824 = vld [vmem:[%s1 + $0x368] sm:$0xff]
    %v825 = vld [vmem:[%s1 + $0x370] sm:$0xff]
    %v826 = vld [vmem:[%s1 + $0x378] sm:$0xff]
    %v827 = vld [vmem:[%s1 + $0x380] sm:$0xff]
    %v828 = vld [vmem:[%s1 + $0x388] sm:$0xff]
    %v829 = vld [vmem:[%s1 + $0x390] sm:$0xff]
    %v830 = vld [vmem:[%s1 + $0x398] sm:$0xff]
    %v831 = vld [vmem:[%s1 + $0x3a0] sm:$0xff]
    %v832 = vld [vmem:[%s1 + $0x3a8] sm:$0xff]
    %v833 = vld [vmem:[%s1 + $0x3b0] sm:$0xff]
    %v834 = vld [vmem:[%s1 + $0x3b8] sm:$0xff]
    %v835 = vld [vmem:[%s1 + $0x3c0] sm:$0xff]
    %v836 = vld [vmem:[%s1 + $0x3c8] sm:$0xff]
    %v837 = vld [vmem:[%s1 + $0x3d0] sm:$0xff]
    %v838 = vld [vmem:[%s1 + $0x3d8] sm:$0xff]
    %v839 = vld [vmem:[%s1 + $0x3e0] sm:$0xff]
    %v840 = vld [vmem:[%s1 + $0x3e8] sm:$0xff]
    %v841 = vld [vmem:[%s1 + $0x3f0] sm:$0xff]
    %v842 = vld [vmem:[%s1 + $0x3f8] sm:$0xff]
    %v843 = vld [vmem:[%s1 + $0x400] sm:$0xff]
    %v844 = vld [vmem:[%s1 + $0x408] sm:$0xff]
    %v845 = vld [vmem:[%s1 + $0x410] sm:$0xff]
    %v846 = vld [vmem:[%s1 + $0x418] sm:$0xff]
    %v847 = vld [vmem:[%s1 + $0x420] sm:$0xff]
    %v848 = vld [vmem:[%s1 + $0x428] sm:$0xff]
    %v849 = vld [vmem:[%s1 + $0x430] sm:$0xff]
    %v850 = vld [vmem:[%s1 + $0x438] sm:$0xff]
    %v851 = vld [vmem:[%s1 + $0x440] sm:$0xff]
    %v852 = vld [vmem:[%s1 + $0x448] sm:$0xff]
    %v853 = vld [vmem:[%s1 + $0x450] sm:$0xff]
    %v854 = vld [vmem:[%s1 + $0x458] sm:$0xff]
    %v855 = vld [vmem:[%s1 + $0x460] sm:$0xff]
    %v856 = vld [vmem:[%s1 + $0x468] sm:$0xff]
    %v857 = vld [vmem:[%s1 + $0x470] sm:$0xff]
    %v858 = vld [vmem:[%s1 + $0x478] sm:$0xff]
    %v859 = vld [vmem:[%s1 + $0x480] sm:$0xff]
    %v860 = vld [vmem:[%s1 + $0x488] sm:$0xff]
    %v861 = vld [vmem:[%s1 + $0x490] sm:$0xff]
    %v862 = vld [vmem:[%s1 + $0x498] sm:$0xff]
    %v863 = vld [vmem:[%s1 + $0x4a0] sm:$0xff]
    %v864 = vld [vmem:[%s1 + $0x4a8] sm:$0xff]
    %v865 = vld [vmem:[%s1 + $0x4b0] sm:$0xff]
    %v866 = vld [vmem:[%s1 + $0x4b8] sm:$0xff]
    %v867 = vld [vmem:[%s1 + $0x4c0] sm:$0xff]
    %v868 = vld [vmem:[%s1 + $0x4c8] sm:$0xff]
    %v869 = vld [vmem:[%s1 + $0x4d0] sm:$0xff]
    %v870 = vld [vmem:[%s1 + $0x4d8] sm:$0xff]
    %v871 = vld [vmem:[%s1 + $0x4e0] sm:$0xff]
    %v872 = vld [vmem:[%s1 + $0x4e8] sm:$0xff]
    %v873 = vld [vmem:[%s1 + $0x4f0] sm:$0xff]
    %v874 = vld [vmem:[%s1 + $0x4f8] sm:$0xff]
    %v875 = vld [vmem:[%s1 + $0x500] sm:$0xff]
    %v876 = vld [vmem:[%s1 + $0x508] sm:$0xff]
    %v877 = vld [vmem:[%s1 + $0x510] sm:$0xff]
    %v878 = vld [vmem:[%s1 + $0x518] sm:$0xff]
    %v879 = vld [vmem:[%s1 + $0x520] sm:$0xff]
    %v880 = vld [vmem:[%s1 + $0x528] sm:$0xff]
    %v881 = vld [vmem:[%s1 + $0x530] sm:$0xff]
    %v882 = vld [vmem:[%s1 + $0x538] sm:$0xff]
    %v883 = vld [vmem:[%s1 + $0x540] sm:$0xff]
    %v884 = vld [vmem:[%s1 + $0x548] sm:$0xff]
    %v885 = vld [vmem:[%s1 + $0x550] sm:$0xff]
    %v886 = vld [vmem:[%s1 + $0x558] sm:$0xff]
    %v887 = vld [vmem:[%s1 + $0x560] sm:$0xff]
    %v888 = vld [vmem:[%s1 + $0x568] sm:$0xff]
    %v889 = vld [vmem:[%s1 + $0x570] sm:$0xff]
    %v890 = vld [vmem:[%s1 + $0x578] sm:$0xff]
    %v891 = vld [vmem:[%s1 + $0x580] sm:$0xff]
    %v892 = vld [vmem:[%s1 + $0x588] sm:$0xff]
    %v893 = vld [vmem:[%s1 + $0x590] sm:$0xff]
    %v894 = vld [vmem:[%s1 + $0x598] sm:$0xff]
    %v895 = vld [vmem:[%s1 + $0x5a0] sm:$0xff]
    %v896 = vld [vmem:[%s1 + $0x5a8] sm:$0xff]
    %v897 = vld [vmem:[%s1 + $0x5b0] sm:$0xff]
    %v898 = vld [vmem:[%s1 + $0x5b8] sm:$0xff]
    %v899 = vld [vmem:[%s1 + $0x5c0] sm:$0xff]
    %v900 = vld [vmem:[%s1 + $0x5c8] sm:$0xff]
    %v901 = vld [vmem:[%s1 + $0x5d0] sm:$0xff]
    %v902 = vld [vmem:[%s1 + $0x5d8] sm:$0xff]
    %v903 = vld [vmem:[%s1 + $0x5e0] sm:$0xff]
    %v904 = vld [vmem:[%s1 + $0x5e8] sm:$0xff]
    %v905 = vld [vmem:[%s1 + $0x5f0] sm:$0xff]
    %v906 = vld [vmem:[%s1 + $0x5f8] sm:$0xff]
    %v907 = vld [vmem:[%s1 + $0x600] sm:$0xff]
    %v908 = vld [vmem:[%s1 + $0x608] sm:$0xff]
    %v909 = vld [vmem:[%s1 + $0x610] sm:$0xff]
    %v910 = vld [vmem:[%s1 + $0x618] sm:$0xff]
    %v911 = vld [vmem:[%s1 + $0x620] sm:$0xff]
    %v912 = vld [vmem:[%s1 + $0x628] sm:$0xff]
    %v913 = vld [vmem:[%s1 + $0x630] sm:$0xff]
    %v914 = vld [vmem:[%s1 + $0x638] sm:$0xff]
    %v915 = vld [vmem:[%s1 + $0x640] sm:$0xff]
    %v916 = vld [vmem:[%s1 + $0x648] sm:$0xff]
    %v917 = vld [vmem:[%s1 + $0x650] sm:$0xff]
    %v918 = vld [vmem:[%s1 + $0x658] sm:$0xff]
    %v919 = vld [vmem:[%s1 + $0x660] sm:$0xff]
    %v920 = vld [vmem:[%s1 + $0x668] sm:$0xff]
    %v921 = vld [vmem:[%s1 + $0x670] sm:$0xff]
    %v922 = vld [vmem:[%s1 + $0x678] sm:$0xff]
    %v923 = vld [vmem:[%s1 + $0x680] sm:$0xff]
    %v924 = vld [vmem:[%s1 + $0x688] sm:$0xff]
    %v925 = vld [vmem:[%s1 + $0x690] sm:$0xff]
    %v926 = vld [vmem:[%s1 + $0x698] sm:$0xff]
    %v927 = vld [vmem:[%s1 + $0x6a0] sm:$0xff]
    %v928 = vld [vmem:[%s1 + $0x6a8] sm:$0xff]
    %v929 = vld [vmem:[%s1 + $0x6b0] sm:$0xff]
    %v930 = vld [vmem:[%s1 + $0x6b8] sm:$0xff]
    %v931 = vld [vmem:[%s1 + $0x6c0] sm:$0xff]
    %v932 = vld [vmem:[%s1 + $0x6c8] sm:$0xff]
    %v933 = vld [vmem:[%s1 + $0x6d0] sm:$0xff]
    %v934 = vld [vmem:[%s1 + $0x6d8] sm:$0xff]
    %v935 = vld [vmem:[%s1 + $0x6e0] sm:$0xff]
    %v936 = vld [vmem:[%s1 + $0x6e8] sm:$0xff]
    %v937 = vld [vmem:[%s1 + $0x6f0] sm:$0xff]
    %v938 = vld [vmem:[%s1 + $0x6f8] sm:$0xff]
    %v939 = vld [vmem:[%s1 + $0x700] sm:$0xff]
    %v940 = vld [vmem:[%s1 + $0x708] sm:$0xff]
    %v941 = vld [vmem:[%s1 + $0x710] sm:$0xff]
    %v942 = vld [vmem:[%s1 + $0x718] sm:$0xff]
    %v943 = vld [vmem:[%s1 + $0x720] sm:$0xff]
    %v944 = vld [vmem:[%s1 + $0x728] sm:$0xff]
    %v945 = vld [vmem:[%s1 + $0x730] sm:$0xff]
    %v946 = vld [vmem:[%s1 + $0x738] sm:$0xff]
    %v947 = vld [vmem:[%s1 + $0x740] sm:$0xff]
    %v948 = vld [vmem:[%s1 + $0x748] sm:$0xff]
    %v949 = vld [vmem:[%s1 + $0x750] sm:$0xff]
    %v950 = vld [vmem:[%s1 + $0x758] sm:$0xff]
    %v951 = vld [vmem:[%s1 + $0x760] sm:$0xff]
    %v952 = vld [vmem:[%s1 + $0x768] sm:$0xff]
    %v953 = vld [vmem:[%s1 + $0x770] sm:$0xff]
    %v954 = vld [vmem:[%s1 + $0x778] sm:$0xff]
    %v955 = vld [vmem:[%s1 + $0x780] sm:$0xff]
    %v956 = vld [vmem:[%s1 + $0x788] sm:$0xff]
    %v957 = vld [vmem:[%s1 + $0x790] sm:$0xff]
    %v958 = vld [vmem:[%s1 + $0x798] sm:$0xff]
    %v959 = vld [vmem:[%s1 + $0x7a0] sm:$0xff]
    %v960 = vld [vmem:[%s1 + $0x7a8] sm:$0xff]
    %v961 = vld [vmem:[%s1 + $0x7b0] sm:$0xff]
    %v962 = vld [vmem:[%s1 + $0x7b8] sm:$0xff]
    %v963 = vld [vmem:[%s1 + $0x7c0] sm:$0xff]
    %v964 = vld [vmem:[%s1 + $0x7c8] sm:$0xff]
    %v965 = vld [vmem:[%s1 + $0x7d0] sm:$0xff]
    %v966 = vld [vmem:[%s1 + $0x7d8] sm:$0xff]
    %v967 = vld [vmem:[%s1 + $0x7e0] sm:$0xff]
    %v968 = vld [vmem:[%s1 + $0x7e8] sm:$0xff]
    %v969 = vld [vmem:[%s1 + $0x7f0] sm:$0xff]
    %v970 = vld [vmem:[%s1 + $0x7f8] sm:$0xff]
    %v971 = vld [vmem:[%s1 + $0x800] sm:$0xff]
    %v972 = vld [vmem:[%s1 + $0x808] sm:$0xff]
    %v973 = vld [vmem:[%s1 + $0x810] sm:$0xff]
    %v974 = vld [vmem:[%s1 + $0x818] sm:$0xff]
    %v975 = vld [vmem:[%s1 + $0x820] sm:$0xff]
    %v976 = vld [vmem:[%s1 + $0x828] sm:$0xff]
    %v977 = vld [vmem:[%s1 + $0x830] sm:$0xff]
    %v978 = vld [vmem:[%s1 + $0x838] sm:$0xff]
    %v979 = vld [vmem:[%s1 + $0x840] sm:$0xff]
    %v980 = vld [vmem:[%s1 + $0x848] sm:$0xff]
    %v981 = vld [vmem:[%s1 + $0x850] sm:$0xff]
    %v982 = vld [vmem:[%s1 + $0x858] sm:$0xff]
    %v983 = vld [vmem:[%s1 + $0x860] sm:$0xff]
    %v984 = vld [vmem:[%s1 + $0x868] sm:$0xff]
    %v985 = vld [vmem:[%s1 + $0x870] sm:$0xff]
    %v986 = vld [vmem:[%s1 + $0x878] sm:$0xff]
    %v987 = vld [vmem:[%s1 + $0x880] sm:$0xff]
    %v988 = vld [vmem:[%s1 + $0x888] sm:$0xff]
    %v989 = vld [vmem:[%s1 + $0x890] sm:$0xff]
    %v990 = vld [vmem:[%s1 + $0x898] sm:$0xff]
    %v991 = vld [vmem:[%s1 + $0x8a0] sm:$0xff]
    %v992 = vld [vmem:[%s1 + $0x8a8] sm:$0xff]
    %v993 = vld [vmem:[%s1 + $0x8b0] sm:$0xff]
    %v994 = vld [vmem:[%s1 + $0x8b8] sm:$0xff]
    %v995 = vld [vmem:[%s1 + $0x8c0] sm:$0xff]
    %v996 = vld [vmem:[%s1 + $0x8c8] sm:$0xff]
    %v997 = vld [vmem:[%s1 + $0x8d0] sm:$0xff]
    %v998 = vld [vmem:[%s1 + $0x8d8] sm:$0xff]
    %v999 = vld [vmem:[%s1 + $0x8e0] sm:$0xff]
    %v1000 = vld [vmem:[%s1 + $0x8e8] sm:$0xff]
    %v1001 = vld [vmem:[%s1 + $0x8f0] sm:$0xff]
    %v1002 = vld [vmem:[%s1 + $0x8f8] sm:$0xff]
    %v1003 = vld [vmem:[%s1 + $0x900] sm:$0xff]
    %v1004 = vld [vmem:[%s1 + $0x908] sm:$0xff]
    %v1005 = vld [vmem:[%s1 + $0x910] sm:$0xff]
    %v1006 = vld [vmem:[%s1 + $0x918] sm:$0xff]
    %v1007 = vld [vmem:[%s1 + $0x920] sm:$0xff]
    %v1008 = vld [vmem:[%s1 + $0x928] sm:$0xff]
    %v1009 = vld [vmem:[%s1 + $0x930] sm:$0xff]
    %v1010 = vld [vmem:[%s1 + $0x938] sm:$0xff]
    %v1011 = vld [vmem:[%s1 + $0x940] sm:$0xff]
    %v1012 = vld [vmem:[%s1 + $0x948] sm:$0xff]
    %v1013 = vld [vmem:[%s1 + $0x950] sm:$0xff]
    %v1014 = vld [vmem:[%s1 + $0x958] sm:$0xff]
    %v1015 = vld [vmem:[%s1 + $0x960] sm:$0xff]
    %v1016 = vld [vmem:[%s1 + $0x968] sm:$0xff]
    %v1017 = vld [vmem:[%s1 + $0x970] sm:$0xff]
    %v1018 = vld [vmem:[%s1 + $0x978] sm:$0xff]
    %v1019 = vld [vmem:[%s1 + $0x980] sm:$0xff]
    %v1020 = vld [vmem:[%s1 + $0x988] sm:$0xff]
    %v1021 = vld [vmem:[%s1 + $0x990] sm:$0xff]
    %v1022 = vld [vmem:[%s1 + $0x998] sm:$0xff]
    %v1023 = vld [vmem:[%s1 + $0x9a0] sm:$0xff]
    %v1024 = vld [vmem:[%s1 + $0x9a8] sm:$0xff]
    %v1025 = vld [vmem:[%s1 + $0x9b0] sm:$0xff]
    %v1026 = vld [vmem:[%s1 + $0x9b8] sm:$0xff]
    %v1027 = vld [vmem:[%s1 + $0x9c0] sm:$0xff]
    %v1028 = vld [vmem:[%s1 + $0x9c8] sm:$0xff]
    %v1029 = vld [vmem:[%s1 + $0x9d0] sm:$0xff]
    %v1030 = vld [vmem:[%s1 + $0x9d8] sm:$0xff]
    %v1031 = vld [vmem:[%s1 + $0x9e0] sm:$0xff]
    %v1032 = vld [vmem:[%s1 + $0x9e8] sm:$0xff]
    %v1033 = vld [vmem:[%s1 + $0x9f0] sm:$0xff]
    %v1034 = vld [vmem:[%s1 + $0x9f8] sm:$0xff]
    %v1035 = vld [vmem:[%s1 + $0xa00] sm:$0xff]
    %v1036 = vld [vmem:[%s1 + $0xa08] sm:$0xff]
    %v1037 = vld [vmem:[%s1 + $0xa10] sm:$0xff]
    %v1038 = vld [vmem:[%s1 + $0xa18] sm:$0xff]
    %v1039 = vld [vmem:[%s1 + $0xa20] sm:$0xff]
    %v1040 = vld [vmem:[%s1 + $0xa28] sm:$0xff]
    %v1041 = vld [vmem:[%s1 + $0xa30] sm:$0xff]
    %v1042 = vld [vmem:[%s1 + $0xa38] sm:$0xff]
    %v1043 = vld [vmem:[%s1 + $0xa40] sm:$0xff]
    %v1044 = vld [vmem:[%s1 + $0xa48] sm:$0xff]
    %v1045 = vld [vmem:[%s1 + $0xa50] sm:$0xff]
    %v1046 = vld [vmem:[%s1 + $0xa58] sm:$0xff]
    %v1047 = vld [vmem:[%s1 + $0xa60] sm:$0xff]
    %v1048 = vld [vmem:[%s1 + $0xa68] sm:$0xff]
    %v1049 = vld [vmem:[%s1 + $0xa70] sm:$0xff]
    %v1050 = vld [vmem:[%s1 + $0xa78] sm:$0xff]
    %v1051 = vld [vmem:[%s1 + $0xa80] sm:$0xff]
    %v1052 = vld [vmem:[%s1 + $0xa88] sm:$0xff]
    %v1053 = vld [vmem:[%s1 + $0xa90] sm:$0xff]
    %v1054 = vld [vmem:[%s1 + $0xa98] sm:$0xff]
    %v1055 = vld [vmem:[%s1 + $0xaa0] sm:$0xff]
    %v1056 = vld [vmem:[%s1 + $0xaa8] sm:$0xff]
    %v1057 = vld [vmem:[%s1 + $0xab0] sm:$0xff]
    %v1058 = vld [vmem:[%s1 + $0xab8] sm:$0xff]
    %v1059 = vld [vmem:[%s1 + $0xac0] sm:$0xff]
    %v1060 = vld [vmem:[%s1 + $0xac8] sm:$0xff]
    %v1061 = vld [vmem:[%s1 + $0xad0] sm:$0xff]
    %v1062 = vld [vmem:[%s1 + $0xad8] sm:$0xff]
    %v1063 = vld [vmem:[%s1 + $0xae0] sm:$0xff]
    %v1064 = vld [vmem:[%s1 + $0xae8] sm:$0xff]
    %v1065 = vld [vmem:[%s1 + $0xaf0] sm:$0xff]
    %v1066 = vld [vmem:[%s1 + $0xaf8] sm:$0xff]
    %v1067 = vld [vmem:[%s1 + $0xb00] sm:$0xff]
    %v1068 = vld [vmem:[%s1 + $0xb08] sm:$0xff]
    %v1069 = vld [vmem:[%s1 + $0xb10] sm:$0xff]
    %v1070 = vld [vmem:[%s1 + $0xb18] sm:$0xff]
    %v1071 = vld [vmem:[%s1 + $0xb20] sm:$0xff]
    %v1072 = vld [vmem:[%s1 + $0xb28] sm:$0xff]
    %v1073 = vld [vmem:[%s1 + $0xb30] sm:$0xff]
    %v1074 = vld [vmem:[%s1 + $0xb38] sm:$0xff]
    %v1075 = vld [vmem:[%s1 + $0xb40] sm:$0xff]
    %v1076 = vld [vmem:[%s1 + $0xb48] sm:$0xff]
    %v1077 = vld [vmem:[%s1 + $0xb50] sm:$0xff]
    %v1078 = vld [vmem:[%s1 + $0xb58] sm:$0xff]
    %v1079 = vld [vmem:[%s1 + $0xb60] sm:$0xff]
    %v1080 = vld [vmem:[%s1 + $0xb68] sm:$0xff]
    %v1081 = vld [vmem:[%s1 + $0xb70] sm:$0xff]
    %v1082 = vld [vmem:[%s1 + $0xb78] sm:$0xff]
    %v1083 = vld [vmem:[%s1 + $0xb80] sm:$0xff]
    %v1084 = vld [vmem:[%s1 + $0xb88] sm:$0xff]
    %v1085 = vld [vmem:[%s1 + $0xb90] sm:$0xff]
    %v1086 = vld [vmem:[%s1 + $0xb98] sm:$0xff]
    %v1087 = vld [vmem:[%s1 + $0xba0] sm:$0xff]
    %v1088 = vld [vmem:[%s1 + $0xba8] sm:$0xff]
    %v1089 = vld [vmem:[%s1 + $0xbb0] sm:$0xff]
    %v1090 = vld [vmem:[%s1 + $0xbb8] sm:$0xff]
    %v1091 = vld [vmem:[%s1 + $0xbc0] sm:$0xff]
    %v1092 = vld [vmem:[%s1 + $0xbc8] sm:$0xff]
    %v1093 = vld [vmem:[%s1 + $0xbd0] sm:$0xff]
    %v1094 = vld [vmem:[%s1 + $0xbd8] sm:$0xff]
    %v1095 = vld [vmem:[%s1 + $0xbe0] sm:$0xff]
    %v1096 = vld [vmem:[%s1 + $0xbe8] sm:$0xff]
    %v1097 = vld [vmem:[%s1 + $0xbf0] sm:$0xff]
    %v1098 = vld [vmem:[%s1 + $0xbf8] sm:$0xff]
    %v1099 = vld [vmem:[%s1 + $0xc00] sm:$0xff]
    %v1100 = vld [vmem:[%s1 + $0xc08] sm:$0xff]
    %v1101 = vld [vmem:[%s1 + $0xc10] sm:$0xff]
    %v1102 = vld [vmem:[%s1 + $0xc18] sm:$0xff]
    %v1103 = vld [vmem:[%s1 + $0xc20] sm:$0xff]
    %v1104 = vld [vmem:[%s1 + $0xc28] sm:$0xff]
    %v1105 = vld [vmem:[%s1 + $0xc30] sm:$0xff]
    %v1106 = vld [vmem:[%s1 + $0xc38] sm:$0xff]
    %v1107 = vld [vmem:[%s1 + $0xc40] sm:$0xff]
    %v1108 = vld [vmem:[%s1 + $0xc48] sm:$0xff]
    %v1109 = vld [vmem:[%s1 + $0xc50] sm:$0xff]
    %v1110 = vld [vmem:[%s1 + $0xc58] sm:$0xff]
    %v1111 = vld [vmem:[%s1 + $0xc60] sm:$0xff]
    %v1112 = vld [vmem:[%s1 + $0xc68] sm:$0xff]
    %v1113 = vld [vmem:[%s1 + $0xc70] sm:$0xff]
    %v1114 = vld [vmem:[%s1 + $0xc78] sm:$0xff]
    %v1115 = vld [vmem:[%s1 + $0xc80] sm:$0xff]
    %v1116 = vld [vmem:[%s1 + $0xc88] sm:$0xff]
    %v1117 = vld [vmem:[%s1 + $0xc90] sm:$0xff]
    %v1118 = vld [vmem:[%s1 + $0xc98] sm:$0xff]
    %v1119 = vld [vmem:[%s1 + $0xca0] sm:$0xff]
    %v1120 = vld [vmem:[%s1 + $0xca8] sm:$0xff]
    %v1121 = vld [vmem:[%s1 + $0xcb0] sm:$0xff]
    %v1122 = vld [vmem:[%s1 + $0xcb8] sm:$0xff]
    %v1123 = vld [vmem:[%s1 + $0xcc0] sm:$0xff]
    %v1124 = vld [vmem:[%s1 + $0xcc8] sm:$0xff]
    %v1125 = vld [vmem:[%s1 + $0xcd0] sm:$0xff]
    %v1126 = vld [vmem:[%s1 + $0xcd8] sm:$0xff]
    %v1127 = vld [vmem:[%s1 + $0xce0] sm:$0xff]
    %v1128 = vld [vmem:[%s1 + $0xce8] sm:$0xff]
    %v1129 = vld [vmem:[%s1 + $0xcf0] sm:$0xff]
    %v1130 = vld [vmem:[%s1 + $0xcf8] sm:$0xff]
    %v1131 = vld [vmem:[%s1 + $0xd00] sm:$0xff]
    %v1132 = vld [vmem:[%s1 + $0xd08] sm:$0xff]
    %v1133 = vld [vmem:[%s1 + $0xd10] sm:$0xff]
    %v1134 = vld [vmem:[%s1 + $0xd18] sm:$0xff]
    %v1135 = vld [vmem:[%s1 + $0xd20] sm:$0xff]
    %v1136 = vld [vmem:[%s1 + $0xd28] sm:$0xff]
    %v1137 = vld [vmem:[%s1 + $0xd30] sm:$0xff]
    %v1138 = vld [vmem:[%s1 + $0xd38] sm:$0xff]
    %v1139 = vld [vmem:[%s1 + $0xd40] sm:$0xff]
    %v1140 = vld [vmem:[%s1 + $0xd48] sm:$0xff]
    %v1141 = vld [vmem:[%s1 + $0xd50] sm:$0xff]
    %v1142 = vld [vmem:[%s1 + $0xd58] sm:$0xff]
    %v1143 = vld [vmem:[%s1 + $0xd60] sm:$0xff]
    %v1144 = vld [vmem:[%s1 + $0xd68] sm:$0xff]
    %v1145 = vld [vmem:[%s1 + $0xd70] sm:$0xff]
    %v1146 = vld [vmem:[%s1 + $0xd78] sm:$0xff]
    %v1147 = vld [vmem:[%s1 + $0xd80] sm:$0xff]
    %v1148 = vld [vmem:[%s1 + $0xd88] sm:$0xff]
    %v1149 = vld [vmem:[%s1 + $0xd90] sm:$0xff]
    %v1150 = vld [vmem:[%s1 + $0xd98] sm:$0xff]
    %v1151 = vld [vmem:[%s1 + $0xda0] sm:$0xff]
    %v1152 = vld [vmem:[%s1 + $0xda8] sm:$0xff]
    %v1153 = vld [vmem:[%s1 + $0xdb0] sm:$0xff]
    %v1154 = vld [vmem:[%s1 + $0xdb8] sm:$0xff]
    %v1155 = vld [vmem:[%s1 + $0xdc0] sm:$0xff]
    %v1156 = vld [vmem:[%s1 + $0xdc8] sm:$0xff]
    %v1157 = vld [vmem:[%s1 + $0xdd0] sm:$0xff]
    %v1158 = vld [vmem:[%s1 + $0xdd8] sm:$0xff]
    %v1159 = vld [vmem:[%s1 + $0xde0] sm:$0xff]
    %v1160 = vld [vmem:[%s1 + $0xde8] sm:$0xff]
    %v1161 = vld [vmem:[%s1 + $0xdf0] sm:$0xff]
    %v1162 = vld [vmem:[%s1 + $0xdf8] sm:$0xff]
    %v1163 = vld [vmem:[%s1 + $0xe00] sm:$0xff]
    %v1164 = vld [vmem:[%s1 + $0xe08] sm:$0xff]
    %v1165 = vld [vmem:[%s1 + $0xe10] sm:$0xff]
    %v1166 = vld [vmem:[%s1 + $0xe18] sm:$0xff]
    %v1167 = vld [vmem:[%s1 + $0xe20] sm:$0xff]
    %v1168 = vld [vmem:[%s1 + $0xe28] sm:$0xff]
    %v1169 = vld [vmem:[%s1 + $0xe30] sm:$0xff]
    %v1170 = vld [vmem:[%s1 + $0xe38] sm:$0xff]
    %v1171 = vld [vmem:[%s1 + $0xe40] sm:$0xff]
    %v1172 = vld [vmem:[%s1 + $0xe48] sm:$0xff]
    %v1173 = vld [vmem:[%s1 + $0xe50] sm:$0xff]
    %v1174 = vld [vmem:[%s1 + $0xe58] sm:$0xff]
    %v1175 = vld [vmem:[%s1 + $0xe60] sm:$0xff]
    %v1176 = vld [vmem:[%s1 + $0xe68] sm:$0xff]
    %v1177 = vld [vmem:[%s1 + $0xe70] sm:$0xff]
    %v1178 = vld [vmem:[%s1 + $0xe78] sm:$0xff]
    %v1179 = vld [vmem:[%s1 + $0xe80] sm:$0xff]
    %v1180 = vld [vmem:[%s1 + $0xe88] sm:$0xff]
    %v1181 = vld [vmem:[%s1 + $0xe90] sm:$0xff]
    %v1182 = vld [vmem:[%s1 + $0xe98] sm:$0xff]
    %v1183 = vld [vmem:[%s1 + $0xea0] sm:$0xff]
    %v1184 = vld [vmem:[%s1 + $0xea8] sm:$0xff]
    %v1185 = vld [vmem:[%s1 + $0xeb0] sm:$0xff]
    %v1186 = vld [vmem:[%s1 + $0xeb8] sm:$0xff]
    %v1187 = vld [vmem:[%s1 + $0xec0] sm:$0xff]
    %v1188 = vld [vmem:[%s1 + $0xec8] sm:$0xff]
    %v1189 = vld [vmem:[%s1 + $0xed0] sm:$0xff]
    %v1190 = vld [vmem:[%s1 + $0xed8] sm:$0xff]
    %v1191 = vld [vmem:[%s1 + $0xee0] sm:$0xff]
    %v1192 = vld [vmem:[%s1 + $0xee8] sm:$0xff]
    %v1193 = vld [vmem:[%s1 + $0xef0] sm:$0xff]
    %v1194 = vld [vmem:[%s1 + $0xef8] sm:$0xff]
    %v1195 = vld [vmem:[%s1 + $0xf00] sm:$0xff]
    %v1196 = vld [vmem:[%s1 + $0xf08] sm:$0xff]
    %v1197 = vld [vmem:[%s1 + $0xf10] sm:$0xff]
    %v1198 = vld [vmem:[%s1 + $0xf18] sm:$0xff]
    %v1199 = vld [vmem:[%s1 + $0xf20] sm:$0xff]
    %v1200 = vld [vmem:[%s1 + $0xf28] sm:$0xff]
    %v1201 = vld [vmem:[%s1 + $0xf30] sm:$0xff]
    %v1202 = vld [vmem:[%s1 + $0xf38] sm:$0xff]
    %v1203 = vld [vmem:[%s1 + $0xf40] sm:$0xff]
    %v1204 = vld [vmem:[%s1 + $0xf48] sm:$0xff]
    %v1205 = vld [vmem:[%s1 + $0xf50] sm:$0xff]
    %v1206 = vld [vmem:[%s1 + $0xf58] sm:$0xff]
    %v1207 = vld [vmem:[%s1 + $0xf60] sm:$0xff]
    %v1208 = vld [vmem:[%s1 + $0xf68] sm:$0xff]
    %v1209 = vld [vmem:[%s1 + $0xf70] sm:$0xff]
    %v1210 = vld [vmem:[%s1 + $0xf78] sm:$0xff]
    %v1211 = vld [vmem:[%s1 + $0xf80] sm:$0xff]
    %v1212 = vld [vmem:[%s1 + $0xf88] sm:$0xff]
    %v1213 = vld [vmem:[%s1 + $0xf90] sm:$0xff]
    %v1214 = vld [vmem:[%s1 + $0xf98] sm:$0xff]
    %v1215 = vld [vmem:[%s1 + $0xfa0] sm:$0xff]
    %v1216 = vld [vmem:[%s1 + $0xfa8] sm:$0xff]
    %v1217 = vld [vmem:[%s1 + $0xfb0] sm:$0xff]
    %v1218 = vld [vmem:[%s1 + $0xfb8] sm:$0xff]
    %v1219 = vld [vmem:[%s1 + $0xfc0] sm:$0xff]
    %v1220 = vld [vmem:[%s1 + $0xfc8] sm:$0xff]
    %v1221 = vld [vmem:[%s1 + $0xfd0] sm:$0xff]
    %v1222 = vld [vmem:[%s1 + $0xfd8] sm:$0xff]
    %v1223 = vld [vmem:[%s1 + $0xfe0] sm:$0xff]
    %v1224 = vld [vmem:[%s1 + $0xfe8] sm:$0xff]
    %v1225 = vld [vmem:[%s1 + $0xff0] sm:$0xff]
    %v1226 = vld [vmem:[%s1 + $0xff8] sm:$0xff]
    %v1227 = vld [vmem:[%s1 + $0x1000] sm:$0xff]
    %v1228 = vld [vmem:[%s1 + $0x1008] sm:$0xff]
    %v1229 = vld [vmem:[%s1 + $0x1010] sm:$0xff]
    %v1230 = vld [vmem:[%s1 + $0x1018] sm:$0xff]
    %v1231 = vld [vmem:[%s1 + $0x1020] sm:$0xff]
    %v1232 = vld [vmem:[%s1 + $0x1028] sm:$0xff]
    %v1233 = vld [vmem:[%s1 + $0x1030] sm:$0xff]
    %v1234 = vld [vmem:[%s1 + $0x1038] sm:$0xff]
    %v1235 = vld [vmem:[%s1 + $0x1040] sm:$0xff]
    %v1236 = vld [vmem:[%s1 + $0x1048] sm:$0xff]
    %v1237 = vld [vmem:[%s1 + $0x1050] sm:$0xff]
    %v1238 = vld [vmem:[%s1 + $0x1058] sm:$0xff]
    %v1239 = vld [vmem:[%s1 + $0x1060] sm:$0xff]
    %v1240 = vld [vmem:[%s1 + $0x1068] sm:$0xff]
    %v1241 = vld [vmem:[%s1 + $0x1070] sm:$0xff]
    %v1242 = vld [vmem:[%s1 + $0x1078] sm:$0xff]
    %v1243 = vld [vmem:[%s1 + $0x1080] sm:$0xff]
    %v1244 = vld [vmem:[%s1 + $0x1088] sm:$0xff]
    %v1245 = vld [vmem:[%s1 + $0x1090] sm:$0xff]
    %v1246 = vld [vmem:[%s1 + $0x1098] sm:$0xff]
    %v1247 = vld [vmem:[%s1 + $0x10a0] sm:$0xff]
    %v1248 = vld [vmem:[%s1 + $0x10a8] sm:$0xff]
    %v1249 = vld [vmem:[%s1 + $0x10b0] sm:$0xff]
    %v1250 = vld [vmem:[%s1 + $0x10b8] sm:$0xff]
    %v1251 = vld [vmem:[%s1 + $0x10c0] sm:$0xff]
    %v1252 = vld [vmem:[%s1 + $0x10c8] sm:$0xff]
    %v1253 = vld [vmem:[%s1 + $0x10d0] sm:$0xff]
    %v1254 = vld [vmem:[%s1 + $0x10d8] sm:$0xff]
    %v1255 = vld [vmem:[%s1 + $0x10e0] sm:$0xff]
    %v1256 = vld [vmem:[%s1 + $0x10e8] sm:$0xff]
    %v1257 = vld [vmem:[%s1 + $0x10f0] sm:$0xff]
    %v1258 = vld [vmem:[%s1 + $0x10f8] sm:$0xff]
    %v1259 = vld [vmem:[%s1 + $0x1100] sm:$0xff]
    %v1260 = vld [vmem:[%s1 + $0x1108] sm:$0xff]
    %v1261 = vld [vmem:[%s1 + $0x1110] sm:$0xff]
    %v1262 = vld [vmem:[%s1 + $0x1118] sm:$0xff]
    %v1263 = vld [vmem:[%s1 + $0x1120] sm:$0xff]
    %v1264 = vld [vmem:[%s1 + $0x1128] sm:$0xff]
    %v1265 = vld [vmem:[%s1 + $0x1130] sm:$0xff]
    %v1266 = vld [vmem:[%s1 + $0x1138] sm:$0xff]
    %v1267 = vld [vmem:[%s1 + $0x1140] sm:$0xff]
    %v1268 = vld [vmem:[%s1 + $0x1148] sm:$0xff]
    %v1269 = vld [vmem:[%s1 + $0x1150] sm:$0xff]
    %v1270 = vld [vmem:[%s1 + $0x1158] sm:$0xff]
    %v1271 = vld [vmem:[%s1 + $0x1160] sm:$0xff]
    %v1272 = vld [vmem:[%s1 + $0x1168] sm:$0xff]
    %v1273 = vld [vmem:[%s1 + $0x1170] sm:$0xff]
    %v1274 = vld [vmem:[%s1 + $0x1178] sm:$0xff]
    %v1275 = vld [vmem:[%s1 + $0x1180] sm:$0xff]
    %v1276 = vld [vmem:[%s1 + $0x1188] sm:$0xff]
    %v1277 = vld [vmem:[%s1 + $0x1190] sm:$0xff]
    %v1278 = vld [vmem:[%s1 + $0x1198] sm:$0xff]
    %v1279 = vld [vmem:[%s1 + $0x11a0] sm:$0xff]
    %v1280 = vld [vmem:[%s1 + $0x11a8] sm:$0xff]
    %v1281 = vld [vmem:[%s1 + $0x11b0] sm:$0xff]
    %v1282 = vld [vmem:[%s1 + $0x11b8] sm:$0xff]
    %v1283 = vld [vmem:[%s1 + $0x11c0] sm:$0xff]
    %v1284 = vld [vmem:[%s1 + $0x11c8] sm:$0xff]
    %v1285 = vld [vmem:[%s1 + $0x11d0] sm:$0xff]
    %v1286 = vld [vmem:[%s1 + $0x11d8] sm:$0xff]
    %v1287 = vld [vmem:[%s1 + $0x11e0] sm:$0xff]
    %v1288 = vld [vmem:[%s1 + $0x11e8] sm:$0xff]
    %v1289 = vld [vmem:[%s1 + $0x11f0] sm:$0xff]
    %v1290 = vld [vmem:[%s1 + $0x11f8] sm:$0xff]
    %v1291 = vld [vmem:[%s2] sm:$0xf]
    %v1293 = vlaneseq
    %v1294 = vshrl.u32 %v1293, 7
    %v1295 = vsub.s32 0, %v1294
    %v1296 = vrot.slane %v1291, %v1295
    %v1297 = vlaneseq
    %v1298 = vshrl.u32 %v1297, 7
    %v1299 = vsub.s32 1, %v1298
    %v1300 = vrot.slane %v1291, %v1299
    %v1301 = vlaneseq
    %v1302 = vshrl.u32 %v1301, 7
    %v1303 = vsub.s32 2, %v1302
    %v1304 = vrot.slane %v1291, %v1303
    %v1305 = vlaneseq
    %v1306 = vshrl.u32 %v1305, 7
    %v1307 = vsub.s32 3, %v1306
    %v1308 = vrot.slane %v1291, %v1307
    %v1889 = vunpack.c.l.b16 %v715
    %v1890 = vunpack.c.h.b16 %v715
    %v1891 = vunpack.c.l.b16 %v716
    %v1892 = vunpack.c.h.b16 %v716
    %v1893 = vunpack.c.l.b16 %v717
    %v1894 = vunpack.c.h.b16 %v717
    %v1895 = vunpack.c.l.b16 %v718
    %v1896 = vunpack.c.h.b16 %v718
    %v1897 = vunpack.c.l.b16 %v719
    %v1898 = vunpack.c.h.b16 %v719
    %v1899 = vunpack.c.l.b16 %v720
    %v1900 = vunpack.c.h.b16 %v720
    %v1901 = vunpack.c.l.b16 %v721
    %v1902 = vunpack.c.h.b16 %v721
    %v1903 = vunpack.c.l.b16 %v722
    %v1904 = vunpack.c.h.b16 %v722
    %v1905 = vunpack.c.l.b16 %v723
    %v1906 = vunpack.c.h.b16 %v723
    %v1907 = vunpack.c.l.b16 %v724
    %v1908 = vunpack.c.h.b16 %v724
    %v1909 = vunpack.c.l.b16 %v725
    %v1910 = vunpack.c.h.b16 %v725
    %v1911 = vunpack.c.l.b16 %v726
    %v1912 = vunpack.c.h.b16 %v726
    %v1913 = vunpack.c.l.b16 %v727
    %v1914 = vunpack.c.h.b16 %v727
    %v1915 = vunpack.c.l.b16 %v728
    %v1916 = vunpack.c.h.b16 %v728
    %v1917 = vunpack.c.l.b16 %v729
    %v1918 = vunpack.c.h.b16 %v729
    %v1919 = vunpack.c.l.b16 %v730
    %v1920 = vunpack.c.h.b16 %v730
    %v1921 = vunpack.c.l.b16 %v731
    %v1922 = vunpack.c.h.b16 %v731
    %v1923 = vunpack.c.l.b16 %v732
    %v1924 = vunpack.c.h.b16 %v732
    %v1925 = vunpack.c.l.b16 %v733
    %v1926 = vunpack.c.h.b16 %v733
    %v1927 = vunpack.c.l.b16 %v734
    %v1928 = vunpack.c.h.b16 %v734
    %v1929 = vunpack.c.l.b16 %v735
    %v1930 = vunpack.c.h.b16 %v735
    %v1931 = vunpack.c.l.b16 %v736
    %v1932 = vunpack.c.h.b16 %v736
    %v1933 = vunpack.c.l.b16 %v737
    %v1934 = vunpack.c.h.b16 %v737
    %v1935 = vunpack.c.l.b16 %v738
    %v1936 = vunpack.c.h.b16 %v738
    %v1937 = vunpack.c.l.b16 %v739
    %v1938 = vunpack.c.h.b16 %v739
    %v1939 = vunpack.c.l.b16 %v740
    %v1940 = vunpack.c.h.b16 %v740
    %v1941 = vunpack.c.l.b16 %v741
    %v1942 = vunpack.c.h.b16 %v741
    %v1943 = vunpack.c.l.b16 %v742
    %v1944 = vunpack.c.h.b16 %v742
    %v1945 = vunpack.c.l.b16 %v743
    %v1946 = vunpack.c.h.b16 %v743
    %v1947 = vunpack.c.l.b16 %v744
    %v1948 = vunpack.c.h.b16 %v744
    %v1949 = vunpack.c.l.b16 %v745
    %v1950 = vunpack.c.h.b16 %v745
    %v1951 = vunpack.c.l.b16 %v746
    %v1952 = vunpack.c.h.b16 %v746
    %v1953 = vunpack.c.l.b16 %v747
    %v1954 = vunpack.c.h.b16 %v747
    %v1955 = vunpack.c.l.b16 %v748
    %v1956 = vunpack.c.h.b16 %v748
    %v1957 = vunpack.c.l.b16 %v749
    %v1958 = vunpack.c.h.b16 %v749
    %v1959 = vunpack.c.l.b16 %v750
    %v1960 = vunpack.c.h.b16 %v750
    %v1961 = vunpack.c.l.b16 %v751
    %v1962 = vunpack.c.h.b16 %v751
    %v1963 = vunpack.c.l.b16 %v752
    %v1964 = vunpack.c.h.b16 %v752
    %v1965 = vunpack.c.l.b16 %v753
    %v1966 = vunpack.c.h.b16 %v753
    %v1967 = vunpack.c.l.b16 %v754
    %v1968 = vunpack.c.h.b16 %v754
    %v1969 = vunpack.c.l.b16 %v755
    %v1970 = vunpack.c.h.b16 %v755
    %v1971 = vunpack.c.l.b16 %v756
    %v1972 = vunpack.c.h.b16 %v756
    %v1973 = vunpack.c.l.b16 %v757
    %v1974 = vunpack.c.h.b16 %v757
    %v1975 = vunpack.c.l.b16 %v758
    %v1976 = vunpack.c.h.b16 %v758
    %v1977 = vunpack.c.l.b16 %v759
    %v1978 = vunpack.c.h.b16 %v759
    %v1979 = vunpack.c.l.b16 %v760
    %v1980 = vunpack.c.h.b16 %v760
    %v1981 = vunpack.c.l.b16 %v761
    %v1982 = vunpack.c.h.b16 %v761
    %v1983 = vunpack.c.l.b16 %v762
    %v1984 = vunpack.c.h.b16 %v762
    %v1985 = vunpack.c.l.b16 %v763
    %v1986 = vunpack.c.h.b16 %v763
    %v1987 = vunpack.c.l.b16 %v764
    %v1988 = vunpack.c.h.b16 %v764
    %v1989 = vunpack.c.l.b16 %v765
    %v1990 = vunpack.c.h.b16 %v765
    %v1991 = vunpack.c.l.b16 %v766
    %v1992 = vunpack.c.h.b16 %v766
    %v1993 = vunpack.c.l.b16 %v767
    %v1994 = vunpack.c.h.b16 %v767
    %v1995 = vunpack.c.l.b16 %v768
    %v1996 = vunpack.c.h.b16 %v768
    %v1997 = vunpack.c.l.b16 %v769
    %v1998 = vunpack.c.h.b16 %v769
    %v1999 = vunpack.c.l.b16 %v770
    %v2000 = vunpack.c.h.b16 %v770
    %v2001 = vunpack.c.l.b16 %v771
    %v2002 = vunpack.c.h.b16 %v771
    %v2003 = vunpack.c.l.b16 %v772
    %v2004 = vunpack.c.h.b16 %v772
    %v2005 = vunpack.c.l.b16 %v773
    %v2006 = vunpack.c.h.b16 %v773
    %v2007 = vunpack.c.l.b16 %v774
    %v2008 = vunpack.c.h.b16 %v774
    %v2009 = vunpack.c.l.b16 %v775
    %v2010 = vunpack.c.h.b16 %v775
    %v2011 = vunpack.c.l.b16 %v776
    %v2012 = vunpack.c.h.b16 %v776
    %v2013 = vunpack.c.l.b16 %v777
    %v2014 = vunpack.c.h.b16 %v777
    %v2015 = vunpack.c.l.b16 %v778
    %v2016 = vunpack.c.h.b16 %v778
    %v2017 = vunpack.c.l.b16 %v779
    %v2018 = vunpack.c.h.b16 %v779
    %v2019 = vunpack.c.l.b16 %v780
    %v2020 = vunpack.c.h.b16 %v780
    %v2021 = vunpack.c.l.b16 %v781
    %v2022 = vunpack.c.h.b16 %v781
    %v2023 = vunpack.c.l.b16 %v782
    %v2024 = vunpack.c.h.b16 %v782
    %v2025 = vunpack.c.l.b16 %v783
    %v2026 = vunpack.c.h.b16 %v783
    %v2027 = vunpack.c.l.b16 %v784
    %v2028 = vunpack.c.h.b16 %v784
    %v2029 = vunpack.c.l.b16 %v785
    %v2030 = vunpack.c.h.b16 %v785
    %v2031 = vunpack.c.l.b16 %v786
    %v2032 = vunpack.c.h.b16 %v786
    %v2033 = vunpack.c.l.b16 %v787
    %v2034 = vunpack.c.h.b16 %v787
    %v2035 = vunpack.c.l.b16 %v788
    %v2036 = vunpack.c.h.b16 %v788
    %v2037 = vunpack.c.l.b16 %v789
    %v2038 = vunpack.c.h.b16 %v789
    %v2039 = vunpack.c.l.b16 %v790
    %v2040 = vunpack.c.h.b16 %v790
    %v2041 = vunpack.c.l.b16 %v791
    %v2042 = vunpack.c.h.b16 %v791
    %v2043 = vunpack.c.l.b16 %v792
    %v2044 = vunpack.c.h.b16 %v792
    %v2045 = vunpack.c.l.b16 %v793
    %v2046 = vunpack.c.h.b16 %v793
    %v2047 = vunpack.c.l.b16 %v794
    %v2048 = vunpack.c.h.b16 %v794
    %v2049 = vunpack.c.l.b16 %v795
    %v2050 = vunpack.c.h.b16 %v795
    %v2051 = vunpack.c.l.b16 %v796
    %v2052 = vunpack.c.h.b16 %v796
    %v2053 = vunpack.c.l.b16 %v797
    %v2054 = vunpack.c.h.b16 %v797
    %v2055 = vunpack.c.l.b16 %v798
    %v2056 = vunpack.c.h.b16 %v798
    %v2057 = vunpack.c.l.b16 %v799
    %v2058 = vunpack.c.h.b16 %v799
    %v2059 = vunpack.c.l.b16 %v800
    %v2060 = vunpack.c.h.b16 %v800
    %v2061 = vunpack.c.l.b16 %v801
    %v2062 = vunpack.c.h.b16 %v801
    %v2063 = vunpack.c.l.b16 %v802
    %v2064 = vunpack.c.h.b16 %v802
    %v2065 = vunpack.c.l.b16 %v803
    %v2066 = vunpack.c.h.b16 %v803
    %v2067 = vunpack.c.l.b16 %v804
    %v2068 = vunpack.c.h.b16 %v804
    %v2069 = vunpack.c.l.b16 %v805
    %v2070 = vunpack.c.h.b16 %v805
    %v2071 = vunpack.c.l.b16 %v806
    %v2072 = vunpack.c.h.b16 %v806
    %v2073 = vunpack.c.l.b16 %v807
    %v2074 = vunpack.c.h.b16 %v807
    %v2075 = vunpack.c.l.b16 %v808
    %v2076 = vunpack.c.h.b16 %v808
    %v2077 = vunpack.c.l.b16 %v809
    %v2078 = vunpack.c.h.b16 %v809
    %v2079 = vunpack.c.l.b16 %v810
    %v2080 = vunpack.c.h.b16 %v810
    %v2081 = vunpack.c.l.b16 %v811
    %v2082 = vunpack.c.h.b16 %v811
    %v2083 = vunpack.c.l.b16 %v812
    %v2084 = vunpack.c.h.b16 %v812
    %v2085 = vunpack.c.l.b16 %v813
    %v2086 = vunpack.c.h.b16 %v813
    %v2087 = vunpack.c.l.b16 %v814
    %v2088 = vunpack.c.h.b16 %v814
    %v2089 = vunpack.c.l.b16 %v815
    %v2090 = vunpack.c.h.b16 %v815
    %v2091 = vunpack.c.l.b16 %v816
    %v2092 = vunpack.c.h.b16 %v816
    %v2093 = vunpack.c.l.b16 %v817
    %v2094 = vunpack.c.h.b16 %v817
    %v2095 = vunpack.c.l.b16 %v818
    %v2096 = vunpack.c.h.b16 %v818
    %v2097 = vunpack.c.l.b16 %v819
    %v2098 = vunpack.c.h.b16 %v819
    %v2099 = vunpack.c.l.b16 %v820
    %v2100 = vunpack.c.h.b16 %v820
    %v2101 = vunpack.c.l.b16 %v821
    %v2102 = vunpack.c.h.b16 %v821
    %v2103 = vunpack.c.l.b16 %v822
    %v2104 = vunpack.c.h.b16 %v822
    %v2105 = vunpack.c.l.b16 %v823
    %v2106 = vunpack.c.h.b16 %v823
    %v2107 = vunpack.c.l.b16 %v824
    %v2108 = vunpack.c.h.b16 %v824
    %v2109 = vunpack.c.l.b16 %v825
    %v2110 = vunpack.c.h.b16 %v825
    %v2111 = vunpack.c.l.b16 %v826
    %v2112 = vunpack.c.h.b16 %v826
    %v2113 = vunpack.c.l.b16 %v827
    %v2114 = vunpack.c.h.b16 %v827
    %v2115 = vunpack.c.l.b16 %v828
    %v2116 = vunpack.c.h.b16 %v828
    %v2117 = vunpack.c.l.b16 %v829
    %v2118 = vunpack.c.h.b16 %v829
    %v2119 = vunpack.c.l.b16 %v830
    %v2120 = vunpack.c.h.b16 %v830
    %v2121 = vunpack.c.l.b16 %v831
    %v2122 = vunpack.c.h.b16 %v831
    %v2123 = vunpack.c.l.b16 %v832
    %v2124 = vunpack.c.h.b16 %v832
    %v2125 = vunpack.c.l.b16 %v833
    %v2126 = vunpack.c.h.b16 %v833
    %v2127 = vunpack.c.l.b16 %v834
    %v2128 = vunpack.c.h.b16 %v834
    %v2129 = vunpack.c.l.b16 %v835
    %v2130 = vunpack.c.h.b16 %v835
    %v2131 = vunpack.c.l.b16 %v836
    %v2132 = vunpack.c.h.b16 %v836
    %v2133 = vunpack.c.l.b16 %v837
    %v2134 = vunpack.c.h.b16 %v837
    %v2135 = vunpack.c.l.b16 %v838
    %v2136 = vunpack.c.h.b16 %v838
    %v2137 = vunpack.c.l.b16 %v839
    %v2138 = vunpack.c.h.b16 %v839
    %v2139 = vunpack.c.l.b16 %v840
    %v2140 = vunpack.c.h.b16 %v840
    %v2141 = vunpack.c.l.b16 %v841
    %v2142 = vunpack.c.h.b16 %v841
    %v2143 = vunpack.c.l.b16 %v842
    %v2144 = vunpack.c.h.b16 %v842
    %v2145 = vunpack.c.l.b16 %v843
    %v2146 = vunpack.c.h.b16 %v843
    %v2147 = vunpack.c.l.b16 %v844
    %v2148 = vunpack.c.h.b16 %v844
    %v2149 = vunpack.c.l.b16 %v845
    %v2150 = vunpack.c.h.b16 %v845
    %v2151 = vunpack.c.l.b16 %v846
    %v2152 = vunpack.c.h.b16 %v846
    %v2153 = vunpack.c.l.b16 %v847
    %v2154 = vunpack.c.h.b16 %v847
    %v2155 = vunpack.c.l.b16 %v848
    %v2156 = vunpack.c.h.b16 %v848
    %v2157 = vunpack.c.l.b16 %v849
    %v2158 = vunpack.c.h.b16 %v849
    %v2159 = vunpack.c.l.b16 %v850
    %v2160 = vunpack.c.h.b16 %v850
    %v2161 = vunpack.c.l.b16 %v851
    %v2162 = vunpack.c.h.b16 %v851
    %v2163 = vunpack.c.l.b16 %v852
    %v2164 = vunpack.c.h.b16 %v852
    %v2165 = vunpack.c.l.b16 %v853
    %v2166 = vunpack.c.h.b16 %v853
    %v2167 = vunpack.c.l.b16 %v854
    %v2168 = vunpack.c.h.b16 %v854
    %v2169 = vunpack.c.l.b16 %v855
    %v2170 = vunpack.c.h.b16 %v855
    %v2171 = vunpack.c.l.b16 %v856
    %v2172 = vunpack.c.h.b16 %v856
    %v2173 = vunpack.c.l.b16 %v857
    %v2174 = vunpack.c.h.b16 %v857
    %v2175 = vunpack.c.l.b16 %v858
    %v2176 = vunpack.c.h.b16 %v858
    %v2177 = vunpack.c.l.b16 %v859
    %v2178 = vunpack.c.h.b16 %v859
    %v2179 = vunpack.c.l.b16 %v860
    %v2180 = vunpack.c.h.b16 %v860
    %v2181 = vunpack.c.l.b16 %v861
    %v2182 = vunpack.c.h.b16 %v861
    %v2183 = vunpack.c.l.b16 %v862
    %v2184 = vunpack.c.h.b16 %v862
    %v2185 = vunpack.c.l.b16 %v863
    %v2186 = vunpack.c.h.b16 %v863
    %v2187 = vunpack.c.l.b16 %v864
    %v2188 = vunpack.c.h.b16 %v864
    %v2189 = vunpack.c.l.b16 %v865
    %v2190 = vunpack.c.h.b16 %v865
    %v2191 = vunpack.c.l.b16 %v866
    %v2192 = vunpack.c.h.b16 %v866
    %v2193 = vunpack.c.l.b16 %v867
    %v2194 = vunpack.c.h.b16 %v867
    %v2195 = vunpack.c.l.b16 %v868
    %v2196 = vunpack.c.h.b16 %v868
    %v2197 = vunpack.c.l.b16 %v869
    %v2198 = vunpack.c.h.b16 %v869
    %v2199 = vunpack.c.l.b16 %v870
    %v2200 = vunpack.c.h.b16 %v870
    %v2201 = vunpack.c.l.b16 %v871
    %v2202 = vunpack.c.h.b16 %v871
    %v2203 = vunpack.c.l.b16 %v872
    %v2204 = vunpack.c.h.b16 %v872
    %v2205 = vunpack.c.l.b16 %v873
    %v2206 = vunpack.c.h.b16 %v873
    %v2207 = vunpack.c.l.b16 %v874
    %v2208 = vunpack.c.h.b16 %v874
    %v2209 = vunpack.c.l.b16 %v875
    %v2210 = vunpack.c.h.b16 %v875
    %v2211 = vunpack.c.l.b16 %v876
    %v2212 = vunpack.c.h.b16 %v876
    %v2213 = vunpack.c.l.b16 %v877
    %v2214 = vunpack.c.h.b16 %v877
    %v2215 = vunpack.c.l.b16 %v878
    %v2216 = vunpack.c.h.b16 %v878
    %v2217 = vunpack.c.l.b16 %v879
    %v2218 = vunpack.c.h.b16 %v879
    %v2219 = vunpack.c.l.b16 %v880
    %v2220 = vunpack.c.h.b16 %v880
    %v2221 = vunpack.c.l.b16 %v881
    %v2222 = vunpack.c.h.b16 %v881
    %v2223 = vunpack.c.l.b16 %v882
    %v2224 = vunpack.c.h.b16 %v882
    %v2225 = vunpack.c.l.b16 %v883
    %v2226 = vunpack.c.h.b16 %v883
    %v2227 = vunpack.c.l.b16 %v884
    %v2228 = vunpack.c.h.b16 %v884
    %v2229 = vunpack.c.l.b16 %v885
    %v2230 = vunpack.c.h.b16 %v885
    %v2231 = vunpack.c.l.b16 %v886
    %v2232 = vunpack.c.h.b16 %v886
    %v2233 = vunpack.c.l.b16 %v887
    %v2234 = vunpack.c.h.b16 %v887
    %v2235 = vunpack.c.l.b16 %v888
    %v2236 = vunpack.c.h.b16 %v888
    %v2237 = vunpack.c.l.b16 %v889
    %v2238 = vunpack.c.h.b16 %v889
    %v2239 = vunpack.c.l.b16 %v890
    %v2240 = vunpack.c.h.b16 %v890
    %v2241 = vunpack.c.l.b16 %v891
    %v2242 = vunpack.c.h.b16 %v891
    %v2243 = vunpack.c.l.b16 %v892
    %v2244 = vunpack.c.h.b16 %v892
    %v2245 = vunpack.c.l.b16 %v893
    %v2246 = vunpack.c.h.b16 %v893
    %v2247 = vunpack.c.l.b16 %v894
    %v2248 = vunpack.c.h.b16 %v894
    %v2249 = vunpack.c.l.b16 %v895
    %v2250 = vunpack.c.h.b16 %v895
    %v2251 = vunpack.c.l.b16 %v896
    %v2252 = vunpack.c.h.b16 %v896
    %v2253 = vunpack.c.l.b16 %v897
    %v2254 = vunpack.c.h.b16 %v897
    %v2255 = vunpack.c.l.b16 %v898
    %v2256 = vunpack.c.h.b16 %v898
    %v2257 = vunpack.c.l.b16 %v899
    %v2258 = vunpack.c.h.b16 %v899
    %v2259 = vunpack.c.l.b16 %v900
    %v2260 = vunpack.c.h.b16 %v900
    %v2261 = vunpack.c.l.b16 %v901
    %v2262 = vunpack.c.h.b16 %v901
    %v2263 = vunpack.c.l.b16 %v902
    %v2264 = vunpack.c.h.b16 %v902
    %v2265 = vunpack.c.l.b16 %v903
    %v2266 = vunpack.c.h.b16 %v903
    %v2267 = vunpack.c.l.b16 %v904
    %v2268 = vunpack.c.h.b16 %v904
    %v2269 = vunpack.c.l.b16 %v905
    %v2270 = vunpack.c.h.b16 %v905
    %v2271 = vunpack.c.l.b16 %v906
    %v2272 = vunpack.c.h.b16 %v906
    %v2273 = vunpack.c.l.b16 %v907
    %v2274 = vunpack.c.h.b16 %v907
    %v2275 = vunpack.c.l.b16 %v908
    %v2276 = vunpack.c.h.b16 %v908
    %v2277 = vunpack.c.l.b16 %v909
    %v2278 = vunpack.c.h.b16 %v909
    %v2279 = vunpack.c.l.b16 %v910
    %v2280 = vunpack.c.h.b16 %v910
    %v2281 = vunpack.c.l.b16 %v911
    %v2282 = vunpack.c.h.b16 %v911
    %v2283 = vunpack.c.l.b16 %v912
    %v2284 = vunpack.c.h.b16 %v912
    %v2285 = vunpack.c.l.b16 %v913
    %v2286 = vunpack.c.h.b16 %v913
    %v2287 = vunpack.c.l.b16 %v914
    %v2288 = vunpack.c.h.b16 %v914
    %v2289 = vunpack.c.l.b16 %v915
    %v2290 = vunpack.c.h.b16 %v915
    %v2291 = vunpack.c.l.b16 %v916
    %v2292 = vunpack.c.h.b16 %v916
    %v2293 = vunpack.c.l.b16 %v917
    %v2294 = vunpack.c.h.b16 %v917
    %v2295 = vunpack.c.l.b16 %v918
    %v2296 = vunpack.c.h.b16 %v918
    %v2297 = vunpack.c.l.b16 %v919
    %v2298 = vunpack.c.h.b16 %v919
    %v2299 = vunpack.c.l.b16 %v920
    %v2300 = vunpack.c.h.b16 %v920
    %v2301 = vunpack.c.l.b16 %v921
    %v2302 = vunpack.c.h.b16 %v921
    %v2303 = vunpack.c.l.b16 %v922
    %v2304 = vunpack.c.h.b16 %v922
    %v2305 = vunpack.c.l.b16 %v923
    %v2306 = vunpack.c.h.b16 %v923
    %v2307 = vunpack.c.l.b16 %v924
    %v2308 = vunpack.c.h.b16 %v924
    %v2309 = vunpack.c.l.b16 %v925
    %v2310 = vunpack.c.h.b16 %v925
    %v2311 = vunpack.c.l.b16 %v926
    %v2312 = vunpack.c.h.b16 %v926
    %v2313 = vunpack.c.l.b16 %v927
    %v2314 = vunpack.c.h.b16 %v927
    %v2315 = vunpack.c.l.b16 %v928
    %v2316 = vunpack.c.h.b16 %v928
    %v2317 = vunpack.c.l.b16 %v929
    %v2318 = vunpack.c.h.b16 %v929
    %v2319 = vunpack.c.l.b16 %v930
    %v2320 = vunpack.c.h.b16 %v930
    %v2321 = vunpack.c.l.b16 %v931
    %v2322 = vunpack.c.h.b16 %v931
    %v2323 = vunpack.c.l.b16 %v932
    %v2324 = vunpack.c.h.b16 %v932
    %v2325 = vunpack.c.l.b16 %v933
    %v2326 = vunpack.c.h.b16 %v933
    %v2327 = vunpack.c.l.b16 %v934
    %v2328 = vunpack.c.h.b16 %v934
    %v2329 = vunpack.c.l.b16 %v935
    %v2330 = vunpack.c.h.b16 %v935
    %v2331 = vunpack.c.l.b16 %v936
    %v2332 = vunpack.c.h.b16 %v936
    %v2333 = vunpack.c.l.b16 %v937
    %v2334 = vunpack.c.h.b16 %v937
    %v2335 = vunpack.c.l.b16 %v938
    %v2336 = vunpack.c.h.b16 %v938
    %v2337 = vunpack.c.l.b16 %v939
    %v2338 = vunpack.c.h.b16 %v939
    %v2339 = vunpack.c.l.b16 %v940
    %v2340 = vunpack.c.h.b16 %v940
    %v2341 = vunpack.c.l.b16 %v941
    %v2342 = vunpack.c.h.b16 %v941
    %v2343 = vunpack.c.l.b16 %v942
    %v2344 = vunpack.c.h.b16 %v942
    %v2345 = vunpack.c.l.b16 %v943
    %v2346 = vunpack.c.h.b16 %v943
    %v2347 = vunpack.c.l.b16 %v944
    %v2348 = vunpack.c.h.b16 %v944
    %v2349 = vunpack.c.l.b16 %v945
    %v2350 = vunpack.c.h.b16 %v945
    %v2351 = vunpack.c.l.b16 %v946
    %v2352 = vunpack.c.h.b16 %v946
    %v2353 = vunpack.c.l.b16 %v947
    %v2354 = vunpack.c.h.b16 %v947
    %v2355 = vunpack.c.l.b16 %v948
    %v2356 = vunpack.c.h.b16 %v948
    %v2357 = vunpack.c.l.b16 %v949
    %v2358 = vunpack.c.h.b16 %v949
    %v2359 = vunpack.c.l.b16 %v950
    %v2360 = vunpack.c.h.b16 %v950
    %v2361 = vunpack.c.l.b16 %v951
    %v2362 = vunpack.c.h.b16 %v951
    %v2363 = vunpack.c.l.b16 %v952
    %v2364 = vunpack.c.h.b16 %v952
    %v2365 = vunpack.c.l.b16 %v953
    %v2366 = vunpack.c.h.b16 %v953
    %v2367 = vunpack.c.l.b16 %v954
    %v2368 = vunpack.c.h.b16 %v954
    %v2369 = vunpack.c.l.b16 %v955
    %v2370 = vunpack.c.h.b16 %v955
    %v2371 = vunpack.c.l.b16 %v956
    %v2372 = vunpack.c.h.b16 %v956
    %v2373 = vunpack.c.l.b16 %v957
    %v2374 = vunpack.c.h.b16 %v957
    %v2375 = vunpack.c.l.b16 %v958
    %v2376 = vunpack.c.h.b16 %v958
    %v2377 = vunpack.c.l.b16 %v959
    %v2378 = vunpack.c.h.b16 %v959
    %v2379 = vunpack.c.l.b16 %v960
    %v2380 = vunpack.c.h.b16 %v960
    %v2381 = vunpack.c.l.b16 %v961
    %v2382 = vunpack.c.h.b16 %v961
    %v2383 = vunpack.c.l.b16 %v962
    %v2384 = vunpack.c.h.b16 %v962
    %v2385 = vunpack.c.l.b16 %v963
    %v2386 = vunpack.c.h.b16 %v963
    %v2387 = vunpack.c.l.b16 %v964
    %v2388 = vunpack.c.h.b16 %v964
    %v2389 = vunpack.c.l.b16 %v965
    %v2390 = vunpack.c.h.b16 %v965
    %v2391 = vunpack.c.l.b16 %v966
    %v2392 = vunpack.c.h.b16 %v966
    %v2393 = vunpack.c.l.b16 %v967
    %v2394 = vunpack.c.h.b16 %v967
    %v2395 = vunpack.c.l.b16 %v968
    %v2396 = vunpack.c.h.b16 %v968
    %v2397 = vunpack.c.l.b16 %v969
    %v2398 = vunpack.c.h.b16 %v969
    %v2399 = vunpack.c.l.b16 %v970
    %v2400 = vunpack.c.h.b16 %v970
    %v2401 = vunpack.c.l.b16 %v971
    %v2402 = vunpack.c.h.b16 %v971
    %v2403 = vunpack.c.l.b16 %v972
    %v2404 = vunpack.c.h.b16 %v972
    %v2405 = vunpack.c.l.b16 %v973
    %v2406 = vunpack.c.h.b16 %v973
    %v2407 = vunpack.c.l.b16 %v974
    %v2408 = vunpack.c.h.b16 %v974
    %v2409 = vunpack.c.l.b16 %v975
    %v2410 = vunpack.c.h.b16 %v975
    %v2411 = vunpack.c.l.b16 %v976
    %v2412 = vunpack.c.h.b16 %v976
    %v2413 = vunpack.c.l.b16 %v977
    %v2414 = vunpack.c.h.b16 %v977
    %v2415 = vunpack.c.l.b16 %v978
    %v2416 = vunpack.c.h.b16 %v978
    %v2417 = vunpack.c.l.b16 %v979
    %v2418 = vunpack.c.h.b16 %v979
    %v2419 = vunpack.c.l.b16 %v980
    %v2420 = vunpack.c.h.b16 %v980
    %v2421 = vunpack.c.l.b16 %v981
    %v2422 = vunpack.c.h.b16 %v981
    %v2423 = vunpack.c.l.b16 %v982
    %v2424 = vunpack.c.h.b16 %v982
    %v2425 = vunpack.c.l.b16 %v983
    %v2426 = vunpack.c.h.b16 %v983
    %v2427 = vunpack.c.l.b16 %v984
    %v2428 = vunpack.c.h.b16 %v984
    %v2429 = vunpack.c.l.b16 %v985
    %v2430 = vunpack.c.h.b16 %v985
    %v2431 = vunpack.c.l.b16 %v986
    %v2432 = vunpack.c.h.b16 %v986
    %v2433 = vunpack.c.l.b16 %v987
    %v2434 = vunpack.c.h.b16 %v987
    %v2435 = vunpack.c.l.b16 %v988
    %v2436 = vunpack.c.h.b16 %v988
    %v2437 = vunpack.c.l.b16 %v989
    %v2438 = vunpack.c.h.b16 %v989
    %v2439 = vunpack.c.l.b16 %v990
    %v2440 = vunpack.c.h.b16 %v990
    %v2441 = vunpack.c.l.b16 %v991
    %v2442 = vunpack.c.h.b16 %v991
    %v2443 = vunpack.c.l.b16 %v992
    %v2444 = vunpack.c.h.b16 %v992
    %v2445 = vunpack.c.l.b16 %v993
    %v2446 = vunpack.c.h.b16 %v993
    %v2447 = vunpack.c.l.b16 %v994
    %v2448 = vunpack.c.h.b16 %v994
    %v2449 = vunpack.c.l.b16 %v995
    %v2450 = vunpack.c.h.b16 %v995
    %v2451 = vunpack.c.l.b16 %v996
    %v2452 = vunpack.c.h.b16 %v996
    %v2453 = vunpack.c.l.b16 %v997
    %v2454 = vunpack.c.h.b16 %v997
    %v2455 = vunpack.c.l.b16 %v998
    %v2456 = vunpack.c.h.b16 %v998
    %v2457 = vunpack.c.l.b16 %v999
    %v2458 = vunpack.c.h.b16 %v999
    %v2459 = vunpack.c.l.b16 %v1000
    %v2460 = vunpack.c.h.b16 %v1000
    %v2461 = vunpack.c.l.b16 %v1001
    %v2462 = vunpack.c.h.b16 %v1001
    %v2463 = vunpack.c.l.b16 %v1002
    %v2464 = vunpack.c.h.b16 %v1002
    %v2465 = vunpack.c.l.b16 %v1003
    %v2466 = vunpack.c.h.b16 %v1003
    %v2467 = vunpack.c.l.b16 %v1004
    %v2468 = vunpack.c.h.b16 %v1004
    %v2469 = vunpack.c.l.b16 %v1005
    %v2470 = vunpack.c.h.b16 %v1005
    %v2471 = vunpack.c.l.b16 %v1006
    %v2472 = vunpack.c.h.b16 %v1006
    %v2473 = vunpack.c.l.b16 %v1007
    %v2474 = vunpack.c.h.b16 %v1007
    %v2475 = vunpack.c.l.b16 %v1008
    %v2476 = vunpack.c.h.b16 %v1008
    %v2477 = vunpack.c.l.b16 %v1009
    %v2478 = vunpack.c.h.b16 %v1009
    %v2479 = vunpack.c.l.b16 %v1010
    %v2480 = vunpack.c.h.b16 %v1010
    %v2481 = vunpack.c.l.b16 %v1011
    %v2482 = vunpack.c.h.b16 %v1011
    %v2483 = vunpack.c.l.b16 %v1012
    %v2484 = vunpack.c.h.b16 %v1012
    %v2485 = vunpack.c.l.b16 %v1013
    %v2486 = vunpack.c.h.b16 %v1013
    %v2487 = vunpack.c.l.b16 %v1014
    %v2488 = vunpack.c.h.b16 %v1014
    %v2489 = vunpack.c.l.b16 %v1015
    %v2490 = vunpack.c.h.b16 %v1015
    %v2491 = vunpack.c.l.b16 %v1016
    %v2492 = vunpack.c.h.b16 %v1016
    %v2493 = vunpack.c.l.b16 %v1017
    %v2494 = vunpack.c.h.b16 %v1017
    %v2495 = vunpack.c.l.b16 %v1018
    %v2496 = vunpack.c.h.b16 %v1018
    %v2497 = vunpack.c.l.b16 %v1019
    %v2498 = vunpack.c.h.b16 %v1019
    %v2499 = vunpack.c.l.b16 %v1020
    %v2500 = vunpack.c.h.b16 %v1020
    %v2501 = vunpack.c.l.b16 %v1021
    %v2502 = vunpack.c.h.b16 %v1021
    %v2503 = vunpack.c.l.b16 %v1022
    %v2504 = vunpack.c.h.b16 %v1022
    %v2505 = vunpack.c.l.b16 %v1023
    %v2506 = vunpack.c.h.b16 %v1023
    %v2507 = vunpack.c.l.b16 %v1024
    %v2508 = vunpack.c.h.b16 %v1024
    %v2509 = vunpack.c.l.b16 %v1025
    %v2510 = vunpack.c.h.b16 %v1025
    %v2511 = vunpack.c.l.b16 %v1026
    %v2512 = vunpack.c.h.b16 %v1026
    %v2513 = vunpack.c.l.b16 %v1027
    %v2514 = vunpack.c.h.b16 %v1027
    %v2515 = vunpack.c.l.b16 %v1028
    %v2516 = vunpack.c.h.b16 %v1028
    %v2517 = vunpack.c.l.b16 %v1029
    %v2518 = vunpack.c.h.b16 %v1029
    %v2519 = vunpack.c.l.b16 %v1030
    %v2520 = vunpack.c.h.b16 %v1030
    %v2521 = vunpack.c.l.b16 %v1031
    %v2522 = vunpack.c.h.b16 %v1031
    %v2523 = vunpack.c.l.b16 %v1032
    %v2524 = vunpack.c.h.b16 %v1032
    %v2525 = vunpack.c.l.b16 %v1033
    %v2526 = vunpack.c.h.b16 %v1033
    %v2527 = vunpack.c.l.b16 %v1034
    %v2528 = vunpack.c.h.b16 %v1034
    %v2529 = vunpack.c.l.b16 %v1035
    %v2530 = vunpack.c.h.b16 %v1035
    %v2531 = vunpack.c.l.b16 %v1036
    %v2532 = vunpack.c.h.b16 %v1036
    %v2533 = vunpack.c.l.b16 %v1037
    %v2534 = vunpack.c.h.b16 %v1037
    %v2535 = vunpack.c.l.b16 %v1038
    %v2536 = vunpack.c.h.b16 %v1038
    %v2537 = vunpack.c.l.b16 %v1039
    %v2538 = vunpack.c.h.b16 %v1039
    %v2539 = vunpack.c.l.b16 %v1040
    %v2540 = vunpack.c.h.b16 %v1040
    %v2541 = vunpack.c.l.b16 %v1041
    %v2542 = vunpack.c.h.b16 %v1041
    %v2543 = vunpack.c.l.b16 %v1042
    %v2544 = vunpack.c.h.b16 %v1042
    %v2545 = vunpack.c.l.b16 %v1043
    %v2546 = vunpack.c.h.b16 %v1043
    %v2547 = vunpack.c.l.b16 %v1044
    %v2548 = vunpack.c.h.b16 %v1044
    %v2549 = vunpack.c.l.b16 %v1045
    %v2550 = vunpack.c.h.b16 %v1045
    %v2551 = vunpack.c.l.b16 %v1046
    %v2552 = vunpack.c.h.b16 %v1046
    %v2553 = vunpack.c.l.b16 %v1047
    %v2554 = vunpack.c.h.b16 %v1047
    %v2555 = vunpack.c.l.b16 %v1048
    %v2556 = vunpack.c.h.b16 %v1048
    %v2557 = vunpack.c.l.b16 %v1049
    %v2558 = vunpack.c.h.b16 %v1049
    %v2559 = vunpack.c.l.b16 %v1050
    %v2560 = vunpack.c.h.b16 %v1050
    %v2561 = vunpack.c.l.b16 %v1051
    %v2562 = vunpack.c.h.b16 %v1051
    %v2563 = vunpack.c.l.b16 %v1052
    %v2564 = vunpack.c.h.b16 %v1052
    %v2565 = vunpack.c.l.b16 %v1053
    %v2566 = vunpack.c.h.b16 %v1053
    %v2567 = vunpack.c.l.b16 %v1054
    %v2568 = vunpack.c.h.b16 %v1054
    %v2569 = vunpack.c.l.b16 %v1055
    %v2570 = vunpack.c.h.b16 %v1055
    %v2571 = vunpack.c.l.b16 %v1056
    %v2572 = vunpack.c.h.b16 %v1056
    %v2573 = vunpack.c.l.b16 %v1057
    %v2574 = vunpack.c.h.b16 %v1057
    %v2575 = vunpack.c.l.b16 %v1058
    %v2576 = vunpack.c.h.b16 %v1058
    %v2577 = vunpack.c.l.b16 %v1059
    %v2578 = vunpack.c.h.b16 %v1059
    %v2579 = vunpack.c.l.b16 %v1060
    %v2580 = vunpack.c.h.b16 %v1060
    %v2581 = vunpack.c.l.b16 %v1061
    %v2582 = vunpack.c.h.b16 %v1061
    %v2583 = vunpack.c.l.b16 %v1062
    %v2584 = vunpack.c.h.b16 %v1062
    %v2585 = vunpack.c.l.b16 %v1063
    %v2586 = vunpack.c.h.b16 %v1063
    %v2587 = vunpack.c.l.b16 %v1064
    %v2588 = vunpack.c.h.b16 %v1064
    %v2589 = vunpack.c.l.b16 %v1065
    %v2590 = vunpack.c.h.b16 %v1065
    %v2591 = vunpack.c.l.b16 %v1066
    %v2592 = vunpack.c.h.b16 %v1066
    %v2593 = vunpack.c.l.b16 %v1067
    %v2594 = vunpack.c.h.b16 %v1067
    %v2595 = vunpack.c.l.b16 %v1068
    %v2596 = vunpack.c.h.b16 %v1068
    %v2597 = vunpack.c.l.b16 %v1069
    %v2598 = vunpack.c.h.b16 %v1069
    %v2599 = vunpack.c.l.b16 %v1070
    %v2600 = vunpack.c.h.b16 %v1070
    %v2601 = vunpack.c.l.b16 %v1071
    %v2602 = vunpack.c.h.b16 %v1071
    %v2603 = vunpack.c.l.b16 %v1072
    %v2604 = vunpack.c.h.b16 %v1072
    %v2605 = vunpack.c.l.b16 %v1073
    %v2606 = vunpack.c.h.b16 %v1073
    %v2607 = vunpack.c.l.b16 %v1074
    %v2608 = vunpack.c.h.b16 %v1074
    %v2609 = vunpack.c.l.b16 %v1075
    %v2610 = vunpack.c.h.b16 %v1075
    %v2611 = vunpack.c.l.b16 %v1076
    %v2612 = vunpack.c.h.b16 %v1076
    %v2613 = vunpack.c.l.b16 %v1077
    %v2614 = vunpack.c.h.b16 %v1077
    %v2615 = vunpack.c.l.b16 %v1078
    %v2616 = vunpack.c.h.b16 %v1078
    %v2617 = vunpack.c.l.b16 %v1079
    %v2618 = vunpack.c.h.b16 %v1079
    %v2619 = vunpack.c.l.b16 %v1080
    %v2620 = vunpack.c.h.b16 %v1080
    %v2621 = vunpack.c.l.b16 %v1081
    %v2622 = vunpack.c.h.b16 %v1081
    %v2623 = vunpack.c.l.b16 %v1082
    %v2624 = vunpack.c.h.b16 %v1082
    %v2625 = vunpack.c.l.b16 %v1083
    %v2626 = vunpack.c.h.b16 %v1083
    %v2627 = vunpack.c.l.b16 %v1084
    %v2628 = vunpack.c.h.b16 %v1084
    %v2629 = vunpack.c.l.b16 %v1085
    %v2630 = vunpack.c.h.b16 %v1085
    %v2631 = vunpack.c.l.b16 %v1086
    %v2632 = vunpack.c.h.b16 %v1086
    %v2633 = vunpack.c.l.b16 %v1087
    %v2634 = vunpack.c.h.b16 %v1087
    %v2635 = vunpack.c.l.b16 %v1088
    %v2636 = vunpack.c.h.b16 %v1088
    %v2637 = vunpack.c.l.b16 %v1089
    %v2638 = vunpack.c.h.b16 %v1089
    %v2639 = vunpack.c.l.b16 %v1090
    %v2640 = vunpack.c.h.b16 %v1090
    %v2641 = vunpack.c.l.b16 %v1091
    %v2642 = vunpack.c.h.b16 %v1091
    %v2643 = vunpack.c.l.b16 %v1092
    %v2644 = vunpack.c.h.b16 %v1092
    %v2645 = vunpack.c.l.b16 %v1093
    %v2646 = vunpack.c.h.b16 %v1093
    %v2647 = vunpack.c.l.b16 %v1094
    %v2648 = vunpack.c.h.b16 %v1094
    %v2649 = vunpack.c.l.b16 %v1095
    %v2650 = vunpack.c.h.b16 %v1095
    %v2651 = vunpack.c.l.b16 %v1096
    %v2652 = vunpack.c.h.b16 %v1096
    %v2653 = vunpack.c.l.b16 %v1097
    %v2654 = vunpack.c.h.b16 %v1097
    %v2655 = vunpack.c.l.b16 %v1098
    %v2656 = vunpack.c.h.b16 %v1098
    %v2657 = vunpack.c.l.b16 %v1099
    %v2658 = vunpack.c.h.b16 %v1099
    %v2659 = vunpack.c.l.b16 %v1100
    %v2660 = vunpack.c.h.b16 %v1100
    %v2661 = vunpack.c.l.b16 %v1101
    %v2662 = vunpack.c.h.b16 %v1101
    %v2663 = vunpack.c.l.b16 %v1102
    %v2664 = vunpack.c.h.b16 %v1102
    %v2665 = vunpack.c.l.b16 %v1103
    %v2666 = vunpack.c.h.b16 %v1103
    %v2667 = vunpack.c.l.b16 %v1104
    %v2668 = vunpack.c.h.b16 %v1104
    %v2669 = vunpack.c.l.b16 %v1105
    %v2670 = vunpack.c.h.b16 %v1105
    %v2671 = vunpack.c.l.b16 %v1106
    %v2672 = vunpack.c.h.b16 %v1106
    %v2673 = vunpack.c.l.b16 %v1107
    %v2674 = vunpack.c.h.b16 %v1107
    %v2675 = vunpack.c.l.b16 %v1108
    %v2676 = vunpack.c.h.b16 %v1108
    %v2677 = vunpack.c.l.b16 %v1109
    %v2678 = vunpack.c.h.b16 %v1109
    %v2679 = vunpack.c.l.b16 %v1110
    %v2680 = vunpack.c.h.b16 %v1110
    %v2681 = vunpack.c.l.b16 %v1111
    %v2682 = vunpack.c.h.b16 %v1111
    %v2683 = vunpack.c.l.b16 %v1112
    %v2684 = vunpack.c.h.b16 %v1112
    %v2685 = vunpack.c.l.b16 %v1113
    %v2686 = vunpack.c.h.b16 %v1113
    %v2687 = vunpack.c.l.b16 %v1114
    %v2688 = vunpack.c.h.b16 %v1114
    %v2689 = vunpack.c.l.b16 %v1115
    %v2690 = vunpack.c.h.b16 %v1115
    %v2691 = vunpack.c.l.b16 %v1116
    %v2692 = vunpack.c.h.b16 %v1116
    %v2693 = vunpack.c.l.b16 %v1117
    %v2694 = vunpack.c.h.b16 %v1117
    %v2695 = vunpack.c.l.b16 %v1118
    %v2696 = vunpack.c.h.b16 %v1118
    %v2697 = vunpack.c.l.b16 %v1119
    %v2698 = vunpack.c.h.b16 %v1119
    %v2699 = vunpack.c.l.b16 %v1120
    %v2700 = vunpack.c.h.b16 %v1120
    %v2701 = vunpack.c.l.b16 %v1121
    %v2702 = vunpack.c.h.b16 %v1121
    %v2703 = vunpack.c.l.b16 %v1122
    %v2704 = vunpack.c.h.b16 %v1122
    %v2705 = vunpack.c.l.b16 %v1123
    %v2706 = vunpack.c.h.b16 %v1123
    %v2707 = vunpack.c.l.b16 %v1124
    %v2708 = vunpack.c.h.b16 %v1124
    %v2709 = vunpack.c.l.b16 %v1125
    %v2710 = vunpack.c.h.b16 %v1125
    %v2711 = vunpack.c.l.b16 %v1126
    %v2712 = vunpack.c.h.b16 %v1126
    %v2713 = vunpack.c.l.b16 %v1127
    %v2714 = vunpack.c.h.b16 %v1127
    %v2715 = vunpack.c.l.b16 %v1128
    %v2716 = vunpack.c.h.b16 %v1128
    %v2717 = vunpack.c.l.b16 %v1129
    %v2718 = vunpack.c.h.b16 %v1129
    %v2719 = vunpack.c.l.b16 %v1130
    %v2720 = vunpack.c.h.b16 %v1130
    %v2721 = vunpack.c.l.b16 %v1131
    %v2722 = vunpack.c.h.b16 %v1131
    %v2723 = vunpack.c.l.b16 %v1132
    %v2724 = vunpack.c.h.b16 %v1132
    %v2725 = vunpack.c.l.b16 %v1133
    %v2726 = vunpack.c.h.b16 %v1133
    %v2727 = vunpack.c.l.b16 %v1134
    %v2728 = vunpack.c.h.b16 %v1134
    %v2729 = vunpack.c.l.b16 %v1135
    %v2730 = vunpack.c.h.b16 %v1135
    %v2731 = vunpack.c.l.b16 %v1136
    %v2732 = vunpack.c.h.b16 %v1136
    %v2733 = vunpack.c.l.b16 %v1137
    %v2734 = vunpack.c.h.b16 %v1137
    %v2735 = vunpack.c.l.b16 %v1138
    %v2736 = vunpack.c.h.b16 %v1138
    %v2737 = vunpack.c.l.b16 %v1139
    %v2738 = vunpack.c.h.b16 %v1139
    %v2739 = vunpack.c.l.b16 %v1140
    %v2740 = vunpack.c.h.b16 %v1140
    %v2741 = vunpack.c.l.b16 %v1141
    %v2742 = vunpack.c.h.b16 %v1141
    %v2743 = vunpack.c.l.b16 %v1142
    %v2744 = vunpack.c.h.b16 %v1142
    %v2745 = vunpack.c.l.b16 %v1143
    %v2746 = vunpack.c.h.b16 %v1143
    %v2747 = vunpack.c.l.b16 %v1144
    %v2748 = vunpack.c.h.b16 %v1144
    %v2749 = vunpack.c.l.b16 %v1145
    %v2750 = vunpack.c.h.b16 %v1145
    %v2751 = vunpack.c.l.b16 %v1146
    %v2752 = vunpack.c.h.b16 %v1146
    %v2753 = vunpack.c.l.b16 %v1147
    %v2754 = vunpack.c.h.b16 %v1147
    %v2755 = vunpack.c.l.b16 %v1148
    %v2756 = vunpack.c.h.b16 %v1148
    %v2757 = vunpack.c.l.b16 %v1149
    %v2758 = vunpack.c.h.b16 %v1149
    %v2759 = vunpack.c.l.b16 %v1150
    %v2760 = vunpack.c.h.b16 %v1150
    %v2761 = vunpack.c.l.b16 %v1151
    %v2762 = vunpack.c.h.b16 %v1151
    %v2763 = vunpack.c.l.b16 %v1152
    %v2764 = vunpack.c.h.b16 %v1152
    %v2765 = vunpack.c.l.b16 %v1153
    %v2766 = vunpack.c.h.b16 %v1153
    %v2767 = vunpack.c.l.b16 %v1154
    %v2768 = vunpack.c.h.b16 %v1154
    %v2769 = vunpack.c.l.b16 %v1155
    %v2770 = vunpack.c.h.b16 %v1155
    %v2771 = vunpack.c.l.b16 %v1156
    %v2772 = vunpack.c.h.b16 %v1156
    %v2773 = vunpack.c.l.b16 %v1157
    %v2774 = vunpack.c.h.b16 %v1157
    %v2775 = vunpack.c.l.b16 %v1158
    %v2776 = vunpack.c.h.b16 %v1158
    %v2777 = vunpack.c.l.b16 %v1159
    %v2778 = vunpack.c.h.b16 %v1159
    %v2779 = vunpack.c.l.b16 %v1160
    %v2780 = vunpack.c.h.b16 %v1160
    %v2781 = vunpack.c.l.b16 %v1161
    %v2782 = vunpack.c.h.b16 %v1161
    %v2783 = vunpack.c.l.b16 %v1162
    %v2784 = vunpack.c.h.b16 %v1162
    %v2785 = vunpack.c.l.b16 %v1163
    %v2786 = vunpack.c.h.b16 %v1163
    %v2787 = vunpack.c.l.b16 %v1164
    %v2788 = vunpack.c.h.b16 %v1164
    %v2789 = vunpack.c.l.b16 %v1165
    %v2790 = vunpack.c.h.b16 %v1165
    %v2791 = vunpack.c.l.b16 %v1166
    %v2792 = vunpack.c.h.b16 %v1166
    %v2793 = vunpack.c.l.b16 %v1167
    %v2794 = vunpack.c.h.b16 %v1167
    %v2795 = vunpack.c.l.b16 %v1168
    %v2796 = vunpack.c.h.b16 %v1168
    %v2797 = vunpack.c.l.b16 %v1169
    %v2798 = vunpack.c.h.b16 %v1169
    %v2799 = vunpack.c.l.b16 %v1170
    %v2800 = vunpack.c.h.b16 %v1170
    %v2801 = vunpack.c.l.b16 %v1171
    %v2802 = vunpack.c.h.b16 %v1171
    %v2803 = vunpack.c.l.b16 %v1172
    %v2804 = vunpack.c.h.b16 %v1172
    %v2805 = vunpack.c.l.b16 %v1173
    %v2806 = vunpack.c.h.b16 %v1173
    %v2807 = vunpack.c.l.b16 %v1174
    %v2808 = vunpack.c.h.b16 %v1174
    %v2809 = vunpack.c.l.b16 %v1175
    %v2810 = vunpack.c.h.b16 %v1175
    %v2811 = vunpack.c.l.b16 %v1176
    %v2812 = vunpack.c.h.b16 %v1176
    %v2813 = vunpack.c.l.b16 %v1177
    %v2814 = vunpack.c.h.b16 %v1177
    %v2815 = vunpack.c.l.b16 %v1178
    %v2816 = vunpack.c.h.b16 %v1178
    %v2817 = vunpack.c.l.b16 %v1179
    %v2818 = vunpack.c.h.b16 %v1179
    %v2819 = vunpack.c.l.b16 %v1180
    %v2820 = vunpack.c.h.b16 %v1180
    %v2821 = vunpack.c.l.b16 %v1181
    %v2822 = vunpack.c.h.b16 %v1181
    %v2823 = vunpack.c.l.b16 %v1182
    %v2824 = vunpack.c.h.b16 %v1182
    %v2825 = vunpack.c.l.b16 %v1183
    %v2826 = vunpack.c.h.b16 %v1183
    %v2827 = vunpack.c.l.b16 %v1184
    %v2828 = vunpack.c.h.b16 %v1184
    %v2829 = vunpack.c.l.b16 %v1185
    %v2830 = vunpack.c.h.b16 %v1185
    %v2831 = vunpack.c.l.b16 %v1186
    %v2832 = vunpack.c.h.b16 %v1186
    %v2833 = vunpack.c.l.b16 %v1187
    %v2834 = vunpack.c.h.b16 %v1187
    %v2835 = vunpack.c.l.b16 %v1188
    %v2836 = vunpack.c.h.b16 %v1188
    %v2837 = vunpack.c.l.b16 %v1189
    %v2838 = vunpack.c.h.b16 %v1189
    %v2839 = vunpack.c.l.b16 %v1190
    %v2840 = vunpack.c.h.b16 %v1190
    %v2841 = vunpack.c.l.b16 %v1191
    %v2842 = vunpack.c.h.b16 %v1191
    %v2843 = vunpack.c.l.b16 %v1192
    %v2844 = vunpack.c.h.b16 %v1192
    %v2845 = vunpack.c.l.b16 %v1193
    %v2846 = vunpack.c.h.b16 %v1193
    %v2847 = vunpack.c.l.b16 %v1194
    %v2848 = vunpack.c.h.b16 %v1194
    %v2849 = vunpack.c.l.b16 %v1195
    %v2850 = vunpack.c.h.b16 %v1195
    %v2851 = vunpack.c.l.b16 %v1196
    %v2852 = vunpack.c.h.b16 %v1196
    %v2853 = vunpack.c.l.b16 %v1197
    %v2854 = vunpack.c.h.b16 %v1197
    %v2855 = vunpack.c.l.b16 %v1198
    %v2856 = vunpack.c.h.b16 %v1198
    %v2857 = vunpack.c.l.b16 %v1199
    %v2858 = vunpack.c.h.b16 %v1199
    %v2859 = vunpack.c.l.b16 %v1200
    %v2860 = vunpack.c.h.b16 %v1200
    %v2861 = vunpack.c.l.b16 %v1201
    %v2862 = vunpack.c.h.b16 %v1201
    %v2863 = vunpack.c.l.b16 %v1202
    %v2864 = vunpack.c.h.b16 %v1202
    %v2865 = vunpack.c.l.b16 %v1203
    %v2866 = vunpack.c.h.b16 %v1203
    %v2867 = vunpack.c.l.b16 %v1204
    %v2868 = vunpack.c.h.b16 %v1204
    %v2869 = vunpack.c.l.b16 %v1205
    %v2870 = vunpack.c.h.b16 %v1205
    %v2871 = vunpack.c.l.b16 %v1206
    %v2872 = vunpack.c.h.b16 %v1206
    %v2873 = vunpack.c.l.b16 %v1207
    %v2874 = vunpack.c.h.b16 %v1207
    %v2875 = vunpack.c.l.b16 %v1208
    %v2876 = vunpack.c.h.b16 %v1208
    %v2877 = vunpack.c.l.b16 %v1209
    %v2878 = vunpack.c.h.b16 %v1209
    %v2879 = vunpack.c.l.b16 %v1210
    %v2880 = vunpack.c.h.b16 %v1210
    %v2881 = vunpack.c.l.b16 %v1211
    %v2882 = vunpack.c.h.b16 %v1211
    %v2883 = vunpack.c.l.b16 %v1212
    %v2884 = vunpack.c.h.b16 %v1212
    %v2885 = vunpack.c.l.b16 %v1213
    %v2886 = vunpack.c.h.b16 %v1213
    %v2887 = vunpack.c.l.b16 %v1214
    %v2888 = vunpack.c.h.b16 %v1214
    %v2889 = vunpack.c.l.b16 %v1215
    %v2890 = vunpack.c.h.b16 %v1215
    %v2891 = vunpack.c.l.b16 %v1216
    %v2892 = vunpack.c.h.b16 %v1216
    %v2893 = vunpack.c.l.b16 %v1217
    %v2894 = vunpack.c.h.b16 %v1217
    %v2895 = vunpack.c.l.b16 %v1218
    %v2896 = vunpack.c.h.b16 %v1218
    %v2897 = vunpack.c.l.b16 %v1219
    %v2898 = vunpack.c.h.b16 %v1219
    %v2899 = vunpack.c.l.b16 %v1220
    %v2900 = vunpack.c.h.b16 %v1220
    %v2901 = vunpack.c.l.b16 %v1221
    %v2902 = vunpack.c.h.b16 %v1221
    %v2903 = vunpack.c.l.b16 %v1222
    %v2904 = vunpack.c.h.b16 %v1222
    %v2905 = vunpack.c.l.b16 %v1223
    %v2906 = vunpack.c.h.b16 %v1223
    %v2907 = vunpack.c.l.b16 %v1224
    %v2908 = vunpack.c.h.b16 %v1224
    %v2909 = vunpack.c.l.b16 %v1225
    %v2910 = vunpack.c.h.b16 %v1225
    %v2911 = vunpack.c.l.b16 %v1226
    %v2912 = vunpack.c.h.b16 %v1226
    %v2913 = vunpack.c.l.b16 %v1227
    %v2914 = vunpack.c.h.b16 %v1227
    %v2915 = vunpack.c.l.b16 %v1228
    %v2916 = vunpack.c.h.b16 %v1228
    %v2917 = vunpack.c.l.b16 %v1229
    %v2918 = vunpack.c.h.b16 %v1229
    %v2919 = vunpack.c.l.b16 %v1230
    %v2920 = vunpack.c.h.b16 %v1230
    %v2921 = vunpack.c.l.b16 %v1231
    %v2922 = vunpack.c.h.b16 %v1231
    %v2923 = vunpack.c.l.b16 %v1232
    %v2924 = vunpack.c.h.b16 %v1232
    %v2925 = vunpack.c.l.b16 %v1233
    %v2926 = vunpack.c.h.b16 %v1233
    %v2927 = vunpack.c.l.b16 %v1234
    %v2928 = vunpack.c.h.b16 %v1234
    %v2929 = vunpack.c.l.b16 %v1235
    %v2930 = vunpack.c.h.b16 %v1235
    %v2931 = vunpack.c.l.b16 %v1236
    %v2932 = vunpack.c.h.b16 %v1236
    %v2933 = vunpack.c.l.b16 %v1237
    %v2934 = vunpack.c.h.b16 %v1237
    %v2935 = vunpack.c.l.b16 %v1238
    %v2936 = vunpack.c.h.b16 %v1238
    %v2937 = vunpack.c.l.b16 %v1239
    %v2938 = vunpack.c.h.b16 %v1239
    %v2939 = vunpack.c.l.b16 %v1240
    %v2940 = vunpack.c.h.b16 %v1240
    %v2941 = vunpack.c.l.b16 %v1241
    %v2942 = vunpack.c.h.b16 %v1241
    %v2943 = vunpack.c.l.b16 %v1242
    %v2944 = vunpack.c.h.b16 %v1242
    %v2945 = vunpack.c.l.b16 %v1243
    %v2946 = vunpack.c.h.b16 %v1243
    %v2947 = vunpack.c.l.b16 %v1244
    %v2948 = vunpack.c.h.b16 %v1244
    %v2949 = vunpack.c.l.b16 %v1245
    %v2950 = vunpack.c.h.b16 %v1245
    %v2951 = vunpack.c.l.b16 %v1246
    %v2952 = vunpack.c.h.b16 %v1246
    %v2953 = vunpack.c.l.b16 %v1247
    %v2954 = vunpack.c.h.b16 %v1247
    %v2955 = vunpack.c.l.b16 %v1248
    %v2956 = vunpack.c.h.b16 %v1248
    %v2957 = vunpack.c.l.b16 %v1249
    %v2958 = vunpack.c.h.b16 %v1249
    %v2959 = vunpack.c.l.b16 %v1250
    %v2960 = vunpack.c.h.b16 %v1250
    %v2961 = vunpack.c.l.b16 %v1251
    %v2962 = vunpack.c.h.b16 %v1251
    %v2963 = vunpack.c.l.b16 %v1252
    %v2964 = vunpack.c.h.b16 %v1252
    %v2965 = vunpack.c.l.b16 %v1253
    %v2966 = vunpack.c.h.b16 %v1253
    %v2967 = vunpack.c.l.b16 %v1254
    %v2968 = vunpack.c.h.b16 %v1254
    %v2969 = vunpack.c.l.b16 %v1255
    %v2970 = vunpack.c.h.b16 %v1255
    %v2971 = vunpack.c.l.b16 %v1256
    %v2972 = vunpack.c.h.b16 %v1256
    %v2973 = vunpack.c.l.b16 %v1257
    %v2974 = vunpack.c.h.b16 %v1257
    %v2975 = vunpack.c.l.b16 %v1258
    %v2976 = vunpack.c.h.b16 %v1258
    %v2977 = vunpack.c.l.b16 %v1259
    %v2978 = vunpack.c.h.b16 %v1259
    %v2979 = vunpack.c.l.b16 %v1260
    %v2980 = vunpack.c.h.b16 %v1260
    %v2981 = vunpack.c.l.b16 %v1261
    %v2982 = vunpack.c.h.b16 %v1261
    %v2983 = vunpack.c.l.b16 %v1262
    %v2984 = vunpack.c.h.b16 %v1262
    %v2985 = vunpack.c.l.b16 %v1263
    %v2986 = vunpack.c.h.b16 %v1263
    %v2987 = vunpack.c.l.b16 %v1264
    %v2988 = vunpack.c.h.b16 %v1264
    %v2989 = vunpack.c.l.b16 %v1265
    %v2990 = vunpack.c.h.b16 %v1265
    %v2991 = vunpack.c.l.b16 %v1266
    %v2992 = vunpack.c.h.b16 %v1266
    %v2993 = vunpack.c.l.b16 %v1267
    %v2994 = vunpack.c.h.b16 %v1267
    %v2995 = vunpack.c.l.b16 %v1268
    %v2996 = vunpack.c.h.b16 %v1268
    %v2997 = vunpack.c.l.b16 %v1269
    %v2998 = vunpack.c.h.b16 %v1269
    %v2999 = vunpack.c.l.b16 %v1270
    %v3000 = vunpack.c.h.b16 %v1270
    %v3001 = vunpack.c.l.b16 %v1271
    %v3002 = vunpack.c.h.b16 %v1271
    %v3003 = vunpack.c.l.b16 %v1272
    %v3004 = vunpack.c.h.b16 %v1272
    %v3005 = vunpack.c.l.b16 %v1273
    %v3006 = vunpack.c.h.b16 %v1273
    %v3007 = vunpack.c.l.b16 %v1274
    %v3008 = vunpack.c.h.b16 %v1274
    %v3009 = vunpack.c.l.b16 %v1275
    %v3010 = vunpack.c.h.b16 %v1275
    %v3011 = vunpack.c.l.b16 %v1276
    %v3012 = vunpack.c.h.b16 %v1276
    %v3013 = vunpack.c.l.b16 %v1277
    %v3014 = vunpack.c.h.b16 %v1277
    %v3015 = vunpack.c.l.b16 %v1278
    %v3016 = vunpack.c.h.b16 %v1278
    %v3017 = vunpack.c.l.b16 %v1279
    %v3018 = vunpack.c.h.b16 %v1279
    %v3019 = vunpack.c.l.b16 %v1280
    %v3020 = vunpack.c.h.b16 %v1280
    %v3021 = vunpack.c.l.b16 %v1281
    %v3022 = vunpack.c.h.b16 %v1281
    %v3023 = vunpack.c.l.b16 %v1282
    %v3024 = vunpack.c.h.b16 %v1282
    %v3025 = vunpack.c.l.b16 %v1283
    %v3026 = vunpack.c.h.b16 %v1283
    %v3027 = vunpack.c.l.b16 %v1284
    %v3028 = vunpack.c.h.b16 %v1284
    %v3029 = vunpack.c.l.b16 %v1285
    %v3030 = vunpack.c.h.b16 %v1285
    %v3031 = vunpack.c.l.b16 %v1286
    %v3032 = vunpack.c.h.b16 %v1286
    %v3033 = vunpack.c.l.b16 %v1287
    %v3034 = vunpack.c.h.b16 %v1287
    %v3035 = vunpack.c.l.b16 %v1288
    %v3036 = vunpack.c.h.b16 %v1288
    %v3037 = vunpack.c.l.b16 %v1289
    %v3038 = vunpack.c.h.b16 %v1289
    %v3039 = vunpack.c.l.b16 %v1290
    %v3040 = vunpack.c.h.b16 %v1290
    %v3041 = vpack.c.b16 %v1893, %v1889
    %v3042 = vpack.c.b16 %v1894, %v1890
    %v3043 = vpack.c.b16 %v1895, %v1891
    %v3044 = vpack.c.b16 %v1896, %v1892
    %v3045 = vpack.c.b16 %v1901, %v1897
    %v3046 = vpack.c.b16 %v1902, %v1898
    %v3047 = vpack.c.b16 %v1903, %v1899
    %v3048 = vpack.c.b16 %v1904, %v1900
    %v3049 = vpack.c.b16 %v1909, %v1905
    %v3050 = vpack.c.b16 %v1910, %v1906
    %v3051 = vpack.c.b16 %v1911, %v1907
    %v3052 = vpack.c.b16 %v1912, %v1908
    %v3053 = vpack.c.b16 %v1917, %v1913
    %v3054 = vpack.c.b16 %v1918, %v1914
    %v3055 = vpack.c.b16 %v1919, %v1915
    %v3056 = vpack.c.b16 %v1920, %v1916
    %v3057 = vpack.c.b16 %v1925, %v1921
    %v3058 = vpack.c.b16 %v1926, %v1922
    %v3059 = vpack.c.b16 %v1927, %v1923
    %v3060 = vpack.c.b16 %v1928, %v1924
    %v3061 = vpack.c.b16 %v1933, %v1929
    %v3062 = vpack.c.b16 %v1934, %v1930
    %v3063 = vpack.c.b16 %v1935, %v1931
    %v3064 = vpack.c.b16 %v1936, %v1932
    %v3065 = vpack.c.b16 %v1941, %v1937
    %v3066 = vpack.c.b16 %v1942, %v1938
    %v3067 = vpack.c.b16 %v1943, %v1939
    %v3068 = vpack.c.b16 %v1944, %v1940
    %v3069 = vpack.c.b16 %v1949, %v1945
    %v3070 = vpack.c.b16 %v1950, %v1946
    %v3071 = vpack.c.b16 %v1951, %v1947
    %v3072 = vpack.c.b16 %v1952, %v1948
    %v3073 = vpack.c.b16 %v1957, %v1953
    %v3074 = vpack.c.b16 %v1958, %v1954
    %v3075 = vpack.c.b16 %v1959, %v1955
    %v3076 = vpack.c.b16 %v1960, %v1956
    %v3077 = vpack.c.b16 %v1965, %v1961
    %v3078 = vpack.c.b16 %v1966, %v1962
    %v3079 = vpack.c.b16 %v1967, %v1963
    %v3080 = vpack.c.b16 %v1968, %v1964
    %v3081 = vpack.c.b16 %v1973, %v1969
    %v3082 = vpack.c.b16 %v1974, %v1970
    %v3083 = vpack.c.b16 %v1975, %v1971
    %v3084 = vpack.c.b16 %v1976, %v1972
    %v3085 = vpack.c.b16 %v1981, %v1977
    %v3086 = vpack.c.b16 %v1982, %v1978
    %v3087 = vpack.c.b16 %v1983, %v1979
    %v3088 = vpack.c.b16 %v1984, %v1980
    %v3089 = vpack.c.b16 %v1989, %v1985
    %v3090 = vpack.c.b16 %v1990, %v1986
    %v3091 = vpack.c.b16 %v1991, %v1987
    %v3092 = vpack.c.b16 %v1992, %v1988
    %v3093 = vpack.c.b16 %v1997, %v1993
    %v3094 = vpack.c.b16 %v1998, %v1994
    %v3095 = vpack.c.b16 %v1999, %v1995
    %v3096 = vpack.c.b16 %v2000, %v1996
    %v3097 = vpack.c.b16 %v2005, %v2001
    %v3098 = vpack.c.b16 %v2006, %v2002
    %v3099 = vpack.c.b16 %v2007, %v2003
    %v3100 = vpack.c.b16 %v2008, %v2004
    %v3101 = vpack.c.b16 %v2013, %v2009
    %v3102 = vpack.c.b16 %v2014, %v2010
    %v3103 = vpack.c.b16 %v2015, %v2011
    %v3104 = vpack.c.b16 %v2016, %v2012
    %v3105 = vpack.c.b16 %v2021, %v2017
    %v3106 = vpack.c.b16 %v2022, %v2018
    %v3107 = vpack.c.b16 %v2023, %v2019
    %v3108 = vpack.c.b16 %v2024, %v2020
    %v3109 = vpack.c.b16 %v2029, %v2025
    %v3110 = vpack.c.b16 %v2030, %v2026
    %v3111 = vpack.c.b16 %v2031, %v2027
    %v3112 = vpack.c.b16 %v2032, %v2028
    %v3113 = vpack.c.b16 %v2037, %v2033
    %v3114 = vpack.c.b16 %v2038, %v2034
    %v3115 = vpack.c.b16 %v2039, %v2035
    %v3116 = vpack.c.b16 %v2040, %v2036
    %v3117 = vpack.c.b16 %v2045, %v2041
    %v3118 = vpack.c.b16 %v2046, %v2042
    %v3119 = vpack.c.b16 %v2047, %v2043
    %v3120 = vpack.c.b16 %v2048, %v2044
    %v3121 = vpack.c.b16 %v2053, %v2049
    %v3122 = vpack.c.b16 %v2054, %v2050
    %v3123 = vpack.c.b16 %v2055, %v2051
    %v3124 = vpack.c.b16 %v2056, %v2052
    %v3125 = vpack.c.b16 %v2061, %v2057
    %v3126 = vpack.c.b16 %v2062, %v2058
    %v3127 = vpack.c.b16 %v2063, %v2059
    %v3128 = vpack.c.b16 %v2064, %v2060
    %v3129 = vpack.c.b16 %v2069, %v2065
    %v3130 = vpack.c.b16 %v2070, %v2066
    %v3131 = vpack.c.b16 %v2071, %v2067
    %v3132 = vpack.c.b16 %v2072, %v2068
    %v3133 = vpack.c.b16 %v2077, %v2073
    %v3134 = vpack.c.b16 %v2078, %v2074
    %v3135 = vpack.c.b16 %v2079, %v2075
    %v3136 = vpack.c.b16 %v2080, %v2076
    %v3137 = vpack.c.b16 %v2085, %v2081
    %v3138 = vpack.c.b16 %v2086, %v2082
    %v3139 = vpack.c.b16 %v2087, %v2083
    %v3140 = vpack.c.b16 %v2088, %v2084
    %v3141 = vpack.c.b16 %v2093, %v2089
    %v3142 = vpack.c.b16 %v2094, %v2090
    %v3143 = vpack.c.b16 %v2095, %v2091
    %v3144 = vpack.c.b16 %v2096, %v2092
    %v3145 = vpack.c.b16 %v2101, %v2097
    %v3146 = vpack.c.b16 %v2102, %v2098
    %v3147 = vpack.c.b16 %v2103, %v2099
    %v3148 = vpack.c.b16 %v2104, %v2100
    %v3149 = vpack.c.b16 %v2109, %v2105
    %v3150 = vpack.c.b16 %v2110, %v2106
    %v3151 = vpack.c.b16 %v2111, %v2107
    %v3152 = vpack.c.b16 %v2112, %v2108
    %v3153 = vpack.c.b16 %v2117, %v2113
    %v3154 = vpack.c.b16 %v2118, %v2114
    %v3155 = vpack.c.b16 %v2119, %v2115
    %v3156 = vpack.c.b16 %v2120, %v2116
    %v3157 = vpack.c.b16 %v2125, %v2121
    %v3158 = vpack.c.b16 %v2126, %v2122
    %v3159 = vpack.c.b16 %v2127, %v2123
    %v3160 = vpack.c.b16 %v2128, %v2124
    %v3161 = vpack.c.b16 %v2133, %v2129
    %v3162 = vpack.c.b16 %v2134, %v2130
    %v3163 = vpack.c.b16 %v2135, %v2131
    %v3164 = vpack.c.b16 %v2136, %v2132
    %v3165 = vpack.c.b16 %v2141, %v2137
    %v3166 = vpack.c.b16 %v2142, %v2138
    %v3167 = vpack.c.b16 %v2143, %v2139
    %v3168 = vpack.c.b16 %v2144, %v2140
    %v3169 = vpack.c.b16 %v2149, %v2145
    %v3170 = vpack.c.b16 %v2150, %v2146
    %v3171 = vpack.c.b16 %v2151, %v2147
    %v3172 = vpack.c.b16 %v2152, %v2148
    %v3173 = vpack.c.b16 %v2157, %v2153
    %v3174 = vpack.c.b16 %v2158, %v2154
    %v3175 = vpack.c.b16 %v2159, %v2155
    %v3176 = vpack.c.b16 %v2160, %v2156
    %v3177 = vpack.c.b16 %v2165, %v2161
    %v3178 = vpack.c.b16 %v2166, %v2162
    %v3179 = vpack.c.b16 %v2167, %v2163
    %v3180 = vpack.c.b16 %v2168, %v2164
    %v3181 = vpack.c.b16 %v2173, %v2169
    %v3182 = vpack.c.b16 %v2174, %v2170
    %v3183 = vpack.c.b16 %v2175, %v2171
    %v3184 = vpack.c.b16 %v2176, %v2172
    %v3185 = vpack.c.b16 %v2181, %v2177
    %v3186 = vpack.c.b16 %v2182, %v2178
    %v3187 = vpack.c.b16 %v2183, %v2179
    %v3188 = vpack.c.b16 %v2184, %v2180
    %v3189 = vpack.c.b16 %v2189, %v2185
    %v3190 = vpack.c.b16 %v2190, %v2186
    %v3191 = vpack.c.b16 %v2191, %v2187
    %v3192 = vpack.c.b16 %v2192, %v2188
    %v3193 = vpack.c.b16 %v2197, %v2193
    %v3194 = vpack.c.b16 %v2198, %v2194
    %v3195 = vpack.c.b16 %v2199, %v2195
    %v3196 = vpack.c.b16 %v2200, %v2196
    %v3197 = vpack.c.b16 %v2205, %v2201
    %v3198 = vpack.c.b16 %v2206, %v2202
    %v3199 = vpack.c.b16 %v2207, %v2203
    %v3200 = vpack.c.b16 %v2208, %v2204
    %v3201 = vpack.c.b16 %v2213, %v2209
    %v3202 = vpack.c.b16 %v2214, %v2210
    %v3203 = vpack.c.b16 %v2215, %v2211
    %v3204 = vpack.c.b16 %v2216, %v2212
    %v3205 = vpack.c.b16 %v2221, %v2217
    %v3206 = vpack.c.b16 %v2222, %v2218
    %v3207 = vpack.c.b16 %v2223, %v2219
    %v3208 = vpack.c.b16 %v2224, %v2220
    %v3209 = vpack.c.b16 %v2229, %v2225
    %v3210 = vpack.c.b16 %v2230, %v2226
    %v3211 = vpack.c.b16 %v2231, %v2227
    %v3212 = vpack.c.b16 %v2232, %v2228
    %v3213 = vpack.c.b16 %v2237, %v2233
    %v3214 = vpack.c.b16 %v2238, %v2234
    %v3215 = vpack.c.b16 %v2239, %v2235
    %v3216 = vpack.c.b16 %v2240, %v2236
    %v3217 = vpack.c.b16 %v2245, %v2241
    %v3218 = vpack.c.b16 %v2246, %v2242
    %v3219 = vpack.c.b16 %v2247, %v2243
    %v3220 = vpack.c.b16 %v2248, %v2244
    %v3221 = vpack.c.b16 %v2253, %v2249
    %v3222 = vpack.c.b16 %v2254, %v2250
    %v3223 = vpack.c.b16 %v2255, %v2251
    %v3224 = vpack.c.b16 %v2256, %v2252
    %v3225 = vpack.c.b16 %v2261, %v2257
    %v3226 = vpack.c.b16 %v2262, %v2258
    %v3227 = vpack.c.b16 %v2263, %v2259
    %v3228 = vpack.c.b16 %v2264, %v2260
    %v3229 = vpack.c.b16 %v2269, %v2265
    %v3230 = vpack.c.b16 %v2270, %v2266
    %v3231 = vpack.c.b16 %v2271, %v2267
    %v3232 = vpack.c.b16 %v2272, %v2268
    %v3233 = vpack.c.b16 %v2277, %v2273
    %v3234 = vpack.c.b16 %v2278, %v2274
    %v3235 = vpack.c.b16 %v2279, %v2275
    %v3236 = vpack.c.b16 %v2280, %v2276
    %v3237 = vpack.c.b16 %v2285, %v2281
    %v3238 = vpack.c.b16 %v2286, %v2282
    %v3239 = vpack.c.b16 %v2287, %v2283
    %v3240 = vpack.c.b16 %v2288, %v2284
    %v3241 = vpack.c.b16 %v2293, %v2289
    %v3242 = vpack.c.b16 %v2294, %v2290
    %v3243 = vpack.c.b16 %v2295, %v2291
    %v3244 = vpack.c.b16 %v2296, %v2292
    %v3245 = vpack.c.b16 %v2301, %v2297
    %v3246 = vpack.c.b16 %v2302, %v2298
    %v3247 = vpack.c.b16 %v2303, %v2299
    %v3248 = vpack.c.b16 %v2304, %v2300
    %v3249 = vpack.c.b16 %v2309, %v2305
    %v3250 = vpack.c.b16 %v2310, %v2306
    %v3251 = vpack.c.b16 %v2311, %v2307
    %v3252 = vpack.c.b16 %v2312, %v2308
    %v3253 = vpack.c.b16 %v2317, %v2313
    %v3254 = vpack.c.b16 %v2318, %v2314
    %v3255 = vpack.c.b16 %v2319, %v2315
    %v3256 = vpack.c.b16 %v2320, %v2316
    %v3257 = vpack.c.b16 %v2325, %v2321
    %v3258 = vpack.c.b16 %v2326, %v2322
    %v3259 = vpack.c.b16 %v2327, %v2323
    %v3260 = vpack.c.b16 %v2328, %v2324
    %v3261 = vpack.c.b16 %v2333, %v2329
    %v3262 = vpack.c.b16 %v2334, %v2330
    %v3263 = vpack.c.b16 %v2335, %v2331
    %v3264 = vpack.c.b16 %v2336, %v2332
    %v3265 = vpack.c.b16 %v2341, %v2337
    %v3266 = vpack.c.b16 %v2342, %v2338
    %v3267 = vpack.c.b16 %v2343, %v2339
    %v3268 = vpack.c.b16 %v2344, %v2340
    %v3269 = vpack.c.b16 %v2349, %v2345
    %v3270 = vpack.c.b16 %v2350, %v2346
    %v3271 = vpack.c.b16 %v2351, %v2347
    %v3272 = vpack.c.b16 %v2352, %v2348
    %v3273 = vpack.c.b16 %v2357, %v2353
    %v3274 = vpack.c.b16 %v2358, %v2354
    %v3275 = vpack.c.b16 %v2359, %v2355
    %v3276 = vpack.c.b16 %v2360, %v2356
    %v3277 = vpack.c.b16 %v2365, %v2361
    %v3278 = vpack.c.b16 %v2366, %v2362
    %v3279 = vpack.c.b16 %v2367, %v2363
    %v3280 = vpack.c.b16 %v2368, %v2364
    %v3281 = vpack.c.b16 %v2373, %v2369
    %v3282 = vpack.c.b16 %v2374, %v2370
    %v3283 = vpack.c.b16 %v2375, %v2371
    %v3284 = vpack.c.b16 %v2376, %v2372
    %v3285 = vpack.c.b16 %v2381, %v2377
    %v3286 = vpack.c.b16 %v2382, %v2378
    %v3287 = vpack.c.b16 %v2383, %v2379
    %v3288 = vpack.c.b16 %v2384, %v2380
    %v3289 = vpack.c.b16 %v2389, %v2385
    %v3290 = vpack.c.b16 %v2390, %v2386
    %v3291 = vpack.c.b16 %v2391, %v2387
    %v3292 = vpack.c.b16 %v2392, %v2388
    %v3293 = vpack.c.b16 %v2397, %v2393
    %v3294 = vpack.c.b16 %v2398, %v2394
    %v3295 = vpack.c.b16 %v2399, %v2395
    %v3296 = vpack.c.b16 %v2400, %v2396
    %v3297 = vpack.c.b16 %v2405, %v2401
    %v3298 = vpack.c.b16 %v2406, %v2402
    %v3299 = vpack.c.b16 %v2407, %v2403
    %v3300 = vpack.c.b16 %v2408, %v2404
    %v3301 = vpack.c.b16 %v2413, %v2409
    %v3302 = vpack.c.b16 %v2414, %v2410
    %v3303 = vpack.c.b16 %v2415, %v2411
    %v3304 = vpack.c.b16 %v2416, %v2412
    %v3305 = vpack.c.b16 %v2421, %v2417
    %v3306 = vpack.c.b16 %v2422, %v2418
    %v3307 = vpack.c.b16 %v2423, %v2419
    %v3308 = vpack.c.b16 %v2424, %v2420
    %v3309 = vpack.c.b16 %v2429, %v2425
    %v3310 = vpack.c.b16 %v2430, %v2426
    %v3311 = vpack.c.b16 %v2431, %v2427
    %v3312 = vpack.c.b16 %v2432, %v2428
    %v3313 = vpack.c.b16 %v2437, %v2433
    %v3314 = vpack.c.b16 %v2438, %v2434
    %v3315 = vpack.c.b16 %v2439, %v2435
    %v3316 = vpack.c.b16 %v2440, %v2436
    %v3317 = vpack.c.b16 %v2445, %v2441
    %v3318 = vpack.c.b16 %v2446, %v2442
    %v3319 = vpack.c.b16 %v2447, %v2443
    %v3320 = vpack.c.b16 %v2448, %v2444
    %v3321 = vpack.c.b16 %v2453, %v2449
    %v3322 = vpack.c.b16 %v2454, %v2450
    %v3323 = vpack.c.b16 %v2455, %v2451
    %v3324 = vpack.c.b16 %v2456, %v2452
    %v3325 = vpack.c.b16 %v2461, %v2457
    %v3326 = vpack.c.b16 %v2462, %v2458
    %v3327 = vpack.c.b16 %v2463, %v2459
    %v3328 = vpack.c.b16 %v2464, %v2460
    %v3329 = vpack.c.b16 %v2469, %v2465
    %v3330 = vpack.c.b16 %v2470, %v2466
    %v3331 = vpack.c.b16 %v2471, %v2467
    %v3332 = vpack.c.b16 %v2472, %v2468
    %v3333 = vpack.c.b16 %v2477, %v2473
    %v3334 = vpack.c.b16 %v2478, %v2474
    %v3335 = vpack.c.b16 %v2479, %v2475
    %v3336 = vpack.c.b16 %v2480, %v2476
    %v3337 = vpack.c.b16 %v2485, %v2481
    %v3338 = vpack.c.b16 %v2486, %v2482
    %v3339 = vpack.c.b16 %v2487, %v2483
    %v3340 = vpack.c.b16 %v2488, %v2484
    %v3341 = vpack.c.b16 %v2493, %v2489
    %v3342 = vpack.c.b16 %v2494, %v2490
    %v3343 = vpack.c.b16 %v2495, %v2491
    %v3344 = vpack.c.b16 %v2496, %v2492
    %v3345 = vpack.c.b16 %v2501, %v2497
    %v3346 = vpack.c.b16 %v2502, %v2498
    %v3347 = vpack.c.b16 %v2503, %v2499
    %v3348 = vpack.c.b16 %v2504, %v2500
    %v3349 = vpack.c.b16 %v2509, %v2505
    %v3350 = vpack.c.b16 %v2510, %v2506
    %v3351 = vpack.c.b16 %v2511, %v2507
    %v3352 = vpack.c.b16 %v2512, %v2508
    %v3353 = vpack.c.b16 %v2517, %v2513
    %v3354 = vpack.c.b16 %v2518, %v2514
    %v3355 = vpack.c.b16 %v2519, %v2515
    %v3356 = vpack.c.b16 %v2520, %v2516
    %v3357 = vpack.c.b16 %v2525, %v2521
    %v3358 = vpack.c.b16 %v2526, %v2522
    %v3359 = vpack.c.b16 %v2527, %v2523
    %v3360 = vpack.c.b16 %v2528, %v2524
    %v3361 = vpack.c.b16 %v2533, %v2529
    %v3362 = vpack.c.b16 %v2534, %v2530
    %v3363 = vpack.c.b16 %v2535, %v2531
    %v3364 = vpack.c.b16 %v2536, %v2532
    %v3365 = vpack.c.b16 %v2541, %v2537
    %v3366 = vpack.c.b16 %v2542, %v2538
    %v3367 = vpack.c.b16 %v2543, %v2539
    %v3368 = vpack.c.b16 %v2544, %v2540
    %v3369 = vpack.c.b16 %v2549, %v2545
    %v3370 = vpack.c.b16 %v2550, %v2546
    %v3371 = vpack.c.b16 %v2551, %v2547
    %v3372 = vpack.c.b16 %v2552, %v2548
    %v3373 = vpack.c.b16 %v2557, %v2553
    %v3374 = vpack.c.b16 %v2558, %v2554
    %v3375 = vpack.c.b16 %v2559, %v2555
    %v3376 = vpack.c.b16 %v2560, %v2556
    %v3377 = vpack.c.b16 %v2565, %v2561
    %v3378 = vpack.c.b16 %v2566, %v2562
    %v3379 = vpack.c.b16 %v2567, %v2563
    %v3380 = vpack.c.b16 %v2568, %v2564
    %v3381 = vpack.c.b16 %v2573, %v2569
    %v3382 = vpack.c.b16 %v2574, %v2570
    %v3383 = vpack.c.b16 %v2575, %v2571
    %v3384 = vpack.c.b16 %v2576, %v2572
    %v3385 = vpack.c.b16 %v2581, %v2577
    %v3386 = vpack.c.b16 %v2582, %v2578
    %v3387 = vpack.c.b16 %v2583, %v2579
    %v3388 = vpack.c.b16 %v2584, %v2580
    %v3389 = vpack.c.b16 %v2589, %v2585
    %v3390 = vpack.c.b16 %v2590, %v2586
    %v3391 = vpack.c.b16 %v2591, %v2587
    %v3392 = vpack.c.b16 %v2592, %v2588
    %v3393 = vpack.c.b16 %v2597, %v2593
    %v3394 = vpack.c.b16 %v2598, %v2594
    %v3395 = vpack.c.b16 %v2599, %v2595
    %v3396 = vpack.c.b16 %v2600, %v2596
    %v3397 = vpack.c.b16 %v2605, %v2601
    %v3398 = vpack.c.b16 %v2606, %v2602
    %v3399 = vpack.c.b16 %v2607, %v2603
    %v3400 = vpack.c.b16 %v2608, %v2604
    %v3401 = vpack.c.b16 %v2613, %v2609
    %v3402 = vpack.c.b16 %v2614, %v2610
    %v3403 = vpack.c.b16 %v2615, %v2611
    %v3404 = vpack.c.b16 %v2616, %v2612
    %v3405 = vpack.c.b16 %v2621, %v2617
    %v3406 = vpack.c.b16 %v2622, %v2618
    %v3407 = vpack.c.b16 %v2623, %v2619
    %v3408 = vpack.c.b16 %v2624, %v2620
    %v3409 = vpack.c.b16 %v2629, %v2625
    %v3410 = vpack.c.b16 %v2630, %v2626
    %v3411 = vpack.c.b16 %v2631, %v2627
    %v3412 = vpack.c.b16 %v2632, %v2628
    %v3413 = vpack.c.b16 %v2637, %v2633
    %v3414 = vpack.c.b16 %v2638, %v2634
    %v3415 = vpack.c.b16 %v2639, %v2635
    %v3416 = vpack.c.b16 %v2640, %v2636
    %v3417 = vpack.c.b16 %v2645, %v2641
    %v3418 = vpack.c.b16 %v2646, %v2642
    %v3419 = vpack.c.b16 %v2647, %v2643
    %v3420 = vpack.c.b16 %v2648, %v2644
    %v3421 = vpack.c.b16 %v2653, %v2649
    %v3422 = vpack.c.b16 %v2654, %v2650
    %v3423 = vpack.c.b16 %v2655, %v2651
    %v3424 = vpack.c.b16 %v2656, %v2652
    %v3425 = vpack.c.b16 %v2661, %v2657
    %v3426 = vpack.c.b16 %v2662, %v2658
    %v3427 = vpack.c.b16 %v2663, %v2659
    %v3428 = vpack.c.b16 %v2664, %v2660
    %v3429 = vpack.c.b16 %v2669, %v2665
    %v3430 = vpack.c.b16 %v2670, %v2666
    %v3431 = vpack.c.b16 %v2671, %v2667
    %v3432 = vpack.c.b16 %v2672, %v2668
    %v3433 = vpack.c.b16 %v2677, %v2673
    %v3434 = vpack.c.b16 %v2678, %v2674
    %v3435 = vpack.c.b16 %v2679, %v2675
    %v3436 = vpack.c.b16 %v2680, %v2676
    %v3437 = vpack.c.b16 %v2685, %v2681
    %v3438 = vpack.c.b16 %v2686, %v2682
    %v3439 = vpack.c.b16 %v2687, %v2683
    %v3440 = vpack.c.b16 %v2688, %v2684
    %v3441 = vpack.c.b16 %v2693, %v2689
    %v3442 = vpack.c.b16 %v2694, %v2690
    %v3443 = vpack.c.b16 %v2695, %v2691
    %v3444 = vpack.c.b16 %v2696, %v2692
    %v3445 = vpack.c.b16 %v2701, %v2697
    %v3446 = vpack.c.b16 %v2702, %v2698
    %v3447 = vpack.c.b16 %v2703, %v2699
    %v3448 = vpack.c.b16 %v2704, %v2700
    %v3449 = vpack.c.b16 %v2709, %v2705
    %v3450 = vpack.c.b16 %v2710, %v2706
    %v3451 = vpack.c.b16 %v2711, %v2707
    %v3452 = vpack.c.b16 %v2712, %v2708
    %v3453 = vpack.c.b16 %v2717, %v2713
    %v3454 = vpack.c.b16 %v2718, %v2714
    %v3455 = vpack.c.b16 %v2719, %v2715
    %v3456 = vpack.c.b16 %v2720, %v2716
    %v3457 = vpack.c.b16 %v2725, %v2721
    %v3458 = vpack.c.b16 %v2726, %v2722
    %v3459 = vpack.c.b16 %v2727, %v2723
    %v3460 = vpack.c.b16 %v2728, %v2724
    %v3461 = vpack.c.b16 %v2733, %v2729
    %v3462 = vpack.c.b16 %v2734, %v2730
    %v3463 = vpack.c.b16 %v2735, %v2731
    %v3464 = vpack.c.b16 %v2736, %v2732
    %v3465 = vpack.c.b16 %v2741, %v2737
    %v3466 = vpack.c.b16 %v2742, %v2738
    %v3467 = vpack.c.b16 %v2743, %v2739
    %v3468 = vpack.c.b16 %v2744, %v2740
    %v3469 = vpack.c.b16 %v2749, %v2745
    %v3470 = vpack.c.b16 %v2750, %v2746
    %v3471 = vpack.c.b16 %v2751, %v2747
    %v3472 = vpack.c.b16 %v2752, %v2748
    %v3473 = vpack.c.b16 %v2757, %v2753
    %v3474 = vpack.c.b16 %v2758, %v2754
    %v3475 = vpack.c.b16 %v2759, %v2755
    %v3476 = vpack.c.b16 %v2760, %v2756
    %v3477 = vpack.c.b16 %v2765, %v2761
    %v3478 = vpack.c.b16 %v2766, %v2762
    %v3479 = vpack.c.b16 %v2767, %v2763
    %v3480 = vpack.c.b16 %v2768, %v2764
    %v3481 = vpack.c.b16 %v2773, %v2769
    %v3482 = vpack.c.b16 %v2774, %v2770
    %v3483 = vpack.c.b16 %v2775, %v2771
    %v3484 = vpack.c.b16 %v2776, %v2772
    %v3485 = vpack.c.b16 %v2781, %v2777
    %v3486 = vpack.c.b16 %v2782, %v2778
    %v3487 = vpack.c.b16 %v2783, %v2779
    %v3488 = vpack.c.b16 %v2784, %v2780
    %v3489 = vpack.c.b16 %v2789, %v2785
    %v3490 = vpack.c.b16 %v2790, %v2786
    %v3491 = vpack.c.b16 %v2791, %v2787
    %v3492 = vpack.c.b16 %v2792, %v2788
    %v3493 = vpack.c.b16 %v2797, %v2793
    %v3494 = vpack.c.b16 %v2798, %v2794
    %v3495 = vpack.c.b16 %v2799, %v2795
    %v3496 = vpack.c.b16 %v2800, %v2796
    %v3497 = vpack.c.b16 %v2805, %v2801
    %v3498 = vpack.c.b16 %v2806, %v2802
    %v3499 = vpack.c.b16 %v2807, %v2803
    %v3500 = vpack.c.b16 %v2808, %v2804
    %v3501 = vpack.c.b16 %v2813, %v2809
    %v3502 = vpack.c.b16 %v2814, %v2810
    %v3503 = vpack.c.b16 %v2815, %v2811
    %v3504 = vpack.c.b16 %v2816, %v2812
    %v3505 = vpack.c.b16 %v2821, %v2817
    %v3506 = vpack.c.b16 %v2822, %v2818
    %v3507 = vpack.c.b16 %v2823, %v2819
    %v3508 = vpack.c.b16 %v2824, %v2820
    %v3509 = vpack.c.b16 %v2829, %v2825
    %v3510 = vpack.c.b16 %v2830, %v2826
    %v3511 = vpack.c.b16 %v2831, %v2827
    %v3512 = vpack.c.b16 %v2832, %v2828
    %v3513 = vpack.c.b16 %v2837, %v2833
    %v3514 = vpack.c.b16 %v2838, %v2834
    %v3515 = vpack.c.b16 %v2839, %v2835
    %v3516 = vpack.c.b16 %v2840, %v2836
    %v3517 = vpack.c.b16 %v2845, %v2841
    %v3518 = vpack.c.b16 %v2846, %v2842
    %v3519 = vpack.c.b16 %v2847, %v2843
    %v3520 = vpack.c.b16 %v2848, %v2844
    %v3521 = vpack.c.b16 %v2853, %v2849
    %v3522 = vpack.c.b16 %v2854, %v2850
    %v3523 = vpack.c.b16 %v2855, %v2851
    %v3524 = vpack.c.b16 %v2856, %v2852
    %v3525 = vpack.c.b16 %v2861, %v2857
    %v3526 = vpack.c.b16 %v2862, %v2858
    %v3527 = vpack.c.b16 %v2863, %v2859
    %v3528 = vpack.c.b16 %v2864, %v2860
    %v3529 = vpack.c.b16 %v2869, %v2865
    %v3530 = vpack.c.b16 %v2870, %v2866
    %v3531 = vpack.c.b16 %v2871, %v2867
    %v3532 = vpack.c.b16 %v2872, %v2868
    %v3533 = vpack.c.b16 %v2877, %v2873
    %v3534 = vpack.c.b16 %v2878, %v2874
    %v3535 = vpack.c.b16 %v2879, %v2875
    %v3536 = vpack.c.b16 %v2880, %v2876
    %v3537 = vpack.c.b16 %v2885, %v2881
    %v3538 = vpack.c.b16 %v2886, %v2882
    %v3539 = vpack.c.b16 %v2887, %v2883
    %v3540 = vpack.c.b16 %v2888, %v2884
    %v3541 = vpack.c.b16 %v2893, %v2889
    %v3542 = vpack.c.b16 %v2894, %v2890
    %v3543 = vpack.c.b16 %v2895, %v2891
    %v3544 = vpack.c.b16 %v2896, %v2892
    %v3545 = vpack.c.b16 %v2901, %v2897
    %v3546 = vpack.c.b16 %v2902, %v2898
    %v3547 = vpack.c.b16 %v2903, %v2899
    %v3548 = vpack.c.b16 %v2904, %v2900
    %v3549 = vpack.c.b16 %v2909, %v2905
    %v3550 = vpack.c.b16 %v2910, %v2906
    %v3551 = vpack.c.b16 %v2911, %v2907
    %v3552 = vpack.c.b16 %v2912, %v2908
    %v3553 = vpack.c.b16 %v2917, %v2913
    %v3554 = vpack.c.b16 %v2918, %v2914
    %v3555 = vpack.c.b16 %v2919, %v2915
    %v3556 = vpack.c.b16 %v2920, %v2916
    %v3557 = vpack.c.b16 %v2925, %v2921
    %v3558 = vpack.c.b16 %v2926, %v2922
    %v3559 = vpack.c.b16 %v2927, %v2923
    %v3560 = vpack.c.b16 %v2928, %v2924
    %v3561 = vpack.c.b16 %v2933, %v2929
    %v3562 = vpack.c.b16 %v2934, %v2930
    %v3563 = vpack.c.b16 %v2935, %v2931
    %v3564 = vpack.c.b16 %v2936, %v2932
    %v3565 = vpack.c.b16 %v2941, %v2937
    %v3566 = vpack.c.b16 %v2942, %v2938
    %v3567 = vpack.c.b16 %v2943, %v2939
    %v3568 = vpack.c.b16 %v2944, %v2940
    %v3569 = vpack.c.b16 %v2949, %v2945
    %v3570 = vpack.c.b16 %v2950, %v2946
    %v3571 = vpack.c.b16 %v2951, %v2947
    %v3572 = vpack.c.b16 %v2952, %v2948
    %v3573 = vpack.c.b16 %v2957, %v2953
    %v3574 = vpack.c.b16 %v2958, %v2954
    %v3575 = vpack.c.b16 %v2959, %v2955
    %v3576 = vpack.c.b16 %v2960, %v2956
    %v3577 = vpack.c.b16 %v2965, %v2961
    %v3578 = vpack.c.b16 %v2966, %v2962
    %v3579 = vpack.c.b16 %v2967, %v2963
    %v3580 = vpack.c.b16 %v2968, %v2964
    %v3581 = vpack.c.b16 %v2973, %v2969
    %v3582 = vpack.c.b16 %v2974, %v2970
    %v3583 = vpack.c.b16 %v2975, %v2971
    %v3584 = vpack.c.b16 %v2976, %v2972
    %v3585 = vpack.c.b16 %v2981, %v2977
    %v3586 = vpack.c.b16 %v2982, %v2978
    %v3587 = vpack.c.b16 %v2983, %v2979
    %v3588 = vpack.c.b16 %v2984, %v2980
    %v3589 = vpack.c.b16 %v2989, %v2985
    %v3590 = vpack.c.b16 %v2990, %v2986
    %v3591 = vpack.c.b16 %v2991, %v2987
    %v3592 = vpack.c.b16 %v2992, %v2988
    %v3593 = vpack.c.b16 %v2997, %v2993
    %v3594 = vpack.c.b16 %v2998, %v2994
    %v3595 = vpack.c.b16 %v2999, %v2995
    %v3596 = vpack.c.b16 %v3000, %v2996
    %v3597 = vpack.c.b16 %v3005, %v3001
    %v3598 = vpack.c.b16 %v3006, %v3002
    %v3599 = vpack.c.b16 %v3007, %v3003
    %v3600 = vpack.c.b16 %v3008, %v3004
    %v3601 = vpack.c.b16 %v3013, %v3009
    %v3602 = vpack.c.b16 %v3014, %v3010
    %v3603 = vpack.c.b16 %v3015, %v3011
    %v3604 = vpack.c.b16 %v3016, %v3012
    %v3605 = vpack.c.b16 %v3021, %v3017
    %v3606 = vpack.c.b16 %v3022, %v3018
    %v3607 = vpack.c.b16 %v3023, %v3019
    %v3608 = vpack.c.b16 %v3024, %v3020
    %v3609 = vpack.c.b16 %v3029, %v3025
    %v3610 = vpack.c.b16 %v3030, %v3026
    %v3611 = vpack.c.b16 %v3031, %v3027
    %v3612 = vpack.c.b16 %v3032, %v3028
    %v3613 = vpack.c.b16 %v3037, %v3033
    %v3614 = vpack.c.b16 %v3038, %v3034
    %v3615 = vpack.c.b16 %v3039, %v3035
    %v3616 = vpack.c.b16 %v3040, %v3036
    %4193 = vmatprep.subr.bf16.mxu0 %v3070
    %4194 = vmatpush1.bf16.msra.mxu0 %v3069
    %4195 = vmatprep.subr.bf16.mxu0 %v3066
    %4196 = vmatpush1.bf16.msra.mxu0 %v3065
    %4197 = vmatprep.subr.bf16.mxu0 %v3062
    %4198 = vmatpush1.bf16.msra.mxu0 %v3061
    %4199 = vmatprep.subr.bf16.mxu0 %v3058
    %4200 = vmatpush1.bf16.msra.mxu0 %v3057
    %4201 = vmatprep.subr.bf16.mxu0 %v3054
    %4202 = vmatpush1.bf16.msra.mxu0 %v3053
    %4203 = vmatprep.subr.bf16.mxu0 %v3050
    %4204 = vmatpush1.bf16.msra.mxu0 %v3049
    %4205 = vmatprep.subr.bf16.mxu0 %v3046
    %4206 = vmatpush1.bf16.msra.mxu0 %v3045
    %4207 = vmatprep.subr.bf16.mxu0 %v3042
    %4208 = vmatpush1.bf16.msra.mxu0 %v3041
    %4209 = vmatprep.subr.bf16.mxu0 %v3102
    %4210 = vmatpush2.bf16.msra.mxu0 %v3101
    %4211 = vmatprep.subr.bf16.mxu0 %v3098
    %4212 = vmatpush2.bf16.msra.mxu0 %v3097
    %4213 = vmatprep.subr.bf16.mxu0 %v3094
    %4214 = vmatpush2.bf16.msra.mxu0 %v3093
    %4215 = vmatprep.subr.bf16.mxu0 %v3090
    %4216 = vmatpush2.bf16.msra.mxu0 %v3089
    %4217 = vmatprep.subr.bf16.mxu0 %v3086
    %4218 = vmatpush2.bf16.msra.mxu0 %v3085
    %4219 = vmatprep.subr.bf16.mxu0 %v3082
    %4220 = vmatpush2.bf16.msra.mxu0 %v3081
    %4221 = vmatprep.subr.bf16.mxu0 %v3078
    %4222 = vmatpush2.bf16.msra.mxu0 %v3077
    %4223 = vmatprep.subr.bf16.mxu0 %v3074
    %4224 = vmatpush2.bf16.msra.mxu0 %v3073
    %4225 = vmatprep.mubr.bf16.mxu0 %v482
    %4226 = vmatmul.mubr.bf16.gmra.mxu0 %v481
    %v4227 = vpop.f32.mrf.mxu0
    %v4228 = vadd.f32 %v1296, %v4227
    %v4229 = vpop.f32.mrf.mxu0
    %v4230 = vadd.f32 %v1300, %v4229
    %v4231 = vpop.f32.mrf.mxu0
    %v4232 = vadd.f32 %v1296, %v4231
    %v4233 = vpop.f32.mrf.mxu0
    %v4234 = vadd.f32 %v1300, %v4233
    %4235 = vmatprep.mubr.bf16.mxu0 %v500
    %4236 = vmatmul.mubr.bf16.gmra.mxu0 %v499
    %v4237 = vpop.f32.mrf.mxu0
    %v4238 = vadd.f32 %v1296, %v4237
    %v4239 = vpop.f32.mrf.mxu0
    %v4240 = vadd.f32 %v1300, %v4239
    %v4241 = vpop.f32.mrf.mxu0
    %v4242 = vadd.f32 %v1296, %v4241
    %v4243 = vpop.f32.mrf.mxu0
    %v4244 = vadd.f32 %v1300, %v4243
    %4245 = vmatprep.mubr.bf16.mxu0 %v518
    %4246 = vmatmul.mubr.bf16.gmra.mxu0 %v517
    %v4247 = vpop.f32.mrf.mxu0
    %v4248 = vadd.f32 %v1296, %v4247
    %v4249 = vpop.f32.mrf.mxu0
    %v4250 = vadd.f32 %v1300, %v4249
    %v4251 = vpop.f32.mrf.mxu0
    %v4252 = vadd.f32 %v1296, %v4251
    %v4253 = vpop.f32.mrf.mxu0
    %v4254 = vadd.f32 %v1300, %v4253
    %4255 = vmatprep.mubr.bf16.mxu0 %v536
    %4256 = vmatmul.mubr.bf16.gmra.mxu0 %v535
    %v4257 = vpop.f32.mrf.mxu0
    %v4258 = vadd.f32 %v1296, %v4257
    %v4259 = vpop.f32.mrf.mxu0
    %v4260 = vadd.f32 %v1300, %v4259
    %v4261 = vpop.f32.mrf.mxu0
    %v4262 = vadd.f32 %v1296, %v4261
    %v4263 = vpop.f32.mrf.mxu0
    %v4264 = vadd.f32 %v1300, %v4263
    %4265 = vmatprep.mubr.bf16.mxu0 %v554
    %4266 = vmatmul.mubr.bf16.gmra.mxu0 %v553
    %v4267 = vpop.f32.mrf.mxu0
    %v4268 = vadd.f32 %v1296, %v4267
    %v4269 = vpop.f32.mrf.mxu0
    %v4270 = vadd.f32 %v1300, %v4269
    %v4271 = vpop.f32.mrf.mxu0
    %v4272 = vadd.f32 %v1296, %v4271
    %v4273 = vpop.f32.mrf.mxu0
    %v4274 = vadd.f32 %v1300, %v4273
    %4275 = vmatprep.mubr.bf16.mxu0 %v572
    %4276 = vmatmul.mubr.bf16.gmra.mxu0 %v571
    %v4277 = vpop.f32.mrf.mxu0
    %v4278 = vadd.f32 %v1296, %v4277
    %v4279 = vpop.f32.mrf.mxu0
    %v4280 = vadd.f32 %v1300, %v4279
    %v4281 = vpop.f32.mrf.mxu0
    %v4282 = vadd.f32 %v1296, %v4281
    %v4283 = vpop.f32.mrf.mxu0
    %v4284 = vadd.f32 %v1300, %v4283
    %4285 = vmatprep.mubr.bf16.mxu0 %v590
    %4286 = vmatmul.mubr.bf16.gmra.mxu0 %v589
    %v4287 = vpop.f32.mrf.mxu0
    %v4288 = vadd.f32 %v1296, %v4287
    %v4289 = vpop.f32.mrf.mxu0
    %v4290 = vadd.f32 %v1300, %v4289
    %v4291 = vpop.f32.mrf.mxu0
    %v4292 = vadd.f32 %v1296, %v4291
    %v4293 = vpop.f32.mrf.mxu0
    %v4294 = vadd.f32 %v1300, %v4293
    %4295 = vmatprep.mubr.bf16.mxu0 %v608
    %4296 = vmatmul.mubr.bf16.gmra.mxu0 %v607
    %v4297 = vpop.f32.mrf.mxu0
    %v4298 = vadd.f32 %v1296, %v4297
    %v4299 = vpop.f32.mrf.mxu0
    %v4300 = vadd.f32 %v1300, %v4299
    %v4301 = vpop.f32.mrf.mxu0
    %v4302 = vadd.f32 %v1296, %v4301
    %v4303 = vpop.f32.mrf.mxu0
    %v4304 = vadd.f32 %v1300, %v4303
    %4305 = vmatprep.mubr.bf16.mxu0 %v626
    %4306 = vmatmul.mubr.bf16.gmra.mxu0 %v625
    %v4307 = vpop.f32.mrf.mxu0
    %v4308 = vadd.f32 %v1296, %v4307
    %v4309 = vpop.f32.mrf.mxu0
    %v4310 = vadd.f32 %v1300, %v4309
    %v4311 = vpop.f32.mrf.mxu0
    %v4312 = vadd.f32 %v1296, %v4311
    %v4313 = vpop.f32.mrf.mxu0
    %v4314 = vadd.f32 %v1300, %v4313
    %4315 = vmatprep.mubr.bf16.mxu0 %v644
    %4316 = vmatmul.mubr.bf16.gmra.mxu0 %v643
    %v4317 = vpop.f32.mrf.mxu0
    %v4318 = vadd.f32 %v1296, %v4317
    %v4319 = vpop.f32.mrf.mxu0
    %v4320 = vadd.f32 %v1300, %v4319
    %v4321 = vpop.f32.mrf.mxu0
    %v4322 = vadd.f32 %v1296, %v4321
    %v4323 = vpop.f32.mrf.mxu0
    %v4324 = vadd.f32 %v1300, %v4323
    %4325 = vmatprep.mubr.bf16.mxu0 %v662
    %4326 = vmatmul.mubr.bf16.gmra.mxu0 %v661
    %v4327 = vpop.f32.mrf.mxu0
    %v4328 = vadd.f32 %v1296, %v4327
    %v4329 = vpop.f32.mrf.mxu0
    %v4330 = vadd.f32 %v1300, %v4329
    %v4331 = vpop.f32.mrf.mxu0
    %v4332 = vadd.f32 %v1296, %v4331
    %v4333 = vpop.f32.mrf.mxu0
    %v4334 = vadd.f32 %v1300, %v4333
    %4335 = vmatprep.mubr.bf16.mxu0 %v680
    %4336 = vmatmul.mubr.bf16.gmra.mxu0 %v679
    %v4337 = vpop.f32.mrf.mxu0
    %v4338 = vadd.f32 %v1296, %v4337
    %v4339 = vpop.f32.mrf.mxu0
    %v4340 = vadd.f32 %v1300, %v4339
    %v4341 = vpop.f32.mrf.mxu0
    %v4342 = vadd.f32 %v1296, %v4341
    %v4343 = vpop.f32.mrf.mxu0
    %v4344 = vadd.f32 %v1300, %v4343
    %4345 = vmatprep.mubr.bf16.mxu0 %v698
    %4346 = vmatmul.mubr.bf16.gmra.mxu0 %v697
    %v4347 = vpop.f32.mrf.mxu0
    %v4348 = vadd.f32 %v1296, %v4347
    %v4349 = vpop.f32.mrf.mxu0
    %v4350 = vadd.f32 %v1300, %v4349
    %v4351 = vpop.f32.mrf.mxu0
    %v4352 = vpop.f32.mrf.mxu0
    %4353 = vdwg.mxu0
    %4354 = vmatprep.subr.bf16.mxu0 %v3134
    %4355 = vmatpush1.bf16.msra.mxu0 %v3133
    %4356 = vmatprep.subr.bf16.mxu0 %v3130
    %4357 = vmatpush1.bf16.msra.mxu0 %v3129
    %4358 = vmatprep.subr.bf16.mxu0 %v3126
    %4359 = vmatpush1.bf16.msra.mxu0 %v3125
    %4360 = vmatprep.subr.bf16.mxu0 %v3122
    %4361 = vmatpush1.bf16.msra.mxu0 %v3121
    %4362 = vmatprep.subr.bf16.mxu0 %v3118
    %4363 = vmatpush1.bf16.msra.mxu0 %v3117
    %4364 = vmatprep.subr.bf16.mxu0 %v3114
    %4365 = vmatpush1.bf16.msra.mxu0 %v3113
    %4366 = vmatprep.subr.bf16.mxu0 %v3110
    %4367 = vmatpush1.bf16.msra.mxu0 %v3109
    %4368 = vmatprep.subr.bf16.mxu0 %v3106
    %4369 = vmatpush1.bf16.msra.mxu0 %v3105
    %4370 = vmatprep.subr.bf16.mxu0 %v3166
    %4371 = vmatpush2.bf16.msra.mxu0 %v3165
    %4372 = vmatprep.subr.bf16.mxu0 %v3162
    %4373 = vmatpush2.bf16.msra.mxu0 %v3161
    %4374 = vmatprep.subr.bf16.mxu0 %v3158
    %4375 = vmatpush2.bf16.msra.mxu0 %v3157
    %4376 = vmatprep.subr.bf16.mxu0 %v3154
    %4377 = vmatpush2.bf16.msra.mxu0 %v3153
    %4378 = vmatprep.subr.bf16.mxu0 %v3150
    %4379 = vmatpush2.bf16.msra.mxu0 %v3149
    %4380 = vmatprep.subr.bf16.mxu0 %v3146
    %4381 = vmatpush2.bf16.msra.mxu0 %v3145
    %4382 = vmatprep.subr.bf16.mxu0 %v3142
    %4383 = vmatpush2.bf16.msra.mxu0 %v3141
    %4384 = vmatprep.subr.bf16.mxu0 %v3138
    %4385 = vmatpush2.bf16.msra.mxu0 %v3137
    %4386 = vmatprep.mubr.bf16.mxu0 %v484
    %4387 = vmatmul.mubr.bf16.gmra.mxu0 %v483
    %v4388 = vpop.f32.mrf.mxu0
    %v4389 = vadd.f32 %v4228, %v4388
    %v4390 = vpop.f32.mrf.mxu0
    %v4391 = vadd.f32 %v4230, %v4390
    %v4392 = vpop.f32.mrf.mxu0
    %v4393 = vadd.f32 %v4232, %v4392
    %v4394 = vpop.f32.mrf.mxu0
    %v4395 = vadd.f32 %v4234, %v4394
    %4396 = vmatprep.mubr.bf16.mxu0 %v502
    %4397 = vmatmul.mubr.bf16.gmra.mxu0 %v501
    %v4398 = vpop.f32.mrf.mxu0
    %v4399 = vadd.f32 %v4238, %v4398
    %v4400 = vpop.f32.mrf.mxu0
    %v4401 = vadd.f32 %v4240, %v4400
    %v4402 = vpop.f32.mrf.mxu0
    %v4403 = vadd.f32 %v4242, %v4402
    %v4404 = vpop.f32.mrf.mxu0
    %v4405 = vadd.f32 %v4244, %v4404
    %4406 = vmatprep.mubr.bf16.mxu0 %v520
    %4407 = vmatmul.mubr.bf16.gmra.mxu0 %v519
    %v4408 = vpop.f32.mrf.mxu0
    %v4409 = vadd.f32 %v4248, %v4408
    %v4410 = vpop.f32.mrf.mxu0
    %v4411 = vadd.f32 %v4250, %v4410
    %v4412 = vpop.f32.mrf.mxu0
    %v4413 = vadd.f32 %v4252, %v4412
    %v4414 = vpop.f32.mrf.mxu0
    %v4415 = vadd.f32 %v4254, %v4414
    %4416 = vmatprep.mubr.bf16.mxu0 %v538
    %4417 = vmatmul.mubr.bf16.gmra.mxu0 %v537
    %v4418 = vpop.f32.mrf.mxu0
    %v4419 = vadd.f32 %v4258, %v4418
    %v4420 = vpop.f32.mrf.mxu0
    %v4421 = vadd.f32 %v4260, %v4420
    %v4422 = vpop.f32.mrf.mxu0
    %v4423 = vadd.f32 %v4262, %v4422
    %v4424 = vpop.f32.mrf.mxu0
    %v4425 = vadd.f32 %v4264, %v4424
    %4426 = vmatprep.mubr.bf16.mxu0 %v556
    %4427 = vmatmul.mubr.bf16.gmra.mxu0 %v555
    %v4428 = vpop.f32.mrf.mxu0
    %v4429 = vadd.f32 %v4268, %v4428
    %v4430 = vpop.f32.mrf.mxu0
    %v4431 = vadd.f32 %v4270, %v4430
    %v4432 = vpop.f32.mrf.mxu0
    %v4433 = vadd.f32 %v4272, %v4432
    %v4434 = vpop.f32.mrf.mxu0
    %v4435 = vadd.f32 %v4274, %v4434
    %4436 = vmatprep.mubr.bf16.mxu0 %v574
    %4437 = vmatmul.mubr.bf16.gmra.mxu0 %v573
    %v4438 = vpop.f32.mrf.mxu0
    %v4439 = vadd.f32 %v4278, %v4438
    %v4440 = vpop.f32.mrf.mxu0
    %v4441 = vadd.f32 %v4280, %v4440
    %v4442 = vpop.f32.mrf.mxu0
    %v4443 = vadd.f32 %v4282, %v4442
    %v4444 = vpop.f32.mrf.mxu0
    %v4445 = vadd.f32 %v4284, %v4444
    %4446 = vmatprep.mubr.bf16.mxu0 %v592
    %4447 = vmatmul.mubr.bf16.gmra.mxu0 %v591
    %v4448 = vpop.f32.mrf.mxu0
    %v4449 = vadd.f32 %v4288, %v4448
    %v4450 = vpop.f32.mrf.mxu0
    %v4451 = vadd.f32 %v4290, %v4450
    %v4452 = vpop.f32.mrf.mxu0
    %v4453 = vadd.f32 %v4292, %v4452
    %v4454 = vpop.f32.mrf.mxu0
    %v4455 = vadd.f32 %v4294, %v4454
    %4456 = vmatprep.mubr.bf16.mxu0 %v610
    %4457 = vmatmul.mubr.bf16.gmra.mxu0 %v609
    %v4458 = vpop.f32.mrf.mxu0
    %v4459 = vadd.f32 %v4298, %v4458
    %v4460 = vpop.f32.mrf.mxu0
    %v4461 = vadd.f32 %v4300, %v4460
    %v4462 = vpop.f32.mrf.mxu0
    %v4463 = vadd.f32 %v4302, %v4462
    %v4464 = vpop.f32.mrf.mxu0
    %v4465 = vadd.f32 %v4304, %v4464
    %4466 = vmatprep.mubr.bf16.mxu0 %v628
    %4467 = vmatmul.mubr.bf16.gmra.mxu0 %v627
    %v4468 = vpop.f32.mrf.mxu0
    %v4469 = vadd.f32 %v4308, %v4468
    %v4470 = vpop.f32.mrf.mxu0
    %v4471 = vadd.f32 %v4310, %v4470
    %v4472 = vpop.f32.mrf.mxu0
    %v4473 = vadd.f32 %v4312, %v4472
    %v4474 = vpop.f32.mrf.mxu0
    %v4475 = vadd.f32 %v4314, %v4474
    %4476 = vmatprep.mubr.bf16.mxu0 %v646
    %4477 = vmatmul.mubr.bf16.gmra.mxu0 %v645
    %v4478 = vpop.f32.mrf.mxu0
    %v4479 = vadd.f32 %v4318, %v4478
    %v4480 = vpop.f32.mrf.mxu0
    %v4481 = vadd.f32 %v4320, %v4480
    %v4482 = vpop.f32.mrf.mxu0
    %v4483 = vadd.f32 %v4322, %v4482
    %v4484 = vpop.f32.mrf.mxu0
    %v4485 = vadd.f32 %v4324, %v4484
    %4486 = vmatprep.mubr.bf16.mxu0 %v664
    %4487 = vmatmul.mubr.bf16.gmra.mxu0 %v663
    %v4488 = vpop.f32.mrf.mxu0
    %v4489 = vadd.f32 %v4328, %v4488
    %v4490 = vpop.f32.mrf.mxu0
    %v4491 = vadd.f32 %v4330, %v4490
    %v4492 = vpop.f32.mrf.mxu0
    %v4493 = vadd.f32 %v4332, %v4492
    %v4494 = vpop.f32.mrf.mxu0
    %v4495 = vadd.f32 %v4334, %v4494
    %4496 = vmatprep.mubr.bf16.mxu0 %v682
    %4497 = vmatmul.mubr.bf16.gmra.mxu0 %v681
    %v4498 = vpop.f32.mrf.mxu0
    %v4499 = vadd.f32 %v4338, %v4498
    %v4500 = vpop.f32.mrf.mxu0
    %v4501 = vadd.f32 %v4340, %v4500
    %v4502 = vpop.f32.mrf.mxu0
    %v4503 = vadd.f32 %v4342, %v4502
    %v4504 = vpop.f32.mrf.mxu0
    %v4505 = vadd.f32 %v4344, %v4504
    %4506 = vmatprep.mubr.bf16.mxu0 %v700
    %4507 = vmatmul.mubr.bf16.gmra.mxu0 %v699
    %v4508 = vpop.f32.mrf.mxu0
    %v4509 = vadd.f32 %v4348, %v4508
    %v4510 = vpop.f32.mrf.mxu0
    %v4511 = vadd.f32 %v4350, %v4510
    %v4512 = vpop.f32.mrf.mxu0
    %v4513 = vpop.f32.mrf.mxu0
    %4514 = vdwg.mxu0
    %4515 = vmatprep.subr.bf16.mxu0 %v3198
    %4516 = vmatpush1.bf16.msra.mxu0 %v3197
    %4517 = vmatprep.subr.bf16.mxu0 %v3194
    %4518 = vmatpush1.bf16.msra.mxu0 %v3193
    %4519 = vmatprep.subr.bf16.mxu0 %v3190
    %4520 = vmatpush1.bf16.msra.mxu0 %v3189
    %4521 = vmatprep.subr.bf16.mxu0 %v3186
    %4522 = vmatpush1.bf16.msra.mxu0 %v3185
    %4523 = vmatprep.subr.bf16.mxu0 %v3182
    %4524 = vmatpush1.bf16.msra.mxu0 %v3181
    %4525 = vmatprep.subr.bf16.mxu0 %v3178
    %4526 = vmatpush1.bf16.msra.mxu0 %v3177
    %4527 = vmatprep.subr.bf16.mxu0 %v3174
    %4528 = vmatpush1.bf16.msra.mxu0 %v3173
    %4529 = vmatprep.subr.bf16.mxu0 %v3170
    %4530 = vmatpush1.bf16.msra.mxu0 %v3169
    %4531 = vmatprep.subr.bf16.mxu0 %v3230
    %4532 = vmatpush2.bf16.msra.mxu0 %v3229
    %4533 = vmatprep.subr.bf16.mxu0 %v3226
    %4534 = vmatpush2.bf16.msra.mxu0 %v3225
    %4535 = vmatprep.subr.bf16.mxu0 %v3222
    %4536 = vmatpush2.bf16.msra.mxu0 %v3221
    %4537 = vmatprep.subr.bf16.mxu0 %v3218
    %4538 = vmatpush2.bf16.msra.mxu0 %v3217
    %4539 = vmatprep.subr.bf16.mxu0 %v3214
    %4540 = vmatpush2.bf16.msra.mxu0 %v3213
    %4541 = vmatprep.subr.bf16.mxu0 %v3210
    %4542 = vmatpush2.bf16.msra.mxu0 %v3209
    %4543 = vmatprep.subr.bf16.mxu0 %v3206
    %4544 = vmatpush2.bf16.msra.mxu0 %v3205
    %4545 = vmatprep.subr.bf16.mxu0 %v3202
    %4546 = vmatpush2.bf16.msra.mxu0 %v3201
    %4547 = vmatprep.mubr.bf16.mxu0 %v486
    %4548 = vmatmul.mubr.bf16.gmra.mxu0 %v485
    %v4549 = vpop.f32.mrf.mxu0
    %v4550 = vadd.f32 %v4389, %v4549
    %v4551 = vpop.f32.mrf.mxu0
    %v4552 = vadd.f32 %v4391, %v4551
    %v4553 = vpop.f32.mrf.mxu0
    %v4554 = vadd.f32 %v4393, %v4553
    %v4555 = vpop.f32.mrf.mxu0
    %v4556 = vadd.f32 %v4395, %v4555
    %4557 = vmatprep.mubr.bf16.mxu0 %v504
    %4558 = vmatmul.mubr.bf16.gmra.mxu0 %v503
    %v4559 = vpop.f32.mrf.mxu0
    %v4560 = vadd.f32 %v4399, %v4559
    %v4561 = vpop.f32.mrf.mxu0
    %v4562 = vadd.f32 %v4401, %v4561
    %v4563 = vpop.f32.mrf.mxu0
    %v4564 = vadd.f32 %v4403, %v4563
    %v4565 = vpop.f32.mrf.mxu0
    %v4566 = vadd.f32 %v4405, %v4565
    %4567 = vmatprep.mubr.bf16.mxu0 %v522
    %4568 = vmatmul.mubr.bf16.gmra.mxu0 %v521
    %v4569 = vpop.f32.mrf.mxu0
    %v4570 = vadd.f32 %v4409, %v4569
    %v4571 = vpop.f32.mrf.mxu0
    %v4572 = vadd.f32 %v4411, %v4571
    %v4573 = vpop.f32.mrf.mxu0
    %v4574 = vadd.f32 %v4413, %v4573
    %v4575 = vpop.f32.mrf.mxu0
    %v4576 = vadd.f32 %v4415, %v4575
    %4577 = vmatprep.mubr.bf16.mxu0 %v540
    %4578 = vmatmul.mubr.bf16.gmra.mxu0 %v539
    %v4579 = vpop.f32.mrf.mxu0
    %v4580 = vadd.f32 %v4419, %v4579
    %v4581 = vpop.f32.mrf.mxu0
    %v4582 = vadd.f32 %v4421, %v4581
    %v4583 = vpop.f32.mrf.mxu0
    %v4584 = vadd.f32 %v4423, %v4583
    %v4585 = vpop.f32.mrf.mxu0
    %v4586 = vadd.f32 %v4425, %v4585
    %4587 = vmatprep.mubr.bf16.mxu0 %v558
    %4588 = vmatmul.mubr.bf16.gmra.mxu0 %v557
    %v4589 = vpop.f32.mrf.mxu0
    %v4590 = vadd.f32 %v4429, %v4589
    %v4591 = vpop.f32.mrf.mxu0
    %v4592 = vadd.f32 %v4431, %v4591
    %v4593 = vpop.f32.mrf.mxu0
    %v4594 = vadd.f32 %v4433, %v4593
    %v4595 = vpop.f32.mrf.mxu0
    %v4596 = vadd.f32 %v4435, %v4595
    %4597 = vmatprep.mubr.bf16.mxu0 %v576
    %4598 = vmatmul.mubr.bf16.gmra.mxu0 %v575
    %v4599 = vpop.f32.mrf.mxu0
    %v4600 = vadd.f32 %v4439, %v4599
    %v4601 = vpop.f32.mrf.mxu0
    %v4602 = vadd.f32 %v4441, %v4601
    %v4603 = vpop.f32.mrf.mxu0
    %v4604 = vadd.f32 %v4443, %v4603
    %v4605 = vpop.f32.mrf.mxu0
    %v4606 = vadd.f32 %v4445, %v4605
    %4607 = vmatprep.mubr.bf16.mxu0 %v594
    %4608 = vmatmul.mubr.bf16.gmra.mxu0 %v593
    %v4609 = vpop.f32.mrf.mxu0
    %v4610 = vadd.f32 %v4449, %v4609
    %v4611 = vpop.f32.mrf.mxu0
    %v4612 = vadd.f32 %v4451, %v4611
    %v4613 = vpop.f32.mrf.mxu0
    %v4614 = vadd.f32 %v4453, %v4613
    %v4615 = vpop.f32.mrf.mxu0
    %v4616 = vadd.f32 %v4455, %v4615
    %4617 = vmatprep.mubr.bf16.mxu0 %v612
    %4618 = vmatmul.mubr.bf16.gmra.mxu0 %v611
    %v4619 = vpop.f32.mrf.mxu0
    %v4620 = vadd.f32 %v4459, %v4619
    %v4621 = vpop.f32.mrf.mxu0
    %v4622 = vadd.f32 %v4461, %v4621
    %v4623 = vpop.f32.mrf.mxu0
    %v4624 = vadd.f32 %v4463, %v4623
    %v4625 = vpop.f32.mrf.mxu0
    %v4626 = vadd.f32 %v4465, %v4625
    %4627 = vmatprep.mubr.bf16.mxu0 %v630
    %4628 = vmatmul.mubr.bf16.gmra.mxu0 %v629
    %v4629 = vpop.f32.mrf.mxu0
    %v4630 = vadd.f32 %v4469, %v4629
    %v4631 = vpop.f32.mrf.mxu0
    %v4632 = vadd.f32 %v4471, %v4631
    %v4633 = vpop.f32.mrf.mxu0
    %v4634 = vadd.f32 %v4473, %v4633
    %v4635 = vpop.f32.mrf.mxu0
    %v4636 = vadd.f32 %v4475, %v4635
    %4637 = vmatprep.mubr.bf16.mxu0 %v648
    %4638 = vmatmul.mubr.bf16.gmra.mxu0 %v647
    %v4639 = vpop.f32.mrf.mxu0
    %v4640 = vadd.f32 %v4479, %v4639
    %v4641 = vpop.f32.mrf.mxu0
    %v4642 = vadd.f32 %v4481, %v4641
    %v4643 = vpop.f32.mrf.mxu0
    %v4644 = vadd.f32 %v4483, %v4643
    %v4645 = vpop.f32.mrf.mxu0
    %v4646 = vadd.f32 %v4485, %v4645
    %4647 = vmatprep.mubr.bf16.mxu0 %v666
    %4648 = vmatmul.mubr.bf16.gmra.mxu0 %v665
    %v4649 = vpop.f32.mrf.mxu0
    %v4650 = vadd.f32 %v4489, %v4649
    %v4651 = vpop.f32.mrf.mxu0
    %v4652 = vadd.f32 %v4491, %v4651
    %v4653 = vpop.f32.mrf.mxu0
    %v4654 = vadd.f32 %v4493, %v4653
    %v4655 = vpop.f32.mrf.mxu0
    %v4656 = vadd.f32 %v4495, %v4655
    %4657 = vmatprep.mubr.bf16.mxu0 %v684
    %4658 = vmatmul.mubr.bf16.gmra.mxu0 %v683
    %v4659 = vpop.f32.mrf.mxu0
    %v4660 = vadd.f32 %v4499, %v4659
    %v4661 = vpop.f32.mrf.mxu0
    %v4662 = vadd.f32 %v4501, %v4661
    %v4663 = vpop.f32.mrf.mxu0
    %v4664 = vadd.f32 %v4503, %v4663
    %v4665 = vpop.f32.mrf.mxu0
    %v4666 = vadd.f32 %v4505, %v4665
    %4667 = vmatprep.mubr.bf16.mxu0 %v702
    %4668 = vmatmul.mubr.bf16.gmra.mxu0 %v701
    %v4669 = vpop.f32.mrf.mxu0
    %v4670 = vadd.f32 %v4509, %v4669
    %v4671 = vpop.f32.mrf.mxu0
    %v4672 = vadd.f32 %v4511, %v4671
    %v4673 = vpop.f32.mrf.mxu0
    %v4674 = vpop.f32.mrf.mxu0
    %4675 = vdwg.mxu0
    %4676 = vmatprep.subr.bf16.mxu0 %v3262
    %4677 = vmatpush1.bf16.msra.mxu0 %v3261
    %4678 = vmatprep.subr.bf16.mxu0 %v3258
    %4679 = vmatpush1.bf16.msra.mxu0 %v3257
    %4680 = vmatprep.subr.bf16.mxu0 %v3254
    %4681 = vmatpush1.bf16.msra.mxu0 %v3253
    %4682 = vmatprep.subr.bf16.mxu0 %v3250
    %4683 = vmatpush1.bf16.msra.mxu0 %v3249
    %4684 = vmatprep.subr.bf16.mxu0 %v3246
    %4685 = vmatpush1.bf16.msra.mxu0 %v3245
    %4686 = vmatprep.subr.bf16.mxu0 %v3242
    %4687 = vmatpush1.bf16.msra.mxu0 %v3241
    %4688 = vmatprep.subr.bf16.mxu0 %v3238
    %4689 = vmatpush1.bf16.msra.mxu0 %v3237
    %4690 = vmatprep.subr.bf16.mxu0 %v3234
    %4691 = vmatpush1.bf16.msra.mxu0 %v3233
    %4692 = vmatprep.subr.bf16.mxu0 %v3294
    %4693 = vmatpush2.bf16.msra.mxu0 %v3293
    %4694 = vmatprep.subr.bf16.mxu0 %v3290
    %4695 = vmatpush2.bf16.msra.mxu0 %v3289
    %4696 = vmatprep.subr.bf16.mxu0 %v3286
    %4697 = vmatpush2.bf16.msra.mxu0 %v3285
    %4698 = vmatprep.subr.bf16.mxu0 %v3282
    %4699 = vmatpush2.bf16.msra.mxu0 %v3281
    %4700 = vmatprep.subr.bf16.mxu0 %v3278
    %4701 = vmatpush2.bf16.msra.mxu0 %v3277
    %4702 = vmatprep.subr.bf16.mxu0 %v3274
    %4703 = vmatpush2.bf16.msra.mxu0 %v3273
    %4704 = vmatprep.subr.bf16.mxu0 %v3270
    %4705 = vmatpush2.bf16.msra.mxu0 %v3269
    %4706 = vmatprep.subr.bf16.mxu0 %v3266
    %4707 = vmatpush2.bf16.msra.mxu0 %v3265
    %4708 = vmatprep.mubr.bf16.mxu0 %v488
    %4709 = vmatmul.mubr.bf16.gmra.mxu0 %v487
    %v4710 = vpop.f32.mrf.mxu0
    %v4711 = vadd.f32 %v4550, %v4710
    %v4712 = vpop.f32.mrf.mxu0
    %v4713 = vadd.f32 %v4552, %v4712
    %v4714 = vpop.f32.mrf.mxu0
    %v4715 = vadd.f32 %v4554, %v4714
    %v4716 = vpop.f32.mrf.mxu0
    %v4717 = vadd.f32 %v4556, %v4716
    %4718 = vmatprep.mubr.bf16.mxu0 %v506
    %4719 = vmatmul.mubr.bf16.gmra.mxu0 %v505
    %v4720 = vpop.f32.mrf.mxu0
    %v4721 = vadd.f32 %v4560, %v4720
    %v4722 = vpop.f32.mrf.mxu0
    %v4723 = vadd.f32 %v4562, %v4722
    %v4724 = vpop.f32.mrf.mxu0
    %v4725 = vadd.f32 %v4564, %v4724
    %v4726 = vpop.f32.mrf.mxu0
    %v4727 = vadd.f32 %v4566, %v4726
    %4728 = vmatprep.mubr.bf16.mxu0 %v524
    %4729 = vmatmul.mubr.bf16.gmra.mxu0 %v523
    %v4730 = vpop.f32.mrf.mxu0
    %v4731 = vadd.f32 %v4570, %v4730
    %v4732 = vpop.f32.mrf.mxu0
    %v4733 = vadd.f32 %v4572, %v4732
    %v4734 = vpop.f32.mrf.mxu0
    %v4735 = vadd.f32 %v4574, %v4734
    %v4736 = vpop.f32.mrf.mxu0
    %v4737 = vadd.f32 %v4576, %v4736
    %4738 = vmatprep.mubr.bf16.mxu0 %v542
    %4739 = vmatmul.mubr.bf16.gmra.mxu0 %v541
    %v4740 = vpop.f32.mrf.mxu0
    %v4741 = vadd.f32 %v4580, %v4740
    %v4742 = vpop.f32.mrf.mxu0
    %v4743 = vadd.f32 %v4582, %v4742
    %v4744 = vpop.f32.mrf.mxu0
    %v4745 = vadd.f32 %v4584, %v4744
    %v4746 = vpop.f32.mrf.mxu0
    %v4747 = vadd.f32 %v4586, %v4746
    %4748 = vmatprep.mubr.bf16.mxu0 %v560
    %4749 = vmatmul.mubr.bf16.gmra.mxu0 %v559
    %v4750 = vpop.f32.mrf.mxu0
    %v4751 = vadd.f32 %v4590, %v4750
    %v4752 = vpop.f32.mrf.mxu0
    %v4753 = vadd.f32 %v4592, %v4752
    %v4754 = vpop.f32.mrf.mxu0
    %v4755 = vadd.f32 %v4594, %v4754
    %v4756 = vpop.f32.mrf.mxu0
    %v4757 = vadd.f32 %v4596, %v4756
    %4758 = vmatprep.mubr.bf16.mxu0 %v578
    %4759 = vmatmul.mubr.bf16.gmra.mxu0 %v577
    %v4760 = vpop.f32.mrf.mxu0
    %v4761 = vadd.f32 %v4600, %v4760
    %v4762 = vpop.f32.mrf.mxu0
    %v4763 = vadd.f32 %v4602, %v4762
    %v4764 = vpop.f32.mrf.mxu0
    %v4765 = vadd.f32 %v4604, %v4764
    %v4766 = vpop.f32.mrf.mxu0
    %v4767 = vadd.f32 %v4606, %v4766
    %4768 = vmatprep.mubr.bf16.mxu0 %v596
    %4769 = vmatmul.mubr.bf16.gmra.mxu0 %v595
    %v4770 = vpop.f32.mrf.mxu0
    %v4771 = vadd.f32 %v4610, %v4770
    %v4772 = vpop.f32.mrf.mxu0
    %v4773 = vadd.f32 %v4612, %v4772
    %v4774 = vpop.f32.mrf.mxu0
    %v4775 = vadd.f32 %v4614, %v4774
    %v4776 = vpop.f32.mrf.mxu0
    %v4777 = vadd.f32 %v4616, %v4776
    %4778 = vmatprep.mubr.bf16.mxu0 %v614
    %4779 = vmatmul.mubr.bf16.gmra.mxu0 %v613
    %v4780 = vpop.f32.mrf.mxu0
    %v4781 = vadd.f32 %v4620, %v4780
    %v4782 = vpop.f32.mrf.mxu0
    %v4783 = vadd.f32 %v4622, %v4782
    %v4784 = vpop.f32.mrf.mxu0
    %v4785 = vadd.f32 %v4624, %v4784
    %v4786 = vpop.f32.mrf.mxu0
    %v4787 = vadd.f32 %v4626, %v4786
    %4788 = vmatprep.mubr.bf16.mxu0 %v632
    %4789 = vmatmul.mubr.bf16.gmra.mxu0 %v631
    %v4790 = vpop.f32.mrf.mxu0
    %v4791 = vadd.f32 %v4630, %v4790
    %v4792 = vpop.f32.mrf.mxu0
    %v4793 = vadd.f32 %v4632, %v4792
    %v4794 = vpop.f32.mrf.mxu0
    %v4795 = vadd.f32 %v4634, %v4794
    %v4796 = vpop.f32.mrf.mxu0
    %v4797 = vadd.f32 %v4636, %v4796
    %4798 = vmatprep.mubr.bf16.mxu0 %v650
    %4799 = vmatmul.mubr.bf16.gmra.mxu0 %v649
    %v4800 = vpop.f32.mrf.mxu0
    %v4801 = vadd.f32 %v4640, %v4800
    %v4802 = vpop.f32.mrf.mxu0
    %v4803 = vadd.f32 %v4642, %v4802
    %v4804 = vpop.f32.mrf.mxu0
    %v4805 = vadd.f32 %v4644, %v4804
    %v4806 = vpop.f32.mrf.mxu0
    %v4807 = vadd.f32 %v4646, %v4806
    %4808 = vmatprep.mubr.bf16.mxu0 %v668
    %4809 = vmatmul.mubr.bf16.gmra.mxu0 %v667
    %v4810 = vpop.f32.mrf.mxu0
    %v4811 = vadd.f32 %v4650, %v4810
    %v4812 = vpop.f32.mrf.mxu0
    %v4813 = vadd.f32 %v4652, %v4812
    %v4814 = vpop.f32.mrf.mxu0
    %v4815 = vadd.f32 %v4654, %v4814
    %v4816 = vpop.f32.mrf.mxu0
    %v4817 = vadd.f32 %v4656, %v4816
    %4818 = vmatprep.mubr.bf16.mxu0 %v686
    %4819 = vmatmul.mubr.bf16.gmra.mxu0 %v685
    %v4820 = vpop.f32.mrf.mxu0
    %v4821 = vadd.f32 %v4660, %v4820
    %v4822 = vpop.f32.mrf.mxu0
    %v4823 = vadd.f32 %v4662, %v4822
    %v4824 = vpop.f32.mrf.mxu0
    %v4825 = vadd.f32 %v4664, %v4824
    %v4826 = vpop.f32.mrf.mxu0
    %v4827 = vadd.f32 %v4666, %v4826
    %4828 = vmatprep.mubr.bf16.mxu0 %v704
    %4829 = vmatmul.mubr.bf16.gmra.mxu0 %v703
    %v4830 = vpop.f32.mrf.mxu0
    %v4831 = vadd.f32 %v4670, %v4830
    %v4832 = vpop.f32.mrf.mxu0
    %v4833 = vadd.f32 %v4672, %v4832
    %v4834 = vpop.f32.mrf.mxu0
    %v4835 = vpop.f32.mrf.mxu0
    %4836 = vdwg.mxu0
    %4837 = vmatprep.subr.bf16.mxu0 %v3326
    %4838 = vmatpush1.bf16.msra.mxu0 %v3325
    %4839 = vmatprep.subr.bf16.mxu0 %v3322
    %4840 = vmatpush1.bf16.msra.mxu0 %v3321
    %4841 = vmatprep.subr.bf16.mxu0 %v3318
    %4842 = vmatpush1.bf16.msra.mxu0 %v3317
    %4843 = vmatprep.subr.bf16.mxu0 %v3314
    %4844 = vmatpush1.bf16.msra.mxu0 %v3313
    %4845 = vmatprep.subr.bf16.mxu0 %v3310
    %4846 = vmatpush1.bf16.msra.mxu0 %v3309
    %4847 = vmatprep.subr.bf16.mxu0 %v3306
    %4848 = vmatpush1.bf16.msra.mxu0 %v3305
    %4849 = vmatprep.subr.bf16.mxu0 %v3302
    %4850 = vmatpush1.bf16.msra.mxu0 %v3301
    %4851 = vmatprep.subr.bf16.mxu0 %v3298
    %4852 = vmatpush1.bf16.msra.mxu0 %v3297
    %4853 = vmatprep.subr.bf16.mxu0 %v3358
    %4854 = vmatpush2.bf16.msra.mxu0 %v3357
    %4855 = vmatprep.subr.bf16.mxu0 %v3354
    %4856 = vmatpush2.bf16.msra.mxu0 %v3353
    %4857 = vmatprep.subr.bf16.mxu0 %v3350
    %4858 = vmatpush2.bf16.msra.mxu0 %v3349
    %4859 = vmatprep.subr.bf16.mxu0 %v3346
    %4860 = vmatpush2.bf16.msra.mxu0 %v3345
    %4861 = vmatprep.subr.bf16.mxu0 %v3342
    %4862 = vmatpush2.bf16.msra.mxu0 %v3341
    %4863 = vmatprep.subr.bf16.mxu0 %v3338
    %4864 = vmatpush2.bf16.msra.mxu0 %v3337
    %4865 = vmatprep.subr.bf16.mxu0 %v3334
    %4866 = vmatpush2.bf16.msra.mxu0 %v3333
    %4867 = vmatprep.subr.bf16.mxu0 %v3330
    %4868 = vmatpush2.bf16.msra.mxu0 %v3329
    %4869 = vmatprep.mubr.bf16.mxu0 %v490
    %4870 = vmatmul.mubr.bf16.gmra.mxu0 %v489
    %v4871 = vpop.f32.mrf.mxu0
    %v4872 = vadd.f32 %v4711, %v4871
    %v4873 = vpop.f32.mrf.mxu0
    %v4874 = vadd.f32 %v4713, %v4873
    %v4875 = vpop.f32.mrf.mxu0
    %v4876 = vadd.f32 %v4715, %v4875
    %v4877 = vpop.f32.mrf.mxu0
    %v4878 = vadd.f32 %v4717, %v4877
    %4879 = vmatprep.mubr.bf16.mxu0 %v508
    %4880 = vmatmul.mubr.bf16.gmra.mxu0 %v507
    %v4881 = vpop.f32.mrf.mxu0
    %v4882 = vadd.f32 %v4721, %v4881
    %v4883 = vpop.f32.mrf.mxu0
    %v4884 = vadd.f32 %v4723, %v4883
    %v4885 = vpop.f32.mrf.mxu0
    %v4886 = vadd.f32 %v4725, %v4885
    %v4887 = vpop.f32.mrf.mxu0
    %v4888 = vadd.f32 %v4727, %v4887
    %4889 = vmatprep.mubr.bf16.mxu0 %v526
    %4890 = vmatmul.mubr.bf16.gmra.mxu0 %v525
    %v4891 = vpop.f32.mrf.mxu0
    %v4892 = vadd.f32 %v4731, %v4891
    %v4893 = vpop.f32.mrf.mxu0
    %v4894 = vadd.f32 %v4733, %v4893
    %v4895 = vpop.f32.mrf.mxu0
    %v4896 = vadd.f32 %v4735, %v4895
    %v4897 = vpop.f32.mrf.mxu0
    %v4898 = vadd.f32 %v4737, %v4897
    %4899 = vmatprep.mubr.bf16.mxu0 %v544
    %4900 = vmatmul.mubr.bf16.gmra.mxu0 %v543
    %v4901 = vpop.f32.mrf.mxu0
    %v4902 = vadd.f32 %v4741, %v4901
    %v4903 = vpop.f32.mrf.mxu0
    %v4904 = vadd.f32 %v4743, %v4903
    %v4905 = vpop.f32.mrf.mxu0
    %v4906 = vadd.f32 %v4745, %v4905
    %v4907 = vpop.f32.mrf.mxu0
    %v4908 = vadd.f32 %v4747, %v4907
    %4909 = vmatprep.mubr.bf16.mxu0 %v562
    %4910 = vmatmul.mubr.bf16.gmra.mxu0 %v561
    %v4911 = vpop.f32.mrf.mxu0
    %v4912 = vadd.f32 %v4751, %v4911
    %v4913 = vpop.f32.mrf.mxu0
    %v4914 = vadd.f32 %v4753, %v4913
    %v4915 = vpop.f32.mrf.mxu0
    %v4916 = vadd.f32 %v4755, %v4915
    %v4917 = vpop.f32.mrf.mxu0
    %v4918 = vadd.f32 %v4757, %v4917
    %4919 = vmatprep.mubr.bf16.mxu0 %v580
    %4920 = vmatmul.mubr.bf16.gmra.mxu0 %v579
    %v4921 = vpop.f32.mrf.mxu0
    %v4922 = vadd.f32 %v4761, %v4921
    %v4923 = vpop.f32.mrf.mxu0
    %v4924 = vadd.f32 %v4763, %v4923
    %v4925 = vpop.f32.mrf.mxu0
    %v4926 = vadd.f32 %v4765, %v4925
    %v4927 = vpop.f32.mrf.mxu0
    %v4928 = vadd.f32 %v4767, %v4927
    %4929 = vmatprep.mubr.bf16.mxu0 %v598
    %4930 = vmatmul.mubr.bf16.gmra.mxu0 %v597
    %v4931 = vpop.f32.mrf.mxu0
    %v4932 = vadd.f32 %v4771, %v4931
    %v4933 = vpop.f32.mrf.mxu0
    %v4934 = vadd.f32 %v4773, %v4933
    %v4935 = vpop.f32.mrf.mxu0
    %v4936 = vadd.f32 %v4775, %v4935
    %v4937 = vpop.f32.mrf.mxu0
    %v4938 = vadd.f32 %v4777, %v4937
    %4939 = vmatprep.mubr.bf16.mxu0 %v616
    %4940 = vmatmul.mubr.bf16.gmra.mxu0 %v615
    %v4941 = vpop.f32.mrf.mxu0
    %v4942 = vadd.f32 %v4781, %v4941
    %v4943 = vpop.f32.mrf.mxu0
    %v4944 = vadd.f32 %v4783, %v4943
    %v4945 = vpop.f32.mrf.mxu0
    %v4946 = vadd.f32 %v4785, %v4945
    %v4947 = vpop.f32.mrf.mxu0
    %v4948 = vadd.f32 %v4787, %v4947
    %4949 = vmatprep.mubr.bf16.mxu0 %v634
    %4950 = vmatmul.mubr.bf16.gmra.mxu0 %v633
    %v4951 = vpop.f32.mrf.mxu0
    %v4952 = vadd.f32 %v4791, %v4951
    %v4953 = vpop.f32.mrf.mxu0
    %v4954 = vadd.f32 %v4793, %v4953
    %v4955 = vpop.f32.mrf.mxu0
    %v4956 = vadd.f32 %v4795, %v4955
    %v4957 = vpop.f32.mrf.mxu0
    %v4958 = vadd.f32 %v4797, %v4957
    %4959 = vmatprep.mubr.bf16.mxu0 %v652
    %4960 = vmatmul.mubr.bf16.gmra.mxu0 %v651
    %v4961 = vpop.f32.mrf.mxu0
    %v4962 = vadd.f32 %v4801, %v4961
    %v4963 = vpop.f32.mrf.mxu0
    %v4964 = vadd.f32 %v4803, %v4963
    %v4965 = vpop.f32.mrf.mxu0
    %v4966 = vadd.f32 %v4805, %v4965
    %v4967 = vpop.f32.mrf.mxu0
    %v4968 = vadd.f32 %v4807, %v4967
    %4969 = vmatprep.mubr.bf16.mxu0 %v670
    %4970 = vmatmul.mubr.bf16.gmra.mxu0 %v669
    %v4971 = vpop.f32.mrf.mxu0
    %v4972 = vadd.f32 %v4811, %v4971
    %v4973 = vpop.f32.mrf.mxu0
    %v4974 = vadd.f32 %v4813, %v4973
    %v4975 = vpop.f32.mrf.mxu0
    %v4976 = vadd.f32 %v4815, %v4975
    %v4977 = vpop.f32.mrf.mxu0
    %v4978 = vadd.f32 %v4817, %v4977
    %4979 = vmatprep.mubr.bf16.mxu0 %v688
    %4980 = vmatmul.mubr.bf16.gmra.mxu0 %v687
    %v4981 = vpop.f32.mrf.mxu0
    %v4982 = vadd.f32 %v4821, %v4981
    %v4983 = vpop.f32.mrf.mxu0
    %v4984 = vadd.f32 %v4823, %v4983
    %v4985 = vpop.f32.mrf.mxu0
    %v4986 = vadd.f32 %v4825, %v4985
    %v4987 = vpop.f32.mrf.mxu0
    %v4988 = vadd.f32 %v4827, %v4987
    %4989 = vmatprep.mubr.bf16.mxu0 %v706
    %4990 = vmatmul.mubr.bf16.gmra.mxu0 %v705
    %v4991 = vpop.f32.mrf.mxu0
    %v4992 = vadd.f32 %v4831, %v4991
    %v4993 = vpop.f32.mrf.mxu0
    %v4994 = vadd.f32 %v4833, %v4993
    %v4995 = vpop.f32.mrf.mxu0
    %v4996 = vpop.f32.mrf.mxu0
    %4997 = vdwg.mxu0
    %4998 = vmatprep.subr.bf16.mxu0 %v3390
    %4999 = vmatpush1.bf16.msra.mxu0 %v3389
    %5000 = vmatprep.subr.bf16.mxu0 %v3386
    %5001 = vmatpush1.bf16.msra.mxu0 %v3385
    %5002 = vmatprep.subr.bf16.mxu0 %v3382
    %5003 = vmatpush1.bf16.msra.mxu0 %v3381
    %5004 = vmatprep.subr.bf16.mxu0 %v3378
    %5005 = vmatpush1.bf16.msra.mxu0 %v3377
    %5006 = vmatprep.subr.bf16.mxu0 %v3374
    %5007 = vmatpush1.bf16.msra.mxu0 %v3373
    %5008 = vmatprep.subr.bf16.mxu0 %v3370
    %5009 = vmatpush1.bf16.msra.mxu0 %v3369
    %5010 = vmatprep.subr.bf16.mxu0 %v3366
    %5011 = vmatpush1.bf16.msra.mxu0 %v3365
    %5012 = vmatprep.subr.bf16.mxu0 %v3362
    %5013 = vmatpush1.bf16.msra.mxu0 %v3361
    %5014 = vmatprep.subr.bf16.mxu0 %v3422
    %5015 = vmatpush2.bf16.msra.mxu0 %v3421
    %5016 = vmatprep.subr.bf16.mxu0 %v3418
    %5017 = vmatpush2.bf16.msra.mxu0 %v3417
    %5018 = vmatprep.subr.bf16.mxu0 %v3414
    %5019 = vmatpush2.bf16.msra.mxu0 %v3413
    %5020 = vmatprep.subr.bf16.mxu0 %v3410
    %5021 = vmatpush2.bf16.msra.mxu0 %v3409
    %5022 = vmatprep.subr.bf16.mxu0 %v3406
    %5023 = vmatpush2.bf16.msra.mxu0 %v3405
    %5024 = vmatprep.subr.bf16.mxu0 %v3402
    %5025 = vmatpush2.bf16.msra.mxu0 %v3401
    %5026 = vmatprep.subr.bf16.mxu0 %v3398
    %5027 = vmatpush2.bf16.msra.mxu0 %v3397
    %5028 = vmatprep.subr.bf16.mxu0 %v3394
    %5029 = vmatpush2.bf16.msra.mxu0 %v3393
    %5030 = vmatprep.mubr.bf16.mxu0 %v492
    %5031 = vmatmul.mubr.bf16.gmra.mxu0 %v491
    %v5032 = vpop.f32.mrf.mxu0
    %v5033 = vadd.f32 %v4872, %v5032
    %v5034 = vpop.f32.mrf.mxu0
    %v5035 = vadd.f32 %v4874, %v5034
    %v5036 = vpop.f32.mrf.mxu0
    %v5037 = vadd.f32 %v4876, %v5036
    %v5038 = vpop.f32.mrf.mxu0
    %v5039 = vadd.f32 %v4878, %v5038
    %5040 = vmatprep.mubr.bf16.mxu0 %v510
    %5041 = vmatmul.mubr.bf16.gmra.mxu0 %v509
    %v5042 = vpop.f32.mrf.mxu0
    %v5043 = vadd.f32 %v4882, %v5042
    %v5044 = vpop.f32.mrf.mxu0
    %v5045 = vadd.f32 %v4884, %v5044
    %v5046 = vpop.f32.mrf.mxu0
    %v5047 = vadd.f32 %v4886, %v5046
    %v5048 = vpop.f32.mrf.mxu0
    %v5049 = vadd.f32 %v4888, %v5048
    %5050 = vmatprep.mubr.bf16.mxu0 %v528
    %5051 = vmatmul.mubr.bf16.gmra.mxu0 %v527
    %v5052 = vpop.f32.mrf.mxu0
    %v5053 = vadd.f32 %v4892, %v5052
    %v5054 = vpop.f32.mrf.mxu0
    %v5055 = vadd.f32 %v4894, %v5054
    %v5056 = vpop.f32.mrf.mxu0
    %v5057 = vadd.f32 %v4896, %v5056
    %v5058 = vpop.f32.mrf.mxu0
    %v5059 = vadd.f32 %v4898, %v5058
    %5060 = vmatprep.mubr.bf16.mxu0 %v546
    %5061 = vmatmul.mubr.bf16.gmra.mxu0 %v545
    %v5062 = vpop.f32.mrf.mxu0
    %v5063 = vadd.f32 %v4902, %v5062
    %v5064 = vpop.f32.mrf.mxu0
    %v5065 = vadd.f32 %v4904, %v5064
    %v5066 = vpop.f32.mrf.mxu0
    %v5067 = vadd.f32 %v4906, %v5066
    %v5068 = vpop.f32.mrf.mxu0
    %v5069 = vadd.f32 %v4908, %v5068
    %5070 = vmatprep.mubr.bf16.mxu0 %v564
    %5071 = vmatmul.mubr.bf16.gmra.mxu0 %v563
    %v5072 = vpop.f32.mrf.mxu0
    %v5073 = vadd.f32 %v4912, %v5072
    %v5074 = vpop.f32.mrf.mxu0
    %v5075 = vadd.f32 %v4914, %v5074
    %v5076 = vpop.f32.mrf.mxu0
    %v5077 = vadd.f32 %v4916, %v5076
    %v5078 = vpop.f32.mrf.mxu0
    %v5079 = vadd.f32 %v4918, %v5078
    %5080 = vmatprep.mubr.bf16.mxu0 %v582
    %5081 = vmatmul.mubr.bf16.gmra.mxu0 %v581
    %v5082 = vpop.f32.mrf.mxu0
    %v5083 = vadd.f32 %v4922, %v5082
    %v5084 = vpop.f32.mrf.mxu0
    %v5085 = vadd.f32 %v4924, %v5084
    %v5086 = vpop.f32.mrf.mxu0
    %v5087 = vadd.f32 %v4926, %v5086
    %v5088 = vpop.f32.mrf.mxu0
    %v5089 = vadd.f32 %v4928, %v5088
    %5090 = vmatprep.mubr.bf16.mxu0 %v600
    %5091 = vmatmul.mubr.bf16.gmra.mxu0 %v599
    %v5092 = vpop.f32.mrf.mxu0
    %v5093 = vadd.f32 %v4932, %v5092
    %v5094 = vpop.f32.mrf.mxu0
    %v5095 = vadd.f32 %v4934, %v5094
    %v5096 = vpop.f32.mrf.mxu0
    %v5097 = vadd.f32 %v4936, %v5096
    %v5098 = vpop.f32.mrf.mxu0
    %v5099 = vadd.f32 %v4938, %v5098
    %5100 = vmatprep.mubr.bf16.mxu0 %v618
    %5101 = vmatmul.mubr.bf16.gmra.mxu0 %v617
    %v5102 = vpop.f32.mrf.mxu0
    %v5103 = vadd.f32 %v4942, %v5102
    %v5104 = vpop.f32.mrf.mxu0
    %v5105 = vadd.f32 %v4944, %v5104
    %v5106 = vpop.f32.mrf.mxu0
    %v5107 = vadd.f32 %v4946, %v5106
    %v5108 = vpop.f32.mrf.mxu0
    %v5109 = vadd.f32 %v4948, %v5108
    %5110 = vmatprep.mubr.bf16.mxu0 %v636
    %5111 = vmatmul.mubr.bf16.gmra.mxu0 %v635
    %v5112 = vpop.f32.mrf.mxu0
    %v5113 = vadd.f32 %v4952, %v5112
    %v5114 = vpop.f32.mrf.mxu0
    %v5115 = vadd.f32 %v4954, %v5114
    %v5116 = vpop.f32.mrf.mxu0
    %v5117 = vadd.f32 %v4956, %v5116
    %v5118 = vpop.f32.mrf.mxu0
    %v5119 = vadd.f32 %v4958, %v5118
    %5120 = vmatprep.mubr.bf16.mxu0 %v654
    %5121 = vmatmul.mubr.bf16.gmra.mxu0 %v653
    %v5122 = vpop.f32.mrf.mxu0
    %v5123 = vadd.f32 %v4962, %v5122
    %v5124 = vpop.f32.mrf.mxu0
    %v5125 = vadd.f32 %v4964, %v5124
    %v5126 = vpop.f32.mrf.mxu0
    %v5127 = vadd.f32 %v4966, %v5126
    %v5128 = vpop.f32.mrf.mxu0
    %v5129 = vadd.f32 %v4968, %v5128
    %5130 = vmatprep.mubr.bf16.mxu0 %v672
    %5131 = vmatmul.mubr.bf16.gmra.mxu0 %v671
    %v5132 = vpop.f32.mrf.mxu0
    %v5133 = vadd.f32 %v4972, %v5132
    %v5134 = vpop.f32.mrf.mxu0
    %v5135 = vadd.f32 %v4974, %v5134
    %v5136 = vpop.f32.mrf.mxu0
    %v5137 = vadd.f32 %v4976, %v5136
    %v5138 = vpop.f32.mrf.mxu0
    %v5139 = vadd.f32 %v4978, %v5138
    %5140 = vmatprep.mubr.bf16.mxu0 %v690
    %5141 = vmatmul.mubr.bf16.gmra.mxu0 %v689
    %v5142 = vpop.f32.mrf.mxu0
    %v5143 = vadd.f32 %v4982, %v5142
    %v5144 = vpop.f32.mrf.mxu0
    %v5145 = vadd.f32 %v4984, %v5144
    %v5146 = vpop.f32.mrf.mxu0
    %v5147 = vadd.f32 %v4986, %v5146
    %v5148 = vpop.f32.mrf.mxu0
    %v5149 = vadd.f32 %v4988, %v5148
    %5150 = vmatprep.mubr.bf16.mxu0 %v708
    %5151 = vmatmul.mubr.bf16.gmra.mxu0 %v707
    %v5152 = vpop.f32.mrf.mxu0
    %v5153 = vadd.f32 %v4992, %v5152
    %v5154 = vpop.f32.mrf.mxu0
    %v5155 = vadd.f32 %v4994, %v5154
    %v5156 = vpop.f32.mrf.mxu0
    %v5157 = vpop.f32.mrf.mxu0
    %5158 = vdwg.mxu0
    %5159 = vmatprep.subr.bf16.mxu0 %v3454
    %5160 = vmatpush1.bf16.msra.mxu0 %v3453
    %5161 = vmatprep.subr.bf16.mxu0 %v3450
    %5162 = vmatpush1.bf16.msra.mxu0 %v3449
    %5163 = vmatprep.subr.bf16.mxu0 %v3446
    %5164 = vmatpush1.bf16.msra.mxu0 %v3445
    %5165 = vmatprep.subr.bf16.mxu0 %v3442
    %5166 = vmatpush1.bf16.msra.mxu0 %v3441
    %5167 = vmatprep.subr.bf16.mxu0 %v3438
    %5168 = vmatpush1.bf16.msra.mxu0 %v3437
    %5169 = vmatprep.subr.bf16.mxu0 %v3434
    %5170 = vmatpush1.bf16.msra.mxu0 %v3433
    %5171 = vmatprep.subr.bf16.mxu0 %v3430
    %5172 = vmatpush1.bf16.msra.mxu0 %v3429
    %5173 = vmatprep.subr.bf16.mxu0 %v3426
    %5174 = vmatpush1.bf16.msra.mxu0 %v3425
    %5175 = vmatprep.subr.bf16.mxu0 %v3486
    %5176 = vmatpush2.bf16.msra.mxu0 %v3485
    %5177 = vmatprep.subr.bf16.mxu0 %v3482
    %5178 = vmatpush2.bf16.msra.mxu0 %v3481
    %5179 = vmatprep.subr.bf16.mxu0 %v3478
    %5180 = vmatpush2.bf16.msra.mxu0 %v3477
    %5181 = vmatprep.subr.bf16.mxu0 %v3474
    %5182 = vmatpush2.bf16.msra.mxu0 %v3473
    %5183 = vmatprep.subr.bf16.mxu0 %v3470
    %5184 = vmatpush2.bf16.msra.mxu0 %v3469
    %5185 = vmatprep.subr.bf16.mxu0 %v3466
    %5186 = vmatpush2.bf16.msra.mxu0 %v3465
    %5187 = vmatprep.subr.bf16.mxu0 %v3462
    %5188 = vmatpush2.bf16.msra.mxu0 %v3461
    %5189 = vmatprep.subr.bf16.mxu0 %v3458
    %5190 = vmatpush2.bf16.msra.mxu0 %v3457
    %5191 = vmatprep.mubr.bf16.mxu0 %v494
    %5192 = vmatmul.mubr.bf16.gmra.mxu0 %v493
    %v5193 = vpop.f32.mrf.mxu0
    %v5194 = vadd.f32 %v5033, %v5193
    %v5195 = vpop.f32.mrf.mxu0
    %v5196 = vadd.f32 %v5035, %v5195
    %v5197 = vpop.f32.mrf.mxu0
    %v5198 = vadd.f32 %v5037, %v5197
    %v5199 = vpop.f32.mrf.mxu0
    %v5200 = vadd.f32 %v5039, %v5199
    %5201 = vmatprep.mubr.bf16.mxu0 %v512
    %5202 = vmatmul.mubr.bf16.gmra.mxu0 %v511
    %v5203 = vpop.f32.mrf.mxu0
    %v5204 = vadd.f32 %v5043, %v5203
    %v5205 = vpop.f32.mrf.mxu0
    %v5206 = vadd.f32 %v5045, %v5205
    %v5207 = vpop.f32.mrf.mxu0
    %v5208 = vadd.f32 %v5047, %v5207
    %v5209 = vpop.f32.mrf.mxu0
    %v5210 = vadd.f32 %v5049, %v5209
    %5211 = vmatprep.mubr.bf16.mxu0 %v530
    %5212 = vmatmul.mubr.bf16.gmra.mxu0 %v529
    %v5213 = vpop.f32.mrf.mxu0
    %v5214 = vadd.f32 %v5053, %v5213
    %v5215 = vpop.f32.mrf.mxu0
    %v5216 = vadd.f32 %v5055, %v5215
    %v5217 = vpop.f32.mrf.mxu0
    %v5218 = vadd.f32 %v5057, %v5217
    %v5219 = vpop.f32.mrf.mxu0
    %v5220 = vadd.f32 %v5059, %v5219
    %5221 = vmatprep.mubr.bf16.mxu0 %v548
    %5222 = vmatmul.mubr.bf16.gmra.mxu0 %v547
    %v5223 = vpop.f32.mrf.mxu0
    %v5224 = vadd.f32 %v5063, %v5223
    %v5225 = vpop.f32.mrf.mxu0
    %v5226 = vadd.f32 %v5065, %v5225
    %v5227 = vpop.f32.mrf.mxu0
    %v5228 = vadd.f32 %v5067, %v5227
    %v5229 = vpop.f32.mrf.mxu0
    %v5230 = vadd.f32 %v5069, %v5229
    %5231 = vmatprep.mubr.bf16.mxu0 %v566
    %5232 = vmatmul.mubr.bf16.gmra.mxu0 %v565
    %v5233 = vpop.f32.mrf.mxu0
    %v5234 = vadd.f32 %v5073, %v5233
    %v5235 = vpop.f32.mrf.mxu0
    %v5236 = vadd.f32 %v5075, %v5235
    %v5237 = vpop.f32.mrf.mxu0
    %v5238 = vadd.f32 %v5077, %v5237
    %v5239 = vpop.f32.mrf.mxu0
    %v5240 = vadd.f32 %v5079, %v5239
    %5241 = vmatprep.mubr.bf16.mxu0 %v584
    %5242 = vmatmul.mubr.bf16.gmra.mxu0 %v583
    %v5243 = vpop.f32.mrf.mxu0
    %v5244 = vadd.f32 %v5083, %v5243
    %v5245 = vpop.f32.mrf.mxu0
    %v5246 = vadd.f32 %v5085, %v5245
    %v5247 = vpop.f32.mrf.mxu0
    %v5248 = vadd.f32 %v5087, %v5247
    %v5249 = vpop.f32.mrf.mxu0
    %v5250 = vadd.f32 %v5089, %v5249
    %5251 = vmatprep.mubr.bf16.mxu0 %v602
    %5252 = vmatmul.mubr.bf16.gmra.mxu0 %v601
    %v5253 = vpop.f32.mrf.mxu0
    %v5254 = vadd.f32 %v5093, %v5253
    %v5255 = vpop.f32.mrf.mxu0
    %v5256 = vadd.f32 %v5095, %v5255
    %v5257 = vpop.f32.mrf.mxu0
    %v5258 = vadd.f32 %v5097, %v5257
    %v5259 = vpop.f32.mrf.mxu0
    %v5260 = vadd.f32 %v5099, %v5259
    %5261 = vmatprep.mubr.bf16.mxu0 %v620
    %5262 = vmatmul.mubr.bf16.gmra.mxu0 %v619
    %v5263 = vpop.f32.mrf.mxu0
    %v5264 = vadd.f32 %v5103, %v5263
    %v5265 = vpop.f32.mrf.mxu0
    %v5266 = vadd.f32 %v5105, %v5265
    %v5267 = vpop.f32.mrf.mxu0
    %v5268 = vadd.f32 %v5107, %v5267
    %v5269 = vpop.f32.mrf.mxu0
    %v5270 = vadd.f32 %v5109, %v5269
    %5271 = vmatprep.mubr.bf16.mxu0 %v638
    %5272 = vmatmul.mubr.bf16.gmra.mxu0 %v637
    %v5273 = vpop.f32.mrf.mxu0
    %v5274 = vadd.f32 %v5113, %v5273
    %v5275 = vpop.f32.mrf.mxu0
    %v5276 = vadd.f32 %v5115, %v5275
    %v5277 = vpop.f32.mrf.mxu0
    %v5278 = vadd.f32 %v5117, %v5277
    %v5279 = vpop.f32.mrf.mxu0
    %v5280 = vadd.f32 %v5119, %v5279
    %5281 = vmatprep.mubr.bf16.mxu0 %v656
    %5282 = vmatmul.mubr.bf16.gmra.mxu0 %v655
    %v5283 = vpop.f32.mrf.mxu0
    %v5284 = vadd.f32 %v5123, %v5283
    %v5285 = vpop.f32.mrf.mxu0
    %v5286 = vadd.f32 %v5125, %v5285
    %v5287 = vpop.f32.mrf.mxu0
    %v5288 = vadd.f32 %v5127, %v5287
    %v5289 = vpop.f32.mrf.mxu0
    %v5290 = vadd.f32 %v5129, %v5289
    %5291 = vmatprep.mubr.bf16.mxu0 %v674
    %5292 = vmatmul.mubr.bf16.gmra.mxu0 %v673
    %v5293 = vpop.f32.mrf.mxu0
    %v5294 = vadd.f32 %v5133, %v5293
    %v5295 = vpop.f32.mrf.mxu0
    %v5296 = vadd.f32 %v5135, %v5295
    %v5297 = vpop.f32.mrf.mxu0
    %v5298 = vadd.f32 %v5137, %v5297
    %v5299 = vpop.f32.mrf.mxu0
    %v5300 = vadd.f32 %v5139, %v5299
    %5301 = vmatprep.mubr.bf16.mxu0 %v692
    %5302 = vmatmul.mubr.bf16.gmra.mxu0 %v691
    %v5303 = vpop.f32.mrf.mxu0
    %v5304 = vadd.f32 %v5143, %v5303
    %v5305 = vpop.f32.mrf.mxu0
    %v5306 = vadd.f32 %v5145, %v5305
    %v5307 = vpop.f32.mrf.mxu0
    %v5308 = vadd.f32 %v5147, %v5307
    %v5309 = vpop.f32.mrf.mxu0
    %v5310 = vadd.f32 %v5149, %v5309
    %5311 = vmatprep.mubr.bf16.mxu0 %v710
    %5312 = vmatmul.mubr.bf16.gmra.mxu0 %v709
    %v5313 = vpop.f32.mrf.mxu0
    %v5314 = vadd.f32 %v5153, %v5313
    %v5315 = vpop.f32.mrf.mxu0
    %v5316 = vadd.f32 %v5155, %v5315
    %v5317 = vpop.f32.mrf.mxu0
    %v5318 = vpop.f32.mrf.mxu0
    %5319 = vdwg.mxu0
    %5320 = vmatprep.subr.bf16.mxu0 %v3518
    %5321 = vmatpush1.bf16.msra.mxu0 %v3517
    %5322 = vmatprep.subr.bf16.mxu0 %v3514
    %5323 = vmatpush1.bf16.msra.mxu0 %v3513
    %5324 = vmatprep.subr.bf16.mxu0 %v3510
    %5325 = vmatpush1.bf16.msra.mxu0 %v3509
    %5326 = vmatprep.subr.bf16.mxu0 %v3506
    %5327 = vmatpush1.bf16.msra.mxu0 %v3505
    %5328 = vmatprep.subr.bf16.mxu0 %v3502
    %5329 = vmatpush1.bf16.msra.mxu0 %v3501
    %5330 = vmatprep.subr.bf16.mxu0 %v3498
    %5331 = vmatpush1.bf16.msra.mxu0 %v3497
    %5332 = vmatprep.subr.bf16.mxu0 %v3494
    %5333 = vmatpush1.bf16.msra.mxu0 %v3493
    %5334 = vmatprep.subr.bf16.mxu0 %v3490
    %5335 = vmatpush1.bf16.msra.mxu0 %v3489
    %5336 = vmatprep.subr.bf16.mxu0 %v3550
    %5337 = vmatpush2.bf16.msra.mxu0 %v3549
    %5338 = vmatprep.subr.bf16.mxu0 %v3546
    %5339 = vmatpush2.bf16.msra.mxu0 %v3545
    %5340 = vmatprep.subr.bf16.mxu0 %v3542
    %5341 = vmatpush2.bf16.msra.mxu0 %v3541
    %5342 = vmatprep.subr.bf16.mxu0 %v3538
    %5343 = vmatpush2.bf16.msra.mxu0 %v3537
    %5344 = vmatprep.subr.bf16.mxu0 %v3534
    %5345 = vmatpush2.bf16.msra.mxu0 %v3533
    %5346 = vmatprep.subr.bf16.mxu0 %v3530
    %5347 = vmatpush2.bf16.msra.mxu0 %v3529
    %5348 = vmatprep.subr.bf16.mxu0 %v3526
    %5349 = vmatpush2.bf16.msra.mxu0 %v3525
    %5350 = vmatprep.subr.bf16.mxu0 %v3522
    %5351 = vmatpush2.bf16.msra.mxu0 %v3521
    %5352 = vmatprep.mubr.bf16.mxu0 %v496
    %5353 = vmatmul.mubr.bf16.gmra.mxu0 %v495
    %v5354 = vpop.f32.mrf.mxu0
    %v5355 = vadd.f32 %v5194, %v5354
    %v5356 = vpop.f32.mrf.mxu0
    %v5357 = vadd.f32 %v5196, %v5356
    %v5358 = vpop.f32.mrf.mxu0
    %v5359 = vadd.f32 %v5198, %v5358
    %v5360 = vpop.f32.mrf.mxu0
    %v5361 = vadd.f32 %v5200, %v5360
    %5362 = vmatprep.mubr.bf16.mxu0 %v514
    %5363 = vmatmul.mubr.bf16.gmra.mxu0 %v513
    %v5364 = vpop.f32.mrf.mxu0
    %v5365 = vadd.f32 %v5204, %v5364
    %v5366 = vpop.f32.mrf.mxu0
    %v5367 = vadd.f32 %v5206, %v5366
    %v5368 = vpop.f32.mrf.mxu0
    %v5369 = vadd.f32 %v5208, %v5368
    %v5370 = vpop.f32.mrf.mxu0
    %v5371 = vadd.f32 %v5210, %v5370
    %5372 = vmatprep.mubr.bf16.mxu0 %v532
    %5373 = vmatmul.mubr.bf16.gmra.mxu0 %v531
    %v5374 = vpop.f32.mrf.mxu0
    %v5375 = vadd.f32 %v5214, %v5374
    %v5376 = vpop.f32.mrf.mxu0
    %v5377 = vadd.f32 %v5216, %v5376
    %v5378 = vpop.f32.mrf.mxu0
    %v5379 = vadd.f32 %v5218, %v5378
    %v5380 = vpop.f32.mrf.mxu0
    %v5381 = vadd.f32 %v5220, %v5380
    %5382 = vmatprep.mubr.bf16.mxu0 %v550
    %5383 = vmatmul.mubr.bf16.gmra.mxu0 %v549
    %v5384 = vpop.f32.mrf.mxu0
    %v5385 = vadd.f32 %v5224, %v5384
    %v5386 = vpop.f32.mrf.mxu0
    %v5387 = vadd.f32 %v5226, %v5386
    %v5388 = vpop.f32.mrf.mxu0
    %v5389 = vadd.f32 %v5228, %v5388
    %v5390 = vpop.f32.mrf.mxu0
    %v5391 = vadd.f32 %v5230, %v5390
    %5392 = vmatprep.mubr.bf16.mxu0 %v568
    %5393 = vmatmul.mubr.bf16.gmra.mxu0 %v567
    %v5394 = vpop.f32.mrf.mxu0
    %v5395 = vadd.f32 %v5234, %v5394
    %v5396 = vpop.f32.mrf.mxu0
    %v5397 = vadd.f32 %v5236, %v5396
    %v5398 = vpop.f32.mrf.mxu0
    %v5399 = vadd.f32 %v5238, %v5398
    %v5400 = vpop.f32.mrf.mxu0
    %v5401 = vadd.f32 %v5240, %v5400
    %5402 = vmatprep.mubr.bf16.mxu0 %v586
    %5403 = vmatmul.mubr.bf16.gmra.mxu0 %v585
    %v5404 = vpop.f32.mrf.mxu0
    %v5405 = vadd.f32 %v5244, %v5404
    %v5406 = vpop.f32.mrf.mxu0
    %v5407 = vadd.f32 %v5246, %v5406
    %v5408 = vpop.f32.mrf.mxu0
    %v5409 = vadd.f32 %v5248, %v5408
    %v5410 = vpop.f32.mrf.mxu0
    %v5411 = vadd.f32 %v5250, %v5410
    %5412 = vmatprep.mubr.bf16.mxu0 %v604
    %5413 = vmatmul.mubr.bf16.gmra.mxu0 %v603
    %v5414 = vpop.f32.mrf.mxu0
    %v5415 = vadd.f32 %v5254, %v5414
    %v5416 = vpop.f32.mrf.mxu0
    %v5417 = vadd.f32 %v5256, %v5416
    %v5418 = vpop.f32.mrf.mxu0
    %v5419 = vadd.f32 %v5258, %v5418
    %v5420 = vpop.f32.mrf.mxu0
    %v5421 = vadd.f32 %v5260, %v5420
    %5422 = vmatprep.mubr.bf16.mxu0 %v622
    %5423 = vmatmul.mubr.bf16.gmra.mxu0 %v621
    %v5424 = vpop.f32.mrf.mxu0
    %v5425 = vadd.f32 %v5264, %v5424
    %v5426 = vpop.f32.mrf.mxu0
    %v5427 = vadd.f32 %v5266, %v5426
    %v5428 = vpop.f32.mrf.mxu0
    %v5429 = vadd.f32 %v5268, %v5428
    %v5430 = vpop.f32.mrf.mxu0
    %v5431 = vadd.f32 %v5270, %v5430
    %5432 = vmatprep.mubr.bf16.mxu0 %v640
    %5433 = vmatmul.mubr.bf16.gmra.mxu0 %v639
    %v5434 = vpop.f32.mrf.mxu0
    %v5435 = vadd.f32 %v5274, %v5434
    %v5436 = vpop.f32.mrf.mxu0
    %v5437 = vadd.f32 %v5276, %v5436
    %v5438 = vpop.f32.mrf.mxu0
    %v5439 = vadd.f32 %v5278, %v5438
    %v5440 = vpop.f32.mrf.mxu0
    %v5441 = vadd.f32 %v5280, %v5440
    %5442 = vmatprep.mubr.bf16.mxu0 %v658
    %5443 = vmatmul.mubr.bf16.gmra.mxu0 %v657
    %v5444 = vpop.f32.mrf.mxu0
    %v5445 = vadd.f32 %v5284, %v5444
    %v5446 = vpop.f32.mrf.mxu0
    %v5447 = vadd.f32 %v5286, %v5446
    %v5448 = vpop.f32.mrf.mxu0
    %v5449 = vadd.f32 %v5288, %v5448
    %v5450 = vpop.f32.mrf.mxu0
    %v5451 = vadd.f32 %v5290, %v5450
    %5452 = vmatprep.mubr.bf16.mxu0 %v676
    %5453 = vmatmul.mubr.bf16.gmra.mxu0 %v675
    %v5454 = vpop.f32.mrf.mxu0
    %v5455 = vadd.f32 %v5294, %v5454
    %v5456 = vpop.f32.mrf.mxu0
    %v5457 = vadd.f32 %v5296, %v5456
    %v5458 = vpop.f32.mrf.mxu0
    %v5459 = vadd.f32 %v5298, %v5458
    %v5460 = vpop.f32.mrf.mxu0
    %v5461 = vadd.f32 %v5300, %v5460
    %5462 = vmatprep.mubr.bf16.mxu0 %v694
    %5463 = vmatmul.mubr.bf16.gmra.mxu0 %v693
    %v5464 = vpop.f32.mrf.mxu0
    %v5465 = vadd.f32 %v5304, %v5464
    %v5466 = vpop.f32.mrf.mxu0
    %v5467 = vadd.f32 %v5306, %v5466
    %v5468 = vpop.f32.mrf.mxu0
    %v5469 = vadd.f32 %v5308, %v5468
    %v5470 = vpop.f32.mrf.mxu0
    %v5471 = vadd.f32 %v5310, %v5470
    %5472 = vmatprep.mubr.bf16.mxu0 %v712
    %5473 = vmatmul.mubr.bf16.gmra.mxu0 %v711
    %v5474 = vpop.f32.mrf.mxu0
    %v5475 = vadd.f32 %v5314, %v5474
    %v5476 = vpop.f32.mrf.mxu0
    %v5477 = vadd.f32 %v5316, %v5476
    %v5478 = vpop.f32.mrf.mxu0
    %v5479 = vpop.f32.mrf.mxu0
    %5480 = vdwg.mxu0
    %5481 = vmatprep.subr.bf16.mxu0 %v3582
    %5482 = vmatpush1.bf16.msra.mxu0 %v3581
    %5483 = vmatprep.subr.bf16.mxu0 %v3578
    %5484 = vmatpush1.bf16.msra.mxu0 %v3577
    %5485 = vmatprep.subr.bf16.mxu0 %v3574
    %5486 = vmatpush1.bf16.msra.mxu0 %v3573
    %5487 = vmatprep.subr.bf16.mxu0 %v3570
    %5488 = vmatpush1.bf16.msra.mxu0 %v3569
    %5489 = vmatprep.subr.bf16.mxu0 %v3566
    %5490 = vmatpush1.bf16.msra.mxu0 %v3565
    %5491 = vmatprep.subr.bf16.mxu0 %v3562
    %5492 = vmatpush1.bf16.msra.mxu0 %v3561
    %5493 = vmatprep.subr.bf16.mxu0 %v3558
    %5494 = vmatpush1.bf16.msra.mxu0 %v3557
    %5495 = vmatprep.subr.bf16.mxu0 %v3554
    %5496 = vmatpush1.bf16.msra.mxu0 %v3553
    %5497 = vmatprep.subr.bf16.mxu0 %v3614
    %5498 = vmatpush2.bf16.msra.mxu0 %v3613
    %5499 = vmatprep.subr.bf16.mxu0 %v3610
    %5500 = vmatpush2.bf16.msra.mxu0 %v3609
    %5501 = vmatprep.subr.bf16.mxu0 %v3606
    %5502 = vmatpush2.bf16.msra.mxu0 %v3605
    %5503 = vmatprep.subr.bf16.mxu0 %v3602
    %5504 = vmatpush2.bf16.msra.mxu0 %v3601
    %5505 = vmatprep.subr.bf16.mxu0 %v3598
    %5506 = vmatpush2.bf16.msra.mxu0 %v3597
    %5507 = vmatprep.subr.bf16.mxu0 %v3594
    %5508 = vmatpush2.bf16.msra.mxu0 %v3593
    %5509 = vmatprep.subr.bf16.mxu0 %v3590
    %5510 = vmatpush2.bf16.msra.mxu0 %v3589
    %5511 = vmatprep.subr.bf16.mxu0 %v3586
    %5512 = vmatpush2.bf16.msra.mxu0 %v3585
    %5513 = vmatprep.mubr.bf16.mxu0 %v498
    %5514 = vmatmul.mubr.bf16.gmra.mxu0 %v497
    %v5515 = vpop.f32.mrf.mxu0
    %v5516 = vadd.f32 %v5355, %v5515
    %v5517 = vpop.f32.mrf.mxu0
    %v5518 = vadd.f32 %v5357, %v5517
    %v5519 = vpop.f32.mrf.mxu0
    %v5520 = vadd.f32 %v5359, %v5519
    %v5521 = vpop.f32.mrf.mxu0
    %v5522 = vadd.f32 %v5361, %v5521
    %5523 = vmatprep.mubr.bf16.mxu0 %v516
    %5524 = vmatmul.mubr.bf16.gmra.mxu0 %v515
    %v5525 = vpop.f32.mrf.mxu0
    %v5526 = vadd.f32 %v5365, %v5525
    %v5527 = vpop.f32.mrf.mxu0
    %v5528 = vadd.f32 %v5367, %v5527
    %v5529 = vpop.f32.mrf.mxu0
    %v5530 = vadd.f32 %v5369, %v5529
    %v5531 = vpop.f32.mrf.mxu0
    %v5532 = vadd.f32 %v5371, %v5531
    %5533 = vmatprep.mubr.bf16.mxu0 %v534
    %5534 = vmatmul.mubr.bf16.gmra.mxu0 %v533
    %v5535 = vpop.f32.mrf.mxu0
    %v5536 = vadd.f32 %v5375, %v5535
    %v5537 = vpop.f32.mrf.mxu0
    %v5538 = vadd.f32 %v5377, %v5537
    %v5539 = vpop.f32.mrf.mxu0
    %v5540 = vadd.f32 %v5379, %v5539
    %v5541 = vpop.f32.mrf.mxu0
    %v5542 = vadd.f32 %v5381, %v5541
    %5543 = vmatprep.mubr.bf16.mxu0 %v552
    %5544 = vmatmul.mubr.bf16.gmra.mxu0 %v551
    %v5545 = vpop.f32.mrf.mxu0
    %v5546 = vadd.f32 %v5385, %v5545
    %v5547 = vpop.f32.mrf.mxu0
    %v5548 = vadd.f32 %v5387, %v5547
    %v5549 = vpop.f32.mrf.mxu0
    %v5550 = vadd.f32 %v5389, %v5549
    %v5551 = vpop.f32.mrf.mxu0
    %v5552 = vadd.f32 %v5391, %v5551
    %5553 = vmatprep.mubr.bf16.mxu0 %v570
    %5554 = vmatmul.mubr.bf16.gmra.mxu0 %v569
    %v5555 = vpop.f32.mrf.mxu0
    %v5556 = vadd.f32 %v5395, %v5555
    %v5557 = vpop.f32.mrf.mxu0
    %v5558 = vadd.f32 %v5397, %v5557
    %v5559 = vpop.f32.mrf.mxu0
    %v5560 = vadd.f32 %v5399, %v5559
    %v5561 = vpop.f32.mrf.mxu0
    %v5562 = vadd.f32 %v5401, %v5561
    %5563 = vmatprep.mubr.bf16.mxu0 %v588
    %5564 = vmatmul.mubr.bf16.gmra.mxu0 %v587
    %v5565 = vpop.f32.mrf.mxu0
    %v5566 = vadd.f32 %v5405, %v5565
    %v5567 = vpop.f32.mrf.mxu0
    %v5568 = vadd.f32 %v5407, %v5567
    %v5569 = vpop.f32.mrf.mxu0
    %v5570 = vadd.f32 %v5409, %v5569
    %v5571 = vpop.f32.mrf.mxu0
    %v5572 = vadd.f32 %v5411, %v5571
    %5573 = vmatprep.mubr.bf16.mxu0 %v606
    %5574 = vmatmul.mubr.bf16.gmra.mxu0 %v605
    %v5575 = vpop.f32.mrf.mxu0
    %v5576 = vadd.f32 %v5415, %v5575
    %v5577 = vpop.f32.mrf.mxu0
    %v5578 = vadd.f32 %v5417, %v5577
    %v5579 = vpop.f32.mrf.mxu0
    %v5580 = vadd.f32 %v5419, %v5579
    %v5581 = vpop.f32.mrf.mxu0
    %v5582 = vadd.f32 %v5421, %v5581
    %5583 = vmatprep.mubr.bf16.mxu0 %v624
    %5584 = vmatmul.mubr.bf16.gmra.mxu0 %v623
    %v5585 = vpop.f32.mrf.mxu0
    %v5586 = vadd.f32 %v5425, %v5585
    %v5587 = vpop.f32.mrf.mxu0
    %v5588 = vadd.f32 %v5427, %v5587
    %v5589 = vpop.f32.mrf.mxu0
    %v5590 = vadd.f32 %v5429, %v5589
    %v5591 = vpop.f32.mrf.mxu0
    %v5592 = vadd.f32 %v5431, %v5591
    %5593 = vmatprep.mubr.bf16.mxu0 %v642
    %5594 = vmatmul.mubr.bf16.gmra.mxu0 %v641
    %v5595 = vpop.f32.mrf.mxu0
    %v5596 = vadd.f32 %v5435, %v5595
    %v5597 = vpop.f32.mrf.mxu0
    %v5598 = vadd.f32 %v5437, %v5597
    %v5599 = vpop.f32.mrf.mxu0
    %v5600 = vadd.f32 %v5439, %v5599
    %v5601 = vpop.f32.mrf.mxu0
    %v5602 = vadd.f32 %v5441, %v5601
    %5603 = vmatprep.mubr.bf16.mxu0 %v660
    %5604 = vmatmul.mubr.bf16.gmra.mxu0 %v659
    %v5605 = vpop.f32.mrf.mxu0
    %v5606 = vadd.f32 %v5445, %v5605
    %v5607 = vpop.f32.mrf.mxu0
    %v5608 = vadd.f32 %v5447, %v5607
    %v5609 = vpop.f32.mrf.mxu0
    %v5610 = vadd.f32 %v5449, %v5609
    %v5611 = vpop.f32.mrf.mxu0
    %v5612 = vadd.f32 %v5451, %v5611
    %5613 = vmatprep.mubr.bf16.mxu0 %v678
    %5614 = vmatmul.mubr.bf16.gmra.mxu0 %v677
    %v5615 = vpop.f32.mrf.mxu0
    %v5616 = vadd.f32 %v5455, %v5615
    %v5617 = vpop.f32.mrf.mxu0
    %v5618 = vadd.f32 %v5457, %v5617
    %v5619 = vpop.f32.mrf.mxu0
    %v5620 = vadd.f32 %v5459, %v5619
    %v5621 = vpop.f32.mrf.mxu0
    %v5622 = vadd.f32 %v5461, %v5621
    %5623 = vmatprep.mubr.bf16.mxu0 %v696
    %5624 = vmatmul.mubr.bf16.gmra.mxu0 %v695
    %v5625 = vpop.f32.mrf.mxu0
    %v5626 = vadd.f32 %v5465, %v5625
    %v5627 = vpop.f32.mrf.mxu0
    %v5628 = vadd.f32 %v5467, %v5627
    %v5629 = vpop.f32.mrf.mxu0
    %v5630 = vadd.f32 %v5469, %v5629
    %v5631 = vpop.f32.mrf.mxu0
    %v5632 = vadd.f32 %v5471, %v5631
    %5633 = vmatprep.mubr.bf16.mxu0 %v714
    %5634 = vmatmul.mubr.bf16.gmra.mxu0 %v713
    %v5635 = vpop.f32.mrf.mxu0
    %v5636 = vadd.f32 %v5475, %v5635
    %v5637 = vpop.f32.mrf.mxu0
    %v5638 = vadd.f32 %v5477, %v5637
    %v5639 = vpop.f32.mrf.mxu0
    %v5640 = vpop.f32.mrf.mxu0
    %5641 = vdwg.mxu0
    %5642 = vmatprep.subr.bf16.mxu0 %v3072
    %5643 = vmatpush1.bf16.msra.mxu0 %v3071
    %5644 = vmatprep.subr.bf16.mxu0 %v3068
    %5645 = vmatpush1.bf16.msra.mxu0 %v3067
    %5646 = vmatprep.subr.bf16.mxu0 %v3064
    %5647 = vmatpush1.bf16.msra.mxu0 %v3063
    %5648 = vmatprep.subr.bf16.mxu0 %v3060
    %5649 = vmatpush1.bf16.msra.mxu0 %v3059
    %5650 = vmatprep.subr.bf16.mxu0 %v3056
    %5651 = vmatpush1.bf16.msra.mxu0 %v3055
    %5652 = vmatprep.subr.bf16.mxu0 %v3052
    %5653 = vmatpush1.bf16.msra.mxu0 %v3051
    %5654 = vmatprep.subr.bf16.mxu0 %v3048
    %5655 = vmatpush1.bf16.msra.mxu0 %v3047
    %5656 = vmatprep.subr.bf16.mxu0 %v3044
    %5657 = vmatpush1.bf16.msra.mxu0 %v3043
    %5658 = vmatprep.subr.bf16.mxu0 %v3104
    %5659 = vmatpush2.bf16.msra.mxu0 %v3103
    %5660 = vmatprep.subr.bf16.mxu0 %v3100
    %5661 = vmatpush2.bf16.msra.mxu0 %v3099
    %5662 = vmatprep.subr.bf16.mxu0 %v3096
    %5663 = vmatpush2.bf16.msra.mxu0 %v3095
    %5664 = vmatprep.subr.bf16.mxu0 %v3092
    %5665 = vmatpush2.bf16.msra.mxu0 %v3091
    %5666 = vmatprep.subr.bf16.mxu0 %v3088
    %5667 = vmatpush2.bf16.msra.mxu0 %v3087
    %5668 = vmatprep.subr.bf16.mxu0 %v3084
    %5669 = vmatpush2.bf16.msra.mxu0 %v3083
    %5670 = vmatprep.subr.bf16.mxu0 %v3080
    %5671 = vmatpush2.bf16.msra.mxu0 %v3079
    %5672 = vmatprep.subr.bf16.mxu0 %v3076
    %5673 = vmatpush2.bf16.msra.mxu0 %v3075
    %5674 = vmatprep.mubr.bf16.mxu0 %v482
    %5675 = vmatmul.mubr.bf16.gmra.mxu0 %v481
    %v5676 = vpop.f32.mrf.mxu0
    %v5677 = vadd.f32 %v1304, %v5676
    %v5678 = vpop.f32.mrf.mxu0
    %v5679 = vadd.f32 %v1308, %v5678
    %v5680 = vpop.f32.mrf.mxu0
    %v5681 = vadd.f32 %v1304, %v5680
    %v5682 = vpop.f32.mrf.mxu0
    %v5683 = vadd.f32 %v1308, %v5682
    %5684 = vmatprep.mubr.bf16.mxu0 %v500
    %5685 = vmatmul.mubr.bf16.gmra.mxu0 %v499
    %v5686 = vpop.f32.mrf.mxu0
    %v5687 = vadd.f32 %v1304, %v5686
    %v5688 = vpop.f32.mrf.mxu0
    %v5689 = vadd.f32 %v1308, %v5688
    %v5690 = vpop.f32.mrf.mxu0
    %v5691 = vadd.f32 %v1304, %v5690
    %v5692 = vpop.f32.mrf.mxu0
    %v5693 = vadd.f32 %v1308, %v5692
    %5694 = vmatprep.mubr.bf16.mxu0 %v518
    %5695 = vmatmul.mubr.bf16.gmra.mxu0 %v517
    %v5696 = vpop.f32.mrf.mxu0
    %v5697 = vadd.f32 %v1304, %v5696
    %v5698 = vpop.f32.mrf.mxu0
    %v5699 = vadd.f32 %v1308, %v5698
    %v5700 = vpop.f32.mrf.mxu0
    %v5701 = vadd.f32 %v1304, %v5700
    %v5702 = vpop.f32.mrf.mxu0
    %v5703 = vadd.f32 %v1308, %v5702
    %5704 = vmatprep.mubr.bf16.mxu0 %v536
    %5705 = vmatmul.mubr.bf16.gmra.mxu0 %v535
    %v5706 = vpop.f32.mrf.mxu0
    %v5707 = vadd.f32 %v1304, %v5706
    %v5708 = vpop.f32.mrf.mxu0
    %v5709 = vadd.f32 %v1308, %v5708
    %v5710 = vpop.f32.mrf.mxu0
    %v5711 = vadd.f32 %v1304, %v5710
    %v5712 = vpop.f32.mrf.mxu0
    %v5713 = vadd.f32 %v1308, %v5712
    %5714 = vmatprep.mubr.bf16.mxu0 %v554
    %5715 = vmatmul.mubr.bf16.gmra.mxu0 %v553
    %v5716 = vpop.f32.mrf.mxu0
    %v5717 = vadd.f32 %v1304, %v5716
    %v5718 = vpop.f32.mrf.mxu0
    %v5719 = vadd.f32 %v1308, %v5718
    %v5720 = vpop.f32.mrf.mxu0
    %v5721 = vadd.f32 %v1304, %v5720
    %v5722 = vpop.f32.mrf.mxu0
    %v5723 = vadd.f32 %v1308, %v5722
    %5724 = vmatprep.mubr.bf16.mxu0 %v572
    %5725 = vmatmul.mubr.bf16.gmra.mxu0 %v571
    %v5726 = vpop.f32.mrf.mxu0
    %v5727 = vadd.f32 %v1304, %v5726
    %v5728 = vpop.f32.mrf.mxu0
    %v5729 = vadd.f32 %v1308, %v5728
    %v5730 = vpop.f32.mrf.mxu0
    %v5731 = vadd.f32 %v1304, %v5730
    %v5732 = vpop.f32.mrf.mxu0
    %v5733 = vadd.f32 %v1308, %v5732
    %5734 = vmatprep.mubr.bf16.mxu0 %v590
    %5735 = vmatmul.mubr.bf16.gmra.mxu0 %v589
    %v5736 = vpop.f32.mrf.mxu0
    %v5737 = vadd.f32 %v1304, %v5736
    %v5738 = vpop.f32.mrf.mxu0
    %v5739 = vadd.f32 %v1308, %v5738
    %v5740 = vpop.f32.mrf.mxu0
    %v5741 = vadd.f32 %v1304, %v5740
    %v5742 = vpop.f32.mrf.mxu0
    %v5743 = vadd.f32 %v1308, %v5742
    %5744 = vmatprep.mubr.bf16.mxu0 %v608
    %5745 = vmatmul.mubr.bf16.gmra.mxu0 %v607
    %v5746 = vpop.f32.mrf.mxu0
    %v5747 = vadd.f32 %v1304, %v5746
    %v5748 = vpop.f32.mrf.mxu0
    %v5749 = vadd.f32 %v1308, %v5748
    %v5750 = vpop.f32.mrf.mxu0
    %v5751 = vadd.f32 %v1304, %v5750
    %v5752 = vpop.f32.mrf.mxu0
    %v5753 = vadd.f32 %v1308, %v5752
    %5754 = vmatprep.mubr.bf16.mxu0 %v626
    %5755 = vmatmul.mubr.bf16.gmra.mxu0 %v625
    %v5756 = vpop.f32.mrf.mxu0
    %v5757 = vadd.f32 %v1304, %v5756
    %v5758 = vpop.f32.mrf.mxu0
    %v5759 = vadd.f32 %v1308, %v5758
    %v5760 = vpop.f32.mrf.mxu0
    %v5761 = vadd.f32 %v1304, %v5760
    %v5762 = vpop.f32.mrf.mxu0
    %v5763 = vadd.f32 %v1308, %v5762
    %5764 = vmatprep.mubr.bf16.mxu0 %v644
    %5765 = vmatmul.mubr.bf16.gmra.mxu0 %v643
    %v5766 = vpop.f32.mrf.mxu0
    %v5767 = vadd.f32 %v1304, %v5766
    %v5768 = vpop.f32.mrf.mxu0
    %v5769 = vadd.f32 %v1308, %v5768
    %v5770 = vpop.f32.mrf.mxu0
    %v5771 = vadd.f32 %v1304, %v5770
    %v5772 = vpop.f32.mrf.mxu0
    %v5773 = vadd.f32 %v1308, %v5772
    %5774 = vmatprep.mubr.bf16.mxu0 %v662
    %5775 = vmatmul.mubr.bf16.gmra.mxu0 %v661
    %v5776 = vpop.f32.mrf.mxu0
    %v5777 = vadd.f32 %v1304, %v5776
    %v5778 = vpop.f32.mrf.mxu0
    %v5779 = vadd.f32 %v1308, %v5778
    %v5780 = vpop.f32.mrf.mxu0
    %v5781 = vadd.f32 %v1304, %v5780
    %v5782 = vpop.f32.mrf.mxu0
    %v5783 = vadd.f32 %v1308, %v5782
    %5784 = vmatprep.mubr.bf16.mxu0 %v680
    %5785 = vmatmul.mubr.bf16.gmra.mxu0 %v679
    %v5786 = vpop.f32.mrf.mxu0
    %v5787 = vadd.f32 %v1304, %v5786
    %v5788 = vpop.f32.mrf.mxu0
    %v5789 = vadd.f32 %v1308, %v5788
    %v5790 = vpop.f32.mrf.mxu0
    %v5791 = vadd.f32 %v1304, %v5790
    %v5792 = vpop.f32.mrf.mxu0
    %v5793 = vadd.f32 %v1308, %v5792
    %5794 = vmatprep.mubr.bf16.mxu0 %v698
    %5795 = vmatmul.mubr.bf16.gmra.mxu0 %v697
    %v5796 = vpop.f32.mrf.mxu0
    %v5797 = vadd.f32 %v1304, %v5796
    %v5798 = vpop.f32.mrf.mxu0
    %v5799 = vadd.f32 %v1308, %v5798
    %v5800 = vpop.f32.mrf.mxu0
    %v5801 = vpop.f32.mrf.mxu0
    %5802 = vdwg.mxu0
    %5803 = vmatprep.subr.bf16.mxu0 %v3136
    %5804 = vmatpush1.bf16.msra.mxu0 %v3135
    %5805 = vmatprep.subr.bf16.mxu0 %v3132
    %5806 = vmatpush1.bf16.msra.mxu0 %v3131
    %5807 = vmatprep.subr.bf16.mxu0 %v3128
    %5808 = vmatpush1.bf16.msra.mxu0 %v3127
    %5809 = vmatprep.subr.bf16.mxu0 %v3124
    %5810 = vmatpush1.bf16.msra.mxu0 %v3123
    %5811 = vmatprep.subr.bf16.mxu0 %v3120
    %5812 = vmatpush1.bf16.msra.mxu0 %v3119
    %5813 = vmatprep.subr.bf16.mxu0 %v3116
    %5814 = vmatpush1.bf16.msra.mxu0 %v3115
    %5815 = vmatprep.subr.bf16.mxu0 %v3112
    %5816 = vmatpush1.bf16.msra.mxu0 %v3111
    %5817 = vmatprep.subr.bf16.mxu0 %v3108
    %5818 = vmatpush1.bf16.msra.mxu0 %v3107
    %5819 = vmatprep.subr.bf16.mxu0 %v3168
    %5820 = vmatpush2.bf16.msra.mxu0 %v3167
    %5821 = vmatprep.subr.bf16.mxu0 %v3164
    %5822 = vmatpush2.bf16.msra.mxu0 %v3163
    %5823 = vmatprep.subr.bf16.mxu0 %v3160
    %5824 = vmatpush2.bf16.msra.mxu0 %v3159
    %5825 = vmatprep.subr.bf16.mxu0 %v3156
    %5826 = vmatpush2.bf16.msra.mxu0 %v3155
    %5827 = vmatprep.subr.bf16.mxu0 %v3152
    %5828 = vmatpush2.bf16.msra.mxu0 %v3151
    %5829 = vmatprep.subr.bf16.mxu0 %v3148
    %5830 = vmatpush2.bf16.msra.mxu0 %v3147
    %5831 = vmatprep.subr.bf16.mxu0 %v3144
    %5832 = vmatpush2.bf16.msra.mxu0 %v3143
    %5833 = vmatprep.subr.bf16.mxu0 %v3140
    %5834 = vmatpush2.bf16.msra.mxu0 %v3139
    %5835 = vmatprep.mubr.bf16.mxu0 %v484
    %5836 = vmatmul.mubr.bf16.gmra.mxu0 %v483
    %v5837 = vpop.f32.mrf.mxu0
    %v5838 = vadd.f32 %v5677, %v5837
    %v5839 = vpop.f32.mrf.mxu0
    %v5840 = vadd.f32 %v5679, %v5839
    %v5841 = vpop.f32.mrf.mxu0
    %v5842 = vadd.f32 %v5681, %v5841
    %v5843 = vpop.f32.mrf.mxu0
    %v5844 = vadd.f32 %v5683, %v5843
    %5845 = vmatprep.mubr.bf16.mxu0 %v502
    %5846 = vmatmul.mubr.bf16.gmra.mxu0 %v501
    %v5847 = vpop.f32.mrf.mxu0
    %v5848 = vadd.f32 %v5687, %v5847
    %v5849 = vpop.f32.mrf.mxu0
    %v5850 = vadd.f32 %v5689, %v5849
    %v5851 = vpop.f32.mrf.mxu0
    %v5852 = vadd.f32 %v5691, %v5851
    %v5853 = vpop.f32.mrf.mxu0
    %v5854 = vadd.f32 %v5693, %v5853
    %5855 = vmatprep.mubr.bf16.mxu0 %v520
    %5856 = vmatmul.mubr.bf16.gmra.mxu0 %v519
    %v5857 = vpop.f32.mrf.mxu0
    %v5858 = vadd.f32 %v5697, %v5857
    %v5859 = vpop.f32.mrf.mxu0
    %v5860 = vadd.f32 %v5699, %v5859
    %v5861 = vpop.f32.mrf.mxu0
    %v5862 = vadd.f32 %v5701, %v5861
    %v5863 = vpop.f32.mrf.mxu0
    %v5864 = vadd.f32 %v5703, %v5863
    %5865 = vmatprep.mubr.bf16.mxu0 %v538
    %5866 = vmatmul.mubr.bf16.gmra.mxu0 %v537
    %v5867 = vpop.f32.mrf.mxu0
    %v5868 = vadd.f32 %v5707, %v5867
    %v5869 = vpop.f32.mrf.mxu0
    %v5870 = vadd.f32 %v5709, %v5869
    %v5871 = vpop.f32.mrf.mxu0
    %v5872 = vadd.f32 %v5711, %v5871
    %v5873 = vpop.f32.mrf.mxu0
    %v5874 = vadd.f32 %v5713, %v5873
    %5875 = vmatprep.mubr.bf16.mxu0 %v556
    %5876 = vmatmul.mubr.bf16.gmra.mxu0 %v555
    %v5877 = vpop.f32.mrf.mxu0
    %v5878 = vadd.f32 %v5717, %v5877
    %v5879 = vpop.f32.mrf.mxu0
    %v5880 = vadd.f32 %v5719, %v5879
    %v5881 = vpop.f32.mrf.mxu0
    %v5882 = vadd.f32 %v5721, %v5881
    %v5883 = vpop.f32.mrf.mxu0
    %v5884 = vadd.f32 %v5723, %v5883
    %5885 = vmatprep.mubr.bf16.mxu0 %v574
    %5886 = vmatmul.mubr.bf16.gmra.mxu0 %v573
    %v5887 = vpop.f32.mrf.mxu0
    %v5888 = vadd.f32 %v5727, %v5887
    %v5889 = vpop.f32.mrf.mxu0
    %v5890 = vadd.f32 %v5729, %v5889
    %v5891 = vpop.f32.mrf.mxu0
    %v5892 = vadd.f32 %v5731, %v5891
    %v5893 = vpop.f32.mrf.mxu0
    %v5894 = vadd.f32 %v5733, %v5893
    %5895 = vmatprep.mubr.bf16.mxu0 %v592
    %5896 = vmatmul.mubr.bf16.gmra.mxu0 %v591
    %v5897 = vpop.f32.mrf.mxu0
    %v5898 = vadd.f32 %v5737, %v5897
    %v5899 = vpop.f32.mrf.mxu0
    %v5900 = vadd.f32 %v5739, %v5899
    %v5901 = vpop.f32.mrf.mxu0
    %v5902 = vadd.f32 %v5741, %v5901
    %v5903 = vpop.f32.mrf.mxu0
    %v5904 = vadd.f32 %v5743, %v5903
    %5905 = vmatprep.mubr.bf16.mxu0 %v610
    %5906 = vmatmul.mubr.bf16.gmra.mxu0 %v609
    %v5907 = vpop.f32.mrf.mxu0
    %v5908 = vadd.f32 %v5747, %v5907
    %v5909 = vpop.f32.mrf.mxu0
    %v5910 = vadd.f32 %v5749, %v5909
    %v5911 = vpop.f32.mrf.mxu0
    %v5912 = vadd.f32 %v5751, %v5911
    %v5913 = vpop.f32.mrf.mxu0
    %v5914 = vadd.f32 %v5753, %v5913
    %5915 = vmatprep.mubr.bf16.mxu0 %v628
    %5916 = vmatmul.mubr.bf16.gmra.mxu0 %v627
    %v5917 = vpop.f32.mrf.mxu0
    %v5918 = vadd.f32 %v5757, %v5917
    %v5919 = vpop.f32.mrf.mxu0
    %v5920 = vadd.f32 %v5759, %v5919
    %v5921 = vpop.f32.mrf.mxu0
    %v5922 = vadd.f32 %v5761, %v5921
    %v5923 = vpop.f32.mrf.mxu0
    %v5924 = vadd.f32 %v5763, %v5923
    %5925 = vmatprep.mubr.bf16.mxu0 %v646
    %5926 = vmatmul.mubr.bf16.gmra.mxu0 %v645
    %v5927 = vpop.f32.mrf.mxu0
    %v5928 = vadd.f32 %v5767, %v5927
    %v5929 = vpop.f32.mrf.mxu0
    %v5930 = vadd.f32 %v5769, %v5929
    %v5931 = vpop.f32.mrf.mxu0
    %v5932 = vadd.f32 %v5771, %v5931
    %v5933 = vpop.f32.mrf.mxu0
    %v5934 = vadd.f32 %v5773, %v5933
    %5935 = vmatprep.mubr.bf16.mxu0 %v664
    %5936 = vmatmul.mubr.bf16.gmra.mxu0 %v663
    %v5937 = vpop.f32.mrf.mxu0
    %v5938 = vadd.f32 %v5777, %v5937
    %v5939 = vpop.f32.mrf.mxu0
    %v5940 = vadd.f32 %v5779, %v5939
    %v5941 = vpop.f32.mrf.mxu0
    %v5942 = vadd.f32 %v5781, %v5941
    %v5943 = vpop.f32.mrf.mxu0
    %v5944 = vadd.f32 %v5783, %v5943
    %5945 = vmatprep.mubr.bf16.mxu0 %v682
    %5946 = vmatmul.mubr.bf16.gmra.mxu0 %v681
    %v5947 = vpop.f32.mrf.mxu0
    %v5948 = vadd.f32 %v5787, %v5947
    %v5949 = vpop.f32.mrf.mxu0
    %v5950 = vadd.f32 %v5789, %v5949
    %v5951 = vpop.f32.mrf.mxu0
    %v5952 = vadd.f32 %v5791, %v5951
    %v5953 = vpop.f32.mrf.mxu0
    %v5954 = vadd.f32 %v5793, %v5953
    %5955 = vmatprep.mubr.bf16.mxu0 %v700
    %5956 = vmatmul.mubr.bf16.gmra.mxu0 %v699
    %v5957 = vpop.f32.mrf.mxu0
    %v5958 = vadd.f32 %v5797, %v5957
    %v5959 = vpop.f32.mrf.mxu0
    %v5960 = vadd.f32 %v5799, %v5959
    %v5961 = vpop.f32.mrf.mxu0
    %v5962 = vpop.f32.mrf.mxu0
    %5963 = vdwg.mxu0
    %5964 = vmatprep.subr.bf16.mxu0 %v3200
    %5965 = vmatpush1.bf16.msra.mxu0 %v3199
    %5966 = vmatprep.subr.bf16.mxu0 %v3196
    %5967 = vmatpush1.bf16.msra.mxu0 %v3195
    %5968 = vmatprep.subr.bf16.mxu0 %v3192
    %5969 = vmatpush1.bf16.msra.mxu0 %v3191
    %5970 = vmatprep.subr.bf16.mxu0 %v3188
    %5971 = vmatpush1.bf16.msra.mxu0 %v3187
    %5972 = vmatprep.subr.bf16.mxu0 %v3184
    %5973 = vmatpush1.bf16.msra.mxu0 %v3183
    %5974 = vmatprep.subr.bf16.mxu0 %v3180
    %5975 = vmatpush1.bf16.msra.mxu0 %v3179
    %5976 = vmatprep.subr.bf16.mxu0 %v3176
    %5977 = vmatpush1.bf16.msra.mxu0 %v3175
    %5978 = vmatprep.subr.bf16.mxu0 %v3172
    %5979 = vmatpush1.bf16.msra.mxu0 %v3171
    %5980 = vmatprep.subr.bf16.mxu0 %v3232
    %5981 = vmatpush2.bf16.msra.mxu0 %v3231
    %5982 = vmatprep.subr.bf16.mxu0 %v3228
    %5983 = vmatpush2.bf16.msra.mxu0 %v3227
    %5984 = vmatprep.subr.bf16.mxu0 %v3224
    %5985 = vmatpush2.bf16.msra.mxu0 %v3223
    %5986 = vmatprep.subr.bf16.mxu0 %v3220
    %5987 = vmatpush2.bf16.msra.mxu0 %v3219
    %5988 = vmatprep.subr.bf16.mxu0 %v3216
    %5989 = vmatpush2.bf16.msra.mxu0 %v3215
    %5990 = vmatprep.subr.bf16.mxu0 %v3212
    %5991 = vmatpush2.bf16.msra.mxu0 %v3211
    %5992 = vmatprep.subr.bf16.mxu0 %v3208
    %5993 = vmatpush2.bf16.msra.mxu0 %v3207
    %5994 = vmatprep.subr.bf16.mxu0 %v3204
    %5995 = vmatpush2.bf16.msra.mxu0 %v3203
    %5996 = vmatprep.mubr.bf16.mxu0 %v486
    %5997 = vmatmul.mubr.bf16.gmra.mxu0 %v485
    %v5998 = vpop.f32.mrf.mxu0
    %v5999 = vadd.f32 %v5838, %v5998
    %v6000 = vpop.f32.mrf.mxu0
    %v6001 = vadd.f32 %v5840, %v6000
    %v6002 = vpop.f32.mrf.mxu0
    %v6003 = vadd.f32 %v5842, %v6002
    %v6004 = vpop.f32.mrf.mxu0
    %v6005 = vadd.f32 %v5844, %v6004
    %6006 = vmatprep.mubr.bf16.mxu0 %v504
    %6007 = vmatmul.mubr.bf16.gmra.mxu0 %v503
    %v6008 = vpop.f32.mrf.mxu0
    %v6009 = vadd.f32 %v5848, %v6008
    %v6010 = vpop.f32.mrf.mxu0
    %v6011 = vadd.f32 %v5850, %v6010
    %v6012 = vpop.f32.mrf.mxu0
    %v6013 = vadd.f32 %v5852, %v6012
    %v6014 = vpop.f32.mrf.mxu0
    %v6015 = vadd.f32 %v5854, %v6014
    %6016 = vmatprep.mubr.bf16.mxu0 %v522
    %6017 = vmatmul.mubr.bf16.gmra.mxu0 %v521
    %v6018 = vpop.f32.mrf.mxu0
    %v6019 = vadd.f32 %v5858, %v6018
    %v6020 = vpop.f32.mrf.mxu0
    %v6021 = vadd.f32 %v5860, %v6020
    %v6022 = vpop.f32.mrf.mxu0
    %v6023 = vadd.f32 %v5862, %v6022
    %v6024 = vpop.f32.mrf.mxu0
    %v6025 = vadd.f32 %v5864, %v6024
    %6026 = vmatprep.mubr.bf16.mxu0 %v540
    %6027 = vmatmul.mubr.bf16.gmra.mxu0 %v539
    %v6028 = vpop.f32.mrf.mxu0
    %v6029 = vadd.f32 %v5868, %v6028
    %v6030 = vpop.f32.mrf.mxu0
    %v6031 = vadd.f32 %v5870, %v6030
    %v6032 = vpop.f32.mrf.mxu0
    %v6033 = vadd.f32 %v5872, %v6032
    %v6034 = vpop.f32.mrf.mxu0
    %v6035 = vadd.f32 %v5874, %v6034
    %6036 = vmatprep.mubr.bf16.mxu0 %v558
    %6037 = vmatmul.mubr.bf16.gmra.mxu0 %v557
    %v6038 = vpop.f32.mrf.mxu0
    %v6039 = vadd.f32 %v5878, %v6038
    %v6040 = vpop.f32.mrf.mxu0
    %v6041 = vadd.f32 %v5880, %v6040
    %v6042 = vpop.f32.mrf.mxu0
    %v6043 = vadd.f32 %v5882, %v6042
    %v6044 = vpop.f32.mrf.mxu0
    %v6045 = vadd.f32 %v5884, %v6044
    %6046 = vmatprep.mubr.bf16.mxu0 %v576
    %6047 = vmatmul.mubr.bf16.gmra.mxu0 %v575
    %v6048 = vpop.f32.mrf.mxu0
    %v6049 = vadd.f32 %v5888, %v6048
    %v6050 = vpop.f32.mrf.mxu0
    %v6051 = vadd.f32 %v5890, %v6050
    %v6052 = vpop.f32.mrf.mxu0
    %v6053 = vadd.f32 %v5892, %v6052
    %v6054 = vpop.f32.mrf.mxu0
    %v6055 = vadd.f32 %v5894, %v6054
    %6056 = vmatprep.mubr.bf16.mxu0 %v594
    %6057 = vmatmul.mubr.bf16.gmra.mxu0 %v593
    %v6058 = vpop.f32.mrf.mxu0
    %v6059 = vadd.f32 %v5898, %v6058
    %v6060 = vpop.f32.mrf.mxu0
    %v6061 = vadd.f32 %v5900, %v6060
    %v6062 = vpop.f32.mrf.mxu0
    %v6063 = vadd.f32 %v5902, %v6062
    %v6064 = vpop.f32.mrf.mxu0
    %v6065 = vadd.f32 %v5904, %v6064
    %6066 = vmatprep.mubr.bf16.mxu0 %v612
    %6067 = vmatmul.mubr.bf16.gmra.mxu0 %v611
    %v6068 = vpop.f32.mrf.mxu0
    %v6069 = vadd.f32 %v5908, %v6068
    %v6070 = vpop.f32.mrf.mxu0
    %v6071 = vadd.f32 %v5910, %v6070
    %v6072 = vpop.f32.mrf.mxu0
    %v6073 = vadd.f32 %v5912, %v6072
    %v6074 = vpop.f32.mrf.mxu0
    %v6075 = vadd.f32 %v5914, %v6074
    %6076 = vmatprep.mubr.bf16.mxu0 %v630
    %6077 = vmatmul.mubr.bf16.gmra.mxu0 %v629
    %v6078 = vpop.f32.mrf.mxu0
    %v6079 = vadd.f32 %v5918, %v6078
    %v6080 = vpop.f32.mrf.mxu0
    %v6081 = vadd.f32 %v5920, %v6080
    %v6082 = vpop.f32.mrf.mxu0
    %v6083 = vadd.f32 %v5922, %v6082
    %v6084 = vpop.f32.mrf.mxu0
    %v6085 = vadd.f32 %v5924, %v6084
    %6086 = vmatprep.mubr.bf16.mxu0 %v648
    %6087 = vmatmul.mubr.bf16.gmra.mxu0 %v647
    %v6088 = vpop.f32.mrf.mxu0
    %v6089 = vadd.f32 %v5928, %v6088
    %v6090 = vpop.f32.mrf.mxu0
    %v6091 = vadd.f32 %v5930, %v6090
    %v6092 = vpop.f32.mrf.mxu0
    %v6093 = vadd.f32 %v5932, %v6092
    %v6094 = vpop.f32.mrf.mxu0
    %v6095 = vadd.f32 %v5934, %v6094
    %6096 = vmatprep.mubr.bf16.mxu0 %v666
    %6097 = vmatmul.mubr.bf16.gmra.mxu0 %v665
    %v6098 = vpop.f32.mrf.mxu0
    %v6099 = vadd.f32 %v5938, %v6098
    %v6100 = vpop.f32.mrf.mxu0
    %v6101 = vadd.f32 %v5940, %v6100
    %v6102 = vpop.f32.mrf.mxu0
    %v6103 = vadd.f32 %v5942, %v6102
    %v6104 = vpop.f32.mrf.mxu0
    %v6105 = vadd.f32 %v5944, %v6104
    %6106 = vmatprep.mubr.bf16.mxu0 %v684
    %6107 = vmatmul.mubr.bf16.gmra.mxu0 %v683
    %v6108 = vpop.f32.mrf.mxu0
    %v6109 = vadd.f32 %v5948, %v6108
    %v6110 = vpop.f32.mrf.mxu0
    %v6111 = vadd.f32 %v5950, %v6110
    %v6112 = vpop.f32.mrf.mxu0
    %v6113 = vadd.f32 %v5952, %v6112
    %v6114 = vpop.f32.mrf.mxu0
    %v6115 = vadd.f32 %v5954, %v6114
    %6116 = vmatprep.mubr.bf16.mxu0 %v702
    %6117 = vmatmul.mubr.bf16.gmra.mxu0 %v701
    %v6118 = vpop.f32.mrf.mxu0
    %v6119 = vadd.f32 %v5958, %v6118
    %v6120 = vpop.f32.mrf.mxu0
    %v6121 = vadd.f32 %v5960, %v6120
    %v6122 = vpop.f32.mrf.mxu0
    %v6123 = vpop.f32.mrf.mxu0
    %6124 = vdwg.mxu0
    %6125 = vmatprep.subr.bf16.mxu0 %v3264
    %6126 = vmatpush1.bf16.msra.mxu0 %v3263
    %6127 = vmatprep.subr.bf16.mxu0 %v3260
    %6128 = vmatpush1.bf16.msra.mxu0 %v3259
    %6129 = vmatprep.subr.bf16.mxu0 %v3256
    %6130 = vmatpush1.bf16.msra.mxu0 %v3255
    %6131 = vmatprep.subr.bf16.mxu0 %v3252
    %6132 = vmatpush1.bf16.msra.mxu0 %v3251
    %6133 = vmatprep.subr.bf16.mxu0 %v3248
    %6134 = vmatpush1.bf16.msra.mxu0 %v3247
    %6135 = vmatprep.subr.bf16.mxu0 %v3244
    %6136 = vmatpush1.bf16.msra.mxu0 %v3243
    %6137 = vmatprep.subr.bf16.mxu0 %v3240
    %6138 = vmatpush1.bf16.msra.mxu0 %v3239
    %6139 = vmatprep.subr.bf16.mxu0 %v3236
    %6140 = vmatpush1.bf16.msra.mxu0 %v3235
    %6141 = vmatprep.subr.bf16.mxu0 %v3296
    %6142 = vmatpush2.bf16.msra.mxu0 %v3295
    %6143 = vmatprep.subr.bf16.mxu0 %v3292
    %6144 = vmatpush2.bf16.msra.mxu0 %v3291
    %6145 = vmatprep.subr.bf16.mxu0 %v3288
    %6146 = vmatpush2.bf16.msra.mxu0 %v3287
    %6147 = vmatprep.subr.bf16.mxu0 %v3284
    %6148 = vmatpush2.bf16.msra.mxu0 %v3283
    %6149 = vmatprep.subr.bf16.mxu0 %v3280
    %6150 = vmatpush2.bf16.msra.mxu0 %v3279
    %6151 = vmatprep.subr.bf16.mxu0 %v3276
    %6152 = vmatpush2.bf16.msra.mxu0 %v3275
    %6153 = vmatprep.subr.bf16.mxu0 %v3272
    %6154 = vmatpush2.bf16.msra.mxu0 %v3271
    %6155 = vmatprep.subr.bf16.mxu0 %v3268
    %6156 = vmatpush2.bf16.msra.mxu0 %v3267
    %6157 = vmatprep.mubr.bf16.mxu0 %v488
    %6158 = vmatmul.mubr.bf16.gmra.mxu0 %v487
    %v6159 = vpop.f32.mrf.mxu0
    %v6160 = vadd.f32 %v5999, %v6159
    %v6161 = vpop.f32.mrf.mxu0
    %v6162 = vadd.f32 %v6001, %v6161
    %v6163 = vpop.f32.mrf.mxu0
    %v6164 = vadd.f32 %v6003, %v6163
    %v6165 = vpop.f32.mrf.mxu0
    %v6166 = vadd.f32 %v6005, %v6165
    %6167 = vmatprep.mubr.bf16.mxu0 %v506
    %6168 = vmatmul.mubr.bf16.gmra.mxu0 %v505
    %v6169 = vpop.f32.mrf.mxu0
    %v6170 = vadd.f32 %v6009, %v6169
    %v6171 = vpop.f32.mrf.mxu0
    %v6172 = vadd.f32 %v6011, %v6171
    %v6173 = vpop.f32.mrf.mxu0
    %v6174 = vadd.f32 %v6013, %v6173
    %v6175 = vpop.f32.mrf.mxu0
    %v6176 = vadd.f32 %v6015, %v6175
    %6177 = vmatprep.mubr.bf16.mxu0 %v524
    %6178 = vmatmul.mubr.bf16.gmra.mxu0 %v523
    %v6179 = vpop.f32.mrf.mxu0
    %v6180 = vadd.f32 %v6019, %v6179
    %v6181 = vpop.f32.mrf.mxu0
    %v6182 = vadd.f32 %v6021, %v6181
    %v6183 = vpop.f32.mrf.mxu0
    %v6184 = vadd.f32 %v6023, %v6183
    %v6185 = vpop.f32.mrf.mxu0
    %v6186 = vadd.f32 %v6025, %v6185
    %6187 = vmatprep.mubr.bf16.mxu0 %v542
    %6188 = vmatmul.mubr.bf16.gmra.mxu0 %v541
    %v6189 = vpop.f32.mrf.mxu0
    %v6190 = vadd.f32 %v6029, %v6189
    %v6191 = vpop.f32.mrf.mxu0
    %v6192 = vadd.f32 %v6031, %v6191
    %v6193 = vpop.f32.mrf.mxu0
    %v6194 = vadd.f32 %v6033, %v6193
    %v6195 = vpop.f32.mrf.mxu0
    %v6196 = vadd.f32 %v6035, %v6195
    %6197 = vmatprep.mubr.bf16.mxu0 %v560
    %6198 = vmatmul.mubr.bf16.gmra.mxu0 %v559
    %v6199 = vpop.f32.mrf.mxu0
    %v6200 = vadd.f32 %v6039, %v6199
    %v6201 = vpop.f32.mrf.mxu0
    %v6202 = vadd.f32 %v6041, %v6201
    %v6203 = vpop.f32.mrf.mxu0
    %v6204 = vadd.f32 %v6043, %v6203
    %v6205 = vpop.f32.mrf.mxu0
    %v6206 = vadd.f32 %v6045, %v6205
    %6207 = vmatprep.mubr.bf16.mxu0 %v578
    %6208 = vmatmul.mubr.bf16.gmra.mxu0 %v577
    %v6209 = vpop.f32.mrf.mxu0
    %v6210 = vadd.f32 %v6049, %v6209
    %v6211 = vpop.f32.mrf.mxu0
    %v6212 = vadd.f32 %v6051, %v6211
    %v6213 = vpop.f32.mrf.mxu0
    %v6214 = vadd.f32 %v6053, %v6213
    %v6215 = vpop.f32.mrf.mxu0
    %v6216 = vadd.f32 %v6055, %v6215
    %6217 = vmatprep.mubr.bf16.mxu0 %v596
    %6218 = vmatmul.mubr.bf16.gmra.mxu0 %v595
    %v6219 = vpop.f32.mrf.mxu0
    %v6220 = vadd.f32 %v6059, %v6219
    %v6221 = vpop.f32.mrf.mxu0
    %v6222 = vadd.f32 %v6061, %v6221
    %v6223 = vpop.f32.mrf.mxu0
    %v6224 = vadd.f32 %v6063, %v6223
    %v6225 = vpop.f32.mrf.mxu0
    %v6226 = vadd.f32 %v6065, %v6225
    %6227 = vmatprep.mubr.bf16.mxu0 %v614
    %6228 = vmatmul.mubr.bf16.gmra.mxu0 %v613
    %v6229 = vpop.f32.mrf.mxu0
    %v6230 = vadd.f32 %v6069, %v6229
    %v6231 = vpop.f32.mrf.mxu0
    %v6232 = vadd.f32 %v6071, %v6231
    %v6233 = vpop.f32.mrf.mxu0
    %v6234 = vadd.f32 %v6073, %v6233
    %v6235 = vpop.f32.mrf.mxu0
    %v6236 = vadd.f32 %v6075, %v6235
    %6237 = vmatprep.mubr.bf16.mxu0 %v632
    %6238 = vmatmul.mubr.bf16.gmra.mxu0 %v631
    %v6239 = vpop.f32.mrf.mxu0
    %v6240 = vadd.f32 %v6079, %v6239
    %v6241 = vpop.f32.mrf.mxu0
    %v6242 = vadd.f32 %v6081, %v6241
    %v6243 = vpop.f32.mrf.mxu0
    %v6244 = vadd.f32 %v6083, %v6243
    %v6245 = vpop.f32.mrf.mxu0
    %v6246 = vadd.f32 %v6085, %v6245
    %6247 = vmatprep.mubr.bf16.mxu0 %v650
    %6248 = vmatmul.mubr.bf16.gmra.mxu0 %v649
    %v6249 = vpop.f32.mrf.mxu0
    %v6250 = vadd.f32 %v6089, %v6249
    %v6251 = vpop.f32.mrf.mxu0
    %v6252 = vadd.f32 %v6091, %v6251
    %v6253 = vpop.f32.mrf.mxu0
    %v6254 = vadd.f32 %v6093, %v6253
    %v6255 = vpop.f32.mrf.mxu0
    %v6256 = vadd.f32 %v6095, %v6255
    %6257 = vmatprep.mubr.bf16.mxu0 %v668
    %6258 = vmatmul.mubr.bf16.gmra.mxu0 %v667
    %v6259 = vpop.f32.mrf.mxu0
    %v6260 = vadd.f32 %v6099, %v6259
    %v6261 = vpop.f32.mrf.mxu0
    %v6262 = vadd.f32 %v6101, %v6261
    %v6263 = vpop.f32.mrf.mxu0
    %v6264 = vadd.f32 %v6103, %v6263
    %v6265 = vpop.f32.mrf.mxu0
    %v6266 = vadd.f32 %v6105, %v6265
    %6267 = vmatprep.mubr.bf16.mxu0 %v686
    %6268 = vmatmul.mubr.bf16.gmra.mxu0 %v685
    %v6269 = vpop.f32.mrf.mxu0
    %v6270 = vadd.f32 %v6109, %v6269
    %v6271 = vpop.f32.mrf.mxu0
    %v6272 = vadd.f32 %v6111, %v6271
    %v6273 = vpop.f32.mrf.mxu0
    %v6274 = vadd.f32 %v6113, %v6273
    %v6275 = vpop.f32.mrf.mxu0
    %v6276 = vadd.f32 %v6115, %v6275
    %6277 = vmatprep.mubr.bf16.mxu0 %v704
    %6278 = vmatmul.mubr.bf16.gmra.mxu0 %v703
    %v6279 = vpop.f32.mrf.mxu0
    %v6280 = vadd.f32 %v6119, %v6279
    %v6281 = vpop.f32.mrf.mxu0
    %v6282 = vadd.f32 %v6121, %v6281
    %v6283 = vpop.f32.mrf.mxu0
    %v6284 = vpop.f32.mrf.mxu0
    %6285 = vdwg.mxu0
    %6286 = vmatprep.subr.bf16.mxu0 %v3328
    %6287 = vmatpush1.bf16.msra.mxu0 %v3327
    %6288 = vmatprep.subr.bf16.mxu0 %v3324
    %6289 = vmatpush1.bf16.msra.mxu0 %v3323
    %6290 = vmatprep.subr.bf16.mxu0 %v3320
    %6291 = vmatpush1.bf16.msra.mxu0 %v3319
    %6292 = vmatprep.subr.bf16.mxu0 %v3316
    %6293 = vmatpush1.bf16.msra.mxu0 %v3315
    %6294 = vmatprep.subr.bf16.mxu0 %v3312
    %6295 = vmatpush1.bf16.msra.mxu0 %v3311
    %6296 = vmatprep.subr.bf16.mxu0 %v3308
    %6297 = vmatpush1.bf16.msra.mxu0 %v3307
    %6298 = vmatprep.subr.bf16.mxu0 %v3304
    %6299 = vmatpush1.bf16.msra.mxu0 %v3303
    %6300 = vmatprep.subr.bf16.mxu0 %v3300
    %6301 = vmatpush1.bf16.msra.mxu0 %v3299
    %6302 = vmatprep.subr.bf16.mxu0 %v3360
    %6303 = vmatpush2.bf16.msra.mxu0 %v3359
    %6304 = vmatprep.subr.bf16.mxu0 %v3356
    %6305 = vmatpush2.bf16.msra.mxu0 %v3355
    %6306 = vmatprep.subr.bf16.mxu0 %v3352
    %6307 = vmatpush2.bf16.msra.mxu0 %v3351
    %6308 = vmatprep.subr.bf16.mxu0 %v3348
    %6309 = vmatpush2.bf16.msra.mxu0 %v3347
    %6310 = vmatprep.subr.bf16.mxu0 %v3344
    %6311 = vmatpush2.bf16.msra.mxu0 %v3343
    %6312 = vmatprep.subr.bf16.mxu0 %v3340
    %6313 = vmatpush2.bf16.msra.mxu0 %v3339
    %6314 = vmatprep.subr.bf16.mxu0 %v3336
    %6315 = vmatpush2.bf16.msra.mxu0 %v3335
    %6316 = vmatprep.subr.bf16.mxu0 %v3332
    %6317 = vmatpush2.bf16.msra.mxu0 %v3331
    %6318 = vmatprep.mubr.bf16.mxu0 %v490
    %6319 = vmatmul.mubr.bf16.gmra.mxu0 %v489
    %v6320 = vpop.f32.mrf.mxu0
    %v6321 = vadd.f32 %v6160, %v6320
    %v6322 = vpop.f32.mrf.mxu0
    %v6323 = vadd.f32 %v6162, %v6322
    %v6324 = vpop.f32.mrf.mxu0
    %v6325 = vadd.f32 %v6164, %v6324
    %v6326 = vpop.f32.mrf.mxu0
    %v6327 = vadd.f32 %v6166, %v6326
    %6328 = vmatprep.mubr.bf16.mxu0 %v508
    %6329 = vmatmul.mubr.bf16.gmra.mxu0 %v507
    %v6330 = vpop.f32.mrf.mxu0
    %v6331 = vadd.f32 %v6170, %v6330
    %v6332 = vpop.f32.mrf.mxu0
    %v6333 = vadd.f32 %v6172, %v6332
    %v6334 = vpop.f32.mrf.mxu0
    %v6335 = vadd.f32 %v6174, %v6334
    %v6336 = vpop.f32.mrf.mxu0
    %v6337 = vadd.f32 %v6176, %v6336
    %6338 = vmatprep.mubr.bf16.mxu0 %v526
    %6339 = vmatmul.mubr.bf16.gmra.mxu0 %v525
    %v6340 = vpop.f32.mrf.mxu0
    %v6341 = vadd.f32 %v6180, %v6340
    %v6342 = vpop.f32.mrf.mxu0
    %v6343 = vadd.f32 %v6182, %v6342
    %v6344 = vpop.f32.mrf.mxu0
    %v6345 = vadd.f32 %v6184, %v6344
    %v6346 = vpop.f32.mrf.mxu0
    %v6347 = vadd.f32 %v6186, %v6346
    %6348 = vmatprep.mubr.bf16.mxu0 %v544
    %6349 = vmatmul.mubr.bf16.gmra.mxu0 %v543
    %v6350 = vpop.f32.mrf.mxu0
    %v6351 = vadd.f32 %v6190, %v6350
    %v6352 = vpop.f32.mrf.mxu0
    %v6353 = vadd.f32 %v6192, %v6352
    %v6354 = vpop.f32.mrf.mxu0
    %v6355 = vadd.f32 %v6194, %v6354
    %v6356 = vpop.f32.mrf.mxu0
    %v6357 = vadd.f32 %v6196, %v6356
    %6358 = vmatprep.mubr.bf16.mxu0 %v562
    %6359 = vmatmul.mubr.bf16.gmra.mxu0 %v561
    %v6360 = vpop.f32.mrf.mxu0
    %v6361 = vadd.f32 %v6200, %v6360
    %v6362 = vpop.f32.mrf.mxu0
    %v6363 = vadd.f32 %v6202, %v6362
    %v6364 = vpop.f32.mrf.mxu0
    %v6365 = vadd.f32 %v6204, %v6364
    %v6366 = vpop.f32.mrf.mxu0
    %v6367 = vadd.f32 %v6206, %v6366
    %6368 = vmatprep.mubr.bf16.mxu0 %v580
    %6369 = vmatmul.mubr.bf16.gmra.mxu0 %v579
    %v6370 = vpop.f32.mrf.mxu0
    %v6371 = vadd.f32 %v6210, %v6370
    %v6372 = vpop.f32.mrf.mxu0
    %v6373 = vadd.f32 %v6212, %v6372
    %v6374 = vpop.f32.mrf.mxu0
    %v6375 = vadd.f32 %v6214, %v6374
    %v6376 = vpop.f32.mrf.mxu0
    %v6377 = vadd.f32 %v6216, %v6376
    %6378 = vmatprep.mubr.bf16.mxu0 %v598
    %6379 = vmatmul.mubr.bf16.gmra.mxu0 %v597
    %v6380 = vpop.f32.mrf.mxu0
    %v6381 = vadd.f32 %v6220, %v6380
    %v6382 = vpop.f32.mrf.mxu0
    %v6383 = vadd.f32 %v6222, %v6382
    %v6384 = vpop.f32.mrf.mxu0
    %v6385 = vadd.f32 %v6224, %v6384
    %v6386 = vpop.f32.mrf.mxu0
    %v6387 = vadd.f32 %v6226, %v6386
    %6388 = vmatprep.mubr.bf16.mxu0 %v616
    %6389 = vmatmul.mubr.bf16.gmra.mxu0 %v615
    %v6390 = vpop.f32.mrf.mxu0
    %v6391 = vadd.f32 %v6230, %v6390
    %v6392 = vpop.f32.mrf.mxu0
    %v6393 = vadd.f32 %v6232, %v6392
    %v6394 = vpop.f32.mrf.mxu0
    %v6395 = vadd.f32 %v6234, %v6394
    %v6396 = vpop.f32.mrf.mxu0
    %v6397 = vadd.f32 %v6236, %v6396
    %6398 = vmatprep.mubr.bf16.mxu0 %v634
    %6399 = vmatmul.mubr.bf16.gmra.mxu0 %v633
    %v6400 = vpop.f32.mrf.mxu0
    %v6401 = vadd.f32 %v6240, %v6400
    %v6402 = vpop.f32.mrf.mxu0
    %v6403 = vadd.f32 %v6242, %v6402
    %v6404 = vpop.f32.mrf.mxu0
    %v6405 = vadd.f32 %v6244, %v6404
    %v6406 = vpop.f32.mrf.mxu0
    %v6407 = vadd.f32 %v6246, %v6406
    %6408 = vmatprep.mubr.bf16.mxu0 %v652
    %6409 = vmatmul.mubr.bf16.gmra.mxu0 %v651
    %v6410 = vpop.f32.mrf.mxu0
    %v6411 = vadd.f32 %v6250, %v6410
    %v6412 = vpop.f32.mrf.mxu0
    %v6413 = vadd.f32 %v6252, %v6412
    %v6414 = vpop.f32.mrf.mxu0
    %v6415 = vadd.f32 %v6254, %v6414
    %v6416 = vpop.f32.mrf.mxu0
    %v6417 = vadd.f32 %v6256, %v6416
    %6418 = vmatprep.mubr.bf16.mxu0 %v670
    %6419 = vmatmul.mubr.bf16.gmra.mxu0 %v669
    %v6420 = vpop.f32.mrf.mxu0
    %v6421 = vadd.f32 %v6260, %v6420
    %v6422 = vpop.f32.mrf.mxu0
    %v6423 = vadd.f32 %v6262, %v6422
    %v6424 = vpop.f32.mrf.mxu0
    %v6425 = vadd.f32 %v6264, %v6424
    %v6426 = vpop.f32.mrf.mxu0
    %v6427 = vadd.f32 %v6266, %v6426
    %6428 = vmatprep.mubr.bf16.mxu0 %v688
    %6429 = vmatmul.mubr.bf16.gmra.mxu0 %v687
    %v6430 = vpop.f32.mrf.mxu0
    %v6431 = vadd.f32 %v6270, %v6430
    %v6432 = vpop.f32.mrf.mxu0
    %v6433 = vadd.f32 %v6272, %v6432
    %v6434 = vpop.f32.mrf.mxu0
    %v6435 = vadd.f32 %v6274, %v6434
    %v6436 = vpop.f32.mrf.mxu0
    %v6437 = vadd.f32 %v6276, %v6436
    %6438 = vmatprep.mubr.bf16.mxu0 %v706
    %6439 = vmatmul.mubr.bf16.gmra.mxu0 %v705
    %v6440 = vpop.f32.mrf.mxu0
    %v6441 = vadd.f32 %v6280, %v6440
    %v6442 = vpop.f32.mrf.mxu0
    %v6443 = vadd.f32 %v6282, %v6442
    %v6444 = vpop.f32.mrf.mxu0
    %v6445 = vpop.f32.mrf.mxu0
    %6446 = vdwg.mxu0
    %6447 = vmatprep.subr.bf16.mxu0 %v3392
    %6448 = vmatpush1.bf16.msra.mxu0 %v3391
    %6449 = vmatprep.subr.bf16.mxu0 %v3388
    %6450 = vmatpush1.bf16.msra.mxu0 %v3387
    %6451 = vmatprep.subr.bf16.mxu0 %v3384
    %6452 = vmatpush1.bf16.msra.mxu0 %v3383
    %6453 = vmatprep.subr.bf16.mxu0 %v3380
    %6454 = vmatpush1.bf16.msra.mxu0 %v3379
    %6455 = vmatprep.subr.bf16.mxu0 %v3376
    %6456 = vmatpush1.bf16.msra.mxu0 %v3375
    %6457 = vmatprep.subr.bf16.mxu0 %v3372
    %6458 = vmatpush1.bf16.msra.mxu0 %v3371
    %6459 = vmatprep.subr.bf16.mxu0 %v3368
    %6460 = vmatpush1.bf16.msra.mxu0 %v3367
    %6461 = vmatprep.subr.bf16.mxu0 %v3364
    %6462 = vmatpush1.bf16.msra.mxu0 %v3363
    %6463 = vmatprep.subr.bf16.mxu0 %v3424
    %6464 = vmatpush2.bf16.msra.mxu0 %v3423
    %6465 = vmatprep.subr.bf16.mxu0 %v3420
    %6466 = vmatpush2.bf16.msra.mxu0 %v3419
    %6467 = vmatprep.subr.bf16.mxu0 %v3416
    %6468 = vmatpush2.bf16.msra.mxu0 %v3415
    %6469 = vmatprep.subr.bf16.mxu0 %v3412
    %6470 = vmatpush2.bf16.msra.mxu0 %v3411
    %6471 = vmatprep.subr.bf16.mxu0 %v3408
    %6472 = vmatpush2.bf16.msra.mxu0 %v3407
    %6473 = vmatprep.subr.bf16.mxu0 %v3404
    %6474 = vmatpush2.bf16.msra.mxu0 %v3403
    %6475 = vmatprep.subr.bf16.mxu0 %v3400
    %6476 = vmatpush2.bf16.msra.mxu0 %v3399
    %6477 = vmatprep.subr.bf16.mxu0 %v3396
    %6478 = vmatpush2.bf16.msra.mxu0 %v3395
    %6479 = vmatprep.mubr.bf16.mxu0 %v492
    %6480 = vmatmul.mubr.bf16.gmra.mxu0 %v491
    %v6481 = vpop.f32.mrf.mxu0
    %v6482 = vadd.f32 %v6321, %v6481
    %v6483 = vpop.f32.mrf.mxu0
    %v6484 = vadd.f32 %v6323, %v6483
    %v6485 = vpop.f32.mrf.mxu0
    %v6486 = vadd.f32 %v6325, %v6485
    %v6487 = vpop.f32.mrf.mxu0
    %v6488 = vadd.f32 %v6327, %v6487
    %6489 = vmatprep.mubr.bf16.mxu0 %v510
    %6490 = vmatmul.mubr.bf16.gmra.mxu0 %v509
    %v6491 = vpop.f32.mrf.mxu0
    %v6492 = vadd.f32 %v6331, %v6491
    %v6493 = vpop.f32.mrf.mxu0
    %v6494 = vadd.f32 %v6333, %v6493
    %v6495 = vpop.f32.mrf.mxu0
    %v6496 = vadd.f32 %v6335, %v6495
    %v6497 = vpop.f32.mrf.mxu0
    %v6498 = vadd.f32 %v6337, %v6497
    %6499 = vmatprep.mubr.bf16.mxu0 %v528
    %6500 = vmatmul.mubr.bf16.gmra.mxu0 %v527
    %v6501 = vpop.f32.mrf.mxu0
    %v6502 = vadd.f32 %v6341, %v6501
    %v6503 = vpop.f32.mrf.mxu0
    %v6504 = vadd.f32 %v6343, %v6503
    %v6505 = vpop.f32.mrf.mxu0
    %v6506 = vadd.f32 %v6345, %v6505
    %v6507 = vpop.f32.mrf.mxu0
    %v6508 = vadd.f32 %v6347, %v6507
    %6509 = vmatprep.mubr.bf16.mxu0 %v546
    %6510 = vmatmul.mubr.bf16.gmra.mxu0 %v545
    %v6511 = vpop.f32.mrf.mxu0
    %v6512 = vadd.f32 %v6351, %v6511
    %v6513 = vpop.f32.mrf.mxu0
    %v6514 = vadd.f32 %v6353, %v6513
    %v6515 = vpop.f32.mrf.mxu0
    %v6516 = vadd.f32 %v6355, %v6515
    %v6517 = vpop.f32.mrf.mxu0
    %v6518 = vadd.f32 %v6357, %v6517
    %6519 = vmatprep.mubr.bf16.mxu0 %v564
    %6520 = vmatmul.mubr.bf16.gmra.mxu0 %v563
    %v6521 = vpop.f32.mrf.mxu0
    %v6522 = vadd.f32 %v6361, %v6521
    %v6523 = vpop.f32.mrf.mxu0
    %v6524 = vadd.f32 %v6363, %v6523
    %v6525 = vpop.f32.mrf.mxu0
    %v6526 = vadd.f32 %v6365, %v6525
    %v6527 = vpop.f32.mrf.mxu0
    %v6528 = vadd.f32 %v6367, %v6527
    %6529 = vmatprep.mubr.bf16.mxu0 %v582
    %6530 = vmatmul.mubr.bf16.gmra.mxu0 %v581
    %v6531 = vpop.f32.mrf.mxu0
    %v6532 = vadd.f32 %v6371, %v6531
    %v6533 = vpop.f32.mrf.mxu0
    %v6534 = vadd.f32 %v6373, %v6533
    %v6535 = vpop.f32.mrf.mxu0
    %v6536 = vadd.f32 %v6375, %v6535
    %v6537 = vpop.f32.mrf.mxu0
    %v6538 = vadd.f32 %v6377, %v6537
    %6539 = vmatprep.mubr.bf16.mxu0 %v600
    %6540 = vmatmul.mubr.bf16.gmra.mxu0 %v599
    %v6541 = vpop.f32.mrf.mxu0
    %v6542 = vadd.f32 %v6381, %v6541
    %v6543 = vpop.f32.mrf.mxu0
    %v6544 = vadd.f32 %v6383, %v6543
    %v6545 = vpop.f32.mrf.mxu0
    %v6546 = vadd.f32 %v6385, %v6545
    %v6547 = vpop.f32.mrf.mxu0
    %v6548 = vadd.f32 %v6387, %v6547
    %6549 = vmatprep.mubr.bf16.mxu0 %v618
    %6550 = vmatmul.mubr.bf16.gmra.mxu0 %v617
    %v6551 = vpop.f32.mrf.mxu0
    %v6552 = vadd.f32 %v6391, %v6551
    %v6553 = vpop.f32.mrf.mxu0
    %v6554 = vadd.f32 %v6393, %v6553
    %v6555 = vpop.f32.mrf.mxu0
    %v6556 = vadd.f32 %v6395, %v6555
    %v6557 = vpop.f32.mrf.mxu0
    %v6558 = vadd.f32 %v6397, %v6557
    %6559 = vmatprep.mubr.bf16.mxu0 %v636
    %6560 = vmatmul.mubr.bf16.gmra.mxu0 %v635
    %v6561 = vpop.f32.mrf.mxu0
    %v6562 = vadd.f32 %v6401, %v6561
    %v6563 = vpop.f32.mrf.mxu0
    %v6564 = vadd.f32 %v6403, %v6563
    %v6565 = vpop.f32.mrf.mxu0
    %v6566 = vadd.f32 %v6405, %v6565
    %v6567 = vpop.f32.mrf.mxu0
    %v6568 = vadd.f32 %v6407, %v6567
    %6569 = vmatprep.mubr.bf16.mxu0 %v654
    %6570 = vmatmul.mubr.bf16.gmra.mxu0 %v653
    %v6571 = vpop.f32.mrf.mxu0
    %v6572 = vadd.f32 %v6411, %v6571
    %v6573 = vpop.f32.mrf.mxu0
    %v6574 = vadd.f32 %v6413, %v6573
    %v6575 = vpop.f32.mrf.mxu0
    %v6576 = vadd.f32 %v6415, %v6575
    %v6577 = vpop.f32.mrf.mxu0
    %v6578 = vadd.f32 %v6417, %v6577
    %6579 = vmatprep.mubr.bf16.mxu0 %v672
    %6580 = vmatmul.mubr.bf16.gmra.mxu0 %v671
    %v6581 = vpop.f32.mrf.mxu0
    %v6582 = vadd.f32 %v6421, %v6581
    %v6583 = vpop.f32.mrf.mxu0
    %v6584 = vadd.f32 %v6423, %v6583
    %v6585 = vpop.f32.mrf.mxu0
    %v6586 = vadd.f32 %v6425, %v6585
    %v6587 = vpop.f32.mrf.mxu0
    %v6588 = vadd.f32 %v6427, %v6587
    %6589 = vmatprep.mubr.bf16.mxu0 %v690
    %6590 = vmatmul.mubr.bf16.gmra.mxu0 %v689
    %v6591 = vpop.f32.mrf.mxu0
    %v6592 = vadd.f32 %v6431, %v6591
    %v6593 = vpop.f32.mrf.mxu0
    %v6594 = vadd.f32 %v6433, %v6593
    %v6595 = vpop.f32.mrf.mxu0
    %v6596 = vadd.f32 %v6435, %v6595
    %v6597 = vpop.f32.mrf.mxu0
    %v6598 = vadd.f32 %v6437, %v6597
    %6599 = vmatprep.mubr.bf16.mxu0 %v708
    %6600 = vmatmul.mubr.bf16.gmra.mxu0 %v707
    %v6601 = vpop.f32.mrf.mxu0
    %v6602 = vadd.f32 %v6441, %v6601
    %v6603 = vpop.f32.mrf.mxu0
    %v6604 = vadd.f32 %v6443, %v6603
    %v6605 = vpop.f32.mrf.mxu0
    %v6606 = vpop.f32.mrf.mxu0
    %6607 = vdwg.mxu0
    %6608 = vmatprep.subr.bf16.mxu0 %v3456
    %6609 = vmatpush1.bf16.msra.mxu0 %v3455
    %6610 = vmatprep.subr.bf16.mxu0 %v3452
    %6611 = vmatpush1.bf16.msra.mxu0 %v3451
    %6612 = vmatprep.subr.bf16.mxu0 %v3448
    %6613 = vmatpush1.bf16.msra.mxu0 %v3447
    %6614 = vmatprep.subr.bf16.mxu0 %v3444
    %6615 = vmatpush1.bf16.msra.mxu0 %v3443
    %6616 = vmatprep.subr.bf16.mxu0 %v3440
    %6617 = vmatpush1.bf16.msra.mxu0 %v3439
    %6618 = vmatprep.subr.bf16.mxu0 %v3436
    %6619 = vmatpush1.bf16.msra.mxu0 %v3435
    %6620 = vmatprep.subr.bf16.mxu0 %v3432
    %6621 = vmatpush1.bf16.msra.mxu0 %v3431
    %6622 = vmatprep.subr.bf16.mxu0 %v3428
    %6623 = vmatpush1.bf16.msra.mxu0 %v3427
    %6624 = vmatprep.subr.bf16.mxu0 %v3488
    %6625 = vmatpush2.bf16.msra.mxu0 %v3487
    %6626 = vmatprep.subr.bf16.mxu0 %v3484
    %6627 = vmatpush2.bf16.msra.mxu0 %v3483
    %6628 = vmatprep.subr.bf16.mxu0 %v3480
    %6629 = vmatpush2.bf16.msra.mxu0 %v3479
    %6630 = vmatprep.subr.bf16.mxu0 %v3476
    %6631 = vmatpush2.bf16.msra.mxu0 %v3475
    %6632 = vmatprep.subr.bf16.mxu0 %v3472
    %6633 = vmatpush2.bf16.msra.mxu0 %v3471
    %6634 = vmatprep.subr.bf16.mxu0 %v3468
    %6635 = vmatpush2.bf16.msra.mxu0 %v3467
    %6636 = vmatprep.subr.bf16.mxu0 %v3464
    %6637 = vmatpush2.bf16.msra.mxu0 %v3463
    %6638 = vmatprep.subr.bf16.mxu0 %v3460
    %6639 = vmatpush2.bf16.msra.mxu0 %v3459
    %6640 = vmatprep.mubr.bf16.mxu0 %v494
    %6641 = vmatmul.mubr.bf16.gmra.mxu0 %v493
    %v6642 = vpop.f32.mrf.mxu0
    %v6643 = vadd.f32 %v6482, %v6642
    %v6644 = vpop.f32.mrf.mxu0
    %v6645 = vadd.f32 %v6484, %v6644
    %v6646 = vpop.f32.mrf.mxu0
    %v6647 = vadd.f32 %v6486, %v6646
    %v6648 = vpop.f32.mrf.mxu0
    %v6649 = vadd.f32 %v6488, %v6648
    %6650 = vmatprep.mubr.bf16.mxu0 %v512
    %6651 = vmatmul.mubr.bf16.gmra.mxu0 %v511
    %v6652 = vpop.f32.mrf.mxu0
    %v6653 = vadd.f32 %v6492, %v6652
    %v6654 = vpop.f32.mrf.mxu0
    %v6655 = vadd.f32 %v6494, %v6654
    %v6656 = vpop.f32.mrf.mxu0
    %v6657 = vadd.f32 %v6496, %v6656
    %v6658 = vpop.f32.mrf.mxu0
    %v6659 = vadd.f32 %v6498, %v6658
    %6660 = vmatprep.mubr.bf16.mxu0 %v530
    %6661 = vmatmul.mubr.bf16.gmra.mxu0 %v529
    %v6662 = vpop.f32.mrf.mxu0
    %v6663 = vadd.f32 %v6502, %v6662
    %v6664 = vpop.f32.mrf.mxu0
    %v6665 = vadd.f32 %v6504, %v6664
    %v6666 = vpop.f32.mrf.mxu0
    %v6667 = vadd.f32 %v6506, %v6666
    %v6668 = vpop.f32.mrf.mxu0
    %v6669 = vadd.f32 %v6508, %v6668
    %6670 = vmatprep.mubr.bf16.mxu0 %v548
    %6671 = vmatmul.mubr.bf16.gmra.mxu0 %v547
    %v6672 = vpop.f32.mrf.mxu0
    %v6673 = vadd.f32 %v6512, %v6672
    %v6674 = vpop.f32.mrf.mxu0
    %v6675 = vadd.f32 %v6514, %v6674
    %v6676 = vpop.f32.mrf.mxu0
    %v6677 = vadd.f32 %v6516, %v6676
    %v6678 = vpop.f32.mrf.mxu0
    %v6679 = vadd.f32 %v6518, %v6678
    %6680 = vmatprep.mubr.bf16.mxu0 %v566
    %6681 = vmatmul.mubr.bf16.gmra.mxu0 %v565
    %v6682 = vpop.f32.mrf.mxu0
    %v6683 = vadd.f32 %v6522, %v6682
    %v6684 = vpop.f32.mrf.mxu0
    %v6685 = vadd.f32 %v6524, %v6684
    %v6686 = vpop.f32.mrf.mxu0
    %v6687 = vadd.f32 %v6526, %v6686
    %v6688 = vpop.f32.mrf.mxu0
    %v6689 = vadd.f32 %v6528, %v6688
    %6690 = vmatprep.mubr.bf16.mxu0 %v584
    %6691 = vmatmul.mubr.bf16.gmra.mxu0 %v583
    %v6692 = vpop.f32.mrf.mxu0
    %v6693 = vadd.f32 %v6532, %v6692
    %v6694 = vpop.f32.mrf.mxu0
    %v6695 = vadd.f32 %v6534, %v6694
    %v6696 = vpop.f32.mrf.mxu0
    %v6697 = vadd.f32 %v6536, %v6696
    %v6698 = vpop.f32.mrf.mxu0
    %v6699 = vadd.f32 %v6538, %v6698
    %6700 = vmatprep.mubr.bf16.mxu0 %v602
    %6701 = vmatmul.mubr.bf16.gmra.mxu0 %v601
    %v6702 = vpop.f32.mrf.mxu0
    %v6703 = vadd.f32 %v6542, %v6702
    %v6704 = vpop.f32.mrf.mxu0
    %v6705 = vadd.f32 %v6544, %v6704
    %v6706 = vpop.f32.mrf.mxu0
    %v6707 = vadd.f32 %v6546, %v6706
    %v6708 = vpop.f32.mrf.mxu0
    %v6709 = vadd.f32 %v6548, %v6708
    %6710 = vmatprep.mubr.bf16.mxu0 %v620
    %6711 = vmatmul.mubr.bf16.gmra.mxu0 %v619
    %v6712 = vpop.f32.mrf.mxu0
    %v6713 = vadd.f32 %v6552, %v6712
    %v6714 = vpop.f32.mrf.mxu0
    %v6715 = vadd.f32 %v6554, %v6714
    %v6716 = vpop.f32.mrf.mxu0
    %v6717 = vadd.f32 %v6556, %v6716
    %v6718 = vpop.f32.mrf.mxu0
    %v6719 = vadd.f32 %v6558, %v6718
    %6720 = vmatprep.mubr.bf16.mxu0 %v638
    %6721 = vmatmul.mubr.bf16.gmra.mxu0 %v637
    %v6722 = vpop.f32.mrf.mxu0
    %v6723 = vadd.f32 %v6562, %v6722
    %v6724 = vpop.f32.mrf.mxu0
    %v6725 = vadd.f32 %v6564, %v6724
    %v6726 = vpop.f32.mrf.mxu0
    %v6727 = vadd.f32 %v6566, %v6726
    %v6728 = vpop.f32.mrf.mxu0
    %v6729 = vadd.f32 %v6568, %v6728
    %6730 = vmatprep.mubr.bf16.mxu0 %v656
    %6731 = vmatmul.mubr.bf16.gmra.mxu0 %v655
    %v6732 = vpop.f32.mrf.mxu0
    %v6733 = vadd.f32 %v6572, %v6732
    %v6734 = vpop.f32.mrf.mxu0
    %v6735 = vadd.f32 %v6574, %v6734
    %v6736 = vpop.f32.mrf.mxu0
    %v6737 = vadd.f32 %v6576, %v6736
    %v6738 = vpop.f32.mrf.mxu0
    %v6739 = vadd.f32 %v6578, %v6738
    %6740 = vmatprep.mubr.bf16.mxu0 %v674
    %6741 = vmatmul.mubr.bf16.gmra.mxu0 %v673
    %v6742 = vpop.f32.mrf.mxu0
    %v6743 = vadd.f32 %v6582, %v6742
    %v6744 = vpop.f32.mrf.mxu0
    %v6745 = vadd.f32 %v6584, %v6744
    %v6746 = vpop.f32.mrf.mxu0
    %v6747 = vadd.f32 %v6586, %v6746
    %v6748 = vpop.f32.mrf.mxu0
    %v6749 = vadd.f32 %v6588, %v6748
    %6750 = vmatprep.mubr.bf16.mxu0 %v692
    %6751 = vmatmul.mubr.bf16.gmra.mxu0 %v691
    %v6752 = vpop.f32.mrf.mxu0
    %v6753 = vadd.f32 %v6592, %v6752
    %v6754 = vpop.f32.mrf.mxu0
    %v6755 = vadd.f32 %v6594, %v6754
    %v6756 = vpop.f32.mrf.mxu0
    %v6757 = vadd.f32 %v6596, %v6756
    %v6758 = vpop.f32.mrf.mxu0
    %v6759 = vadd.f32 %v6598, %v6758
    %6760 = vmatprep.mubr.bf16.mxu0 %v710
    %6761 = vmatmul.mubr.bf16.gmra.mxu0 %v709
    %v6762 = vpop.f32.mrf.mxu0
    %v6763 = vadd.f32 %v6602, %v6762
    %v6764 = vpop.f32.mrf.mxu0
    %v6765 = vadd.f32 %v6604, %v6764
    %v6766 = vpop.f32.mrf.mxu0
    %v6767 = vpop.f32.mrf.mxu0
    %6768 = vdwg.mxu0
    %6769 = vmatprep.subr.bf16.mxu0 %v3520
    %6770 = vmatpush1.bf16.msra.mxu0 %v3519
    %6771 = vmatprep.subr.bf16.mxu0 %v3516
    %6772 = vmatpush1.bf16.msra.mxu0 %v3515
    %6773 = vmatprep.subr.bf16.mxu0 %v3512
    %6774 = vmatpush1.bf16.msra.mxu0 %v3511
    %6775 = vmatprep.subr.bf16.mxu0 %v3508
    %6776 = vmatpush1.bf16.msra.mxu0 %v3507
    %6777 = vmatprep.subr.bf16.mxu0 %v3504
    %6778 = vmatpush1.bf16.msra.mxu0 %v3503
    %6779 = vmatprep.subr.bf16.mxu0 %v3500
    %6780 = vmatpush1.bf16.msra.mxu0 %v3499
    %6781 = vmatprep.subr.bf16.mxu0 %v3496
    %6782 = vmatpush1.bf16.msra.mxu0 %v3495
    %6783 = vmatprep.subr.bf16.mxu0 %v3492
    %6784 = vmatpush1.bf16.msra.mxu0 %v3491
    %6785 = vmatprep.subr.bf16.mxu0 %v3552
    %6786 = vmatpush2.bf16.msra.mxu0 %v3551
    %6787 = vmatprep.subr.bf16.mxu0 %v3548
    %6788 = vmatpush2.bf16.msra.mxu0 %v3547
    %6789 = vmatprep.subr.bf16.mxu0 %v3544
    %6790 = vmatpush2.bf16.msra.mxu0 %v3543
    %6791 = vmatprep.subr.bf16.mxu0 %v3540
    %6792 = vmatpush2.bf16.msra.mxu0 %v3539
    %6793 = vmatprep.subr.bf16.mxu0 %v3536
    %6794 = vmatpush2.bf16.msra.mxu0 %v3535
    %6795 = vmatprep.subr.bf16.mxu0 %v3532
    %6796 = vmatpush2.bf16.msra.mxu0 %v3531
    %6797 = vmatprep.subr.bf16.mxu0 %v3528
    %6798 = vmatpush2.bf16.msra.mxu0 %v3527
    %6799 = vmatprep.subr.bf16.mxu0 %v3524
    %6800 = vmatpush2.bf16.msra.mxu0 %v3523
    %6801 = vmatprep.mubr.bf16.mxu0 %v496
    %6802 = vmatmul.mubr.bf16.gmra.mxu0 %v495
    %v6803 = vpop.f32.mrf.mxu0
    %v6804 = vadd.f32 %v6643, %v6803
    %v6805 = vpop.f32.mrf.mxu0
    %v6806 = vadd.f32 %v6645, %v6805
    %v6807 = vpop.f32.mrf.mxu0
    %v6808 = vadd.f32 %v6647, %v6807
    %v6809 = vpop.f32.mrf.mxu0
    %v6810 = vadd.f32 %v6649, %v6809
    %6811 = vmatprep.mubr.bf16.mxu0 %v514
    %6812 = vmatmul.mubr.bf16.gmra.mxu0 %v513
    %v6813 = vpop.f32.mrf.mxu0
    %v6814 = vadd.f32 %v6653, %v6813
    %v6815 = vpop.f32.mrf.mxu0
    %v6816 = vadd.f32 %v6655, %v6815
    %v6817 = vpop.f32.mrf.mxu0
    %v6818 = vadd.f32 %v6657, %v6817
    %v6819 = vpop.f32.mrf.mxu0
    %v6820 = vadd.f32 %v6659, %v6819
    %6821 = vmatprep.mubr.bf16.mxu0 %v532
    %6822 = vmatmul.mubr.bf16.gmra.mxu0 %v531
    %v6823 = vpop.f32.mrf.mxu0
    %v6824 = vadd.f32 %v6663, %v6823
    %v6825 = vpop.f32.mrf.mxu0
    %v6826 = vadd.f32 %v6665, %v6825
    %v6827 = vpop.f32.mrf.mxu0
    %v6828 = vadd.f32 %v6667, %v6827
    %v6829 = vpop.f32.mrf.mxu0
    %v6830 = vadd.f32 %v6669, %v6829
    %6831 = vmatprep.mubr.bf16.mxu0 %v550
    %6832 = vmatmul.mubr.bf16.gmra.mxu0 %v549
    %v6833 = vpop.f32.mrf.mxu0
    %v6834 = vadd.f32 %v6673, %v6833
    %v6835 = vpop.f32.mrf.mxu0
    %v6836 = vadd.f32 %v6675, %v6835
    %v6837 = vpop.f32.mrf.mxu0
    %v6838 = vadd.f32 %v6677, %v6837
    %v6839 = vpop.f32.mrf.mxu0
    %v6840 = vadd.f32 %v6679, %v6839
    %6841 = vmatprep.mubr.bf16.mxu0 %v568
    %6842 = vmatmul.mubr.bf16.gmra.mxu0 %v567
    %v6843 = vpop.f32.mrf.mxu0
    %v6844 = vadd.f32 %v6683, %v6843
    %v6845 = vpop.f32.mrf.mxu0
    %v6846 = vadd.f32 %v6685, %v6845
    %v6847 = vpop.f32.mrf.mxu0
    %v6848 = vadd.f32 %v6687, %v6847
    %v6849 = vpop.f32.mrf.mxu0
    %v6850 = vadd.f32 %v6689, %v6849
    %6851 = vmatprep.mubr.bf16.mxu0 %v586
    %6852 = vmatmul.mubr.bf16.gmra.mxu0 %v585
    %v6853 = vpop.f32.mrf.mxu0
    %v6854 = vadd.f32 %v6693, %v6853
    %v6855 = vpop.f32.mrf.mxu0
    %v6856 = vadd.f32 %v6695, %v6855
    %v6857 = vpop.f32.mrf.mxu0
    %v6858 = vadd.f32 %v6697, %v6857
    %v6859 = vpop.f32.mrf.mxu0
    %v6860 = vadd.f32 %v6699, %v6859
    %6861 = vmatprep.mubr.bf16.mxu0 %v604
    %6862 = vmatmul.mubr.bf16.gmra.mxu0 %v603
    %v6863 = vpop.f32.mrf.mxu0
    %v6864 = vadd.f32 %v6703, %v6863
    %v6865 = vpop.f32.mrf.mxu0
    %v6866 = vadd.f32 %v6705, %v6865
    %v6867 = vpop.f32.mrf.mxu0
    %v6868 = vadd.f32 %v6707, %v6867
    %v6869 = vpop.f32.mrf.mxu0
    %v6870 = vadd.f32 %v6709, %v6869
    %6871 = vmatprep.mubr.bf16.mxu0 %v622
    %6872 = vmatmul.mubr.bf16.gmra.mxu0 %v621
    %v6873 = vpop.f32.mrf.mxu0
    %v6874 = vadd.f32 %v6713, %v6873
    %v6875 = vpop.f32.mrf.mxu0
    %v6876 = vadd.f32 %v6715, %v6875
    %v6877 = vpop.f32.mrf.mxu0
    %v6878 = vadd.f32 %v6717, %v6877
    %v6879 = vpop.f32.mrf.mxu0
    %v6880 = vadd.f32 %v6719, %v6879
    %6881 = vmatprep.mubr.bf16.mxu0 %v640
    %6882 = vmatmul.mubr.bf16.gmra.mxu0 %v639
    %v6883 = vpop.f32.mrf.mxu0
    %v6884 = vadd.f32 %v6723, %v6883
    %v6885 = vpop.f32.mrf.mxu0
    %v6886 = vadd.f32 %v6725, %v6885
    %v6887 = vpop.f32.mrf.mxu0
    %v6888 = vadd.f32 %v6727, %v6887
    %v6889 = vpop.f32.mrf.mxu0
    %v6890 = vadd.f32 %v6729, %v6889
    %6891 = vmatprep.mubr.bf16.mxu0 %v658
    %6892 = vmatmul.mubr.bf16.gmra.mxu0 %v657
    %v6893 = vpop.f32.mrf.mxu0
    %v6894 = vadd.f32 %v6733, %v6893
    %v6895 = vpop.f32.mrf.mxu0
    %v6896 = vadd.f32 %v6735, %v6895
    %v6897 = vpop.f32.mrf.mxu0
    %v6898 = vadd.f32 %v6737, %v6897
    %v6899 = vpop.f32.mrf.mxu0
    %v6900 = vadd.f32 %v6739, %v6899
    %6901 = vmatprep.mubr.bf16.mxu0 %v676
    %6902 = vmatmul.mubr.bf16.gmra.mxu0 %v675
    %v6903 = vpop.f32.mrf.mxu0
    %v6904 = vadd.f32 %v6743, %v6903
    %v6905 = vpop.f32.mrf.mxu0
    %v6906 = vadd.f32 %v6745, %v6905
    %v6907 = vpop.f32.mrf.mxu0
    %v6908 = vadd.f32 %v6747, %v6907
    %v6909 = vpop.f32.mrf.mxu0
    %v6910 = vadd.f32 %v6749, %v6909
    %6911 = vmatprep.mubr.bf16.mxu0 %v694
    %6912 = vmatmul.mubr.bf16.gmra.mxu0 %v693
    %v6913 = vpop.f32.mrf.mxu0
    %v6914 = vadd.f32 %v6753, %v6913
    %v6915 = vpop.f32.mrf.mxu0
    %v6916 = vadd.f32 %v6755, %v6915
    %v6917 = vpop.f32.mrf.mxu0
    %v6918 = vadd.f32 %v6757, %v6917
    %v6919 = vpop.f32.mrf.mxu0
    %v6920 = vadd.f32 %v6759, %v6919
    %6921 = vmatprep.mubr.bf16.mxu0 %v712
    %6922 = vmatmul.mubr.bf16.gmra.mxu0 %v711
    %v6923 = vpop.f32.mrf.mxu0
    %v6924 = vadd.f32 %v6763, %v6923
    %v6925 = vpop.f32.mrf.mxu0
    %v6926 = vadd.f32 %v6765, %v6925
    %v6927 = vpop.f32.mrf.mxu0
    %v6928 = vpop.f32.mrf.mxu0
    %6929 = vdwg.mxu0
    %6930 = vmatprep.subr.bf16.mxu0 %v3584
    %6931 = vmatpush1.bf16.msra.mxu0 %v3583
    %6932 = vmatprep.subr.bf16.mxu0 %v3580
    %6933 = vmatpush1.bf16.msra.mxu0 %v3579
    %6934 = vmatprep.subr.bf16.mxu0 %v3576
    %6935 = vmatpush1.bf16.msra.mxu0 %v3575
    %6936 = vmatprep.subr.bf16.mxu0 %v3572
    %6937 = vmatpush1.bf16.msra.mxu0 %v3571
    %6938 = vmatprep.subr.bf16.mxu0 %v3568
    %6939 = vmatpush1.bf16.msra.mxu0 %v3567
    %6940 = vmatprep.subr.bf16.mxu0 %v3564
    %6941 = vmatpush1.bf16.msra.mxu0 %v3563
    %6942 = vmatprep.subr.bf16.mxu0 %v3560
    %6943 = vmatpush1.bf16.msra.mxu0 %v3559
    %6944 = vmatprep.subr.bf16.mxu0 %v3556
    %6945 = vmatpush1.bf16.msra.mxu0 %v3555
    %6946 = vmatprep.subr.bf16.mxu0 %v3616
    %6947 = vmatpush2.bf16.msra.mxu0 %v3615
    %6948 = vmatprep.subr.bf16.mxu0 %v3612
    %6949 = vmatpush2.bf16.msra.mxu0 %v3611
    %6950 = vmatprep.subr.bf16.mxu0 %v3608
    %6951 = vmatpush2.bf16.msra.mxu0 %v3607
    %6952 = vmatprep.subr.bf16.mxu0 %v3604
    %6953 = vmatpush2.bf16.msra.mxu0 %v3603
    %6954 = vmatprep.subr.bf16.mxu0 %v3600
    %6955 = vmatpush2.bf16.msra.mxu0 %v3599
    %6956 = vmatprep.subr.bf16.mxu0 %v3596
    %6957 = vmatpush2.bf16.msra.mxu0 %v3595
    %6958 = vmatprep.subr.bf16.mxu0 %v3592
    %6959 = vmatpush2.bf16.msra.mxu0 %v3591
    %6960 = vmatprep.subr.bf16.mxu0 %v3588
    %6961 = vmatpush2.bf16.msra.mxu0 %v3587
    %6962 = vmatprep.mubr.bf16.mxu0 %v498
    %6963 = vmatmul.mubr.bf16.gmra.mxu0 %v497
    %v6964 = vpop.f32.mrf.mxu0
    %v6965 = vadd.f32 %v6804, %v6964
    %v6966 = vpop.f32.mrf.mxu0
    %v6967 = vadd.f32 %v6806, %v6966
    %v6968 = vpop.f32.mrf.mxu0
    %v6969 = vadd.f32 %v6808, %v6968
    %v6970 = vpop.f32.mrf.mxu0
    %v6971 = vadd.f32 %v6810, %v6970
    %6972 = vmatprep.mubr.bf16.mxu0 %v516
    %6973 = vmatmul.mubr.bf16.gmra.mxu0 %v515
    %v6974 = vpop.f32.mrf.mxu0
    %v6975 = vadd.f32 %v6814, %v6974
    %v6976 = vpop.f32.mrf.mxu0
    %v6977 = vadd.f32 %v6816, %v6976
    %v6978 = vpop.f32.mrf.mxu0
    %v6979 = vadd.f32 %v6818, %v6978
    %v6980 = vpop.f32.mrf.mxu0
    %v6981 = vadd.f32 %v6820, %v6980
    %6982 = vmatprep.mubr.bf16.mxu0 %v534
    %6983 = vmatmul.mubr.bf16.gmra.mxu0 %v533
    %v6984 = vpop.f32.mrf.mxu0
    %v6985 = vadd.f32 %v6824, %v6984
    %v6986 = vpop.f32.mrf.mxu0
    %v6987 = vadd.f32 %v6826, %v6986
    %v6988 = vpop.f32.mrf.mxu0
    %v6989 = vadd.f32 %v6828, %v6988
    %v6990 = vpop.f32.mrf.mxu0
    %v6991 = vadd.f32 %v6830, %v6990
    %6992 = vmatprep.mubr.bf16.mxu0 %v552
    %6993 = vmatmul.mubr.bf16.gmra.mxu0 %v551
    %v6994 = vpop.f32.mrf.mxu0
    %v6995 = vadd.f32 %v6834, %v6994
    %v6996 = vpop.f32.mrf.mxu0
    %v6997 = vadd.f32 %v6836, %v6996
    %v6998 = vpop.f32.mrf.mxu0
    %v6999 = vadd.f32 %v6838, %v6998
    %v7000 = vpop.f32.mrf.mxu0
    %v7001 = vadd.f32 %v6840, %v7000
    %7002 = vmatprep.mubr.bf16.mxu0 %v570
    %7003 = vmatmul.mubr.bf16.gmra.mxu0 %v569
    %v7004 = vpop.f32.mrf.mxu0
    %v7005 = vadd.f32 %v6844, %v7004
    %v7006 = vpop.f32.mrf.mxu0
    %v7007 = vadd.f32 %v6846, %v7006
    %v7008 = vpop.f32.mrf.mxu0
    %v7009 = vadd.f32 %v6848, %v7008
    %v7010 = vpop.f32.mrf.mxu0
    %v7011 = vadd.f32 %v6850, %v7010
    %7012 = vmatprep.mubr.bf16.mxu0 %v588
    %7013 = vmatmul.mubr.bf16.gmra.mxu0 %v587
    %v7014 = vpop.f32.mrf.mxu0
    %v7015 = vadd.f32 %v6854, %v7014
    %v7016 = vpop.f32.mrf.mxu0
    %v7017 = vadd.f32 %v6856, %v7016
    %v7018 = vpop.f32.mrf.mxu0
    %v7019 = vadd.f32 %v6858, %v7018
    %v7020 = vpop.f32.mrf.mxu0
    %v7021 = vadd.f32 %v6860, %v7020
    %7022 = vmatprep.mubr.bf16.mxu0 %v606
    %7023 = vmatmul.mubr.bf16.gmra.mxu0 %v605
    %v7024 = vpop.f32.mrf.mxu0
    %v7025 = vadd.f32 %v6864, %v7024
    %v7026 = vpop.f32.mrf.mxu0
    %v7027 = vadd.f32 %v6866, %v7026
    %v7028 = vpop.f32.mrf.mxu0
    %v7029 = vadd.f32 %v6868, %v7028
    %v7030 = vpop.f32.mrf.mxu0
    %v7031 = vadd.f32 %v6870, %v7030
    %7032 = vmatprep.mubr.bf16.mxu0 %v624
    %7033 = vmatmul.mubr.bf16.gmra.mxu0 %v623
    %v7034 = vpop.f32.mrf.mxu0
    %v7035 = vadd.f32 %v6874, %v7034
    %v7036 = vpop.f32.mrf.mxu0
    %v7037 = vadd.f32 %v6876, %v7036
    %v7038 = vpop.f32.mrf.mxu0
    %v7039 = vadd.f32 %v6878, %v7038
    %v7040 = vpop.f32.mrf.mxu0
    %v7041 = vadd.f32 %v6880, %v7040
    %7042 = vmatprep.mubr.bf16.mxu0 %v642
    %7043 = vmatmul.mubr.bf16.gmra.mxu0 %v641
    %v7044 = vpop.f32.mrf.mxu0
    %v7045 = vadd.f32 %v6884, %v7044
    %v7046 = vpop.f32.mrf.mxu0
    %v7047 = vadd.f32 %v6886, %v7046
    %v7048 = vpop.f32.mrf.mxu0
    %v7049 = vadd.f32 %v6888, %v7048
    %v7050 = vpop.f32.mrf.mxu0
    %v7051 = vadd.f32 %v6890, %v7050
    %7052 = vmatprep.mubr.bf16.mxu0 %v660
    %7053 = vmatmul.mubr.bf16.gmra.mxu0 %v659
    %v7054 = vpop.f32.mrf.mxu0
    %v7055 = vadd.f32 %v6894, %v7054
    %v7056 = vpop.f32.mrf.mxu0
    %v7057 = vadd.f32 %v6896, %v7056
    %v7058 = vpop.f32.mrf.mxu0
    %v7059 = vadd.f32 %v6898, %v7058
    %v7060 = vpop.f32.mrf.mxu0
    %v7061 = vadd.f32 %v6900, %v7060
    %7062 = vmatprep.mubr.bf16.mxu0 %v678
    %7063 = vmatmul.mubr.bf16.gmra.mxu0 %v677
    %v7064 = vpop.f32.mrf.mxu0
    %v7065 = vadd.f32 %v6904, %v7064
    %v7066 = vpop.f32.mrf.mxu0
    %v7067 = vadd.f32 %v6906, %v7066
    %v7068 = vpop.f32.mrf.mxu0
    %v7069 = vadd.f32 %v6908, %v7068
    %v7070 = vpop.f32.mrf.mxu0
    %v7071 = vadd.f32 %v6910, %v7070
    %7072 = vmatprep.mubr.bf16.mxu0 %v696
    %7073 = vmatmul.mubr.bf16.gmra.mxu0 %v695
    %v7074 = vpop.f32.mrf.mxu0
    %v7075 = vadd.f32 %v6914, %v7074
    %v7076 = vpop.f32.mrf.mxu0
    %v7077 = vadd.f32 %v6916, %v7076
    %v7078 = vpop.f32.mrf.mxu0
    %v7079 = vadd.f32 %v6918, %v7078
    %v7080 = vpop.f32.mrf.mxu0
    %v7081 = vadd.f32 %v6920, %v7080
    %7082 = vmatprep.mubr.bf16.mxu0 %v714
    %7083 = vmatmul.mubr.bf16.gmra.mxu0 %v713
    %v7084 = vpop.f32.mrf.mxu0
    %v7085 = vadd.f32 %v6924, %v7084
    %v7086 = vpop.f32.mrf.mxu0
    %v7087 = vadd.f32 %v6926, %v7086
    %v7088 = vpop.f32.mrf.mxu0
    %v7089 = vpop.f32.mrf.mxu0
    %7090 = vdwg.mxu0
    %v7091 = vmax.f32 %v5516, 0.0
    %v7092 = vmax.f32 %v5518, 0.0
    %v7093 = vmax.f32 %v6965, 0.0
    %v7094 = vmax.f32 %v6967, 0.0
    %v7095 = vmax.f32 %v5520, 0.0
    %v7096 = vmax.f32 %v5522, 0.0
    %v7097 = vmax.f32 %v6969, 0.0
    %v7098 = vmax.f32 %v6971, 0.0
    %v7099 = vmax.f32 %v5526, 0.0
    %v7100 = vmax.f32 %v5528, 0.0
    %v7101 = vmax.f32 %v6975, 0.0
    %v7102 = vmax.f32 %v6977, 0.0
    %v7103 = vmax.f32 %v5530, 0.0
    %v7104 = vmax.f32 %v5532, 0.0
    %v7105 = vmax.f32 %v6979, 0.0
    %v7106 = vmax.f32 %v6981, 0.0
    %v7107 = vmax.f32 %v5536, 0.0
    %v7108 = vmax.f32 %v5538, 0.0
    %v7109 = vmax.f32 %v6985, 0.0
    %v7110 = vmax.f32 %v6987, 0.0
    %v7111 = vmax.f32 %v5540, 0.0
    %v7112 = vmax.f32 %v5542, 0.0
    %v7113 = vmax.f32 %v6989, 0.0
    %v7114 = vmax.f32 %v6991, 0.0
    %v7115 = vmax.f32 %v5546, 0.0
    %v7116 = vmax.f32 %v5548, 0.0
    %v7117 = vmax.f32 %v6995, 0.0
    %v7118 = vmax.f32 %v6997, 0.0
    %v7119 = vmax.f32 %v5550, 0.0
    %v7120 = vmax.f32 %v5552, 0.0
    %v7121 = vmax.f32 %v6999, 0.0
    %v7122 = vmax.f32 %v7001, 0.0
    %v7123 = vmax.f32 %v5556, 0.0
    %v7124 = vmax.f32 %v5558, 0.0
    %v7125 = vmax.f32 %v7005, 0.0
    %v7126 = vmax.f32 %v7007, 0.0
    %v7127 = vmax.f32 %v5560, 0.0
    %v7128 = vmax.f32 %v5562, 0.0
    %v7129 = vmax.f32 %v7009, 0.0
    %v7130 = vmax.f32 %v7011, 0.0
    %v7131 = vmax.f32 %v5566, 0.0
    %v7132 = vmax.f32 %v5568, 0.0
    %v7133 = vmax.f32 %v7015, 0.0
    %v7134 = vmax.f32 %v7017, 0.0
    %v7135 = vmax.f32 %v5570, 0.0
    %v7136 = vmax.f32 %v5572, 0.0
    %v7137 = vmax.f32 %v7019, 0.0
    %v7138 = vmax.f32 %v7021, 0.0
    %v7139 = vmax.f32 %v5576, 0.0
    %v7140 = vmax.f32 %v5578, 0.0
    %v7141 = vmax.f32 %v7025, 0.0
    %v7142 = vmax.f32 %v7027, 0.0
    %v7143 = vmax.f32 %v5580, 0.0
    %v7144 = vmax.f32 %v5582, 0.0
    %v7145 = vmax.f32 %v7029, 0.0
    %v7146 = vmax.f32 %v7031, 0.0
    %v7147 = vmax.f32 %v5586, 0.0
    %v7148 = vmax.f32 %v5588, 0.0
    %v7149 = vmax.f32 %v7035, 0.0
    %v7150 = vmax.f32 %v7037, 0.0
    %v7151 = vmax.f32 %v5590, 0.0
    %v7152 = vmax.f32 %v5592, 0.0
    %v7153 = vmax.f32 %v7039, 0.0
    %v7154 = vmax.f32 %v7041, 0.0
    %v7155 = vmax.f32 %v5596, 0.0
    %v7156 = vmax.f32 %v5598, 0.0
    %v7157 = vmax.f32 %v7045, 0.0
    %v7158 = vmax.f32 %v7047, 0.0
    %v7159 = vmax.f32 %v5600, 0.0
    %v7160 = vmax.f32 %v5602, 0.0
    %v7161 = vmax.f32 %v7049, 0.0
    %v7162 = vmax.f32 %v7051, 0.0
    %v7163 = vmax.f32 %v5606, 0.0
    %v7164 = vmax.f32 %v5608, 0.0
    %v7165 = vmax.f32 %v7055, 0.0
    %v7166 = vmax.f32 %v7057, 0.0
    %v7167 = vmax.f32 %v5610, 0.0
    %v7168 = vmax.f32 %v5612, 0.0
    %v7169 = vmax.f32 %v7059, 0.0
    %v7170 = vmax.f32 %v7061, 0.0
    %v7171 = vmax.f32 %v5616, 0.0
    %v7172 = vmax.f32 %v5618, 0.0
    %v7173 = vmax.f32 %v7065, 0.0
    %v7174 = vmax.f32 %v7067, 0.0
    %v7175 = vmax.f32 %v5620, 0.0
    %v7176 = vmax.f32 %v5622, 0.0
    %v7177 = vmax.f32 %v7069, 0.0
    %v7178 = vmax.f32 %v7071, 0.0
    %v7179 = vmax.f32 %v5626, 0.0
    %v7180 = vmax.f32 %v5628, 0.0
    %v7181 = vmax.f32 %v7075, 0.0
    %v7182 = vmax.f32 %v7077, 0.0
    %v7183 = vmax.f32 %v5630, 0.0
    %v7184 = vmax.f32 %v5632, 0.0
    %v7185 = vmax.f32 %v7079, 0.0
    %v7186 = vmax.f32 %v7081, 0.0
    %v7187 = vmax.f32 %v5636, 0.0
    %v7188 = vmax.f32 %v5638, 0.0
    %v7189 = vmax.f32 %v7085, 0.0
    %v7190 = vmax.f32 %v7087, 0.0
    %v7191 = vld [vmem:[%s3] sm:$0x3]
    %v7192 = vpack.c.bf16 %v7095, %v7091
    %v7193 = vpack.c.bf16 %v7096, %v7092
    %v7194 = vpack.c.bf16 %v7097, %v7093
    %v7195 = vpack.c.bf16 %v7098, %v7094
    %v7196 = vpack.c.bf16 %v7103, %v7099
    %v7197 = vpack.c.bf16 %v7104, %v7100
    %v7198 = vpack.c.bf16 %v7105, %v7101
    %v7199 = vpack.c.bf16 %v7106, %v7102
    %v7200 = vpack.c.bf16 %v7111, %v7107
    %v7201 = vpack.c.bf16 %v7112, %v7108
    %v7202 = vpack.c.bf16 %v7113, %v7109
    %v7203 = vpack.c.bf16 %v7114, %v7110
    %v7204 = vpack.c.bf16 %v7119, %v7115
    %v7205 = vpack.c.bf16 %v7120, %v7116
    %v7206 = vpack.c.bf16 %v7121, %v7117
    %v7207 = vpack.c.bf16 %v7122, %v7118
    %v7208 = vpack.c.bf16 %v7127, %v7123
    %v7209 = vpack.c.bf16 %v7128, %v7124
    %v7210 = vpack.c.bf16 %v7129, %v7125
    %v7211 = vpack.c.bf16 %v7130, %v7126
    %v7212 = vpack.c.bf16 %v7135, %v7131
    %v7213 = vpack.c.bf16 %v7136, %v7132
    %v7214 = vpack.c.bf16 %v7137, %v7133
    %v7215 = vpack.c.bf16 %v7138, %v7134
    %v7216 = vpack.c.bf16 %v7143, %v7139
    %v7217 = vpack.c.bf16 %v7144, %v7140
    %v7218 = vpack.c.bf16 %v7145, %v7141
    %v7219 = vpack.c.bf16 %v7146, %v7142
    %v7220 = vpack.c.bf16 %v7151, %v7147
    %v7221 = vpack.c.bf16 %v7152, %v7148
    %v7222 = vpack.c.bf16 %v7153, %v7149
    %v7223 = vpack.c.bf16 %v7154, %v7150
    %v7224 = vpack.c.bf16 %v7159, %v7155
    %v7225 = vpack.c.bf16 %v7160, %v7156
    %v7226 = vpack.c.bf16 %v7161, %v7157
    %v7227 = vpack.c.bf16 %v7162, %v7158
    %v7228 = vpack.c.bf16 %v7167, %v7163
    %v7229 = vpack.c.bf16 %v7168, %v7164
    %v7230 = vpack.c.bf16 %v7169, %v7165
    %v7231 = vpack.c.bf16 %v7170, %v7166
    %v7232 = vpack.c.bf16 %v7175, %v7171
    %v7233 = vpack.c.bf16 %v7176, %v7172
    %v7234 = vpack.c.bf16 %v7177, %v7173
    %v7235 = vpack.c.bf16 %v7178, %v7174
    %v7236 = vpack.c.bf16 %v7183, %v7179
    %v7237 = vpack.c.bf16 %v7184, %v7180
    %v7238 = vpack.c.bf16 %v7185, %v7181
    %v7239 = vpack.c.bf16 %v7186, %v7182
    %v7240 = vpack.c.bf16 %v7187, %v7187
    %v7241 = vpack.c.bf16 %v7188, %v7188
    %v7242 = vpack.c.bf16 %v7189, %v7189
    %v7243 = vpack.c.bf16 %v7190, %v7190
    %v7246 = vunpack.c.l.s4 1966171168
    %v7247 = vunpack.c.0.s8 %v7246
    %v7248 = vlaneseq
    %v7249 = vshrl.u32 %v7248, 7
    %v7250 = vsub.s32 %v7247, %v7249
    %v7251 = vrot.slane %v7191, %v7250
    %v7252 = vcombine.high %v7251, %v7251
    %v7254 = vunpack.c.l.s4 1966171168
    %v7255 = vunpack.c.0.s8 %v7254
    %v7256 = vlaneseq
    %v7257 = vshrl.u32 %v7256, 7
    %v7258 = vsub.s32 %v7255, %v7257
    %v7259 = vrot.slane %v7251, %v7258
    %v7261 = vunpack.c.l.s4 1966171168
    %v7262 = vunpack.c.0.s8 %v7261
    %v7263 = vlaneseq
    %v7264 = vshrl.u32 %v7263, 7
    %v7265 = vsub.s32 %v7262, %v7264
    %v7266 = vrot.slane %v7252, %v7265
    %vm7268 = vcmask 588800
    %v7270 = vsel %vm7268, %v7266, 0
    %vm7272 = vcmask 1043456
    %v7274 = vsel %vm7272, %v7240, 0
    %v7277 = vsel %vm7272, %v7241, 0
    %v7280 = vsel %vm7272, %v7242, 0
    %v7283 = vsel %vm7272, %v7243, 0
    %7285 = vmatprep.subr.bf16.mxu0 %v7221
    %7286 = vmatpush1.bf16.msra.mxu0 %v7220
    %7287 = vmatprep.subr.bf16.mxu0 %v7217
    %7288 = vmatpush1.bf16.msra.mxu0 %v7216
    %7289 = vmatprep.subr.bf16.mxu0 %v7213
    %7290 = vmatpush1.bf16.msra.mxu0 %v7212
    %7291 = vmatprep.subr.bf16.mxu0 %v7209
    %7292 = vmatpush1.bf16.msra.mxu0 %v7208
    %7293 = vmatprep.subr.bf16.mxu0 %v7205
    %7294 = vmatpush1.bf16.msra.mxu0 %v7204
    %7295 = vmatprep.subr.bf16.mxu0 %v7201
    %7296 = vmatpush1.bf16.msra.mxu0 %v7200
    %7297 = vmatprep.subr.bf16.mxu0 %v7197
    %7298 = vmatpush1.bf16.msra.mxu0 %v7196
    %7299 = vmatprep.subr.bf16.mxu0 %v7193
    %7300 = vmatpush1.bf16.msra.mxu0 %v7192
    %7301 = vmatprep.subr.bf16.mxu0 0
    %7302 = vmatpush2.bf16.msra.mxu0 0
    %7303 = vmatprep.subr.bf16.mxu0 0
    %7304 = vmatpush2.bf16.msra.mxu0 0
    %7305 = vmatprep.subr.bf16.mxu0 0
    %7306 = vmatpush2.bf16.msra.mxu0 0
    %7307 = vmatprep.subr.bf16.mxu0 %v7277
    %7308 = vmatpush2.bf16.msra.mxu0 %v7274
    %7309 = vmatprep.subr.bf16.mxu0 %v7237
    %7310 = vmatpush2.bf16.msra.mxu0 %v7236
    %7311 = vmatprep.subr.bf16.mxu0 %v7233
    %7312 = vmatpush2.bf16.msra.mxu0 %v7232
    %7313 = vmatprep.subr.bf16.mxu0 %v7229
    %7314 = vmatpush2.bf16.msra.mxu0 %v7228
    %7315 = vmatprep.subr.bf16.mxu0 %v7225
    %7316 = vmatpush2.bf16.msra.mxu0 %v7224
    %7317 = vmatprep.mubr.bf16.mxu0 %v7270
    %7318 = vmatmul.mubr.bf16.gmra.mxu0 %v7259
    %v7319 = vpop.f32.mrf.mxu0
    %v7320 = vadd.f32 0.0, %v7319
    %v7321 = vpop.f32.mrf.mxu0
    %v7322 = vadd.f32 0.0, %v7321
    %v7323 = vpop.f32.mrf.mxu0
    %v7324 = vpop.f32.mrf.mxu0
    %7325 = vdwg.mxu0
    %7326 = vmatprep.subr.bf16.mxu0 %v7223
    %7327 = vmatpush1.bf16.msra.mxu0 %v7222
    %7328 = vmatprep.subr.bf16.mxu0 %v7219
    %7329 = vmatpush1.bf16.msra.mxu0 %v7218
    %7330 = vmatprep.subr.bf16.mxu0 %v7215
    %7331 = vmatpush1.bf16.msra.mxu0 %v7214
    %7332 = vmatprep.subr.bf16.mxu0 %v7211
    %7333 = vmatpush1.bf16.msra.mxu0 %v7210
    %7334 = vmatprep.subr.bf16.mxu0 %v7207
    %7335 = vmatpush1.bf16.msra.mxu0 %v7206
    %7336 = vmatprep.subr.bf16.mxu0 %v7203
    %7337 = vmatpush1.bf16.msra.mxu0 %v7202
    %7338 = vmatprep.subr.bf16.mxu0 %v7199
    %7339 = vmatpush1.bf16.msra.mxu0 %v7198
    %7340 = vmatprep.subr.bf16.mxu0 %v7195
    %7341 = vmatpush1.bf16.msra.mxu0 %v7194
    %7342 = vmatprep.subr.bf16.mxu0 0
    %7343 = vmatpush2.bf16.msra.mxu0 0
    %7344 = vmatprep.subr.bf16.mxu0 0
    %7345 = vmatpush2.bf16.msra.mxu0 0
    %7346 = vmatprep.subr.bf16.mxu0 0
    %7347 = vmatpush2.bf16.msra.mxu0 0
    %7348 = vmatprep.subr.bf16.mxu0 %v7283
    %7349 = vmatpush2.bf16.msra.mxu0 %v7280
    %7350 = vmatprep.subr.bf16.mxu0 %v7239
    %7351 = vmatpush2.bf16.msra.mxu0 %v7238
    %7352 = vmatprep.subr.bf16.mxu0 %v7235
    %7353 = vmatpush2.bf16.msra.mxu0 %v7234
    %7354 = vmatprep.subr.bf16.mxu0 %v7231
    %7355 = vmatpush2.bf16.msra.mxu0 %v7230
    %7356 = vmatprep.subr.bf16.mxu0 %v7227
    %7357 = vmatpush2.bf16.msra.mxu0 %v7226
    %7358 = vmatprep.mubr.bf16.mxu0 %v7270
    %7359 = vmatmul.mubr.bf16.gmra.mxu0 %v7259
    %v7360 = vpop.f32.mrf.mxu0
    %v7361 = vadd.f32 0.0, %v7360
    %v7362 = vpop.f32.mrf.mxu0
    %v7363 = vadd.f32 0.0, %v7362
    %v7364 = vpop.f32.mrf.mxu0
    %v7365 = vpop.f32.mrf.mxu0
    %7366 = vdwg.mxu0
    %v7367 = vpack.c.bf16 %v7320, %v7320
    %v7368 = vpack.c.bf16 %v7322, %v7322
    %v7369 = vpack.c.bf16 %v7361, %v7361
    %v7370 = vpack.c.bf16 %v7363, %v7363
    %v7371 = vld [vmem:[%s4] sm:$0xf]
    %v7372 = vld [vmem:[%s4 + $0x4] sm:$0xf]
    %v7373 = vld [vmem:[%s4 + $0x8] sm:$0xf]
    %v7374 = vld [vmem:[%s4 + $0xc] sm:$0xf]
    %v7375 = vld [vmem:[%s4 + $0x10] sm:$0xf]
    %v7376 = vld [vmem:[%s4 + $0x14] sm:$0xf]
    %v7377 = vld [vmem:[%s4 + $0x18] sm:$0xf]
    %v7378 = vld [vmem:[%s4 + $0x1c] sm:$0xf]
    %v7379 = vld [vmem:[%s4 + $0x20] sm:$0xf]
    %v7380 = vld [vmem:[%s4 + $0x24] sm:$0xf]
    %v7381 = vld [vmem:[%s4 + $0x28] sm:$0xf]
    %v7382 = vld [vmem:[%s4 + $0x2c] sm:$0xf]
    %v7383 = vld [vmem:[%s4 + $0x30] sm:$0xf]
    %v7384 = vld [vmem:[%s4 + $0x34] sm:$0xf]
    %v7385 = vld [vmem:[%s4 + $0x38] sm:$0xf]
    %v7386 = vld [vmem:[%s4 + $0x3c] sm:$0xf]
    %v7387 = vld [vmem:[%s4 + $0x40] sm:$0xf]
    %v7388 = vld [vmem:[%s4 + $0x44] sm:$0xf]
    %v7389 = vld [vmem:[%s4 + $0x48] sm:$0xf]
    %v7390 = vld [vmem:[%s4 + $0x4c] sm:$0xf]
    %v7391 = vld [vmem:[%s4 + $0x50] sm:$0xf]
    %v7392 = vld [vmem:[%s4 + $0x54] sm:$0xf]
    %v7393 = vld [vmem:[%s4 + $0x58] sm:$0xf]
    %v7394 = vld [vmem:[%s4 + $0x5c] sm:$0xf]
    %v7395 = vld [vmem:[%s4 + $0x60] sm:$0xf]
    %v7396 = vld [vmem:[%s4 + $0x64] sm:$0xf]
    %v7397 = vld [vmem:[%s4 + $0x68] sm:$0xf]
    %v7398 = vld [vmem:[%s4 + $0x6c] sm:$0xf]
    %v7399 = vld [vmem:[%s4 + $0x70] sm:$0xf]
    %v7400 = vld [vmem:[%s4 + $0x74] sm:$0xf]
    %v7401 = vld [vmem:[%s4 + $0x78] sm:$0xf]
    %v7402 = vld [vmem:[%s4 + $0x7c] sm:$0xf]
    %v7403 = vld [vmem:[%s4 + $0x80] sm:$0xf]
    %v7404 = vld [vmem:[%s4 + $0x84] sm:$0xf]
    %v7405 = vld [vmem:[%s4 + $0x88] sm:$0xf]
    %v7406 = vld [vmem:[%s4 + $0x8c] sm:$0xf]
    %v7407 = vld [vmem:[%s4 + $0x90] sm:$0xf]
    %v7408 = vld [vmem:[%s4 + $0x94] sm:$0xf]
    %v7409 = vld [vmem:[%s4 + $0x98] sm:$0xf]
    %v7410 = vld [vmem:[%s4 + $0x9c] sm:$0xf]
    %v7411 = vld [vmem:[%s4 + $0xa0] sm:$0xf]
    %v7412 = vld [vmem:[%s4 + $0xa4] sm:$0xf]
    %v7413 = vld [vmem:[%s4 + $0xa8] sm:$0xf]
    %v7414 = vld [vmem:[%s4 + $0xac] sm:$0xf]
    %v7415 = vld [vmem:[%s4 + $0xb0] sm:$0xf]
    %v7416 = vld [vmem:[%s4 + $0xb4] sm:$0xf]
    %v7417 = vld [vmem:[%s4 + $0xb8] sm:$0xf]
    %v7418 = vld [vmem:[%s4 + $0xbc] sm:$0xf]
    %v7419 = vld [vmem:[%s4 + $0xc0] sm:$0xf]
    %v7420 = vld [vmem:[%s4 + $0xc4] sm:$0xf]
    %v7421 = vld [vmem:[%s4 + $0xc8] sm:$0xf]
    %v7422 = vld [vmem:[%s4 + $0xcc] sm:$0xf]
    %v7423 = vld [vmem:[%s4 + $0xd0] sm:$0xf]
    %v7424 = vld [vmem:[%s4 + $0xd4] sm:$0xf]
    %v7425 = vld [vmem:[%s4 + $0xd8] sm:$0xf]
    %v7426 = vld [vmem:[%s4 + $0xdc] sm:$0xf]
    %v7427 = vld [vmem:[%s4 + $0xe0] sm:$0xf]
    %v7428 = vld [vmem:[%s4 + $0xe4] sm:$0xf]
    %v7429 = vld [vmem:[%s4 + $0xe8] sm:$0xf]
    %v7430 = vld [vmem:[%s4 + $0xec] sm:$0xf]
    %v7431 = vld [vmem:[%s4 + $0xf0] sm:$0xf]
    %v7432 = vld [vmem:[%s4 + $0xf4] sm:$0xf]
    %v7433 = vld [vmem:[%s4 + $0xf8] sm:$0xf]
    %v7434 = vld [vmem:[%s4 + $0xfc] sm:$0xf]
    %v7435 = vld [vmem:[%s5] sm:$0x1]
    %v7437 = vlaneseq
    %v7438 = vshrl.u32 %v7437, 7
    %v7439 = vsub.s32 0, %v7438
    %v7440 = vrot.slane %v7435, %v7439
    %v7506 = vunpack.c.l.b16 %v7371
    %v7507 = vunpack.c.l.b16 %v7372
    %v7508 = vunpack.c.l.b16 %v7373
    %v7509 = vunpack.c.l.b16 %v7374
    %v7510 = vunpack.c.l.b16 %v7375
    %v7511 = vunpack.c.l.b16 %v7376
    %v7512 = vunpack.c.l.b16 %v7377
    %v7513 = vunpack.c.l.b16 %v7378
    %v7514 = vunpack.c.l.b16 %v7379
    %v7515 = vunpack.c.l.b16 %v7380
    %v7516 = vunpack.c.l.b16 %v7381
    %v7517 = vunpack.c.l.b16 %v7382
    %v7518 = vunpack.c.l.b16 %v7383
    %v7519 = vunpack.c.l.b16 %v7384
    %v7520 = vunpack.c.l.b16 %v7385
    %v7521 = vunpack.c.l.b16 %v7386
    %v7522 = vunpack.c.l.b16 %v7387
    %v7523 = vunpack.c.l.b16 %v7388
    %v7524 = vunpack.c.l.b16 %v7389
    %v7525 = vunpack.c.l.b16 %v7390
    %v7526 = vunpack.c.l.b16 %v7391
    %v7527 = vunpack.c.l.b16 %v7392
    %v7528 = vunpack.c.l.b16 %v7393
    %v7529 = vunpack.c.l.b16 %v7394
    %v7530 = vunpack.c.l.b16 %v7395
    %v7531 = vunpack.c.l.b16 %v7396
    %v7532 = vunpack.c.l.b16 %v7397
    %v7533 = vunpack.c.l.b16 %v7398
    %v7534 = vunpack.c.l.b16 %v7399
    %v7535 = vunpack.c.l.b16 %v7400
    %v7536 = vunpack.c.l.b16 %v7401
    %v7537 = vunpack.c.l.b16 %v7402
    %v7538 = vunpack.c.l.b16 %v7403
    %v7539 = vunpack.c.l.b16 %v7404
    %v7540 = vunpack.c.l.b16 %v7405
    %v7541 = vunpack.c.l.b16 %v7406
    %v7542 = vunpack.c.l.b16 %v7407
    %v7543 = vunpack.c.l.b16 %v7408
    %v7544 = vunpack.c.l.b16 %v7409
    %v7545 = vunpack.c.l.b16 %v7410
    %v7546 = vunpack.c.l.b16 %v7411
    %v7547 = vunpack.c.l.b16 %v7412
    %v7548 = vunpack.c.l.b16 %v7413
    %v7549 = vunpack.c.l.b16 %v7414
    %v7550 = vunpack.c.l.b16 %v7415
    %v7551 = vunpack.c.l.b16 %v7416
    %v7552 = vunpack.c.l.b16 %v7417
    %v7553 = vunpack.c.l.b16 %v7418
    %v7554 = vunpack.c.l.b16 %v7419
    %v7555 = vunpack.c.l.b16 %v7420
    %v7556 = vunpack.c.l.b16 %v7421
    %v7557 = vunpack.c.l.b16 %v7422
    %v7558 = vunpack.c.l.b16 %v7423
    %v7559 = vunpack.c.l.b16 %v7424
    %v7560 = vunpack.c.l.b16 %v7425
    %v7561 = vunpack.c.l.b16 %v7426
    %v7562 = vunpack.c.l.b16 %v7427
    %v7563 = vunpack.c.l.b16 %v7428
    %v7564 = vunpack.c.l.b16 %v7429
    %v7565 = vunpack.c.l.b16 %v7430
    %v7566 = vunpack.c.l.b16 %v7431
    %v7567 = vunpack.c.l.b16 %v7432
    %v7568 = vunpack.c.l.b16 %v7433
    %v7569 = vunpack.c.l.b16 %v7434
    %v7570 = vpack.c.b16 %v7507, %v7506
    %v7571 = vpack.c.b16 %v7509, %v7508
    %v7572 = vpack.c.b16 %v7511, %v7510
    %v7573 = vpack.c.b16 %v7513, %v7512
    %v7574 = vpack.c.b16 %v7515, %v7514
    %v7575 = vpack.c.b16 %v7517, %v7516
    %v7576 = vpack.c.b16 %v7519, %v7518
    %v7577 = vpack.c.b16 %v7521, %v7520
    %v7578 = vpack.c.b16 %v7523, %v7522
    %v7579 = vpack.c.b16 %v7525, %v7524
    %v7580 = vpack.c.b16 %v7527, %v7526
    %v7581 = vpack.c.b16 %v7529, %v7528
    %v7582 = vpack.c.b16 %v7531, %v7530
    %v7583 = vpack.c.b16 %v7533, %v7532
    %v7584 = vpack.c.b16 %v7535, %v7534
    %v7585 = vpack.c.b16 %v7537, %v7536
    %v7586 = vpack.c.b16 %v7539, %v7538
    %v7587 = vpack.c.b16 %v7541, %v7540
    %v7588 = vpack.c.b16 %v7543, %v7542
    %v7589 = vpack.c.b16 %v7545, %v7544
    %v7590 = vpack.c.b16 %v7547, %v7546
    %v7591 = vpack.c.b16 %v7549, %v7548
    %v7592 = vpack.c.b16 %v7551, %v7550
    %v7593 = vpack.c.b16 %v7553, %v7552
    %v7594 = vpack.c.b16 %v7555, %v7554
    %v7595 = vpack.c.b16 %v7557, %v7556
    %v7596 = vpack.c.b16 %v7559, %v7558
    %v7597 = vpack.c.b16 %v7561, %v7560
    %v7598 = vpack.c.b16 %v7563, %v7562
    %v7599 = vpack.c.b16 %v7565, %v7564
    %v7600 = vpack.c.b16 %v7567, %v7566
    %v7601 = vpack.c.b16 %v7569, %v7568
    %7634 = vmatprep.subr.bf16.mxu0 0
    %7635 = vmatpush1.bf16.msra.mxu0 %v7577
    %7636 = vmatprep.subr.bf16.mxu0 0
    %7637 = vmatpush1.bf16.msra.mxu0 %v7576
    %7638 = vmatprep.subr.bf16.mxu0 0
    %7639 = vmatpush1.bf16.msra.mxu0 %v7575
    %7640 = vmatprep.subr.bf16.mxu0 0
    %7641 = vmatpush1.bf16.msra.mxu0 %v7574
    %7642 = vmatprep.subr.bf16.mxu0 0
    %7643 = vmatpush1.bf16.msra.mxu0 %v7573
    %7644 = vmatprep.subr.bf16.mxu0 0
    %7645 = vmatpush1.bf16.msra.mxu0 %v7572
    %7646 = vmatprep.subr.bf16.mxu0 0
    %7647 = vmatpush1.bf16.msra.mxu0 %v7571
    %7648 = vmatprep.subr.bf16.mxu0 0
    %7649 = vmatpush1.bf16.msra.mxu0 %v7570
    %7650 = vmatprep.subr.bf16.mxu0 0
    %7651 = vmatpush2.bf16.msra.mxu0 %v7585
    %7652 = vmatprep.subr.bf16.mxu0 0
    %7653 = vmatpush2.bf16.msra.mxu0 %v7584
    %7654 = vmatprep.subr.bf16.mxu0 0
    %7655 = vmatpush2.bf16.msra.mxu0 %v7583
    %7656 = vmatprep.subr.bf16.mxu0 0
    %7657 = vmatpush2.bf16.msra.mxu0 %v7582
    %7658 = vmatprep.subr.bf16.mxu0 0
    %7659 = vmatpush2.bf16.msra.mxu0 %v7581
    %7660 = vmatprep.subr.bf16.mxu0 0
    %7661 = vmatpush2.bf16.msra.mxu0 %v7580
    %7662 = vmatprep.subr.bf16.mxu0 0
    %7663 = vmatpush2.bf16.msra.mxu0 %v7579
    %7664 = vmatprep.subr.bf16.mxu0 0
    %7665 = vmatpush2.bf16.msra.mxu0 %v7578
    %7666 = vmatprep.mubr.bf16.mxu0 %v7368
    %7667 = vmatmul.mubr.bf16.gmra.mxu0 %v7367
    %v7668 = vpop.f32.mrf.mxu0
    %v7669 = vadd.f32 %v7440, %v7668
    %v7670 = vpop.f32.mrf.mxu0
    %v7671 = vpop.f32.mrf.mxu0
    %v7672 = vpop.f32.mrf.mxu0
    %7673 = vdwg.mxu0
    %7674 = vmatprep.subr.bf16.mxu0 0
    %7675 = vmatpush1.bf16.msra.mxu0 %v7593
    %7676 = vmatprep.subr.bf16.mxu0 0
    %7677 = vmatpush1.bf16.msra.mxu0 %v7592
    %7678 = vmatprep.subr.bf16.mxu0 0
    %7679 = vmatpush1.bf16.msra.mxu0 %v7591
    %7680 = vmatprep.subr.bf16.mxu0 0
    %7681 = vmatpush1.bf16.msra.mxu0 %v7590
    %7682 = vmatprep.subr.bf16.mxu0 0
    %7683 = vmatpush1.bf16.msra.mxu0 %v7589
    %7684 = vmatprep.subr.bf16.mxu0 0
    %7685 = vmatpush1.bf16.msra.mxu0 %v7588
    %7686 = vmatprep.subr.bf16.mxu0 0
    %7687 = vmatpush1.bf16.msra.mxu0 %v7587
    %7688 = vmatprep.subr.bf16.mxu0 0
    %7689 = vmatpush1.bf16.msra.mxu0 %v7586
    %7690 = vmatprep.subr.bf16.mxu0 0
    %7691 = vmatpush2.bf16.msra.mxu0 %v7601
    %7692 = vmatprep.subr.bf16.mxu0 0
    %7693 = vmatpush2.bf16.msra.mxu0 %v7600
    %7694 = vmatprep.subr.bf16.mxu0 0
    %7695 = vmatpush2.bf16.msra.mxu0 %v7599
    %7696 = vmatprep.subr.bf16.mxu0 0
    %7697 = vmatpush2.bf16.msra.mxu0 %v7598
    %7698 = vmatprep.subr.bf16.mxu0 0
    %7699 = vmatpush2.bf16.msra.mxu0 %v7597
    %7700 = vmatprep.subr.bf16.mxu0 0
    %7701 = vmatpush2.bf16.msra.mxu0 %v7596
    %7702 = vmatprep.subr.bf16.mxu0 0
    %7703 = vmatpush2.bf16.msra.mxu0 %v7595
    %7704 = vmatprep.subr.bf16.mxu0 0
    %7705 = vmatpush2.bf16.msra.mxu0 %v7594
    %7706 = vmatprep.mubr.bf16.mxu0 %v7370
    %7707 = vmatmul.mubr.bf16.gmra.mxu0 %v7369
    %v7708 = vpop.f32.mrf.mxu0
    %v7709 = vadd.f32 %v7669, %v7708
    %v7710 = vpop.f32.mrf.mxu0
    %v7711 = vpop.f32.mrf.mxu0
    %v7712 = vpop.f32.mrf.mxu0
    %7713 = vdwg.mxu0
    %v7714 = vpack.c.bf16 %v7709, %v7709
    %v7715 = vld [vmem:[%s6] sm:$0xf]
    %v7716 = vld [vmem:[%s6 + $0x4] sm:$0xf]
    %v7717 = vld [vmem:[%s6 + $0x8] sm:$0xf]
    %v7718 = vld [vmem:[%s6 + $0xc] sm:$0xf]
    %v7719 = vld [vmem:[%s7] sm:$0x1]
    %v7721 = vlaneseq
    %v7722 = vshrl.u32 %v7721, 7
    %v7723 = vsub.s32 0, %v7722
    %v7724 = vrot.slane %v7719, %v7723
    %v7730 = vunpack.c.l.b16 %v7715
    %v7731 = vunpack.c.l.b16 %v7716
    %v7732 = vunpack.c.l.b16 %v7717
    %v7733 = vunpack.c.l.b16 %v7718
    %v7734 = vpack.c.b16 %v7731, %v7730
    %v7735 = vpack.c.b16 %v7733, %v7732
    %vm7738 = vcmask 261120
    %v7740 = vsel %vm7738, %v7714, 0
    %7742 = vmatprep.subr.bf16.mxu0 0
    %7743 = vmatpush1.bf16.msra.mxu0 0
    %7744 = vmatprep.subr.bf16.mxu0 0
    %7745 = vmatpush1.bf16.msra.mxu0 0
    %7746 = vmatprep.subr.bf16.mxu0 0
    %7747 = vmatpush1.bf16.msra.mxu0 0
    %7748 = vmatprep.subr.bf16.mxu0 0
    %7749 = vmatpush1.bf16.msra.mxu0 0
    %7750 = vmatprep.subr.bf16.mxu0 0
    %7751 = vmatpush1.bf16.msra.mxu0 0
    %7752 = vmatprep.subr.bf16.mxu0 0
    %7753 = vmatpush1.bf16.msra.mxu0 0
    %7754 = vmatprep.subr.bf16.mxu0 0
    %7755 = vmatpush1.bf16.msra.mxu0 %v7735
    %7756 = vmatprep.subr.bf16.mxu0 0
    %7757 = vmatpush1.bf16.msra.mxu0 %v7734
    %7758 = vmatprep.subr.bf16.mxu0 0
    %7759 = vmatpush2.bf16.msra.mxu0 0
    %7760 = vmatprep.subr.bf16.mxu0 0
    %7761 = vmatpush2.bf16.msra.mxu0 0
    %7762 = vmatprep.subr.bf16.mxu0 0
    %7763 = vmatpush2.bf16.msra.mxu0 0
    %7764 = vmatprep.subr.bf16.mxu0 0
    %7765 = vmatpush2.bf16.msra.mxu0 0
    %7766 = vmatprep.subr.bf16.mxu0 0
    %7767 = vmatpush2.bf16.msra.mxu0 0
    %7768 = vmatprep.subr.bf16.mxu0 0
    %7769 = vmatpush2.bf16.msra.mxu0 0
    %7770 = vmatprep.subr.bf16.mxu0 0
    %7771 = vmatpush2.bf16.msra.mxu0 0
    %7772 = vmatprep.subr.bf16.mxu0 0
    %7773 = vmatpush2.bf16.msra.mxu0 0
    %7774 = vmatprep.mubr.bf16.mxu0 0
    %7775 = vmatmul.mubr.bf16.gmra.mxu0 %v7740
    %v7776 = vpop.f32.mrf.mxu0
    %v7777 = vadd.f32 %v7724, %v7776
    %v7778 = vpop.f32.mrf.mxu0
    %v7779 = vpop.f32.mrf.mxu0
    %v7780 = vpop.f32.mrf.mxu0
    %7781 = vdwg.mxu0
    %vm7782 = vcmask 74752
    %7783 = vst.msk [vmem:[#allocation2] sm:$0x3] %vm7782, %v7777
    // Predicated region
    $region34: #{mynet_forward.7} parent=1 // pred_check
      _
    $region35: #{mynet_forward.7} parent=1 // pred_check_branch
      %7785 = sbr.rel (0) target = $region37
    $region36: #{mynet_forward.7} parent=1 // pred_region
      %s7787 = ssub.s32 32, 32
      %7788 = vsyncadd [#allocation3], %s7787
      %s7790 = sshll.u32 [#allocation2], 4
      %s7791 = int_to_ptr.vmem [resolvable:$true] %s7790
      %7793 = dma.vmem_to_hbm [thread:$0]  %s7791, 32, %s8, [#allocation3]
    $region37: #{mynet_forward.7} parent=1 // pred_fallthru
      _
    // Predicated region
    $region38: #{mynet_forward.7} parent=1 // pred_check
      _
    $region39: #{mynet_forward.7} parent=1 // pred_check_branch
      %7795 = sbr.rel (0) target = $region41
    $region40: #{mynet_forward.7} parent=1 // pred_region
      %7796 = dma.done [#allocation3], 32
    $region41: #{mynet_forward.7} parent=1 // pred_fallthru
      _
    %7797 = vsyncpa [#allocation3], 1

</llo_original>
